<compile_context>
chip_gen: v7x
topology: tpu7x:2x2x1
jax: 0.10.0
libtpu: 0.0.40
codegen_flags: <defaults>
</compile_context>

<pallas_src>
import math
import functools

import jax
import jax.numpy as jnp
from jax.experimental import pallas as pl
from jax.experimental.pallas import tpu as pltpu

# Module hyper-parameters (module defaults are depth=5, capacity_base=64;
# kept small here so the demo stays tiny — same code path / semantics).
DEPTH = 3
CAPACITY_BASE = 16
NUM_HEADS = 8

# Storage dtype for weights / precomputed K,V.  f32 keeps the exactness check
# tight in this demo; use jnp.bfloat16 on v6e/v7x at production dims.
PARAM_DTYPE = jnp.float32

LANE = 128
NEG_INF = -1e30  # additive mask constant (stays in the f32 score tensor)


# ----------------------------------------------------------------------------
# Fused kernel: all scale levels, all heads, one query-row tile per grid step.
# ----------------------------------------------------------------------------
def _fractal_fused_kernel(x_ref, wq_ref, bq_ref, wf_ref, bf_ref, *rest,
                          num_heads, depth):
    o_ref = rest[-1]
    lvl_refs = rest[:-1]                    # (kT_0, v_0, mask_0, kT_1, ...)
    tT, D = x_ref.shape                     # tT = query-row tile
    hd = D // num_heads
    f32 = jnp.float32

    def attend(y, lvl):
        """processor(out_proj(MHA(y, mem_lvl, mem_lvl))) with fused weights."""
        kT_ref, v_ref, mask_ref = lvl_refs[3 * lvl:3 * lvl + 3]

        # Full-width Q projection: ONE (tT,D)@(D,D) MXU matmul, 1/sqrt(hd)
        # pre-folded into the weight/bias.
        q = jnp.dot(y, wq_ref[lvl], preferred_element_type=f32) + bq_ref[lvl]

        kT = kT_ref[...]                    # (D, Mp_l)   precomputed K^T
        v = v_ref[...]                      # (Mp_l, D)   precomputed V
        mask = mask_ref[...]                # (1, Mp_l)   additive 0 / -1e30

        ctx_parts = []
        for h in range(num_heads):          # static unroll; per-head slices
            lo = h * hd
            qh = q[:, lo:lo + hd]                                    # (tT, hd)
            s = jnp.dot(qh, kT[lo:lo + hd, :],
                        preferred_element_type=f32) + mask           # (tT, Mp)
            # Softmax in f32; reciprocal goes to the EUP slot.
            s = s - jnp.max(s, axis=-1, keepdims=True)
            p = jnp.exp(s)
            p = p * pl.reciprocal(jnp.sum(p, axis=-1, keepdims=True),
                                  approx=True)
            ctx_parts.append(jnp.dot(p, v[:, lo:lo + hd],
                                     preferred_element_type=f32))    # (tT, hd)

        # Heads concatenated along lanes -> one full (tT,D)@(D,D) matmul with
        # the fused (Wo @ Wp) weight; head reduction happens inside the MXU
        # contraction (no (H,T,D) intermediate, no VALU sum).
        ctx = jnp.concatenate(ctx_parts, axis=-1)                     # (tT, D)
        return jnp.dot(ctx, wf_ref[lvl],
                       preferred_element_type=f32) + bf_ref[lvl]      # (tT, D)

    def recurse(y, lvl):
        a = attend(y, lvl)
        if lvl < depth - 1:
            a = recurse(a, lvl + 1)
        return y + a                        # residual, matches the module

    o_ref[...] = recurse(x_ref[...].astype(f32), 0).astype(o_ref.dtype)


# ----------------------------------------------------------------------------
# Wrapper
# ----------------------------------------------------------------------------
def _vmem_limit_bytes():
    """Generation-aware scoped-VMEM cap (v5e/v6e 128 MiB, v7x 64 MiB phys)."""
    try:
        phys = pltpu.get_tpu_info().vmem_capacity_bytes
    except Exception:
        phys = 128 * 1024 * 1024
    return int(min(phys * 3 // 4, 100 * 1024 * 1024))


def fractal_forward(x, wq_s, bq_s, wf_s, bf_s, level_arrays, *,
                    num_heads=NUM_HEADS, tile_rows=256):
    """Full FractalMemoryBank forward in one pallas_call with a row-tile grid."""
    B, N, D = x.shape
    T = B * N
    x2 = x.reshape(T, D)                    # rows are independent

    depth = wq_s.shape[0]
    assert len(level_arrays) == depth

    tT = min(tile_rows, T)
    assert T % tT == 0 and tT % 8 == 0, "row tile must divide T and be 8-aligned"
    grid = (T // tT,)

    flat_levels = [a for lvl in level_arrays for a in lvl]

    def resident_spec(a):                   # constant block index -> stays in VMEM
        zeros = (0,) * a.ndim
        return pl.BlockSpec(a.shape, lambda i, z=zeros: z)

    in_specs = ([pl.BlockSpec((tT, D), lambda i: (i, 0))]
                + [resident_spec(a) for a in (wq_s, bq_s, wf_s, bf_s)]
                + [resident_spec(a) for a in flat_levels])
    out_spec = pl.BlockSpec((tT, D), lambda i: (i, 0))

    # Advisory cost estimate for the XLA scheduler.
    mp_list = [int(lvl[1].shape[0]) for lvl in level_arrays]   # padded rows / lvl
    flops = int(sum(4 * T * D * D + 4 * T * D * mp for mp in mp_list))
    transcendentals = int(sum(num_heads * T * mp for mp in mp_list))
    bytes_accessed = int(4 * (2 * T * D
                              + 2 * depth * D * D + 2 * depth * D
                              + sum(2 * mp * D + mp for mp in mp_list)))

    kernel = functools.partial(_fractal_fused_kernel,
                               num_heads=num_heads, depth=depth)

    out = pl.pallas_call(
        kernel,
        out_shape=jax.ShapeDtypeStruct((T, D), x.dtype),
        grid=grid,
        in_specs=in_specs,
        out_specs=out_spec,
        compiler_params=pltpu.CompilerParams(
            dimension_semantics=("parallel",),
            vmem_limit_bytes=_vmem_limit_bytes()),
        cost_estimate=pl.CostEstimate(flops=flops,
                                      transcendentals=transcendentals,
                                      bytes_accessed=bytes_accessed),
    )(x2, wq_s, bq_s, wf_s, bf_s, *flat_levels)
    return out.reshape(B, N, D)


def prepare_params(level_params, mems, num_heads, dtype=PARAM_DTYPE):
    """Offline exact fusions:
       - fold 1/sqrt(hd) attention scale into Wq / bq,
       - collapse out_proj + NdLinear processor: Wf = Wo @ Wp, bf = bo @ Wp + bp,
       - precompute the constant K / V projections of each memory bank,
       - pad each level to its OWN multiple of 128 rows and build the additive
         (0 / -1e30) softmax mask for the padded slots."""
    wq_l, bq_l, wf_l, bf_l, levels = [], [], [], [], []
    for (wq, bq, wk, bk, wv, bv, wo, bo, wp, bp), mem in zip(level_params, mems):
        d = wq.shape[0]
        assert d % num_heads == 0
        hd = d // num_heads
        scale = 1.0 / math.sqrt(hd)

        wq_l.append(wq * scale)                       # scale folded (exact)
        bq_l.append(bq * scale)
        wf_l.append(wo @ wp)                          # exact affine fuse
        bf_l.append(bo @ wp + bp)

        m = mem.shape[0]
        mp = max(LANE, -(-m // LANE) * LANE)          # per-level lane-dense pad
        k = mem @ wk + bk                             # (m, d) constant K
        v = mem @ wv + bv                             # (m, d) constant V
        k = jnp.pad(k, ((0, mp - m), (0, 0)))
        v = jnp.pad(v, ((0, mp - m), (0, 0)))
        mask = jnp.where(jnp.arange(mp) < m, 0.0, NEG_INF).reshape(1, mp)
        levels.append((jnp.asarray(k.T, dtype),       # (d, mp)  K^T, lane-dense
                       jnp.asarray(v, dtype),         # (mp, d)  V, lane-dense
                       jnp.asarray(mask, jnp.float32)))  # mask stays f32

    stack = lambda xs: jnp.stack(xs, axis=0).astype(dtype)
    return stack(wq_l), stack(bq_l), stack(wf_l), stack(bf_l), levels


def init_params(key, dim, depth, capacity_base):
    """Deterministic parameter init (memory banks + per-level MHA/processor)."""
    mems, level_params = [], []
    for i in range(depth):
        key, *ks = jax.random.split(key, 12)
        m = capacity_base * (2 ** i)
        mems.append(jax.random.normal(ks[0], (m, dim), jnp.float32))
        w = lambda k: jax.random.normal(k, (dim, dim), jnp.float32) / math.sqrt(dim)
        b = lambda k: jax.random.normal(k, (1, dim), jnp.float32) * 0.01
        level_params.append((w(ks[1]), b(ks[2]),      # Wq, bq
                             w(ks[3]), b(ks[4]),      # Wk, bk
                             w(ks[5]), b(ks[6]),      # Wv, bv
                             w(ks[7]), b(ks[8]),      # Wo, bo
                             w(ks[9]), b(ks[10])))    # processor W, b
    return mems, level_params


# ----------------------------------------------------------------------------
# Plain-JAX reference (mirrors the PyTorch module) for a correctness check.
# ----------------------------------------------------------------------------
def reference_forward(x, mems, level_params, num_heads=NUM_HEADS, level=0):
    if level >= len(mems):
        return x
    wq, bq, wk, bk, wv, bv, wo, bo, wp, bp = level_params[level]
    B, N, D = x.shape
    hd = D // num_heads
    mem = mems[level]
    q = x @ wq + bq
    k = mem @ wk + bk
    v = mem @ wv + bv
    qh = q.reshape(B, N, num_heads, hd).transpose(0, 2, 1, 3)
    kh = k.reshape(-1, num_heads, hd).transpose(1, 0, 2)
    vh = v.reshape(-1, num_heads, hd).transpose(1, 0, 2)
    s = jnp.einsum('bhnd,hmd->bhnm', qh, kh) / math.sqrt(hd)
    p = jax.nn.softmax(s, axis=-1)
    ctx = jnp.einsum('bhnm,hmd->bhnd', p, vh).transpose(0, 2, 1, 3).reshape(B, N, D)
    attended = (ctx @ wo + bo) @ wp + bp
    if level < len(mems) - 1:
        attended = reference_forward(attended, mems, level_params, num_heads, level + 1)
    return x + attended


if __name__ == "__main__":
    # batch=2, seq=8, dim=128 (8 heads -> head_dim=16; lane-dense last dim).
    B, N, D = 2, 8, 128

    key = jax.random.PRNGKey(0)
    k_x, k_p = jax.random.split(key)
    x = jax.random.normal(k_x, (B, N, D), jnp.float32)

    mems, level_params = init_params(k_p, D, DEPTH, CAPACITY_BASE)
    wq_s, bq_s, wf_s, bf_s, levels = prepare_params(level_params, mems, NUM_HEADS)

    fwd = jax.jit(functools.partial(fractal_forward,
                                    num_heads=NUM_HEADS, tile_rows=8))
    out = fwd(x, wq_s, bq_s, wf_s, bf_s, levels)
    jax.block_until_ready(out)

    assert out.shape == (B, N, D) and out.dtype == jnp.float32
    ref = reference_forward(x, mems, level_params)
    err = float(jnp.max(jnp.abs(out - ref)))
    assert err < 2e-2, f"mismatch vs reference: max abs err {err}"
    print("KERNEL_OK")
</pallas_src>

<mosaic_0001>
module attributes {stable_mosaic.version = 11 : i64} {
  func.func @_fractal_fused_kernel(%arg0: i32, %arg1: memref<8x128xf32, #tpu.memory_space<vmem>>, %arg2: memref<3x128x128xf32, #tpu.memory_space<vmem>>, %arg3: memref<3x1x128xf32, #tpu.memory_space<vmem>>, %arg4: memref<3x128x128xf32, #tpu.memory_space<vmem>>, %arg5: memref<3x1x128xf32, #tpu.memory_space<vmem>>, %arg6: memref<128x128xf32, #tpu.memory_space<vmem>>, %arg7: memref<128x128xf32, #tpu.memory_space<vmem>>, %arg8: memref<1x128xf32, #tpu.memory_space<vmem>>, %arg9: memref<128x128xf32, #tpu.memory_space<vmem>>, %arg10: memref<128x128xf32, #tpu.memory_space<vmem>>, %arg11: memref<1x128xf32, #tpu.memory_space<vmem>>, %arg12: memref<128x128xf32, #tpu.memory_space<vmem>>, %arg13: memref<128x128xf32, #tpu.memory_space<vmem>>, %arg14: memref<1x128xf32, #tpu.memory_space<vmem>>, %arg15: memref<8x128xf32, #tpu.memory_space<vmem>>) attributes {dimension_semantics = [#tpu.dimension_semantics<parallel>], iteration_bounds = array<i64: 2>, scalar_prefetch = 0 : i64, scratch_operands = 0 : i64, tpu.core_type = #tpu.core_type<tc>, window_params = [{transform_indices = @transform_0, window_bounds = array<i64: 8, 128>}, {pipeline_mode = #tpu.pipeline_mode<synchronous>, transform_indices = @transform_1, window_bounds = array<i64: 3, 128, 128>}, {pipeline_mode = #tpu.pipeline_mode<synchronous>, transform_indices = @transform_2, window_bounds = array<i64: 3, 1, 128>}, {pipeline_mode = #tpu.pipeline_mode<synchronous>, transform_indices = @transform_3, window_bounds = array<i64: 3, 128, 128>}, {pipeline_mode = #tpu.pipeline_mode<synchronous>, transform_indices = @transform_4, window_bounds = array<i64: 3, 1, 128>}, {pipeline_mode = #tpu.pipeline_mode<synchronous>, transform_indices = @transform_5, window_bounds = array<i64: 128, 128>}, {pipeline_mode = #tpu.pipeline_mode<synchronous>, transform_indices = @transform_6, window_bounds = array<i64: 128, 128>}, {pipeline_mode = #tpu.pipeline_mode<synchronous>, transform_indices = @transform_7, window_bounds = array<i64: 1, 128>}, {pipeline_mode = #tpu.pipeline_mode<synchronous>, transform_indices = @transform_8, window_bounds = array<i64: 128, 128>}, {pipeline_mode = #tpu.pipeline_mode<synchronous>, transform_indices = @transform_9, window_bounds = array<i64: 128, 128>}, {pipeline_mode = #tpu.pipeline_mode<synchronous>, transform_indices = @transform_10, window_bounds = array<i64: 1, 128>}, {pipeline_mode = #tpu.pipeline_mode<synchronous>, transform_indices = @transform_11, window_bounds = array<i64: 128, 128>}, {pipeline_mode = #tpu.pipeline_mode<synchronous>, transform_indices = @transform_12, window_bounds = array<i64: 128, 128>}, {pipeline_mode = #tpu.pipeline_mode<synchronous>, transform_indices = @transform_13, window_bounds = array<i64: 1, 128>}, {transform_indices = @transform_14, window_bounds = array<i64: 8, 128>}]} {
    %c0 = arith.constant 0 : index
    %c0_0 = arith.constant 0 : index
    %0 = vector.load %arg1[%c0, %c0_0] : memref<8x128xf32, #tpu.memory_space<vmem>>, vector<8x128xf32>
    %c0_1 = arith.constant 0 : index
    %c0_2 = arith.constant 0 : index
    %c0_3 = arith.constant 0 : index
    %1 = vector.load %arg2[%c0_1, %c0_2, %c0_3] : memref<3x128x128xf32, #tpu.memory_space<vmem>>, vector<1x128x128xf32>
    %2 = vector.shape_cast %1 : vector<1x128x128xf32> to vector<128x128xf32>
    %cst = arith.constant dense<0.000000e+00> : vector<8x128xf32>
    %3 = tpu.matmul %0, %2, %cst {dimension_numbers = #tpu.dot_dimension_numbers<[1], [0], [0], [1], [0, 0, 1, 1], [], []>} : vector<8x128xf32>, vector<128x128xf32>, vector<8x128xf32> -> vector<8x128xf32>
    %c0_4 = arith.constant 0 : index
    %c0_5 = arith.constant 0 : index
    %c0_6 = arith.constant 0 : index
    %4 = vector.load %arg3[%c0_4, %c0_5, %c0_6] : memref<3x1x128xf32, #tpu.memory_space<vmem>>, vector<1x1x128xf32>
    %5 = vector.shape_cast %4 : vector<1x1x128xf32> to vector<1x128xf32>
    %6 = vector.broadcast %5 : vector<1x128xf32> to vector<8x128xf32>
    %7 = arith.addf %3, %6 : vector<8x128xf32>
    %c0_7 = arith.constant 0 : index
    %c0_8 = arith.constant 0 : index
    %8 = vector.load %arg6[%c0_7, %c0_8] : memref<128x128xf32, #tpu.memory_space<vmem>>, vector<128x128xf32>
    %c0_9 = arith.constant 0 : index
    %c0_10 = arith.constant 0 : index
    %9 = vector.load %arg7[%c0_9, %c0_10] : memref<128x128xf32, #tpu.memory_space<vmem>>, vector<128x128xf32>
    %c0_11 = arith.constant 0 : index
    %c0_12 = arith.constant 0 : index
    %10 = vector.load %arg8[%c0_11, %c0_12] : memref<1x128xf32, #tpu.memory_space<vmem>>, vector<1x128xf32>
    %11 = vector.extract_strided_slice %7 {offsets = [0, 0], sizes = [8, 16], strides = [1, 1]} : vector<8x128xf32> to vector<8x16xf32>
    %12 = vector.extract_strided_slice %8 {offsets = [0, 0], sizes = [16, 128], strides = [1, 1]} : vector<128x128xf32> to vector<16x128xf32>
    %cst_13 = arith.constant dense<0.000000e+00> : vector<8x128xf32>
    %13 = tpu.matmul %11, %12, %cst_13 {dimension_numbers = #tpu.dot_dimension_numbers<[1], [0], [0], [1], [0, 0, 1, 1], [], []>} : vector<8x16xf32>, vector<16x128xf32>, vector<8x128xf32> -> vector<8x128xf32>
    %14 = vector.broadcast %10 : vector<1x128xf32> to vector<8x128xf32>
    %15 = arith.addf %13, %14 : vector<8x128xf32>
    %cst_14 = arith.constant dense<0xFF800000> : vector<8xf32>
    %16 = vector.multi_reduction <maximumf>, %15, %cst_14 [1] : vector<8x128xf32> to vector<8xf32>
    %17 = vector.shape_cast %16 : vector<8xf32> to vector<8x1xf32>
    %18 = vector.broadcast %17 : vector<8x1xf32> to vector<8x128xf32>
    %19 = arith.subf %15, %18 : vector<8x128xf32>
    %20 = math.exp %19 : vector<8x128xf32>
    %cst_15 = arith.constant dense<0.000000e+00> : vector<8xf32>
    %21 = vector.multi_reduction <add>, %20, %cst_15 [1] : vector<8x128xf32> to vector<8xf32>
    %22 = vector.shape_cast %21 : vector<8xf32> to vector<8x1xf32>
    %23 = tpu.reciprocal %22 {approx = true} : vector<8x1xf32> -> vector<8x1xf32>
    %24 = vector.broadcast %23 : vector<8x1xf32> to vector<8x128xf32>
    %25 = arith.mulf %20, %24 : vector<8x128xf32>
    %26 = vector.extract_strided_slice %9 {offsets = [0, 0], sizes = [128, 16], strides = [1, 1]} : vector<128x128xf32> to vector<128x16xf32>
    %cst_16 = arith.constant dense<0.000000e+00> : vector<8x16xf32>
    %27 = tpu.matmul %25, %26, %cst_16 {dimension_numbers = #tpu.dot_dimension_numbers<[1], [0], [0], [1], [0, 0, 1, 1], [], []>} : vector<8x128xf32>, vector<128x16xf32>, vector<8x16xf32> -> vector<8x16xf32>
    %28 = vector.extract_strided_slice %7 {offsets = [0, 16], sizes = [8, 16], strides = [1, 1]} : vector<8x128xf32> to vector<8x16xf32>
    %29 = vector.extract_strided_slice %8 {offsets = [16, 0], sizes = [16, 128], strides = [1, 1]} : vector<128x128xf32> to vector<16x128xf32>
    %cst_17 = arith.constant dense<0.000000e+00> : vector<8x128xf32>
    %30 = tpu.matmul %28, %29, %cst_17 {dimension_numbers = #tpu.dot_dimension_numbers<[1], [0], [0], [1], [0, 0, 1, 1], [], []>} : vector<8x16xf32>, vector<16x128xf32>, vector<8x128xf32> -> vector<8x128xf32>
    %31 = vector.broadcast %10 : vector<1x128xf32> to vector<8x128xf32>
    %32 = arith.addf %30, %31 : vector<8x128xf32>
    %cst_18 = arith.constant dense<0xFF800000> : vector<8xf32>
    %33 = vector.multi_reduction <maximumf>, %32, %cst_18 [1] : vector<8x128xf32> to vector<8xf32>
    %34 = vector.shape_cast %33 : vector<8xf32> to vector<8x1xf32>
    %35 = vector.broadcast %34 : vector<8x1xf32> to vector<8x128xf32>
    %36 = arith.subf %32, %35 : vector<8x128xf32>
    %37 = math.exp %36 : vector<8x128xf32>
    %cst_19 = arith.constant dense<0.000000e+00> : vector<8xf32>
    %38 = vector.multi_reduction <add>, %37, %cst_19 [1] : vector<8x128xf32> to vector<8xf32>
    %39 = vector.shape_cast %38 : vector<8xf32> to vector<8x1xf32>
    %40 = tpu.reciprocal %39 {approx = true} : vector<8x1xf32> -> vector<8x1xf32>
    %41 = vector.broadcast %40 : vector<8x1xf32> to vector<8x128xf32>
    %42 = arith.mulf %37, %41 : vector<8x128xf32>
    %43 = vector.extract_strided_slice %9 {offsets = [0, 16], sizes = [128, 16], strides = [1, 1]} : vector<128x128xf32> to vector<128x16xf32>
    %cst_20 = arith.constant dense<0.000000e+00> : vector<8x16xf32>
    %44 = tpu.matmul %42, %43, %cst_20 {dimension_numbers = #tpu.dot_dimension_numbers<[1], [0], [0], [1], [0, 0, 1, 1], [], []>} : vector<8x128xf32>, vector<128x16xf32>, vector<8x16xf32> -> vector<8x16xf32>
    %45 = vector.extract_strided_slice %7 {offsets = [0, 32], sizes = [8, 16], strides = [1, 1]} : vector<8x128xf32> to vector<8x16xf32>
    %46 = vector.extract_strided_slice %8 {offsets = [32, 0], sizes = [16, 128], strides = [1, 1]} : vector<128x128xf32> to vector<16x128xf32>
    %cst_21 = arith.constant dense<0.000000e+00> : vector<8x128xf32>
    %47 = tpu.matmul %45, %46, %cst_21 {dimension_numbers = #tpu.dot_dimension_numbers<[1], [0], [0], [1], [0, 0, 1, 1], [], []>} : vector<8x16xf32>, vector<16x128xf32>, vector<8x128xf32> -> vector<8x128xf32>
    %48 = vector.broadcast %10 : vector<1x128xf32> to vector<8x128xf32>
    %49 = arith.addf %47, %48 : vector<8x128xf32>
    %cst_22 = arith.constant dense<0xFF800000> : vector<8xf32>
    %50 = vector.multi_reduction <maximumf>, %49, %cst_22 [1] : vector<8x128xf32> to vector<8xf32>
    %51 = vector.shape_cast %50 : vector<8xf32> to vector<8x1xf32>
    %52 = vector.broadcast %51 : vector<8x1xf32> to vector<8x128xf32>
    %53 = arith.subf %49, %52 : vector<8x128xf32>
    %54 = math.exp %53 : vector<8x128xf32>
    %cst_23 = arith.constant dense<0.000000e+00> : vector<8xf32>
    %55 = vector.multi_reduction <add>, %54, %cst_23 [1] : vector<8x128xf32> to vector<8xf32>
    %56 = vector.shape_cast %55 : vector<8xf32> to vector<8x1xf32>
    %57 = tpu.reciprocal %56 {approx = true} : vector<8x1xf32> -> vector<8x1xf32>
    %58 = vector.broadcast %57 : vector<8x1xf32> to vector<8x128xf32>
    %59 = arith.mulf %54, %58 : vector<8x128xf32>
    %60 = vector.extract_strided_slice %9 {offsets = [0, 32], sizes = [128, 16], strides = [1, 1]} : vector<128x128xf32> to vector<128x16xf32>
    %cst_24 = arith.constant dense<0.000000e+00> : vector<8x16xf32>
    %61 = tpu.matmul %59, %60, %cst_24 {dimension_numbers = #tpu.dot_dimension_numbers<[1], [0], [0], [1], [0, 0, 1, 1], [], []>} : vector<8x128xf32>, vector<128x16xf32>, vector<8x16xf32> -> vector<8x16xf32>
    %62 = vector.extract_strided_slice %7 {offsets = [0, 48], sizes = [8, 16], strides = [1, 1]} : vector<8x128xf32> to vector<8x16xf32>
    %63 = vector.extract_strided_slice %8 {offsets = [48, 0], sizes = [16, 128], strides = [1, 1]} : vector<128x128xf32> to vector<16x128xf32>
    %cst_25 = arith.constant dense<0.000000e+00> : vector<8x128xf32>
    %64 = tpu.matmul %62, %63, %cst_25 {dimension_numbers = #tpu.dot_dimension_numbers<[1], [0], [0], [1], [0, 0, 1, 1], [], []>} : vector<8x16xf32>, vector<16x128xf32>, vector<8x128xf32> -> vector<8x128xf32>
    %65 = vector.broadcast %10 : vector<1x128xf32> to vector<8x128xf32>
    %66 = arith.addf %64, %65 : vector<8x128xf32>
    %cst_26 = arith.constant dense<0xFF800000> : vector<8xf32>
    %67 = vector.multi_reduction <maximumf>, %66, %cst_26 [1] : vector<8x128xf32> to vector<8xf32>
    %68 = vector.shape_cast %67 : vector<8xf32> to vector<8x1xf32>
    %69 = vector.broadcast %68 : vector<8x1xf32> to vector<8x128xf32>
    %70 = arith.subf %66, %69 : vector<8x128xf32>
    %71 = math.exp %70 : vector<8x128xf32>
    %cst_27 = arith.constant dense<0.000000e+00> : vector<8xf32>
    %72 = vector.multi_reduction <add>, %71, %cst_27 [1] : vector<8x128xf32> to vector<8xf32>
    %73 = vector.shape_cast %72 : vector<8xf32> to vector<8x1xf32>
    %74 = tpu.reciprocal %73 {approx = true} : vector<8x1xf32> -> vector<8x1xf32>
    %75 = vector.broadcast %74 : vector<8x1xf32> to vector<8x128xf32>
    %76 = arith.mulf %71, %75 : vector<8x128xf32>
    %77 = vector.extract_strided_slice %9 {offsets = [0, 48], sizes = [128, 16], strides = [1, 1]} : vector<128x128xf32> to vector<128x16xf32>
    %cst_28 = arith.constant dense<0.000000e+00> : vector<8x16xf32>
    %78 = tpu.matmul %76, %77, %cst_28 {dimension_numbers = #tpu.dot_dimension_numbers<[1], [0], [0], [1], [0, 0, 1, 1], [], []>} : vector<8x128xf32>, vector<128x16xf32>, vector<8x16xf32> -> vector<8x16xf32>
    %79 = vector.extract_strided_slice %7 {offsets = [0, 64], sizes = [8, 16], strides = [1, 1]} : vector<8x128xf32> to vector<8x16xf32>
    %80 = vector.extract_strided_slice %8 {offsets = [64, 0], sizes = [16, 128], strides = [1, 1]} : vector<128x128xf32> to vector<16x128xf32>
    %cst_29 = arith.constant dense<0.000000e+00> : vector<8x128xf32>
    %81 = tpu.matmul %79, %80, %cst_29 {dimension_numbers = #tpu.dot_dimension_numbers<[1], [0], [0], [1], [0, 0, 1, 1], [], []>} : vector<8x16xf32>, vector<16x128xf32>, vector<8x128xf32> -> vector<8x128xf32>
    %82 = vector.broadcast %10 : vector<1x128xf32> to vector<8x128xf32>
    %83 = arith.addf %81, %82 : vector<8x128xf32>
    %cst_30 = arith.constant dense<0xFF800000> : vector<8xf32>
    %84 = vector.multi_reduction <maximumf>, %83, %cst_30 [1] : vector<8x128xf32> to vector<8xf32>
    %85 = vector.shape_cast %84 : vector<8xf32> to vector<8x1xf32>
    %86 = vector.broadcast %85 : vector<8x1xf32> to vector<8x128xf32>
    %87 = arith.subf %83, %86 : vector<8x128xf32>
    %88 = math.exp %87 : vector<8x128xf32>
    %cst_31 = arith.constant dense<0.000000e+00> : vector<8xf32>
    %89 = vector.multi_reduction <add>, %88, %cst_31 [1] : vector<8x128xf32> to vector<8xf32>
    %90 = vector.shape_cast %89 : vector<8xf32> to vector<8x1xf32>
    %91 = tpu.reciprocal %90 {approx = true} : vector<8x1xf32> -> vector<8x1xf32>
    %92 = vector.broadcast %91 : vector<8x1xf32> to vector<8x128xf32>
    %93 = arith.mulf %88, %92 : vector<8x128xf32>
    %94 = vector.extract_strided_slice %9 {offsets = [0, 64], sizes = [128, 16], strides = [1, 1]} : vector<128x128xf32> to vector<128x16xf32>
    %cst_32 = arith.constant dense<0.000000e+00> : vector<8x16xf32>
    %95 = tpu.matmul %93, %94, %cst_32 {dimension_numbers = #tpu.dot_dimension_numbers<[1], [0], [0], [1], [0, 0, 1, 1], [], []>} : vector<8x128xf32>, vector<128x16xf32>, vector<8x16xf32> -> vector<8x16xf32>
    %96 = vector.extract_strided_slice %7 {offsets = [0, 80], sizes = [8, 16], strides = [1, 1]} : vector<8x128xf32> to vector<8x16xf32>
    %97 = vector.extract_strided_slice %8 {offsets = [80, 0], sizes = [16, 128], strides = [1, 1]} : vector<128x128xf32> to vector<16x128xf32>
    %cst_33 = arith.constant dense<0.000000e+00> : vector<8x128xf32>
    %98 = tpu.matmul %96, %97, %cst_33 {dimension_numbers = #tpu.dot_dimension_numbers<[1], [0], [0], [1], [0, 0, 1, 1], [], []>} : vector<8x16xf32>, vector<16x128xf32>, vector<8x128xf32> -> vector<8x128xf32>
    %99 = vector.broadcast %10 : vector<1x128xf32> to vector<8x128xf32>
    %100 = arith.addf %98, %99 : vector<8x128xf32>
    %cst_34 = arith.constant dense<0xFF800000> : vector<8xf32>
    %101 = vector.multi_reduction <maximumf>, %100, %cst_34 [1] : vector<8x128xf32> to vector<8xf32>
    %102 = vector.shape_cast %101 : vector<8xf32> to vector<8x1xf32>
    %103 = vector.broadcast %102 : vector<8x1xf32> to vector<8x128xf32>
    %104 = arith.subf %100, %103 : vector<8x128xf32>
    %105 = math.exp %104 : vector<8x128xf32>
    %cst_35 = arith.constant dense<0.000000e+00> : vector<8xf32>
    %106 = vector.multi_reduction <add>, %105, %cst_35 [1] : vector<8x128xf32> to vector<8xf32>
    %107 = vector.shape_cast %106 : vector<8xf32> to vector<8x1xf32>
    %108 = tpu.reciprocal %107 {approx = true} : vector<8x1xf32> -> vector<8x1xf32>
    %109 = vector.broadcast %108 : vector<8x1xf32> to vector<8x128xf32>
    %110 = arith.mulf %105, %109 : vector<8x128xf32>
    %111 = vector.extract_strided_slice %9 {offsets = [0, 80], sizes = [128, 16], strides = [1, 1]} : vector<128x128xf32> to vector<128x16xf32>
    %cst_36 = arith.constant dense<0.000000e+00> : vector<8x16xf32>
    %112 = tpu.matmul %110, %111, %cst_36 {dimension_numbers = #tpu.dot_dimension_numbers<[1], [0], [0], [1], [0, 0, 1, 1], [], []>} : vector<8x128xf32>, vector<128x16xf32>, vector<8x16xf32> -> vector<8x16xf32>
    %113 = vector.extract_strided_slice %7 {offsets = [0, 96], sizes = [8, 16], strides = [1, 1]} : vector<8x128xf32> to vector<8x16xf32>
    %114 = vector.extract_strided_slice %8 {offsets = [96, 0], sizes = [16, 128], strides = [1, 1]} : vector<128x128xf32> to vector<16x128xf32>
    %cst_37 = arith.constant dense<0.000000e+00> : vector<8x128xf32>
    %115 = tpu.matmul %113, %114, %cst_37 {dimension_numbers = #tpu.dot_dimension_numbers<[1], [0], [0], [1], [0, 0, 1, 1], [], []>} : vector<8x16xf32>, vector<16x128xf32>, vector<8x128xf32> -> vector<8x128xf32>
    %116 = vector.broadcast %10 : vector<1x128xf32> to vector<8x128xf32>
    %117 = arith.addf %115, %116 : vector<8x128xf32>
    %cst_38 = arith.constant dense<0xFF800000> : vector<8xf32>
    %118 = vector.multi_reduction <maximumf>, %117, %cst_38 [1] : vector<8x128xf32> to vector<8xf32>
    %119 = vector.shape_cast %118 : vector<8xf32> to vector<8x1xf32>
    %120 = vector.broadcast %119 : vector<8x1xf32> to vector<8x128xf32>
    %121 = arith.subf %117, %120 : vector<8x128xf32>
    %122 = math.exp %121 : vector<8x128xf32>
    %cst_39 = arith.constant dense<0.000000e+00> : vector<8xf32>
    %123 = vector.multi_reduction <add>, %122, %cst_39 [1] : vector<8x128xf32> to vector<8xf32>
    %124 = vector.shape_cast %123 : vector<8xf32> to vector<8x1xf32>
    %125 = tpu.reciprocal %124 {approx = true} : vector<8x1xf32> -> vector<8x1xf32>
    %126 = vector.broadcast %125 : vector<8x1xf32> to vector<8x128xf32>
    %127 = arith.mulf %122, %126 : vector<8x128xf32>
    %128 = vector.extract_strided_slice %9 {offsets = [0, 96], sizes = [128, 16], strides = [1, 1]} : vector<128x128xf32> to vector<128x16xf32>
    %cst_40 = arith.constant dense<0.000000e+00> : vector<8x16xf32>
    %129 = tpu.matmul %127, %128, %cst_40 {dimension_numbers = #tpu.dot_dimension_numbers<[1], [0], [0], [1], [0, 0, 1, 1], [], []>} : vector<8x128xf32>, vector<128x16xf32>, vector<8x16xf32> -> vector<8x16xf32>
    %130 = vector.extract_strided_slice %7 {offsets = [0, 112], sizes = [8, 16], strides = [1, 1]} : vector<8x128xf32> to vector<8x16xf32>
    %131 = vector.extract_strided_slice %8 {offsets = [112, 0], sizes = [16, 128], strides = [1, 1]} : vector<128x128xf32> to vector<16x128xf32>
    %cst_41 = arith.constant dense<0.000000e+00> : vector<8x128xf32>
    %132 = tpu.matmul %130, %131, %cst_41 {dimension_numbers = #tpu.dot_dimension_numbers<[1], [0], [0], [1], [0, 0, 1, 1], [], []>} : vector<8x16xf32>, vector<16x128xf32>, vector<8x128xf32> -> vector<8x128xf32>
    %133 = vector.broadcast %10 : vector<1x128xf32> to vector<8x128xf32>
    %134 = arith.addf %132, %133 : vector<8x128xf32>
    %cst_42 = arith.constant dense<0xFF800000> : vector<8xf32>
    %135 = vector.multi_reduction <maximumf>, %134, %cst_42 [1] : vector<8x128xf32> to vector<8xf32>
    %136 = vector.shape_cast %135 : vector<8xf32> to vector<8x1xf32>
    %137 = vector.broadcast %136 : vector<8x1xf32> to vector<8x128xf32>
    %138 = arith.subf %134, %137 : vector<8x128xf32>
    %139 = math.exp %138 : vector<8x128xf32>
    %cst_43 = arith.constant dense<0.000000e+00> : vector<8xf32>
    %140 = vector.multi_reduction <add>, %139, %cst_43 [1] : vector<8x128xf32> to vector<8xf32>
    %141 = vector.shape_cast %140 : vector<8xf32> to vector<8x1xf32>
    %142 = tpu.reciprocal %141 {approx = true} : vector<8x1xf32> -> vector<8x1xf32>
    %143 = vector.broadcast %142 : vector<8x1xf32> to vector<8x128xf32>
    %144 = arith.mulf %139, %143 : vector<8x128xf32>
    %145 = vector.extract_strided_slice %9 {offsets = [0, 112], sizes = [128, 16], strides = [1, 1]} : vector<128x128xf32> to vector<128x16xf32>
    %cst_44 = arith.constant dense<0.000000e+00> : vector<8x16xf32>
    %146 = tpu.matmul %144, %145, %cst_44 {dimension_numbers = #tpu.dot_dimension_numbers<[1], [0], [0], [1], [0, 0, 1, 1], [], []>} : vector<8x128xf32>, vector<128x16xf32>, vector<8x16xf32> -> vector<8x16xf32>
    %147 = tpu.concatenate %27, %44, %61, %78, %95, %112, %129, %146 in 1 : vector<8x16xf32>, vector<8x16xf32>, vector<8x16xf32>, vector<8x16xf32>, vector<8x16xf32>, vector<8x16xf32>, vector<8x16xf32>, vector<8x16xf32> -> vector<8x128xf32>
    %c0_45 = arith.constant 0 : index
    %c0_46 = arith.constant 0 : index
    %c0_47 = arith.constant 0 : index
    %148 = vector.load %arg4[%c0_45, %c0_46, %c0_47] : memref<3x128x128xf32, #tpu.memory_space<vmem>>, vector<1x128x128xf32>
    %149 = vector.shape_cast %148 : vector<1x128x128xf32> to vector<128x128xf32>
    %cst_48 = arith.constant dense<0.000000e+00> : vector<8x128xf32>
    %150 = tpu.matmul %147, %149, %cst_48 {dimension_numbers = #tpu.dot_dimension_numbers<[1], [0], [0], [1], [0, 0, 1, 1], [], []>} : vector<8x128xf32>, vector<128x128xf32>, vector<8x128xf32> -> vector<8x128xf32>
    %c0_49 = arith.constant 0 : index
    %c0_50 = arith.constant 0 : index
    %c0_51 = arith.constant 0 : index
    %151 = vector.load %arg5[%c0_49, %c0_50, %c0_51] : memref<3x1x128xf32, #tpu.memory_space<vmem>>, vector<1x1x128xf32>
    %152 = vector.shape_cast %151 : vector<1x1x128xf32> to vector<1x128xf32>
    %153 = vector.broadcast %152 : vector<1x128xf32> to vector<8x128xf32>
    %154 = arith.addf %150, %153 : vector<8x128xf32>
    %c1 = arith.constant 1 : index
    %c0_52 = arith.constant 0 : index
    %c0_53 = arith.constant 0 : index
    %155 = vector.load %arg2[%c1, %c0_52, %c0_53] : memref<3x128x128xf32, #tpu.memory_space<vmem>>, vector<1x128x128xf32>
    %156 = vector.shape_cast %155 : vector<1x128x128xf32> to vector<128x128xf32>
    %cst_54 = arith.constant dense<0.000000e+00> : vector<8x128xf32>
    %157 = tpu.matmul %154, %156, %cst_54 {dimension_numbers = #tpu.dot_dimension_numbers<[1], [0], [0], [1], [0, 0, 1, 1], [], []>} : vector<8x128xf32>, vector<128x128xf32>, vector<8x128xf32> -> vector<8x128xf32>
    %c1_55 = arith.constant 1 : index
    %c0_56 = arith.constant 0 : index
    %c0_57 = arith.constant 0 : index
    %158 = vector.load %arg3[%c1_55, %c0_56, %c0_57] : memref<3x1x128xf32, #tpu.memory_space<vmem>>, vector<1x1x128xf32>
    %159 = vector.shape_cast %158 : vector<1x1x128xf32> to vector<1x128xf32>
    %160 = vector.broadcast %159 : vector<1x128xf32> to vector<8x128xf32>
    %161 = arith.addf %157, %160 : vector<8x128xf32>
    %c0_58 = arith.constant 0 : index
    %c0_59 = arith.constant 0 : index
    %162 = vector.load %arg9[%c0_58, %c0_59] : memref<128x128xf32, #tpu.memory_space<vmem>>, vector<128x128xf32>
    %c0_60 = arith.constant 0 : index
    %c0_61 = arith.constant 0 : index
    %163 = vector.load %arg10[%c0_60, %c0_61] : memref<128x128xf32, #tpu.memory_space<vmem>>, vector<128x128xf32>
    %c0_62 = arith.constant 0 : index
    %c0_63 = arith.constant 0 : index
    %164 = vector.load %arg11[%c0_62, %c0_63] : memref<1x128xf32, #tpu.memory_space<vmem>>, vector<1x128xf32>
    %165 = vector.extract_strided_slice %161 {offsets = [0, 0], sizes = [8, 16], strides = [1, 1]} : vector<8x128xf32> to vector<8x16xf32>
    %166 = vector.extract_strided_slice %162 {offsets = [0, 0], sizes = [16, 128], strides = [1, 1]} : vector<128x128xf32> to vector<16x128xf32>
    %cst_64 = arith.constant dense<0.000000e+00> : vector<8x128xf32>
    %167 = tpu.matmul %165, %166, %cst_64 {dimension_numbers = #tpu.dot_dimension_numbers<[1], [0], [0], [1], [0, 0, 1, 1], [], []>} : vector<8x16xf32>, vector<16x128xf32>, vector<8x128xf32> -> vector<8x128xf32>
    %168 = vector.broadcast %164 : vector<1x128xf32> to vector<8x128xf32>
    %169 = arith.addf %167, %168 : vector<8x128xf32>
    %cst_65 = arith.constant dense<0xFF800000> : vector<8xf32>
    %170 = vector.multi_reduction <maximumf>, %169, %cst_65 [1] : vector<8x128xf32> to vector<8xf32>
    %171 = vector.shape_cast %170 : vector<8xf32> to vector<8x1xf32>
    %172 = vector.broadcast %171 : vector<8x1xf32> to vector<8x128xf32>
    %173 = arith.subf %169, %172 : vector<8x128xf32>
    %174 = math.exp %173 : vector<8x128xf32>
    %cst_66 = arith.constant dense<0.000000e+00> : vector<8xf32>
    %175 = vector.multi_reduction <add>, %174, %cst_66 [1] : vector<8x128xf32> to vector<8xf32>
    %176 = vector.shape_cast %175 : vector<8xf32> to vector<8x1xf32>
    %177 = tpu.reciprocal %176 {approx = true} : vector<8x1xf32> -> vector<8x1xf32>
    %178 = vector.broadcast %177 : vector<8x1xf32> to vector<8x128xf32>
    %179 = arith.mulf %174, %178 : vector<8x128xf32>
    %180 = vector.extract_strided_slice %163 {offsets = [0, 0], sizes = [128, 16], strides = [1, 1]} : vector<128x128xf32> to vector<128x16xf32>
    %cst_67 = arith.constant dense<0.000000e+00> : vector<8x16xf32>
    %181 = tpu.matmul %179, %180, %cst_67 {dimension_numbers = #tpu.dot_dimension_numbers<[1], [0], [0], [1], [0, 0, 1, 1], [], []>} : vector<8x128xf32>, vector<128x16xf32>, vector<8x16xf32> -> vector<8x16xf32>
    %182 = vector.extract_strided_slice %161 {offsets = [0, 16], sizes = [8, 16], strides = [1, 1]} : vector<8x128xf32> to vector<8x16xf32>
    %183 = vector.extract_strided_slice %162 {offsets = [16, 0], sizes = [16, 128], strides = [1, 1]} : vector<128x128xf32> to vector<16x128xf32>
    %cst_68 = arith.constant dense<0.000000e+00> : vector<8x128xf32>
    %184 = tpu.matmul %182, %183, %cst_68 {dimension_numbers = #tpu.dot_dimension_numbers<[1], [0], [0], [1], [0, 0, 1, 1], [], []>} : vector<8x16xf32>, vector<16x128xf32>, vector<8x128xf32> -> vector<8x128xf32>
    %185 = vector.broadcast %164 : vector<1x128xf32> to vector<8x128xf32>
    %186 = arith.addf %184, %185 : vector<8x128xf32>
    %cst_69 = arith.constant dense<0xFF800000> : vector<8xf32>
    %187 = vector.multi_reduction <maximumf>, %186, %cst_69 [1] : vector<8x128xf32> to vector<8xf32>
    %188 = vector.shape_cast %187 : vector<8xf32> to vector<8x1xf32>
    %189 = vector.broadcast %188 : vector<8x1xf32> to vector<8x128xf32>
    %190 = arith.subf %186, %189 : vector<8x128xf32>
    %191 = math.exp %190 : vector<8x128xf32>
    %cst_70 = arith.constant dense<0.000000e+00> : vector<8xf32>
    %192 = vector.multi_reduction <add>, %191, %cst_70 [1] : vector<8x128xf32> to vector<8xf32>
    %193 = vector.shape_cast %192 : vector<8xf32> to vector<8x1xf32>
    %194 = tpu.reciprocal %193 {approx = true} : vector<8x1xf32> -> vector<8x1xf32>
    %195 = vector.broadcast %194 : vector<8x1xf32> to vector<8x128xf32>
    %196 = arith.mulf %191, %195 : vector<8x128xf32>
    %197 = vector.extract_strided_slice %163 {offsets = [0, 16], sizes = [128, 16], strides = [1, 1]} : vector<128x128xf32> to vector<128x16xf32>
    %cst_71 = arith.constant dense<0.000000e+00> : vector<8x16xf32>
    %198 = tpu.matmul %196, %197, %cst_71 {dimension_numbers = #tpu.dot_dimension_numbers<[1], [0], [0], [1], [0, 0, 1, 1], [], []>} : vector<8x128xf32>, vector<128x16xf32>, vector<8x16xf32> -> vector<8x16xf32>
    %199 = vector.extract_strided_slice %161 {offsets = [0, 32], sizes = [8, 16], strides = [1, 1]} : vector<8x128xf32> to vector<8x16xf32>
    %200 = vector.extract_strided_slice %162 {offsets = [32, 0], sizes = [16, 128], strides = [1, 1]} : vector<128x128xf32> to vector<16x128xf32>
    %cst_72 = arith.constant dense<0.000000e+00> : vector<8x128xf32>
    %201 = tpu.matmul %199, %200, %cst_72 {dimension_numbers = #tpu.dot_dimension_numbers<[1], [0], [0], [1], [0, 0, 1, 1], [], []>} : vector<8x16xf32>, vector<16x128xf32>, vector<8x128xf32> -> vector<8x128xf32>
    %202 = vector.broadcast %164 : vector<1x128xf32> to vector<8x128xf32>
    %203 = arith.addf %201, %202 : vector<8x128xf32>
    %cst_73 = arith.constant dense<0xFF800000> : vector<8xf32>
    %204 = vector.multi_reduction <maximumf>, %203, %cst_73 [1] : vector<8x128xf32> to vector<8xf32>
    %205 = vector.shape_cast %204 : vector<8xf32> to vector<8x1xf32>
    %206 = vector.broadcast %205 : vector<8x1xf32> to vector<8x128xf32>
    %207 = arith.subf %203, %206 : vector<8x128xf32>
    %208 = math.exp %207 : vector<8x128xf32>
    %cst_74 = arith.constant dense<0.000000e+00> : vector<8xf32>
    %209 = vector.multi_reduction <add>, %208, %cst_74 [1] : vector<8x128xf32> to vector<8xf32>
    %210 = vector.shape_cast %209 : vector<8xf32> to vector<8x1xf32>
    %211 = tpu.reciprocal %210 {approx = true} : vector<8x1xf32> -> vector<8x1xf32>
    %212 = vector.broadcast %211 : vector<8x1xf32> to vector<8x128xf32>
    %213 = arith.mulf %208, %212 : vector<8x128xf32>
    %214 = vector.extract_strided_slice %163 {offsets = [0, 32], sizes = [128, 16], strides = [1, 1]} : vector<128x128xf32> to vector<128x16xf32>
    %cst_75 = arith.constant dense<0.000000e+00> : vector<8x16xf32>
    %215 = tpu.matmul %213, %214, %cst_75 {dimension_numbers = #tpu.dot_dimension_numbers<[1], [0], [0], [1], [0, 0, 1, 1], [], []>} : vector<8x128xf32>, vector<128x16xf32>, vector<8x16xf32> -> vector<8x16xf32>
    %216 = vector.extract_strided_slice %161 {offsets = [0, 48], sizes = [8, 16], strides = [1, 1]} : vector<8x128xf32> to vector<8x16xf32>
    %217 = vector.extract_strided_slice %162 {offsets = [48, 0], sizes = [16, 128], strides = [1, 1]} : vector<128x128xf32> to vector<16x128xf32>
    %cst_76 = arith.constant dense<0.000000e+00> : vector<8x128xf32>
    %218 = tpu.matmul %216, %217, %cst_76 {dimension_numbers = #tpu.dot_dimension_numbers<[1], [0], [0], [1], [0, 0, 1, 1], [], []>} : vector<8x16xf32>, vector<16x128xf32>, vector<8x128xf32> -> vector<8x128xf32>
    %219 = vector.broadcast %164 : vector<1x128xf32> to vector<8x128xf32>
    %220 = arith.addf %218, %219 : vector<8x128xf32>
    %cst_77 = arith.constant dense<0xFF800000> : vector<8xf32>
    %221 = vector.multi_reduction <maximumf>, %220, %cst_77 [1] : vector<8x128xf32> to vector<8xf32>
    %222 = vector.shape_cast %221 : vector<8xf32> to vector<8x1xf32>
    %223 = vector.broadcast %222 : vector<8x1xf32> to vector<8x128xf32>
    %224 = arith.subf %220, %223 : vector<8x128xf32>
    %225 = math.exp %224 : vector<8x128xf32>
    %cst_78 = arith.constant dense<0.000000e+00> : vector<8xf32>
    %226 = vector.multi_reduction <add>, %225, %cst_78 [1] : vector<8x128xf32> to vector<8xf32>
    %227 = vector.shape_cast %226 : vector<8xf32> to vector<8x1xf32>
    %228 = tpu.reciprocal %227 {approx = true} : vector<8x1xf32> -> vector<8x1xf32>
    %229 = vector.broadcast %228 : vector<8x1xf32> to vector<8x128xf32>
    %230 = arith.mulf %225, %229 : vector<8x128xf32>
    %231 = vector.extract_strided_slice %163 {offsets = [0, 48], sizes = [128, 16], strides = [1, 1]} : vector<128x128xf32> to vector<128x16xf32>
    %cst_79 = arith.constant dense<0.000000e+00> : vector<8x16xf32>
    %232 = tpu.matmul %230, %231, %cst_79 {dimension_numbers = #tpu.dot_dimension_numbers<[1], [0], [0], [1], [0, 0, 1, 1], [], []>} : vector<8x128xf32>, vector<128x16xf32>, vector<8x16xf32> -> vector<8x16xf32>
    %233 = vector.extract_strided_slice %161 {offsets = [0, 64], sizes = [8, 16], strides = [1, 1]} : vector<8x128xf32> to vector<8x16xf32>
    %234 = vector.extract_strided_slice %162 {offsets = [64, 0], sizes = [16, 128], strides = [1, 1]} : vector<128x128xf32> to vector<16x128xf32>
    %cst_80 = arith.constant dense<0.000000e+00> : vector<8x128xf32>
    %235 = tpu.matmul %233, %234, %cst_80 {dimension_numbers = #tpu.dot_dimension_numbers<[1], [0], [0], [1], [0, 0, 1, 1], [], []>} : vector<8x16xf32>, vector<16x128xf32>, vector<8x128xf32> -> vector<8x128xf32>
    %236 = vector.broadcast %164 : vector<1x128xf32> to vector<8x128xf32>
    %237 = arith.addf %235, %236 : vector<8x128xf32>
    %cst_81 = arith.constant dense<0xFF800000> : vector<8xf32>
    %238 = vector.multi_reduction <maximumf>, %237, %cst_81 [1] : vector<8x128xf32> to vector<8xf32>
    %239 = vector.shape_cast %238 : vector<8xf32> to vector<8x1xf32>
    %240 = vector.broadcast %239 : vector<8x1xf32> to vector<8x128xf32>
    %241 = arith.subf %237, %240 : vector<8x128xf32>
    %242 = math.exp %241 : vector<8x128xf32>
    %cst_82 = arith.constant dense<0.000000e+00> : vector<8xf32>
    %243 = vector.multi_reduction <add>, %242, %cst_82 [1] : vector<8x128xf32> to vector<8xf32>
    %244 = vector.shape_cast %243 : vector<8xf32> to vector<8x1xf32>
    %245 = tpu.reciprocal %244 {approx = true} : vector<8x1xf32> -> vector<8x1xf32>
    %246 = vector.broadcast %245 : vector<8x1xf32> to vector<8x128xf32>
    %247 = arith.mulf %242, %246 : vector<8x128xf32>
    %248 = vector.extract_strided_slice %163 {offsets = [0, 64], sizes = [128, 16], strides = [1, 1]} : vector<128x128xf32> to vector<128x16xf32>
    %cst_83 = arith.constant dense<0.000000e+00> : vector<8x16xf32>
    %249 = tpu.matmul %247, %248, %cst_83 {dimension_numbers = #tpu.dot_dimension_numbers<[1], [0], [0], [1], [0, 0, 1, 1], [], []>} : vector<8x128xf32>, vector<128x16xf32>, vector<8x16xf32> -> vector<8x16xf32>
    %250 = vector.extract_strided_slice %161 {offsets = [0, 80], sizes = [8, 16], strides = [1, 1]} : vector<8x128xf32> to vector<8x16xf32>
    %251 = vector.extract_strided_slice %162 {offsets = [80, 0], sizes = [16, 128], strides = [1, 1]} : vector<128x128xf32> to vector<16x128xf32>
    %cst_84 = arith.constant dense<0.000000e+00> : vector<8x128xf32>
    %252 = tpu.matmul %250, %251, %cst_84 {dimension_numbers = #tpu.dot_dimension_numbers<[1], [0], [0], [1], [0, 0, 1, 1], [], []>} : vector<8x16xf32>, vector<16x128xf32>, vector<8x128xf32> -> vector<8x128xf32>
    %253 = vector.broadcast %164 : vector<1x128xf32> to vector<8x128xf32>
    %254 = arith.addf %252, %253 : vector<8x128xf32>
    %cst_85 = arith.constant dense<0xFF800000> : vector<8xf32>
    %255 = vector.multi_reduction <maximumf>, %254, %cst_85 [1] : vector<8x128xf32> to vector<8xf32>
    %256 = vector.shape_cast %255 : vector<8xf32> to vector<8x1xf32>
    %257 = vector.broadcast %256 : vector<8x1xf32> to vector<8x128xf32>
    %258 = arith.subf %254, %257 : vector<8x128xf32>
    %259 = math.exp %258 : vector<8x128xf32>
    %cst_86 = arith.constant dense<0.000000e+00> : vector<8xf32>
    %260 = vector.multi_reduction <add>, %259, %cst_86 [1] : vector<8x128xf32> to vector<8xf32>
    %261 = vector.shape_cast %260 : vector<8xf32> to vector<8x1xf32>
    %262 = tpu.reciprocal %261 {approx = true} : vector<8x1xf32> -> vector<8x1xf32>
    %263 = vector.broadcast %262 : vector<8x1xf32> to vector<8x128xf32>
    %264 = arith.mulf %259, %263 : vector<8x128xf32>
    %265 = vector.extract_strided_slice %163 {offsets = [0, 80], sizes = [128, 16], strides = [1, 1]} : vector<128x128xf32> to vector<128x16xf32>
    %cst_87 = arith.constant dense<0.000000e+00> : vector<8x16xf32>
    %266 = tpu.matmul %264, %265, %cst_87 {dimension_numbers = #tpu.dot_dimension_numbers<[1], [0], [0], [1], [0, 0, 1, 1], [], []>} : vector<8x128xf32>, vector<128x16xf32>, vector<8x16xf32> -> vector<8x16xf32>
    %267 = vector.extract_strided_slice %161 {offsets = [0, 96], sizes = [8, 16], strides = [1, 1]} : vector<8x128xf32> to vector<8x16xf32>
    %268 = vector.extract_strided_slice %162 {offsets = [96, 0], sizes = [16, 128], strides = [1, 1]} : vector<128x128xf32> to vector<16x128xf32>
    %cst_88 = arith.constant dense<0.000000e+00> : vector<8x128xf32>
    %269 = tpu.matmul %267, %268, %cst_88 {dimension_numbers = #tpu.dot_dimension_numbers<[1], [0], [0], [1], [0, 0, 1, 1], [], []>} : vector<8x16xf32>, vector<16x128xf32>, vector<8x128xf32> -> vector<8x128xf32>
    %270 = vector.broadcast %164 : vector<1x128xf32> to vector<8x128xf32>
    %271 = arith.addf %269, %270 : vector<8x128xf32>
    %cst_89 = arith.constant dense<0xFF800000> : vector<8xf32>
    %272 = vector.multi_reduction <maximumf>, %271, %cst_89 [1] : vector<8x128xf32> to vector<8xf32>
    %273 = vector.shape_cast %272 : vector<8xf32> to vector<8x1xf32>
    %274 = vector.broadcast %273 : vector<8x1xf32> to vector<8x128xf32>
    %275 = arith.subf %271, %274 : vector<8x128xf32>
    %276 = math.exp %275 : vector<8x128xf32>
    %cst_90 = arith.constant dense<0.000000e+00> : vector<8xf32>
    %277 = vector.multi_reduction <add>, %276, %cst_90 [1] : vector<8x128xf32> to vector<8xf32>
    %278 = vector.shape_cast %277 : vector<8xf32> to vector<8x1xf32>
    %279 = tpu.reciprocal %278 {approx = true} : vector<8x1xf32> -> vector<8x1xf32>
    %280 = vector.broadcast %279 : vector<8x1xf32> to vector<8x128xf32>
    %281 = arith.mulf %276, %280 : vector<8x128xf32>
    %282 = vector.extract_strided_slice %163 {offsets = [0, 96], sizes = [128, 16], strides = [1, 1]} : vector<128x128xf32> to vector<128x16xf32>
    %cst_91 = arith.constant dense<0.000000e+00> : vector<8x16xf32>
    %283 = tpu.matmul %281, %282, %cst_91 {dimension_numbers = #tpu.dot_dimension_numbers<[1], [0], [0], [1], [0, 0, 1, 1], [], []>} : vector<8x128xf32>, vector<128x16xf32>, vector<8x16xf32> -> vector<8x16xf32>
    %284 = vector.extract_strided_slice %161 {offsets = [0, 112], sizes = [8, 16], strides = [1, 1]} : vector<8x128xf32> to vector<8x16xf32>
    %285 = vector.extract_strided_slice %162 {offsets = [112, 0], sizes = [16, 128], strides = [1, 1]} : vector<128x128xf32> to vector<16x128xf32>
    %cst_92 = arith.constant dense<0.000000e+00> : vector<8x128xf32>
    %286 = tpu.matmul %284, %285, %cst_92 {dimension_numbers = #tpu.dot_dimension_numbers<[1], [0], [0], [1], [0, 0, 1, 1], [], []>} : vector<8x16xf32>, vector<16x128xf32>, vector<8x128xf32> -> vector<8x128xf32>
    %287 = vector.broadcast %164 : vector<1x128xf32> to vector<8x128xf32>
    %288 = arith.addf %286, %287 : vector<8x128xf32>
    %cst_93 = arith.constant dense<0xFF800000> : vector<8xf32>
    %289 = vector.multi_reduction <maximumf>, %288, %cst_93 [1] : vector<8x128xf32> to vector<8xf32>
    %290 = vector.shape_cast %289 : vector<8xf32> to vector<8x1xf32>
    %291 = vector.broadcast %290 : vector<8x1xf32> to vector<8x128xf32>
    %292 = arith.subf %288, %291 : vector<8x128xf32>
    %293 = math.exp %292 : vector<8x128xf32>
    %cst_94 = arith.constant dense<0.000000e+00> : vector<8xf32>
    %294 = vector.multi_reduction <add>, %293, %cst_94 [1] : vector<8x128xf32> to vector<8xf32>
    %295 = vector.shape_cast %294 : vector<8xf32> to vector<8x1xf32>
    %296 = tpu.reciprocal %295 {approx = true} : vector<8x1xf32> -> vector<8x1xf32>
    %297 = vector.broadcast %296 : vector<8x1xf32> to vector<8x128xf32>
    %298 = arith.mulf %293, %297 : vector<8x128xf32>
    %299 = vector.extract_strided_slice %163 {offsets = [0, 112], sizes = [128, 16], strides = [1, 1]} : vector<128x128xf32> to vector<128x16xf32>
    %cst_95 = arith.constant dense<0.000000e+00> : vector<8x16xf32>
    %300 = tpu.matmul %298, %299, %cst_95 {dimension_numbers = #tpu.dot_dimension_numbers<[1], [0], [0], [1], [0, 0, 1, 1], [], []>} : vector<8x128xf32>, vector<128x16xf32>, vector<8x16xf32> -> vector<8x16xf32>
    %301 = tpu.concatenate %181, %198, %215, %232, %249, %266, %283, %300 in 1 : vector<8x16xf32>, vector<8x16xf32>, vector<8x16xf32>, vector<8x16xf32>, vector<8x16xf32>, vector<8x16xf32>, vector<8x16xf32>, vector<8x16xf32> -> vector<8x128xf32>
    %c1_96 = arith.constant 1 : index
    %c0_97 = arith.constant 0 : index
    %c0_98 = arith.constant 0 : index
    %302 = vector.load %arg4[%c1_96, %c0_97, %c0_98] : memref<3x128x128xf32, #tpu.memory_space<vmem>>, vector<1x128x128xf32>
    %303 = vector.shape_cast %302 : vector<1x128x128xf32> to vector<128x128xf32>
    %cst_99 = arith.constant dense<0.000000e+00> : vector<8x128xf32>
    %304 = tpu.matmul %301, %303, %cst_99 {dimension_numbers = #tpu.dot_dimension_numbers<[1], [0], [0], [1], [0, 0, 1, 1], [], []>} : vector<8x128xf32>, vector<128x128xf32>, vector<8x128xf32> -> vector<8x128xf32>
    %c1_100 = arith.constant 1 : index
    %c0_101 = arith.constant 0 : index
    %c0_102 = arith.constant 0 : index
    %305 = vector.load %arg5[%c1_100, %c0_101, %c0_102] : memref<3x1x128xf32, #tpu.memory_space<vmem>>, vector<1x1x128xf32>
    %306 = vector.shape_cast %305 : vector<1x1x128xf32> to vector<1x128xf32>
    %307 = vector.broadcast %306 : vector<1x128xf32> to vector<8x128xf32>
    %308 = arith.addf %304, %307 : vector<8x128xf32>
    %c2 = arith.constant 2 : index
    %c0_103 = arith.constant 0 : index
    %c0_104 = arith.constant 0 : index
    %309 = vector.load %arg2[%c2, %c0_103, %c0_104] : memref<3x128x128xf32, #tpu.memory_space<vmem>>, vector<1x128x128xf32>
    %310 = vector.shape_cast %309 : vector<1x128x128xf32> to vector<128x128xf32>
    %cst_105 = arith.constant dense<0.000000e+00> : vector<8x128xf32>
    %311 = tpu.matmul %308, %310, %cst_105 {dimension_numbers = #tpu.dot_dimension_numbers<[1], [0], [0], [1], [0, 0, 1, 1], [], []>} : vector<8x128xf32>, vector<128x128xf32>, vector<8x128xf32> -> vector<8x128xf32>
    %c2_106 = arith.constant 2 : index
    %c0_107 = arith.constant 0 : index
    %c0_108 = arith.constant 0 : index
    %312 = vector.load %arg3[%c2_106, %c0_107, %c0_108] : memref<3x1x128xf32, #tpu.memory_space<vmem>>, vector<1x1x128xf32>
    %313 = vector.shape_cast %312 : vector<1x1x128xf32> to vector<1x128xf32>
    %314 = vector.broadcast %313 : vector<1x128xf32> to vector<8x128xf32>
    %315 = arith.addf %311, %314 : vector<8x128xf32>
    %c0_109 = arith.constant 0 : index
    %c0_110 = arith.constant 0 : index
    %316 = vector.load %arg12[%c0_109, %c0_110] : memref<128x128xf32, #tpu.memory_space<vmem>>, vector<128x128xf32>
    %c0_111 = arith.constant 0 : index
    %c0_112 = arith.constant 0 : index
    %317 = vector.load %arg13[%c0_111, %c0_112] : memref<128x128xf32, #tpu.memory_space<vmem>>, vector<128x128xf32>
    %c0_113 = arith.constant 0 : index
    %c0_114 = arith.constant 0 : index
    %318 = vector.load %arg14[%c0_113, %c0_114] : memref<1x128xf32, #tpu.memory_space<vmem>>, vector<1x128xf32>
    %319 = vector.extract_strided_slice %315 {offsets = [0, 0], sizes = [8, 16], strides = [1, 1]} : vector<8x128xf32> to vector<8x16xf32>
    %320 = vector.extract_strided_slice %316 {offsets = [0, 0], sizes = [16, 128], strides = [1, 1]} : vector<128x128xf32> to vector<16x128xf32>
    %cst_115 = arith.constant dense<0.000000e+00> : vector<8x128xf32>
    %321 = tpu.matmul %319, %320, %cst_115 {dimension_numbers = #tpu.dot_dimension_numbers<[1], [0], [0], [1], [0, 0, 1, 1], [], []>} : vector<8x16xf32>, vector<16x128xf32>, vector<8x128xf32> -> vector<8x128xf32>
    %322 = vector.broadcast %318 : vector<1x128xf32> to vector<8x128xf32>
    %323 = arith.addf %321, %322 : vector<8x128xf32>
    %cst_116 = arith.constant dense<0xFF800000> : vector<8xf32>
    %324 = vector.multi_reduction <maximumf>, %323, %cst_116 [1] : vector<8x128xf32> to vector<8xf32>
    %325 = vector.shape_cast %324 : vector<8xf32> to vector<8x1xf32>
    %326 = vector.broadcast %325 : vector<8x1xf32> to vector<8x128xf32>
    %327 = arith.subf %323, %326 : vector<8x128xf32>
    %328 = math.exp %327 : vector<8x128xf32>
    %cst_117 = arith.constant dense<0.000000e+00> : vector<8xf32>
    %329 = vector.multi_reduction <add>, %328, %cst_117 [1] : vector<8x128xf32> to vector<8xf32>
    %330 = vector.shape_cast %329 : vector<8xf32> to vector<8x1xf32>
    %331 = tpu.reciprocal %330 {approx = true} : vector<8x1xf32> -> vector<8x1xf32>
    %332 = vector.broadcast %331 : vector<8x1xf32> to vector<8x128xf32>
    %333 = arith.mulf %328, %332 : vector<8x128xf32>
    %334 = vector.extract_strided_slice %317 {offsets = [0, 0], sizes = [128, 16], strides = [1, 1]} : vector<128x128xf32> to vector<128x16xf32>
    %cst_118 = arith.constant dense<0.000000e+00> : vector<8x16xf32>
    %335 = tpu.matmul %333, %334, %cst_118 {dimension_numbers = #tpu.dot_dimension_numbers<[1], [0], [0], [1], [0, 0, 1, 1], [], []>} : vector<8x128xf32>, vector<128x16xf32>, vector<8x16xf32> -> vector<8x16xf32>
    %336 = vector.extract_strided_slice %315 {offsets = [0, 16], sizes = [8, 16], strides = [1, 1]} : vector<8x128xf32> to vector<8x16xf32>
    %337 = vector.extract_strided_slice %316 {offsets = [16, 0], sizes = [16, 128], strides = [1, 1]} : vector<128x128xf32> to vector<16x128xf32>
    %cst_119 = arith.constant dense<0.000000e+00> : vector<8x128xf32>
    %338 = tpu.matmul %336, %337, %cst_119 {dimension_numbers = #tpu.dot_dimension_numbers<[1], [0], [0], [1], [0, 0, 1, 1], [], []>} : vector<8x16xf32>, vector<16x128xf32>, vector<8x128xf32> -> vector<8x128xf32>
    %339 = vector.broadcast %318 : vector<1x128xf32> to vector<8x128xf32>
    %340 = arith.addf %338, %339 : vector<8x128xf32>
    %cst_120 = arith.constant dense<0xFF800000> : vector<8xf32>
    %341 = vector.multi_reduction <maximumf>, %340, %cst_120 [1] : vector<8x128xf32> to vector<8xf32>
    %342 = vector.shape_cast %341 : vector<8xf32> to vector<8x1xf32>
    %343 = vector.broadcast %342 : vector<8x1xf32> to vector<8x128xf32>
    %344 = arith.subf %340, %343 : vector<8x128xf32>
    %345 = math.exp %344 : vector<8x128xf32>
    %cst_121 = arith.constant dense<0.000000e+00> : vector<8xf32>
    %346 = vector.multi_reduction <add>, %345, %cst_121 [1] : vector<8x128xf32> to vector<8xf32>
    %347 = vector.shape_cast %346 : vector<8xf32> to vector<8x1xf32>
    %348 = tpu.reciprocal %347 {approx = true} : vector<8x1xf32> -> vector<8x1xf32>
    %349 = vector.broadcast %348 : vector<8x1xf32> to vector<8x128xf32>
    %350 = arith.mulf %345, %349 : vector<8x128xf32>
    %351 = vector.extract_strided_slice %317 {offsets = [0, 16], sizes = [128, 16], strides = [1, 1]} : vector<128x128xf32> to vector<128x16xf32>
    %cst_122 = arith.constant dense<0.000000e+00> : vector<8x16xf32>
    %352 = tpu.matmul %350, %351, %cst_122 {dimension_numbers = #tpu.dot_dimension_numbers<[1], [0], [0], [1], [0, 0, 1, 1], [], []>} : vector<8x128xf32>, vector<128x16xf32>, vector<8x16xf32> -> vector<8x16xf32>
    %353 = vector.extract_strided_slice %315 {offsets = [0, 32], sizes = [8, 16], strides = [1, 1]} : vector<8x128xf32> to vector<8x16xf32>
    %354 = vector.extract_strided_slice %316 {offsets = [32, 0], sizes = [16, 128], strides = [1, 1]} : vector<128x128xf32> to vector<16x128xf32>
    %cst_123 = arith.constant dense<0.000000e+00> : vector<8x128xf32>
    %355 = tpu.matmul %353, %354, %cst_123 {dimension_numbers = #tpu.dot_dimension_numbers<[1], [0], [0], [1], [0, 0, 1, 1], [], []>} : vector<8x16xf32>, vector<16x128xf32>, vector<8x128xf32> -> vector<8x128xf32>
    %356 = vector.broadcast %318 : vector<1x128xf32> to vector<8x128xf32>
    %357 = arith.addf %355, %356 : vector<8x128xf32>
    %cst_124 = arith.constant dense<0xFF800000> : vector<8xf32>
    %358 = vector.multi_reduction <maximumf>, %357, %cst_124 [1] : vector<8x128xf32> to vector<8xf32>
    %359 = vector.shape_cast %358 : vector<8xf32> to vector<8x1xf32>
    %360 = vector.broadcast %359 : vector<8x1xf32> to vector<8x128xf32>
    %361 = arith.subf %357, %360 : vector<8x128xf32>
    %362 = math.exp %361 : vector<8x128xf32>
    %cst_125 = arith.constant dense<0.000000e+00> : vector<8xf32>
    %363 = vector.multi_reduction <add>, %362, %cst_125 [1] : vector<8x128xf32> to vector<8xf32>
    %364 = vector.shape_cast %363 : vector<8xf32> to vector<8x1xf32>
    %365 = tpu.reciprocal %364 {approx = true} : vector<8x1xf32> -> vector<8x1xf32>
    %366 = vector.broadcast %365 : vector<8x1xf32> to vector<8x128xf32>
    %367 = arith.mulf %362, %366 : vector<8x128xf32>
    %368 = vector.extract_strided_slice %317 {offsets = [0, 32], sizes = [128, 16], strides = [1, 1]} : vector<128x128xf32> to vector<128x16xf32>
    %cst_126 = arith.constant dense<0.000000e+00> : vector<8x16xf32>
    %369 = tpu.matmul %367, %368, %cst_126 {dimension_numbers = #tpu.dot_dimension_numbers<[1], [0], [0], [1], [0, 0, 1, 1], [], []>} : vector<8x128xf32>, vector<128x16xf32>, vector<8x16xf32> -> vector<8x16xf32>
    %370 = vector.extract_strided_slice %315 {offsets = [0, 48], sizes = [8, 16], strides = [1, 1]} : vector<8x128xf32> to vector<8x16xf32>
    %371 = vector.extract_strided_slice %316 {offsets = [48, 0], sizes = [16, 128], strides = [1, 1]} : vector<128x128xf32> to vector<16x128xf32>
    %cst_127 = arith.constant dense<0.000000e+00> : vector<8x128xf32>
    %372 = tpu.matmul %370, %371, %cst_127 {dimension_numbers = #tpu.dot_dimension_numbers<[1], [0], [0], [1], [0, 0, 1, 1], [], []>} : vector<8x16xf32>, vector<16x128xf32>, vector<8x128xf32> -> vector<8x128xf32>
    %373 = vector.broadcast %318 : vector<1x128xf32> to vector<8x128xf32>
    %374 = arith.addf %372, %373 : vector<8x128xf32>
    %cst_128 = arith.constant dense<0xFF800000> : vector<8xf32>
    %375 = vector.multi_reduction <maximumf>, %374, %cst_128 [1] : vector<8x128xf32> to vector<8xf32>
    %376 = vector.shape_cast %375 : vector<8xf32> to vector<8x1xf32>
    %377 = vector.broadcast %376 : vector<8x1xf32> to vector<8x128xf32>
    %378 = arith.subf %374, %377 : vector<8x128xf32>
    %379 = math.exp %378 : vector<8x128xf32>
    %cst_129 = arith.constant dense<0.000000e+00> : vector<8xf32>
    %380 = vector.multi_reduction <add>, %379, %cst_129 [1] : vector<8x128xf32> to vector<8xf32>
    %381 = vector.shape_cast %380 : vector<8xf32> to vector<8x1xf32>
    %382 = tpu.reciprocal %381 {approx = true} : vector<8x1xf32> -> vector<8x1xf32>
    %383 = vector.broadcast %382 : vector<8x1xf32> to vector<8x128xf32>
    %384 = arith.mulf %379, %383 : vector<8x128xf32>
    %385 = vector.extract_strided_slice %317 {offsets = [0, 48], sizes = [128, 16], strides = [1, 1]} : vector<128x128xf32> to vector<128x16xf32>
    %cst_130 = arith.constant dense<0.000000e+00> : vector<8x16xf32>
    %386 = tpu.matmul %384, %385, %cst_130 {dimension_numbers = #tpu.dot_dimension_numbers<[1], [0], [0], [1], [0, 0, 1, 1], [], []>} : vector<8x128xf32>, vector<128x16xf32>, vector<8x16xf32> -> vector<8x16xf32>
    %387 = vector.extract_strided_slice %315 {offsets = [0, 64], sizes = [8, 16], strides = [1, 1]} : vector<8x128xf32> to vector<8x16xf32>
    %388 = vector.extract_strided_slice %316 {offsets = [64, 0], sizes = [16, 128], strides = [1, 1]} : vector<128x128xf32> to vector<16x128xf32>
    %cst_131 = arith.constant dense<0.000000e+00> : vector<8x128xf32>
    %389 = tpu.matmul %387, %388, %cst_131 {dimension_numbers = #tpu.dot_dimension_numbers<[1], [0], [0], [1], [0, 0, 1, 1], [], []>} : vector<8x16xf32>, vector<16x128xf32>, vector<8x128xf32> -> vector<8x128xf32>
    %390 = vector.broadcast %318 : vector<1x128xf32> to vector<8x128xf32>
    %391 = arith.addf %389, %390 : vector<8x128xf32>
    %cst_132 = arith.constant dense<0xFF800000> : vector<8xf32>
    %392 = vector.multi_reduction <maximumf>, %391, %cst_132 [1] : vector<8x128xf32> to vector<8xf32>
    %393 = vector.shape_cast %392 : vector<8xf32> to vector<8x1xf32>
    %394 = vector.broadcast %393 : vector<8x1xf32> to vector<8x128xf32>
    %395 = arith.subf %391, %394 : vector<8x128xf32>
    %396 = math.exp %395 : vector<8x128xf32>
    %cst_133 = arith.constant dense<0.000000e+00> : vector<8xf32>
    %397 = vector.multi_reduction <add>, %396, %cst_133 [1] : vector<8x128xf32> to vector<8xf32>
    %398 = vector.shape_cast %397 : vector<8xf32> to vector<8x1xf32>
    %399 = tpu.reciprocal %398 {approx = true} : vector<8x1xf32> -> vector<8x1xf32>
    %400 = vector.broadcast %399 : vector<8x1xf32> to vector<8x128xf32>
    %401 = arith.mulf %396, %400 : vector<8x128xf32>
    %402 = vector.extract_strided_slice %317 {offsets = [0, 64], sizes = [128, 16], strides = [1, 1]} : vector<128x128xf32> to vector<128x16xf32>
    %cst_134 = arith.constant dense<0.000000e+00> : vector<8x16xf32>
    %403 = tpu.matmul %401, %402, %cst_134 {dimension_numbers = #tpu.dot_dimension_numbers<[1], [0], [0], [1], [0, 0, 1, 1], [], []>} : vector<8x128xf32>, vector<128x16xf32>, vector<8x16xf32> -> vector<8x16xf32>
    %404 = vector.extract_strided_slice %315 {offsets = [0, 80], sizes = [8, 16], strides = [1, 1]} : vector<8x128xf32> to vector<8x16xf32>
    %405 = vector.extract_strided_slice %316 {offsets = [80, 0], sizes = [16, 128], strides = [1, 1]} : vector<128x128xf32> to vector<16x128xf32>
    %cst_135 = arith.constant dense<0.000000e+00> : vector<8x128xf32>
    %406 = tpu.matmul %404, %405, %cst_135 {dimension_numbers = #tpu.dot_dimension_numbers<[1], [0], [0], [1], [0, 0, 1, 1], [], []>} : vector<8x16xf32>, vector<16x128xf32>, vector<8x128xf32> -> vector<8x128xf32>
    %407 = vector.broadcast %318 : vector<1x128xf32> to vector<8x128xf32>
    %408 = arith.addf %406, %407 : vector<8x128xf32>
    %cst_136 = arith.constant dense<0xFF800000> : vector<8xf32>
    %409 = vector.multi_reduction <maximumf>, %408, %cst_136 [1] : vector<8x128xf32> to vector<8xf32>
    %410 = vector.shape_cast %409 : vector<8xf32> to vector<8x1xf32>
    %411 = vector.broadcast %410 : vector<8x1xf32> to vector<8x128xf32>
    %412 = arith.subf %408, %411 : vector<8x128xf32>
    %413 = math.exp %412 : vector<8x128xf32>
    %cst_137 = arith.constant dense<0.000000e+00> : vector<8xf32>
    %414 = vector.multi_reduction <add>, %413, %cst_137 [1] : vector<8x128xf32> to vector<8xf32>
    %415 = vector.shape_cast %414 : vector<8xf32> to vector<8x1xf32>
    %416 = tpu.reciprocal %415 {approx = true} : vector<8x1xf32> -> vector<8x1xf32>
    %417 = vector.broadcast %416 : vector<8x1xf32> to vector<8x128xf32>
    %418 = arith.mulf %413, %417 : vector<8x128xf32>
    %419 = vector.extract_strided_slice %317 {offsets = [0, 80], sizes = [128, 16], strides = [1, 1]} : vector<128x128xf32> to vector<128x16xf32>
    %cst_138 = arith.constant dense<0.000000e+00> : vector<8x16xf32>
    %420 = tpu.matmul %418, %419, %cst_138 {dimension_numbers = #tpu.dot_dimension_numbers<[1], [0], [0], [1], [0, 0, 1, 1], [], []>} : vector<8x128xf32>, vector<128x16xf32>, vector<8x16xf32> -> vector<8x16xf32>
    %421 = vector.extract_strided_slice %315 {offsets = [0, 96], sizes = [8, 16], strides = [1, 1]} : vector<8x128xf32> to vector<8x16xf32>
    %422 = vector.extract_strided_slice %316 {offsets = [96, 0], sizes = [16, 128], strides = [1, 1]} : vector<128x128xf32> to vector<16x128xf32>
    %cst_139 = arith.constant dense<0.000000e+00> : vector<8x128xf32>
    %423 = tpu.matmul %421, %422, %cst_139 {dimension_numbers = #tpu.dot_dimension_numbers<[1], [0], [0], [1], [0, 0, 1, 1], [], []>} : vector<8x16xf32>, vector<16x128xf32>, vector<8x128xf32> -> vector<8x128xf32>
    %424 = vector.broadcast %318 : vector<1x128xf32> to vector<8x128xf32>
    %425 = arith.addf %423, %424 : vector<8x128xf32>
    %cst_140 = arith.constant dense<0xFF800000> : vector<8xf32>
    %426 = vector.multi_reduction <maximumf>, %425, %cst_140 [1] : vector<8x128xf32> to vector<8xf32>
    %427 = vector.shape_cast %426 : vector<8xf32> to vector<8x1xf32>
    %428 = vector.broadcast %427 : vector<8x1xf32> to vector<8x128xf32>
    %429 = arith.subf %425, %428 : vector<8x128xf32>
    %430 = math.exp %429 : vector<8x128xf32>
    %cst_141 = arith.constant dense<0.000000e+00> : vector<8xf32>
    %431 = vector.multi_reduction <add>, %430, %cst_141 [1] : vector<8x128xf32> to vector<8xf32>
    %432 = vector.shape_cast %431 : vector<8xf32> to vector<8x1xf32>
    %433 = tpu.reciprocal %432 {approx = true} : vector<8x1xf32> -> vector<8x1xf32>
    %434 = vector.broadcast %433 : vector<8x1xf32> to vector<8x128xf32>
    %435 = arith.mulf %430, %434 : vector<8x128xf32>
    %436 = vector.extract_strided_slice %317 {offsets = [0, 96], sizes = [128, 16], strides = [1, 1]} : vector<128x128xf32> to vector<128x16xf32>
    %cst_142 = arith.constant dense<0.000000e+00> : vector<8x16xf32>
    %437 = tpu.matmul %435, %436, %cst_142 {dimension_numbers = #tpu.dot_dimension_numbers<[1], [0], [0], [1], [0, 0, 1, 1], [], []>} : vector<8x128xf32>, vector<128x16xf32>, vector<8x16xf32> -> vector<8x16xf32>
    %438 = vector.extract_strided_slice %315 {offsets = [0, 112], sizes = [8, 16], strides = [1, 1]} : vector<8x128xf32> to vector<8x16xf32>
    %439 = vector.extract_strided_slice %316 {offsets = [112, 0], sizes = [16, 128], strides = [1, 1]} : vector<128x128xf32> to vector<16x128xf32>
    %cst_143 = arith.constant dense<0.000000e+00> : vector<8x128xf32>
    %440 = tpu.matmul %438, %439, %cst_143 {dimension_numbers = #tpu.dot_dimension_numbers<[1], [0], [0], [1], [0, 0, 1, 1], [], []>} : vector<8x16xf32>, vector<16x128xf32>, vector<8x128xf32> -> vector<8x128xf32>
    %441 = vector.broadcast %318 : vector<1x128xf32> to vector<8x128xf32>
    %442 = arith.addf %440, %441 : vector<8x128xf32>
    %cst_144 = arith.constant dense<0xFF800000> : vector<8xf32>
    %443 = vector.multi_reduction <maximumf>, %442, %cst_144 [1] : vector<8x128xf32> to vector<8xf32>
    %444 = vector.shape_cast %443 : vector<8xf32> to vector<8x1xf32>
    %445 = vector.broadcast %444 : vector<8x1xf32> to vector<8x128xf32>
    %446 = arith.subf %442, %445 : vector<8x128xf32>
    %447 = math.exp %446 : vector<8x128xf32>
    %cst_145 = arith.constant dense<0.000000e+00> : vector<8xf32>
    %448 = vector.multi_reduction <add>, %447, %cst_145 [1] : vector<8x128xf32> to vector<8xf32>
    %449 = vector.shape_cast %448 : vector<8xf32> to vector<8x1xf32>
    %450 = tpu.reciprocal %449 {approx = true} : vector<8x1xf32> -> vector<8x1xf32>
    %451 = vector.broadcast %450 : vector<8x1xf32> to vector<8x128xf32>
    %452 = arith.mulf %447, %451 : vector<8x128xf32>
    %453 = vector.extract_strided_slice %317 {offsets = [0, 112], sizes = [128, 16], strides = [1, 1]} : vector<128x128xf32> to vector<128x16xf32>
    %cst_146 = arith.constant dense<0.000000e+00> : vector<8x16xf32>
    %454 = tpu.matmul %452, %453, %cst_146 {dimension_numbers = #tpu.dot_dimension_numbers<[1], [0], [0], [1], [0, 0, 1, 1], [], []>} : vector<8x128xf32>, vector<128x16xf32>, vector<8x16xf32> -> vector<8x16xf32>
    %455 = tpu.concatenate %335, %352, %369, %386, %403, %420, %437, %454 in 1 : vector<8x16xf32>, vector<8x16xf32>, vector<8x16xf32>, vector<8x16xf32>, vector<8x16xf32>, vector<8x16xf32>, vector<8x16xf32>, vector<8x16xf32> -> vector<8x128xf32>
    %c2_147 = arith.constant 2 : index
    %c0_148 = arith.constant 0 : index
    %c0_149 = arith.constant 0 : index
    %456 = vector.load %arg4[%c2_147, %c0_148, %c0_149] : memref<3x128x128xf32, #tpu.memory_space<vmem>>, vector<1x128x128xf32>
    %457 = vector.shape_cast %456 : vector<1x128x128xf32> to vector<128x128xf32>
    %cst_150 = arith.constant dense<0.000000e+00> : vector<8x128xf32>
    %458 = tpu.matmul %455, %457, %cst_150 {dimension_numbers = #tpu.dot_dimension_numbers<[1], [0], [0], [1], [0, 0, 1, 1], [], []>} : vector<8x128xf32>, vector<128x128xf32>, vector<8x128xf32> -> vector<8x128xf32>
    %c2_151 = arith.constant 2 : index
    %c0_152 = arith.constant 0 : index
    %c0_153 = arith.constant 0 : index
    %459 = vector.load %arg5[%c2_151, %c0_152, %c0_153] : memref<3x1x128xf32, #tpu.memory_space<vmem>>, vector<1x1x128xf32>
    %460 = vector.shape_cast %459 : vector<1x1x128xf32> to vector<1x128xf32>
    %461 = vector.broadcast %460 : vector<1x128xf32> to vector<8x128xf32>
    %462 = arith.addf %458, %461 : vector<8x128xf32>
    %463 = arith.addf %308, %462 : vector<8x128xf32>
    %464 = arith.addf %154, %463 : vector<8x128xf32>
    %465 = arith.addf %0, %464 : vector<8x128xf32>
    %c0_154 = arith.constant 0 : index
    %c0_155 = arith.constant 0 : index
    %466 = vector.load %arg15[%c0_154, %c0_155] : memref<8x128xf32, #tpu.memory_space<vmem>>, vector<8x128xf32>
    tpu.vector_store %arg15[%c0_154, %c0_155], %465 {strides = array<i32>} : memref<8x128xf32, #tpu.memory_space<vmem>>, vector<8x128xf32>,
    return
  }
  func.func @transform_0(%arg0: i32) -> (i32, i32) {
    %c0_i32 = arith.constant 0 : i32
    %c0_i32_0 = arith.constant 0 : i32
    return %arg0, %c0_i32 : i32, i32
  }
  func.func @transform_1(%arg0: i32) -> (i32, i32, i32) {
    %c0_i32 = arith.constant 0 : i32
    %c0_i32_0 = arith.constant 0 : i32
    %c0_i32_1 = arith.constant 0 : i32
    %c0_i32_2 = arith.constant 0 : i32
    return %c0_i32, %c0_i32_0, %c0_i32_1 : i32, i32, i32
  }
  func.func @transform_2(%arg0: i32) -> (i32, i32, i32) {
    %c0_i32 = arith.constant 0 : i32
    %c0_i32_0 = arith.constant 0 : i32
    %c0_i32_1 = arith.constant 0 : i32
    %c0_i32_2 = arith.constant 0 : i32
    return %c0_i32, %c0_i32_0, %c0_i32_1 : i32, i32, i32
  }
  func.func @transform_3(%arg0: i32) -> (i32, i32, i32) {
    %c0_i32 = arith.constant 0 : i32
    %c0_i32_0 = arith.constant 0 : i32
    %c0_i32_1 = arith.constant 0 : i32
    %c0_i32_2 = arith.constant 0 : i32
    return %c0_i32, %c0_i32_0, %c0_i32_1 : i32, i32, i32
  }
  func.func @transform_4(%arg0: i32) -> (i32, i32, i32) {
    %c0_i32 = arith.constant 0 : i32
    %c0_i32_0 = arith.constant 0 : i32
    %c0_i32_1 = arith.constant 0 : i32
    %c0_i32_2 = arith.constant 0 : i32
    return %c0_i32, %c0_i32_0, %c0_i32_1 : i32, i32, i32
  }
  func.func @transform_5(%arg0: i32) -> (i32, i32) {
    %c0_i32 = arith.constant 0 : i32
    %c0_i32_0 = arith.constant 0 : i32
    %c0_i32_1 = arith.constant 0 : i32
    return %c0_i32, %c0_i32_0 : i32, i32
  }
  func.func @transform_6(%arg0: i32) -> (i32, i32) {
    %c0_i32 = arith.constant 0 : i32
    %c0_i32_0 = arith.constant 0 : i32
    %c0_i32_1 = arith.constant 0 : i32
    return %c0_i32, %c0_i32_0 : i32, i32
  }
  func.func @transform_7(%arg0: i32) -> (i32, i32) {
    %c0_i32 = arith.constant 0 : i32
    %c0_i32_0 = arith.constant 0 : i32
    %c0_i32_1 = arith.constant 0 : i32
    return %c0_i32, %c0_i32_0 : i32, i32
  }
  func.func @transform_8(%arg0: i32) -> (i32, i32) {
    %c0_i32 = arith.constant 0 : i32
    %c0_i32_0 = arith.constant 0 : i32
    %c0_i32_1 = arith.constant 0 : i32
    return %c0_i32, %c0_i32_0 : i32, i32
  }
  func.func @transform_9(%arg0: i32) -> (i32, i32) {
    %c0_i32 = arith.constant 0 : i32
    %c0_i32_0 = arith.constant 0 : i32
    %c0_i32_1 = arith.constant 0 : i32
    return %c0_i32, %c0_i32_0 : i32, i32
  }
  func.func @transform_10(%arg0: i32) -> (i32, i32) {
    %c0_i32 = arith.constant 0 : i32
    %c0_i32_0 = arith.constant 0 : i32
    %c0_i32_1 = arith.constant 0 : i32
    return %c0_i32, %c0_i32_0 : i32, i32
  }
  func.func @transform_11(%arg0: i32) -> (i32, i32) {
    %c0_i32 = arith.constant 0 : i32
    %c0_i32_0 = arith.constant 0 : i32
    %c0_i32_1 = arith.constant 0 : i32
    return %c0_i32, %c0_i32_0 : i32, i32
  }
  func.func @transform_12(%arg0: i32) -> (i32, i32) {
    %c0_i32 = arith.constant 0 : i32
    %c0_i32_0 = arith.constant 0 : i32
    %c0_i32_1 = arith.constant 0 : i32
    return %c0_i32, %c0_i32_0 : i32, i32
  }
  func.func @transform_13(%arg0: i32) -> (i32, i32) {
    %c0_i32 = arith.constant 0 : i32
    %c0_i32_0 = arith.constant 0 : i32
    %c0_i32_1 = arith.constant 0 : i32
    return %c0_i32, %c0_i32_0 : i32, i32
  }
  func.func @transform_14(%arg0: i32) -> (i32, i32) {
    %c0_i32 = arith.constant 0 : i32
    %c0_i32_0 = arith.constant 0 : i32
    return %arg0, %c0_i32 : i32, i32
  }
}

</mosaic_0001>

<llo_original>
// kernel: fractal_forward.1
$region0: #{fractal_forward.1}
  #allocation0 [shape = 'u32[]', space=smem, size = 0x4, offset = 0x4, fixed_abs, tag = 'smem constant byte address 0x4 - core index']
  #allocation1 [shape = 'u32[144,128]{1,0:T(1,128)}', space=vmem, size = 0x12000, scoped, tag = 'internal scratch']
  %s0 = inlined_call_operand.hbm [shape: f32[16,128], index: 0, kind: input, shape index: {}]
  %s1 = inlined_call_operand.hbm [shape: f32[3,128,128], index: 1, kind: input, shape index: {}]
  %s2 = inlined_call_operand.hbm [shape: f32[3,1,128], index: 2, kind: input, shape index: {}]
  %s3 = inlined_call_operand.hbm [shape: f32[3,128,128], index: 3, kind: input, shape index: {}]
  %s4 = inlined_call_operand.hbm [shape: f32[3,1,128], index: 4, kind: input, shape index: {}]
  %s5 = inlined_call_operand.hbm [shape: f32[128,128], index: 5, kind: input, shape index: {}]
  %s6 = inlined_call_operand.hbm [shape: f32[128,128], index: 6, kind: input, shape index: {}]
  %s7 = inlined_call_operand.hbm [shape: f32[1,128], index: 7, kind: input, shape index: {}]
  %s8 = inlined_call_operand.hbm [shape: f32[128,128], index: 8, kind: input, shape index: {}]
  %s9 = inlined_call_operand.hbm [shape: f32[128,128], index: 9, kind: input, shape index: {}]
  %s10 = inlined_call_operand.hbm [shape: f32[1,128], index: 10, kind: input, shape index: {}]
  %s11 = inlined_call_operand.hbm [shape: f32[128,128], index: 11, kind: input, shape index: {}]
  %s12 = inlined_call_operand.hbm [shape: f32[128,128], index: 12, kind: input, shape index: {}]
  %s13 = inlined_call_operand.hbm [shape: f32[1,128], index: 13, kind: input, shape index: {}]
  %s14 = inlined_call_operand.hbm [shape: f32[16,128], index: 14, kind: output, shape index: {}]
  %s15 = sld [smem:[#allocation0]]
  $region145: #{fractal_forward.1} parent=0
    _
  %s17 = ssub.s32 1, %s15
  %s18 = scalar_select 0, %s17, %s15
  $region1: #{fractal_forward.1} parent=0
    #allocation2 [shape = 'u8[8192]{0}', space=vmem, size = 0x2000, scoped, tag = 'input window, operand 0']
    #allocation3 [shape = 's32[2]{0}', space=sflag, size = 0x8, scoped, tag = 'scoped memory for fractal_forward.1']
    #allocation4 [shape = 's32[2]{0}', space=sflag, size = 0x8, scoped, tag = 'scoped memory for fractal_forward.1']
    #allocation5 [shape = 'u8[196608]{0}', space=vmem, size = 0x30000, scoped, tag = 'input window, operand 1, single buffered']
    #allocation6 [shape = 's32[1]{0}', space=sflag, size = 0x4, scoped, tag = 'scoped memory for fractal_forward.1']
    #allocation7 [shape = 'u8[1536]{0}', space=vmem, size = 0x800, scoped, tag = 'input window, operand 2, single buffered']
    #allocation8 [shape = 'u8[196608]{0}', space=vmem, size = 0x30000, scoped, tag = 'input window, operand 3, single buffered']
    #allocation9 [shape = 's32[1]{0}', space=sflag, size = 0x4, scoped, tag = 'scoped memory for fractal_forward.1']
    #allocation10 [shape = 'u8[1536]{0}', space=vmem, size = 0x800, scoped, tag = 'input window, operand 4, single buffered']
    #allocation11 [shape = 'u8[65536]{0}', space=vmem, size = 0x10000, scoped, tag = 'input window, operand 5, single buffered']
    #allocation12 [shape = 's32[1]{0}', space=sflag, size = 0x4, scoped, tag = 'scoped memory for fractal_forward.1']
    #allocation13 [shape = 'u8[65536]{0}', space=vmem, size = 0x10000, scoped, tag = 'input window, operand 6, single buffered']
    #allocation14 [shape = 'u8[512]{0}', space=vmem, size = 0x400, scoped, tag = 'input window, operand 7, single buffered']
    #allocation15 [shape = 's32[1]{0}', space=sflag, size = 0x4, scoped, tag = 'scoped memory for fractal_forward.1']
    #allocation16 [shape = 'u8[65536]{0}', space=vmem, size = 0x10000, scoped, tag = 'input window, operand 8, single buffered']
    #allocation17 [shape = 'u8[65536]{0}', space=vmem, size = 0x10000, scoped, tag = 'input window, operand 9, single buffered']
    #allocation18 [shape = 's32[1]{0}', space=sflag, size = 0x4, scoped, tag = 'scoped memory for fractal_forward.1']
    #allocation19 [shape = 'u8[512]{0}', space=vmem, size = 0x400, scoped, tag = 'input window, operand 10, single buffered']
    #allocation20 [shape = 'u8[65536]{0}', space=vmem, size = 0x10000, scoped, tag = 'input window, operand 11, single buffered']
    #allocation21 [shape = 's32[1]{0}', space=sflag, size = 0x4, scoped, tag = 'scoped memory for fractal_forward.1']
    #allocation22 [shape = 'u8[65536]{0}', space=vmem, size = 0x10000, scoped, tag = 'input window, operand 12, single buffered']
    #allocation23 [shape = 'u8[512]{0}', space=vmem, size = 0x400, scoped, tag = 'input window, operand 13, single buffered']
    #allocation24 [shape = 's32[1]{0}', space=sflag, size = 0x4, scoped, tag = 'scoped memory for fractal_forward.1']
    #allocation25 [shape = 'u8[8192]{0}', space=vmem, size = 0x2000, scoped, tag = 'output window, operand 0']
    %19 = vsyncpa [#allocation3], 0
    %s20 = scalar_lea.sflag [#allocation3], 1
    %21 = vsyncpa %s20, 0
    %22 = vsyncpa [#allocation6], 0
    %23 = vsyncpa [#allocation9], 0
    %24 = vsyncpa [#allocation12], 0
    %25 = vsyncpa [#allocation15], 0
    %26 = vsyncpa [#allocation18], 0
    %27 = vsyncpa [#allocation21], 0
    %28 = vsyncpa [#allocation24], 0
    %29 = vsyncpa [#allocation4], 0
    %s30 = scalar_lea.sflag [#allocation4], 1
    %31 = vsyncpa %s30, 0
    loop: start=0, step=1, limit=4
    $region2: #{fractal_forward.1} parent=1 // loop_pre_header
      _
    $region3: #{fractal_forward.1} parent=1 // loop_header
      %s33 = sphi 0, %s37
      %p34 = scmp.ge.s32.totalorder %s33, 4
      %s43 = sphi 0, %s45
      %s46 = sphi 0, %s43
      %s47 = sphi 0, %s46
      %s63 = sphi 0, %s47
      %s67 = sphi 0, %s67
      %s69 = sphi 0, %s67
      %s70 = sphi 0, %s69
      %s84 = sphi 0, %s70
      %s88 = sphi 0, %s88
      %s90 = sphi 0, %s88
      %s91 = sphi 0, %s90
      %s105 = sphi 0, %s91
      %s109 = sphi 0, %s109
      %s111 = sphi 0, %s109
      %s112 = sphi 0, %s111
      %s126 = sphi 0, %s112
      %s130 = sphi 0, %s130
      %s132 = sphi 0, %s130
      %s133 = sphi 0, %s132
      %s147 = sphi 0, %s133
      %s151 = sphi 0, %s151
      %s153 = sphi 0, %s151
      %s154 = sphi 0, %s153
      %s168 = sphi 0, %s154
      %s172 = sphi 0, %s172
      %s174 = sphi 0, %s172
      %s175 = sphi 0, %s174
      %s189 = sphi 0, %s175
      %s193 = sphi 0, %s193
      %s195 = sphi 0, %s193
      %s196 = sphi 0, %s195
      %s210 = sphi 0, %s196
      %s214 = sphi 0, %s214
      %s216 = sphi 0, %s214
      %s217 = sphi 0, %s216
      %s231 = sphi 0, %s217
      %s235 = sphi 0, %s235
      %s237 = sphi 0, %s235
      %s238 = sphi 0, %s237
      %s252 = sphi 0, %s238
      %s256 = sphi 0, %s256
      %s258 = sphi 0, %s256
      %s259 = sphi 0, %s258
      %s273 = sphi 0, %s259
      %s277 = sphi 0, %s277
      %s279 = sphi 0, %s277
      %s280 = sphi 0, %s279
      %s294 = sphi 0, %s280
      %s298 = sphi 0, %s298
      %s300 = sphi 0, %s298
      %s301 = sphi 0, %s300
      %s315 = sphi 0, %s301
      %s319 = sphi 0, %s319
      %s321 = sphi 0, %s319
      %s322 = sphi 0, %s321
      %s336 = sphi 0, %s322
      %s342 = sphi 0, %s344
      %s345 = sphi 0, %s342
      %s346 = sphi 0, %s345
      %s362 = sphi 0, %s346
    $region4: #{fractal_forward.1} parent=1 // loop_header_branch
      %36 = sbr.rel (%p34) target = $region8
    $region5: #{fractal_forward.1} parent=1 // loop_body
      %s38 = ssub.s32 %s33, 1
      %s39 = ssub.s32 %s33, 2
      %s40 = sadd.s32 %s33, 1
      %s41 = ssub.s32 %s33, %s40
      %p42 = scmp.eq.s32.totalorder %s41, 0
      %s44 = sadd.s32 %s43, 1
      %s45 = scalar_select %p42, %s43, %s44
      %p48 = pneg %p42
      %p49 = scmp.eq.s32.totalorder %s33, 1
      %p50 = por %p48, %p49
      %p51 = scmp.ne.s32.totalorder %s43, %s46
      %p52 = scmp.eq.s32.totalorder %s33, 0
      %p53 = por %p51, %p52
      %p54 = scmp.ne.s32.totalorder %s43, %s46
      %p55 = scmp.eq.s32.totalorder %s38, 1
      %p56 = por %p54, %p55
      %p57 = scmp.ne.s32.totalorder %s46, %s47
      %p58 = scmp.eq.s32.totalorder %s38, 0
      %p59 = por %p57, %p58
      %p60 = scmp.ne.s32.totalorder %s46, %s47
      %p61 = scmp.eq.s32.totalorder %s39, 1
      %p62 = por %p60, %p61
      %p64 = scmp.ne.s32.totalorder %s47, %s63
      %p65 = scmp.eq.s32.totalorder %s39, 0
      %p66 = por %p64, %p65
      %s68 = sadd.s32 %s67, 1
      %p71 = scmp.eq.s32.totalorder %s33, 1
      %p72 = scmp.ne.s32.totalorder %s67, %s69
      %p73 = scmp.eq.s32.totalorder %s33, 0
      %p74 = por %p72, %p73
      %p75 = scmp.ne.s32.totalorder %s67, %s69
      %p76 = scmp.eq.s32.totalorder %s38, 1
      %p77 = por %p75, %p76
      %p78 = scmp.ne.s32.totalorder %s69, %s70
      %p79 = scmp.eq.s32.totalorder %s38, 0
      %p80 = por %p78, %p79
      %p81 = scmp.ne.s32.totalorder %s69, %s70
      %p82 = scmp.eq.s32.totalorder %s39, 1
      %p83 = por %p81, %p82
      %p85 = scmp.ne.s32.totalorder %s70, %s84
      %p86 = scmp.eq.s32.totalorder %s39, 0
      %p87 = por %p85, %p86
      %s89 = sadd.s32 %s88, 1
      %p92 = scmp.eq.s32.totalorder %s33, 1
      %p93 = scmp.ne.s32.totalorder %s88, %s90
      %p94 = scmp.eq.s32.totalorder %s33, 0
      %p95 = por %p93, %p94
      %p96 = scmp.ne.s32.totalorder %s88, %s90
      %p97 = scmp.eq.s32.totalorder %s38, 1
      %p98 = por %p96, %p97
      %p99 = scmp.ne.s32.totalorder %s90, %s91
      %p100 = scmp.eq.s32.totalorder %s38, 0
      %p101 = por %p99, %p100
      %p102 = scmp.ne.s32.totalorder %s90, %s91
      %p103 = scmp.eq.s32.totalorder %s39, 1
      %p104 = por %p102, %p103
      %p106 = scmp.ne.s32.totalorder %s91, %s105
      %p107 = scmp.eq.s32.totalorder %s39, 0
      %p108 = por %p106, %p107
      %s110 = sadd.s32 %s109, 1
      %p113 = scmp.eq.s32.totalorder %s33, 1
      %p114 = scmp.ne.s32.totalorder %s109, %s111
      %p115 = scmp.eq.s32.totalorder %s33, 0
      %p116 = por %p114, %p115
      %p117 = scmp.ne.s32.totalorder %s109, %s111
      %p118 = scmp.eq.s32.totalorder %s38, 1
      %p119 = por %p117, %p118
      %p120 = scmp.ne.s32.totalorder %s111, %s112
      %p121 = scmp.eq.s32.totalorder %s38, 0
      %p122 = por %p120, %p121
      %p123 = scmp.ne.s32.totalorder %s111, %s112
      %p124 = scmp.eq.s32.totalorder %s39, 1
      %p125 = por %p123, %p124
      %p127 = scmp.ne.s32.totalorder %s112, %s126
      %p128 = scmp.eq.s32.totalorder %s39, 0
      %p129 = por %p127, %p128
      %s131 = sadd.s32 %s130, 1
      %p134 = scmp.eq.s32.totalorder %s33, 1
      %p135 = scmp.ne.s32.totalorder %s130, %s132
      %p136 = scmp.eq.s32.totalorder %s33, 0
      %p137 = por %p135, %p136
      %p138 = scmp.ne.s32.totalorder %s130, %s132
      %p139 = scmp.eq.s32.totalorder %s38, 1
      %p140 = por %p138, %p139
      %p141 = scmp.ne.s32.totalorder %s132, %s133
      %p142 = scmp.eq.s32.totalorder %s38, 0
      %p143 = por %p141, %p142
      %p144 = scmp.ne.s32.totalorder %s132, %s133
      %p145 = scmp.eq.s32.totalorder %s39, 1
      %p146 = por %p144, %p145
      %p148 = scmp.ne.s32.totalorder %s133, %s147
      %p149 = scmp.eq.s32.totalorder %s39, 0
      %p150 = por %p148, %p149
      %s152 = sadd.s32 %s151, 1
      %p155 = scmp.eq.s32.totalorder %s33, 1
      %p156 = scmp.ne.s32.totalorder %s151, %s153
      %p157 = scmp.eq.s32.totalorder %s33, 0
      %p158 = por %p156, %p157
      %p159 = scmp.ne.s32.totalorder %s151, %s153
      %p160 = scmp.eq.s32.totalorder %s38, 1
      %p161 = por %p159, %p160
      %p162 = scmp.ne.s32.totalorder %s153, %s154
      %p163 = scmp.eq.s32.totalorder %s38, 0
      %p164 = por %p162, %p163
      %p165 = scmp.ne.s32.totalorder %s153, %s154
      %p166 = scmp.eq.s32.totalorder %s39, 1
      %p167 = por %p165, %p166
      %p169 = scmp.ne.s32.totalorder %s154, %s168
      %p170 = scmp.eq.s32.totalorder %s39, 0
      %p171 = por %p169, %p170
      %s173 = sadd.s32 %s172, 1
      %p176 = scmp.eq.s32.totalorder %s33, 1
      %p177 = scmp.ne.s32.totalorder %s172, %s174
      %p178 = scmp.eq.s32.totalorder %s33, 0
      %p179 = por %p177, %p178
      %p180 = scmp.ne.s32.totalorder %s172, %s174
      %p181 = scmp.eq.s32.totalorder %s38, 1
      %p182 = por %p180, %p181
      %p183 = scmp.ne.s32.totalorder %s174, %s175
      %p184 = scmp.eq.s32.totalorder %s38, 0
      %p185 = por %p183, %p184
      %p186 = scmp.ne.s32.totalorder %s174, %s175
      %p187 = scmp.eq.s32.totalorder %s39, 1
      %p188 = por %p186, %p187
      %p190 = scmp.ne.s32.totalorder %s175, %s189
      %p191 = scmp.eq.s32.totalorder %s39, 0
      %p192 = por %p190, %p191
      %s194 = sadd.s32 %s193, 1
      %p197 = scmp.eq.s32.totalorder %s33, 1
      %p198 = scmp.ne.s32.totalorder %s193, %s195
      %p199 = scmp.eq.s32.totalorder %s33, 0
      %p200 = por %p198, %p199
      %p201 = scmp.ne.s32.totalorder %s193, %s195
      %p202 = scmp.eq.s32.totalorder %s38, 1
      %p203 = por %p201, %p202
      %p204 = scmp.ne.s32.totalorder %s195, %s196
      %p205 = scmp.eq.s32.totalorder %s38, 0
      %p206 = por %p204, %p205
      %p207 = scmp.ne.s32.totalorder %s195, %s196
      %p208 = scmp.eq.s32.totalorder %s39, 1
      %p209 = por %p207, %p208
      %p211 = scmp.ne.s32.totalorder %s196, %s210
      %p212 = scmp.eq.s32.totalorder %s39, 0
      %p213 = por %p211, %p212
      %s215 = sadd.s32 %s214, 1
      %p218 = scmp.eq.s32.totalorder %s33, 1
      %p219 = scmp.ne.s32.totalorder %s214, %s216
      %p220 = scmp.eq.s32.totalorder %s33, 0
      %p221 = por %p219, %p220
      %p222 = scmp.ne.s32.totalorder %s214, %s216
      %p223 = scmp.eq.s32.totalorder %s38, 1
      %p224 = por %p222, %p223
      %p225 = scmp.ne.s32.totalorder %s216, %s217
      %p226 = scmp.eq.s32.totalorder %s38, 0
      %p227 = por %p225, %p226
      %p228 = scmp.ne.s32.totalorder %s216, %s217
      %p229 = scmp.eq.s32.totalorder %s39, 1
      %p230 = por %p228, %p229
      %p232 = scmp.ne.s32.totalorder %s217, %s231
      %p233 = scmp.eq.s32.totalorder %s39, 0
      %p234 = por %p232, %p233
      %s236 = sadd.s32 %s235, 1
      %p239 = scmp.eq.s32.totalorder %s33, 1
      %p240 = scmp.ne.s32.totalorder %s235, %s237
      %p241 = scmp.eq.s32.totalorder %s33, 0
      %p242 = por %p240, %p241
      %p243 = scmp.ne.s32.totalorder %s235, %s237
      %p244 = scmp.eq.s32.totalorder %s38, 1
      %p245 = por %p243, %p244
      %p246 = scmp.ne.s32.totalorder %s237, %s238
      %p247 = scmp.eq.s32.totalorder %s38, 0
      %p248 = por %p246, %p247
      %p249 = scmp.ne.s32.totalorder %s237, %s238
      %p250 = scmp.eq.s32.totalorder %s39, 1
      %p251 = por %p249, %p250
      %p253 = scmp.ne.s32.totalorder %s238, %s252
      %p254 = scmp.eq.s32.totalorder %s39, 0
      %p255 = por %p253, %p254
      %s257 = sadd.s32 %s256, 1
      %p260 = scmp.eq.s32.totalorder %s33, 1
      %p261 = scmp.ne.s32.totalorder %s256, %s258
      %p262 = scmp.eq.s32.totalorder %s33, 0
      %p263 = por %p261, %p262
      %p264 = scmp.ne.s32.totalorder %s256, %s258
      %p265 = scmp.eq.s32.totalorder %s38, 1
      %p266 = por %p264, %p265
      %p267 = scmp.ne.s32.totalorder %s258, %s259
      %p268 = scmp.eq.s32.totalorder %s38, 0
      %p269 = por %p267, %p268
      %p270 = scmp.ne.s32.totalorder %s258, %s259
      %p271 = scmp.eq.s32.totalorder %s39, 1
      %p272 = por %p270, %p271
      %p274 = scmp.ne.s32.totalorder %s259, %s273
      %p275 = scmp.eq.s32.totalorder %s39, 0
      %p276 = por %p274, %p275
      %s278 = sadd.s32 %s277, 1
      %p281 = scmp.eq.s32.totalorder %s33, 1
      %p282 = scmp.ne.s32.totalorder %s277, %s279
      %p283 = scmp.eq.s32.totalorder %s33, 0
      %p284 = por %p282, %p283
      %p285 = scmp.ne.s32.totalorder %s277, %s279
      %p286 = scmp.eq.s32.totalorder %s38, 1
      %p287 = por %p285, %p286
      %p288 = scmp.ne.s32.totalorder %s279, %s280
      %p289 = scmp.eq.s32.totalorder %s38, 0
      %p290 = por %p288, %p289
      %p291 = scmp.ne.s32.totalorder %s279, %s280
      %p292 = scmp.eq.s32.totalorder %s39, 1
      %p293 = por %p291, %p292
      %p295 = scmp.ne.s32.totalorder %s280, %s294
      %p296 = scmp.eq.s32.totalorder %s39, 0
      %p297 = por %p295, %p296
      %s299 = sadd.s32 %s298, 1
      %p302 = scmp.eq.s32.totalorder %s33, 1
      %p303 = scmp.ne.s32.totalorder %s298, %s300
      %p304 = scmp.eq.s32.totalorder %s33, 0
      %p305 = por %p303, %p304
      %p306 = scmp.ne.s32.totalorder %s298, %s300
      %p307 = scmp.eq.s32.totalorder %s38, 1
      %p308 = por %p306, %p307
      %p309 = scmp.ne.s32.totalorder %s300, %s301
      %p310 = scmp.eq.s32.totalorder %s38, 0
      %p311 = por %p309, %p310
      %p312 = scmp.ne.s32.totalorder %s300, %s301
      %p313 = scmp.eq.s32.totalorder %s39, 1
      %p314 = por %p312, %p313
      %p316 = scmp.ne.s32.totalorder %s301, %s315
      %p317 = scmp.eq.s32.totalorder %s39, 0
      %p318 = por %p316, %p317
      %s320 = sadd.s32 %s319, 1
      %p323 = scmp.eq.s32.totalorder %s33, 1
      %p324 = scmp.ne.s32.totalorder %s319, %s321
      %p325 = scmp.eq.s32.totalorder %s33, 0
      %p326 = por %p324, %p325
      %p327 = scmp.ne.s32.totalorder %s319, %s321
      %p328 = scmp.eq.s32.totalorder %s38, 1
      %p329 = por %p327, %p328
      %p330 = scmp.ne.s32.totalorder %s321, %s322
      %p331 = scmp.eq.s32.totalorder %s38, 0
      %p332 = por %p330, %p331
      %p333 = scmp.ne.s32.totalorder %s321, %s322
      %p334 = scmp.eq.s32.totalorder %s39, 1
      %p335 = por %p333, %p334
      %p337 = scmp.ne.s32.totalorder %s322, %s336
      %p338 = scmp.eq.s32.totalorder %s39, 0
      %p339 = por %p337, %p338
      %s340 = ssub.s32 %s33, %s40
      %p341 = scmp.eq.s32.totalorder %s340, 0
      %s343 = sadd.s32 %s342, 1
      %s344 = scalar_select %p341, %s342, %s343
      %p347 = pneg %p341
      %p348 = scmp.eq.s32.totalorder %s33, 1
      %p349 = por %p347, %p348
      %p350 = scmp.ne.s32.totalorder %s342, %s345
      %p351 = scmp.eq.s32.totalorder %s33, 0
      %p352 = por %p350, %p351
      %p353 = scmp.ne.s32.totalorder %s342, %s345
      %p354 = scmp.eq.s32.totalorder %s38, 1
      %p355 = por %p353, %p354
      %p356 = scmp.ne.s32.totalorder %s345, %s346
      %p357 = scmp.eq.s32.totalorder %s38, 0
      %p358 = por %p356, %p357
      %p359 = scmp.ne.s32.totalorder %s345, %s346
      %p360 = scmp.eq.s32.totalorder %s39, 1
      %p361 = por %p359, %p360
      %p363 = scmp.ne.s32.totalorder %s346, %s362
      %p364 = scmp.eq.s32.totalorder %s39, 0
      %p365 = por %p363, %p364
      %p366 = scmp.le.s32.totalorder 1, %s33
      %p367 = scmp.lt.s32.totalorder %s33, 3
      %p368 = pnand %p366, %p367
      %p369 = pneg %p368
      // Predicated region
      $region9: #{fractal_forward.1} parent=5 // pred_check
        _
      $region10: #{fractal_forward.1} parent=5 // pred_check_branch
        %371 = sbr.rel (%p368) target = $region12
      $region11: #{fractal_forward.1} parent=5 // pred_region
        %s372 = ssub.s32 %s33, 1
        // Predicated region
        $region13: #{fractal_forward.1} parent=11 // pred_check
          %p373 = pneg %p80
        $region14: #{fractal_forward.1} parent=11 // pred_check_branch
          %375 = sbr.rel (%p373) target = $region16
        $region15: #{fractal_forward.1} parent=11 // pred_region
          %s377 = ssub.s32 6144, 6144
          %378 = vsyncadd [#allocation6], %s377
          %s379 = sshll.u32 [#allocation5], 4
          %s380 = int_to_ptr.vmem [resolvable:$true] %s379
          %385 = dma.hbm_to_vmem [thread:$0]  %s1, 6144, %s380, [#allocation6], 128, 128, 8
        $region16: #{fractal_forward.1} parent=11 // pred_fallthru
          _
        // Predicated region
        $region17: #{fractal_forward.1} parent=11 // pred_check
          %p386 = pneg %p101
        $region18: #{fractal_forward.1} parent=11 // pred_check_branch
          %388 = sbr.rel (%p386) target = $region20
        $region19: #{fractal_forward.1} parent=11 // pred_region
          %s390 = ssub.s32 48, 48
          %391 = vsyncadd [#allocation6], %s390
          %s392 = sshll.u32 [#allocation7], 4
          %s393 = int_to_ptr.vmem [resolvable:$true] %s392
          %398 = dma.hbm_to_vmem [thread:$0]  %s2, 48, %s393, [#allocation6], 16, 16, 1
        $region20: #{fractal_forward.1} parent=11 // pred_fallthru
          _
        // Predicated region
        $region21: #{fractal_forward.1} parent=11 // pred_check
          %p399 = pneg %p122
        $region22: #{fractal_forward.1} parent=11 // pred_check_branch
          %401 = sbr.rel (%p399) target = $region24
        $region23: #{fractal_forward.1} parent=11 // pred_region
          %s403 = ssub.s32 6144, 6144
          %404 = vsyncadd [#allocation9], %s403
          %s405 = sshll.u32 [#allocation8], 4
          %s406 = int_to_ptr.vmem [resolvable:$true] %s405
          %411 = dma.hbm_to_vmem [thread:$0]  %s3, 6144, %s406, [#allocation9], 128, 128, 8
        $region24: #{fractal_forward.1} parent=11 // pred_fallthru
          _
        // Predicated region
        $region25: #{fractal_forward.1} parent=11 // pred_check
          %p412 = pneg %p143
        $region26: #{fractal_forward.1} parent=11 // pred_check_branch
          %414 = sbr.rel (%p412) target = $region28
        $region27: #{fractal_forward.1} parent=11 // pred_region
          %s416 = ssub.s32 48, 48
          %417 = vsyncadd [#allocation9], %s416
          %s418 = sshll.u32 [#allocation10], 4
          %s419 = int_to_ptr.vmem [resolvable:$true] %s418
          %424 = dma.hbm_to_vmem [thread:$0]  %s4, 48, %s419, [#allocation9], 16, 16, 1
        $region28: #{fractal_forward.1} parent=11 // pred_fallthru
          _
        // Predicated region
        $region29: #{fractal_forward.1} parent=11 // pred_check
          %p425 = pneg %p164
        $region30: #{fractal_forward.1} parent=11 // pred_check_branch
          %427 = sbr.rel (%p425) target = $region32
        $region31: #{fractal_forward.1} parent=11 // pred_region
          %s429 = ssub.s32 2048, 2048
          %430 = vsyncadd [#allocation12], %s429
          %s431 = sshll.u32 [#allocation11], 4
          %s432 = int_to_ptr.vmem [resolvable:$true] %s431
          %437 = dma.hbm_to_vmem [thread:$0]  %s5, 2048, %s432, [#allocation12], 128, 128, 8
        $region32: #{fractal_forward.1} parent=11 // pred_fallthru
          _
        // Predicated region
        $region33: #{fractal_forward.1} parent=11 // pred_check
          %p438 = pneg %p185
        $region34: #{fractal_forward.1} parent=11 // pred_check_branch
          %440 = sbr.rel (%p438) target = $region36
        $region35: #{fractal_forward.1} parent=11 // pred_region
          %s442 = ssub.s32 2048, 2048
          %443 = vsyncadd [#allocation12], %s442
          %s444 = sshll.u32 [#allocation13], 4
          %s445 = int_to_ptr.vmem [resolvable:$true] %s444
          %450 = dma.hbm_to_vmem [thread:$0]  %s6, 2048, %s445, [#allocation12], 128, 128, 8
        $region36: #{fractal_forward.1} parent=11 // pred_fallthru
          _
        // Predicated region
        $region37: #{fractal_forward.1} parent=11 // pred_check
          %p451 = pneg %p206
        $region38: #{fractal_forward.1} parent=11 // pred_check_branch
          %453 = sbr.rel (%p451) target = $region40
        $region39: #{fractal_forward.1} parent=11 // pred_region
          %s455 = ssub.s32 16, 16
          %456 = vsyncadd [#allocation15], %s455
          %s458 = sshll.u32 [#allocation14], 4
          %s459 = int_to_ptr.vmem [resolvable:$true] %s458
          %461 = dma.hbm_to_vmem [thread:$0]  %s7, 16, %s459, [#allocation15]
        $region40: #{fractal_forward.1} parent=11 // pred_fallthru
          _
        // Predicated region
        $region41: #{fractal_forward.1} parent=11 // pred_check
          %p462 = pneg %p227
        $region42: #{fractal_forward.1} parent=11 // pred_check_branch
          %464 = sbr.rel (%p462) target = $region44
        $region43: #{fractal_forward.1} parent=11 // pred_region
          %s466 = ssub.s32 2048, 2048
          %467 = vsyncadd [#allocation15], %s466
          %s468 = sshll.u32 [#allocation16], 4
          %s469 = int_to_ptr.vmem [resolvable:$true] %s468
          %474 = dma.hbm_to_vmem [thread:$0]  %s8, 2048, %s469, [#allocation15], 128, 128, 8
        $region44: #{fractal_forward.1} parent=11 // pred_fallthru
          _
        // Predicated region
        $region45: #{fractal_forward.1} parent=11 // pred_check
          %p475 = pneg %p248
        $region46: #{fractal_forward.1} parent=11 // pred_check_branch
          %477 = sbr.rel (%p475) target = $region48
        $region47: #{fractal_forward.1} parent=11 // pred_region
          %s479 = ssub.s32 2048, 2048
          %480 = vsyncadd [#allocation18], %s479
          %s481 = sshll.u32 [#allocation17], 4
          %s482 = int_to_ptr.vmem [resolvable:$true] %s481
          %487 = dma.hbm_to_vmem [thread:$0]  %s9, 2048, %s482, [#allocation18], 128, 128, 8
        $region48: #{fractal_forward.1} parent=11 // pred_fallthru
          _
        // Predicated region
        $region49: #{fractal_forward.1} parent=11 // pred_check
          %p488 = pneg %p269
        $region50: #{fractal_forward.1} parent=11 // pred_check_branch
          %490 = sbr.rel (%p488) target = $region52
        $region51: #{fractal_forward.1} parent=11 // pred_region
          %s492 = ssub.s32 16, 16
          %493 = vsyncadd [#allocation18], %s492
          %s495 = sshll.u32 [#allocation19], 4
          %s496 = int_to_ptr.vmem [resolvable:$true] %s495
          %498 = dma.hbm_to_vmem [thread:$0]  %s10, 16, %s496, [#allocation18]
        $region52: #{fractal_forward.1} parent=11 // pred_fallthru
          _
        // Predicated region
        $region53: #{fractal_forward.1} parent=11 // pred_check
          %p499 = pneg %p290
        $region54: #{fractal_forward.1} parent=11 // pred_check_branch
          %501 = sbr.rel (%p499) target = $region56
        $region55: #{fractal_forward.1} parent=11 // pred_region
          %s503 = ssub.s32 2048, 2048
          %504 = vsyncadd [#allocation21], %s503
          %s505 = sshll.u32 [#allocation20], 4
          %s506 = int_to_ptr.vmem [resolvable:$true] %s505
          %511 = dma.hbm_to_vmem [thread:$0]  %s11, 2048, %s506, [#allocation21], 128, 128, 8
        $region56: #{fractal_forward.1} parent=11 // pred_fallthru
          _
        // Predicated region
        $region57: #{fractal_forward.1} parent=11 // pred_check
          %p512 = pneg %p311
        $region58: #{fractal_forward.1} parent=11 // pred_check_branch
          %514 = sbr.rel (%p512) target = $region60
        $region59: #{fractal_forward.1} parent=11 // pred_region
          %s516 = ssub.s32 2048, 2048
          %517 = vsyncadd [#allocation21], %s516
          %s518 = sshll.u32 [#allocation22], 4
          %s519 = int_to_ptr.vmem [resolvable:$true] %s518
          %524 = dma.hbm_to_vmem [thread:$0]  %s12, 2048, %s519, [#allocation21], 128, 128, 8
        $region60: #{fractal_forward.1} parent=11 // pred_fallthru
          _
        // Predicated region
        $region61: #{fractal_forward.1} parent=11 // pred_check
          %p525 = pneg %p332
        $region62: #{fractal_forward.1} parent=11 // pred_check_branch
          %527 = sbr.rel (%p525) target = $region64
        $region63: #{fractal_forward.1} parent=11 // pred_region
          %s529 = ssub.s32 16, 16
          %530 = vsyncadd [#allocation24], %s529
          %s532 = sshll.u32 [#allocation23], 4
          %s533 = int_to_ptr.vmem [resolvable:$true] %s532
          %535 = dma.hbm_to_vmem [thread:$0]  %s13, 16, %s533, [#allocation24]
        $region64: #{fractal_forward.1} parent=11 // pred_fallthru
          _
      $region12: #{fractal_forward.1} parent=5 // pred_fallthru
        _
      %p536 = scmp.lt.s32.totalorder %s33, 2
      // Predicated region
      $region65: #{fractal_forward.1} parent=5 // pred_check
        %p537 = pneg %p536
      $region66: #{fractal_forward.1} parent=5 // pred_check_branch
        %539 = sbr.rel (%p537) target = $region68
      $region67: #{fractal_forward.1} parent=5 // pred_region
        // Predicated region
        $region69: #{fractal_forward.1} parent=67 // pred_check
          %p540 = pneg %p53
        $region70: #{fractal_forward.1} parent=67 // pred_check_branch
          %542 = sbr.rel (%p540) target = $region72
        $region71: #{fractal_forward.1} parent=67 // pred_region
          %s543 = sand.u32 %s43, 1
          %s544 = scalar_lea.sflag [#allocation3], %s543
          %s545 = sand.u32 %s43, 1
          %s546 = smul.addr %s545, 8
          %s547 = scalar_lea.vmem [#allocation2], %s546
          %s549 = ssub.s32 128, 128
          %550 = vsyncadd %s544, %s549
          %s551 = smul.addr %s33, 128
          %s552 = scalar_lea.hbm %s0, %s551
          %s554 = sshll.u32 %s547, 4
          %s555 = int_to_ptr.vmem [resolvable:$true] %s554
          %557 = dma.hbm_to_vmem [thread:$0]  %s552, 128, %s555, %s544
        $region72: #{fractal_forward.1} parent=67 // pred_fallthru
          _
      $region68: #{fractal_forward.1} parent=5 // pred_fallthru
        _
      %p558 = scmp.le.s32.totalorder 1, %s33
      %p559 = scmp.lt.s32.totalorder %s33, 3
      %p560 = pnand %p558, %p559
      %p561 = pneg %p560
      // Predicated region
      $region73: #{fractal_forward.1} parent=5 // pred_check
        _
      $region74: #{fractal_forward.1} parent=5 // pred_check_branch
        %563 = sbr.rel (%p560) target = $region76
      $region75: #{fractal_forward.1} parent=5 // pred_region
        %s564 = ssub.s32 %s33, 1
        %s565 = sand.u32 %s46, 1
        %s566 = scalar_lea.sflag [#allocation3], %s565
        %s567 = sand.u32 %s46, 1
        %s568 = smul.addr %s567, 8
        %s569 = scalar_lea.vmem [#allocation2], %s568
        // Predicated region
        $region77: #{fractal_forward.1} parent=75 // pred_check
          %p570 = pneg %p59
        $region78: #{fractal_forward.1} parent=75 // pred_check_branch
          %572 = sbr.rel (%p570) target = $region80
        $region79: #{fractal_forward.1} parent=75 // pred_region
          %573 = dma.done %s566, 128
        $region80: #{fractal_forward.1} parent=75 // pred_fallthru
          _
        // Predicated region
        $region81: #{fractal_forward.1} parent=75 // pred_check
          %p574 = pneg %p80
        $region82: #{fractal_forward.1} parent=75 // pred_check_branch
          %576 = sbr.rel (%p574) target = $region84
        $region83: #{fractal_forward.1} parent=75 // pred_region
          %577 = dma.done [#allocation6], 6144
        $region84: #{fractal_forward.1} parent=75 // pred_fallthru
          _
        // Predicated region
        $region85: #{fractal_forward.1} parent=75 // pred_check
          %p578 = pneg %p101
        $region86: #{fractal_forward.1} parent=75 // pred_check_branch
          %580 = sbr.rel (%p578) target = $region88
        $region87: #{fractal_forward.1} parent=75 // pred_region
          %581 = dma.done [#allocation6], 48
        $region88: #{fractal_forward.1} parent=75 // pred_fallthru
          _
        // Predicated region
        $region89: #{fractal_forward.1} parent=75 // pred_check
          %p582 = pneg %p122
        $region90: #{fractal_forward.1} parent=75 // pred_check_branch
          %584 = sbr.rel (%p582) target = $region92
        $region91: #{fractal_forward.1} parent=75 // pred_region
          %585 = dma.done [#allocation9], 6144
        $region92: #{fractal_forward.1} parent=75 // pred_fallthru
          _
        // Predicated region
        $region93: #{fractal_forward.1} parent=75 // pred_check
          %p586 = pneg %p143
        $region94: #{fractal_forward.1} parent=75 // pred_check_branch
          %588 = sbr.rel (%p586) target = $region96
        $region95: #{fractal_forward.1} parent=75 // pred_region
          %589 = dma.done [#allocation9], 48
        $region96: #{fractal_forward.1} parent=75 // pred_fallthru
          _
        // Predicated region
        $region97: #{fractal_forward.1} parent=75 // pred_check
          %p590 = pneg %p164
        $region98: #{fractal_forward.1} parent=75 // pred_check_branch
          %592 = sbr.rel (%p590) target = $region100
        $region99: #{fractal_forward.1} parent=75 // pred_region
          %593 = dma.done [#allocation12], 2048
        $region100: #{fractal_forward.1} parent=75 // pred_fallthru
          _
        // Predicated region
        $region101: #{fractal_forward.1} parent=75 // pred_check
          %p594 = pneg %p185
        $region102: #{fractal_forward.1} parent=75 // pred_check_branch
          %596 = sbr.rel (%p594) target = $region104
        $region103: #{fractal_forward.1} parent=75 // pred_region
          %597 = dma.done [#allocation12], 2048
        $region104: #{fractal_forward.1} parent=75 // pred_fallthru
          _
        // Predicated region
        $region105: #{fractal_forward.1} parent=75 // pred_check
          %p598 = pneg %p206
        $region106: #{fractal_forward.1} parent=75 // pred_check_branch
          %600 = sbr.rel (%p598) target = $region108
        $region107: #{fractal_forward.1} parent=75 // pred_region
          %601 = dma.done [#allocation15], 16
        $region108: #{fractal_forward.1} parent=75 // pred_fallthru
          _
        // Predicated region
        $region109: #{fractal_forward.1} parent=75 // pred_check
          %p602 = pneg %p227
        $region110: #{fractal_forward.1} parent=75 // pred_check_branch
          %604 = sbr.rel (%p602) target = $region112
        $region111: #{fractal_forward.1} parent=75 // pred_region
          %605 = dma.done [#allocation15], 2048
        $region112: #{fractal_forward.1} parent=75 // pred_fallthru
          _
        // Predicated region
        $region113: #{fractal_forward.1} parent=75 // pred_check
          %p606 = pneg %p248
        $region114: #{fractal_forward.1} parent=75 // pred_check_branch
          %608 = sbr.rel (%p606) target = $region116
        $region115: #{fractal_forward.1} parent=75 // pred_region
          %609 = dma.done [#allocation18], 2048
        $region116: #{fractal_forward.1} parent=75 // pred_fallthru
          _
        // Predicated region
        $region117: #{fractal_forward.1} parent=75 // pred_check
          %p610 = pneg %p269
        $region118: #{fractal_forward.1} parent=75 // pred_check_branch
          %612 = sbr.rel (%p610) target = $region120
        $region119: #{fractal_forward.1} parent=75 // pred_region
          %613 = dma.done [#allocation18], 16
        $region120: #{fractal_forward.1} parent=75 // pred_fallthru
          _
        // Predicated region
        $region121: #{fractal_forward.1} parent=75 // pred_check
          %p614 = pneg %p290
        $region122: #{fractal_forward.1} parent=75 // pred_check_branch
          %616 = sbr.rel (%p614) target = $region124
        $region123: #{fractal_forward.1} parent=75 // pred_region
          %617 = dma.done [#allocation21], 2048
        $region124: #{fractal_forward.1} parent=75 // pred_fallthru
          _
        // Predicated region
        $region125: #{fractal_forward.1} parent=75 // pred_check
          %p618 = pneg %p311
        $region126: #{fractal_forward.1} parent=75 // pred_check_branch
          %620 = sbr.rel (%p618) target = $region128
        $region127: #{fractal_forward.1} parent=75 // pred_region
          %621 = dma.done [#allocation21], 2048
        $region128: #{fractal_forward.1} parent=75 // pred_fallthru
          _
        // Predicated region
        $region129: #{fractal_forward.1} parent=75 // pred_check
          %p622 = pneg %p332
        $region130: #{fractal_forward.1} parent=75 // pred_check_branch
          %624 = sbr.rel (%p622) target = $region132
        $region131: #{fractal_forward.1} parent=75 // pred_region
          %625 = dma.done [#allocation24], 16
        $region132: #{fractal_forward.1} parent=75 // pred_fallthru
          _
        %s626 = sand.u32 %s46, 1
        %s627 = scalar_lea.sflag [#allocation3], %s626
        %s628 = sand.u32 %s46, 1
        %s629 = smul.addr %s628, 8
        %s630 = scalar_lea.vmem [#allocation2], %s629
        %p631 = pneg %p59
        %p632 = pneg %p56
        %p633 = pneg %p80
        %p634 = pneg %p77
        %p635 = pneg %p101
        %p636 = pneg %p98
        %p637 = pneg %p122
        %p638 = pneg %p119
        %p639 = pneg %p143
        %p640 = pneg %p140
        %p641 = pneg %p164
        %p642 = pneg %p161
        %p643 = pneg %p185
        %p644 = pneg %p182
        %p645 = pneg %p206
        %p646 = pneg %p203
        %p647 = pneg %p227
        %p648 = pneg %p224
        %p649 = pneg %p248
        %p650 = pneg %p245
        %p651 = pneg %p269
        %p652 = pneg %p266
        %p653 = pneg %p290
        %p654 = pneg %p287
        %p655 = pneg %p311
        %p656 = pneg %p308
        %p657 = pneg %p332
        %p658 = pneg %p329
        %p659 = pneg %p358
        %p660 = pneg %p355
        %s661 = sand.u32 %s345, 1
        %s662 = scalar_lea.sflag [#allocation4], %s661
        %s663 = sand.u32 %s345, 1
        %s664 = smul.addr %s663, 8
        %s665 = scalar_lea.vmem [#allocation25], %s664
        %v666 = vld [vmem:[%s569] sm:$0xff]
        %v667 = vld [vmem:[#allocation5] sm:$0xff]
        %v668 = vld [vmem:[#allocation5 + $0x8] sm:$0xff]
        %v669 = vld [vmem:[#allocation5 + $0x10] sm:$0xff]
        %v670 = vld [vmem:[#allocation5 + $0x18] sm:$0xff]
        %v671 = vld [vmem:[#allocation5 + $0x20] sm:$0xff]
        %v672 = vld [vmem:[#allocation5 + $0x28] sm:$0xff]
        %v673 = vld [vmem:[#allocation5 + $0x30] sm:$0xff]
        %v674 = vld [vmem:[#allocation5 + $0x38] sm:$0xff]
        %v675 = vld [vmem:[#allocation5 + $0x40] sm:$0xff]
        %v676 = vld [vmem:[#allocation5 + $0x48] sm:$0xff]
        %v677 = vld [vmem:[#allocation5 + $0x50] sm:$0xff]
        %v678 = vld [vmem:[#allocation5 + $0x58] sm:$0xff]
        %v679 = vld [vmem:[#allocation5 + $0x60] sm:$0xff]
        %v680 = vld [vmem:[#allocation5 + $0x68] sm:$0xff]
        %v681 = vld [vmem:[#allocation5 + $0x70] sm:$0xff]
        %v682 = vld [vmem:[#allocation5 + $0x78] sm:$0xff]
        %v683 = vld [vmem:[#allocation7] sm:$0x1]
        %v685 = vlaneseq
        %v686 = vshrl.u32 %v685, 7
        %v687 = vsub.s32 0, %v686
        %v688 = vrot.slane %v683, %v687
        %690 = vmatprep.subr.mxu0 0.0
        %691 = vmatpush1.msra.mxu0 %v667
        %692 = vmatprep.subr.mxu0 0.0
        %693 = vmatpush1.msra.mxu0 %v668
        %694 = vmatprep.subr.mxu0 0.0
        %695 = vmatpush1.msra.mxu0 %v669
        %696 = vmatprep.subr.mxu0 0.0
        %697 = vmatpush1.msra.mxu0 %v670
        %698 = vmatprep.subr.mxu0 0.0
        %699 = vmatpush1.msra.mxu0 %v671
        %700 = vmatprep.subr.mxu0 0.0
        %701 = vmatpush1.msra.mxu0 %v672
        %702 = vmatprep.subr.mxu0 0.0
        %703 = vmatpush1.msra.mxu0 %v673
        %704 = vmatprep.subr.mxu0 0.0
        %705 = vmatpush1.msra.mxu0 %v674
        %706 = vmatprep.subr.mxu0 0.0
        %707 = vmatpush1.msra.mxu0 %v675
        %708 = vmatprep.subr.mxu0 0.0
        %709 = vmatpush1.msra.mxu0 %v676
        %710 = vmatprep.subr.mxu0 0.0
        %711 = vmatpush1.msra.mxu0 %v677
        %712 = vmatprep.subr.mxu0 0.0
        %713 = vmatpush1.msra.mxu0 %v678
        %714 = vmatprep.subr.mxu0 0.0
        %715 = vmatpush1.msra.mxu0 %v679
        %716 = vmatprep.subr.mxu0 0.0
        %717 = vmatpush1.msra.mxu0 %v680
        %718 = vmatprep.subr.mxu0 0.0
        %719 = vmatpush1.msra.mxu0 %v681
        %720 = vmatprep.subr.mxu0 0.0
        %721 = vmatpush1.msra.mxu0 %v682
        %722 = vmatprep.subr.mxu0 0.0
        %723 = vmatpush1.msra.mxu0 0.0
        %724 = vmatprep.subr.mxu0 0.0
        %725 = vmatpush1.msra.mxu0 0.0
        %726 = vmatprep.subr.mxu0 0.0
        %727 = vmatpush1.msra.mxu0 0.0
        %728 = vmatprep.subr.mxu0 0.0
        %729 = vmatpush1.msra.mxu0 0.0
        %730 = vmatprep.subr.mxu0 0.0
        %731 = vmatpush1.msra.mxu0 0.0
        %732 = vmatprep.subr.mxu0 0.0
        %733 = vmatpush1.msra.mxu0 0.0
        %734 = vmatprep.subr.mxu0 0.0
        %735 = vmatpush1.msra.mxu0 0.0
        %736 = vmatprep.subr.mxu0 0.0
        %737 = vmatpush1.msra.mxu0 0.0
        %738 = vmatprep.subr.mxu0 0.0
        %739 = vmatpush1.msra.mxu0 0.0
        %740 = vmatprep.subr.mxu0 0.0
        %741 = vmatpush1.msra.mxu0 0.0
        %742 = vmatprep.subr.mxu0 0.0
        %743 = vmatpush1.msra.mxu0 0.0
        %744 = vmatprep.subr.mxu0 0.0
        %745 = vmatpush1.msra.mxu0 0.0
        %746 = vmatprep.subr.mxu0 0.0
        %747 = vmatpush1.msra.mxu0 0.0
        %748 = vmatprep.subr.mxu0 0.0
        %749 = vmatpush1.msra.mxu0 0.0
        %750 = vmatprep.subr.mxu0 0.0
        %751 = vmatpush1.msra.mxu0 0.0
        %752 = vmatprep.subr.mxu0 0.0
        %753 = vmatpush1.msra.mxu0 0.0
        %754 = vmatprep.mubr.f32.mxu0 0.0
        %755 = vmatmul.mubr.f32.gmra.mrb[0].mxu0 %v666
        %v756 = vpop.f32.mrb[0].mxu0
        %v757 = vadd.f32 %v688, %v756
        %v758 = vpop.f32.mrb[0].mxu0
        %759 = vdwg.mxu0
        %v760 = vld [vmem:[#allocation11] sm:$0xff]
        %v761 = vld [vmem:[#allocation11 + $0x8] sm:$0xff]
        %v762 = vld [vmem:[#allocation11 + $0x10] sm:$0xff]
        %v763 = vld [vmem:[#allocation11 + $0x18] sm:$0xff]
        %v764 = vld [vmem:[#allocation11 + $0x20] sm:$0xff]
        %v765 = vld [vmem:[#allocation11 + $0x28] sm:$0xff]
        %v766 = vld [vmem:[#allocation11 + $0x30] sm:$0xff]
        %v767 = vld [vmem:[#allocation11 + $0x38] sm:$0xff]
        %v768 = vld [vmem:[#allocation11 + $0x40] sm:$0xff]
        %v769 = vld [vmem:[#allocation11 + $0x48] sm:$0xff]
        %v770 = vld [vmem:[#allocation11 + $0x50] sm:$0xff]
        %v771 = vld [vmem:[#allocation11 + $0x58] sm:$0xff]
        %v772 = vld [vmem:[#allocation11 + $0x60] sm:$0xff]
        %v773 = vld [vmem:[#allocation11 + $0x68] sm:$0xff]
        %v774 = vld [vmem:[#allocation11 + $0x70] sm:$0xff]
        %v775 = vld [vmem:[#allocation11 + $0x78] sm:$0xff]
        %v776 = vld [vmem:[#allocation13] sm:$0xff]
        %v777 = vld [vmem:[#allocation13 + $0x8] sm:$0xff]
        %v778 = vld [vmem:[#allocation13 + $0x10] sm:$0xff]
        %v779 = vld [vmem:[#allocation13 + $0x18] sm:$0xff]
        %v780 = vld [vmem:[#allocation13 + $0x20] sm:$0xff]
        %v781 = vld [vmem:[#allocation13 + $0x28] sm:$0xff]
        %v782 = vld [vmem:[#allocation13 + $0x30] sm:$0xff]
        %v783 = vld [vmem:[#allocation13 + $0x38] sm:$0xff]
        %v784 = vld [vmem:[#allocation13 + $0x40] sm:$0xff]
        %v785 = vld [vmem:[#allocation13 + $0x48] sm:$0xff]
        %v786 = vld [vmem:[#allocation13 + $0x50] sm:$0xff]
        %v787 = vld [vmem:[#allocation13 + $0x58] sm:$0xff]
        %v788 = vld [vmem:[#allocation13 + $0x60] sm:$0xff]
        %v789 = vld [vmem:[#allocation13 + $0x68] sm:$0xff]
        %v790 = vld [vmem:[#allocation13 + $0x70] sm:$0xff]
        %v791 = vld [vmem:[#allocation13 + $0x78] sm:$0xff]
        %v792 = vld [vmem:[#allocation14] sm:$0x1]
        %v794 = vlaneseq
        %v795 = vshrl.u32 %v794, 7
        %v796 = vsub.s32 0, %v795
        %v797 = vrot.slane %v792, %v796
        %vm799 = vcmask 130048
        %v801 = vsel %vm799, %v757, 0
        %803 = vmatprep.subr.mxu0 0.0
        %804 = vmatpush1.msra.mxu0 %v760
        %805 = vmatprep.subr.mxu0 0.0
        %806 = vmatpush1.msra.mxu0 %v761
        %807 = vmatprep.subr.mxu0 0.0
        %808 = vmatpush1.msra.mxu0 0.0
        %809 = vmatprep.subr.mxu0 0.0
        %810 = vmatpush1.msra.mxu0 0.0
        %811 = vmatprep.subr.mxu0 0.0
        %812 = vmatpush1.msra.mxu0 0.0
        %813 = vmatprep.subr.mxu0 0.0
        %814 = vmatpush1.msra.mxu0 0.0
        %815 = vmatprep.subr.mxu0 0.0
        %816 = vmatpush1.msra.mxu0 0.0
        %817 = vmatprep.subr.mxu0 0.0
        %818 = vmatpush1.msra.mxu0 0.0
        %819 = vmatprep.subr.mxu0 0.0
        %820 = vmatpush1.msra.mxu0 0.0
        %821 = vmatprep.subr.mxu0 0.0
        %822 = vmatpush1.msra.mxu0 0.0
        %823 = vmatprep.subr.mxu0 0.0
        %824 = vmatpush1.msra.mxu0 0.0
        %825 = vmatprep.subr.mxu0 0.0
        %826 = vmatpush1.msra.mxu0 0.0
        %827 = vmatprep.subr.mxu0 0.0
        %828 = vmatpush1.msra.mxu0 0.0
        %829 = vmatprep.subr.mxu0 0.0
        %830 = vmatpush1.msra.mxu0 0.0
        %831 = vmatprep.subr.mxu0 0.0
        %832 = vmatpush1.msra.mxu0 0.0
        %833 = vmatprep.subr.mxu0 0.0
        %834 = vmatpush1.msra.mxu0 0.0
        %835 = vmatprep.subr.mxu0 0.0
        %836 = vmatpush1.msra.mxu0 0.0
        %837 = vmatprep.subr.mxu0 0.0
        %838 = vmatpush1.msra.mxu0 0.0
        %839 = vmatprep.subr.mxu0 0.0
        %840 = vmatpush1.msra.mxu0 0.0
        %841 = vmatprep.subr.mxu0 0.0
        %842 = vmatpush1.msra.mxu0 0.0
        %843 = vmatprep.subr.mxu0 0.0
        %844 = vmatpush1.msra.mxu0 0.0
        %845 = vmatprep.subr.mxu0 0.0
        %846 = vmatpush1.msra.mxu0 0.0
        %847 = vmatprep.subr.mxu0 0.0
        %848 = vmatpush1.msra.mxu0 0.0
        %849 = vmatprep.subr.mxu0 0.0
        %850 = vmatpush1.msra.mxu0 0.0
        %851 = vmatprep.subr.mxu0 0.0
        %852 = vmatpush1.msra.mxu0 0.0
        %853 = vmatprep.subr.mxu0 0.0
        %854 = vmatpush1.msra.mxu0 0.0
        %855 = vmatprep.subr.mxu0 0.0
        %856 = vmatpush1.msra.mxu0 0.0
        %857 = vmatprep.subr.mxu0 0.0
        %858 = vmatpush1.msra.mxu0 0.0
        %859 = vmatprep.subr.mxu0 0.0
        %860 = vmatpush1.msra.mxu0 0.0
        %861 = vmatprep.subr.mxu0 0.0
        %862 = vmatpush1.msra.mxu0 0.0
        %863 = vmatprep.subr.mxu0 0.0
        %864 = vmatpush1.msra.mxu0 0.0
        %865 = vmatprep.subr.mxu0 0.0
        %866 = vmatpush1.msra.mxu0 0.0
        %867 = vmatprep.mubr.f32.mxu0 0.0
        %868 = vmatmul.mubr.f32.gmra.mrb[0].mxu0 %v801
        %v869 = vpop.f32.mrb[0].mxu0
        %v870 = vadd.f32 %v797, %v869
        %v871 = vpop.f32.mrb[0].mxu0
        %872 = vdwg.mxu0
        %873 = vmax.xlane.f32.xlu0 %v870
        %v874 = vpop.xlane.xlu0 %873
        %v875 = vsub.f32 %v870, %v874
        %v876 = vmul.f32 %v875, 1.442695
        %v877 = vpow.pop %v876
        %878 = vadd.xlane.f32.xlu0 %v877
        %v879 = vpop.xlane.xlu0 %878
        %v880 = vrcp.pop %v879
        %v881 = vmul.f32 %v877, %v880
        %882 = vmatprep.subr.mxu0 0.0
        %883 = vmatpush1.msra.mxu0 %v776
        %884 = vmatprep.subr.mxu0 0.0
        %885 = vmatpush1.msra.mxu0 %v777
        %886 = vmatprep.subr.mxu0 0.0
        %887 = vmatpush1.msra.mxu0 %v778
        %888 = vmatprep.subr.mxu0 0.0
        %889 = vmatpush1.msra.mxu0 %v779
        %890 = vmatprep.subr.mxu0 0.0
        %891 = vmatpush1.msra.mxu0 %v780
        %892 = vmatprep.subr.mxu0 0.0
        %893 = vmatpush1.msra.mxu0 %v781
        %894 = vmatprep.subr.mxu0 0.0
        %895 = vmatpush1.msra.mxu0 %v782
        %896 = vmatprep.subr.mxu0 0.0
        %897 = vmatpush1.msra.mxu0 %v783
        %898 = vmatprep.subr.mxu0 0.0
        %899 = vmatpush1.msra.mxu0 %v784
        %900 = vmatprep.subr.mxu0 0.0
        %901 = vmatpush1.msra.mxu0 %v785
        %902 = vmatprep.subr.mxu0 0.0
        %903 = vmatpush1.msra.mxu0 %v786
        %904 = vmatprep.subr.mxu0 0.0
        %905 = vmatpush1.msra.mxu0 %v787
        %906 = vmatprep.subr.mxu0 0.0
        %907 = vmatpush1.msra.mxu0 %v788
        %908 = vmatprep.subr.mxu0 0.0
        %909 = vmatpush1.msra.mxu0 %v789
        %910 = vmatprep.subr.mxu0 0.0
        %911 = vmatpush1.msra.mxu0 %v790
        %912 = vmatprep.subr.mxu0 0.0
        %913 = vmatpush1.msra.mxu0 %v791
        %914 = vmatprep.subr.mxu0 0.0
        %915 = vmatpush1.msra.mxu0 0.0
        %916 = vmatprep.subr.mxu0 0.0
        %917 = vmatpush1.msra.mxu0 0.0
        %918 = vmatprep.subr.mxu0 0.0
        %919 = vmatpush1.msra.mxu0 0.0
        %920 = vmatprep.subr.mxu0 0.0
        %921 = vmatpush1.msra.mxu0 0.0
        %922 = vmatprep.subr.mxu0 0.0
        %923 = vmatpush1.msra.mxu0 0.0
        %924 = vmatprep.subr.mxu0 0.0
        %925 = vmatpush1.msra.mxu0 0.0
        %926 = vmatprep.subr.mxu0 0.0
        %927 = vmatpush1.msra.mxu0 0.0
        %928 = vmatprep.subr.mxu0 0.0
        %929 = vmatpush1.msra.mxu0 0.0
        %930 = vmatprep.subr.mxu0 0.0
        %931 = vmatpush1.msra.mxu0 0.0
        %932 = vmatprep.subr.mxu0 0.0
        %933 = vmatpush1.msra.mxu0 0.0
        %934 = vmatprep.subr.mxu0 0.0
        %935 = vmatpush1.msra.mxu0 0.0
        %936 = vmatprep.subr.mxu0 0.0
        %937 = vmatpush1.msra.mxu0 0.0
        %938 = vmatprep.subr.mxu0 0.0
        %939 = vmatpush1.msra.mxu0 0.0
        %940 = vmatprep.subr.mxu0 0.0
        %941 = vmatpush1.msra.mxu0 0.0
        %942 = vmatprep.subr.mxu0 0.0
        %943 = vmatpush1.msra.mxu0 0.0
        %944 = vmatprep.subr.mxu0 0.0
        %945 = vmatpush1.msra.mxu0 0.0
        %946 = vmatprep.mubr.f32.mxu0 0.0
        %947 = vmatmul.mubr.f32.gmra.mrb[0].mxu0 %v881
        %v948 = vpop.f32.mrb[0].mxu0
        %v949 = vadd.f32 0.0, %v948
        %v950 = vpop.f32.mrb[0].mxu0
        %951 = vdwg.mxu0
        %952 = vrot.lane.b32.xlu0 %v757, 112
        %v953 = vpop.permute.xlu0 %952
        %v954 = vsel %vm799, %v953, 0
        %956 = vmatprep.subr.mxu0 0.0
        %957 = vmatpush1.msra.mxu0 %v762
        %958 = vmatprep.subr.mxu0 0.0
        %959 = vmatpush1.msra.mxu0 %v763
        %960 = vmatprep.subr.mxu0 0.0
        %961 = vmatpush1.msra.mxu0 0.0
        %962 = vmatprep.subr.mxu0 0.0
        %963 = vmatpush1.msra.mxu0 0.0
        %964 = vmatprep.subr.mxu0 0.0
        %965 = vmatpush1.msra.mxu0 0.0
        %966 = vmatprep.subr.mxu0 0.0
        %967 = vmatpush1.msra.mxu0 0.0
        %968 = vmatprep.subr.mxu0 0.0
        %969 = vmatpush1.msra.mxu0 0.0
        %970 = vmatprep.subr.mxu0 0.0
        %971 = vmatpush1.msra.mxu0 0.0
        %972 = vmatprep.subr.mxu0 0.0
        %973 = vmatpush1.msra.mxu0 0.0
        %974 = vmatprep.subr.mxu0 0.0
        %975 = vmatpush1.msra.mxu0 0.0
        %976 = vmatprep.subr.mxu0 0.0
        %977 = vmatpush1.msra.mxu0 0.0
        %978 = vmatprep.subr.mxu0 0.0
        %979 = vmatpush1.msra.mxu0 0.0
        %980 = vmatprep.subr.mxu0 0.0
        %981 = vmatpush1.msra.mxu0 0.0
        %982 = vmatprep.subr.mxu0 0.0
        %983 = vmatpush1.msra.mxu0 0.0
        %984 = vmatprep.subr.mxu0 0.0
        %985 = vmatpush1.msra.mxu0 0.0
        %986 = vmatprep.subr.mxu0 0.0
        %987 = vmatpush1.msra.mxu0 0.0
        %988 = vmatprep.subr.mxu0 0.0
        %989 = vmatpush1.msra.mxu0 0.0
        %990 = vmatprep.subr.mxu0 0.0
        %991 = vmatpush1.msra.mxu0 0.0
        %992 = vmatprep.subr.mxu0 0.0
        %993 = vmatpush1.msra.mxu0 0.0
        %994 = vmatprep.subr.mxu0 0.0
        %995 = vmatpush1.msra.mxu0 0.0
        %996 = vmatprep.subr.mxu0 0.0
        %997 = vmatpush1.msra.mxu0 0.0
        %998 = vmatprep.subr.mxu0 0.0
        %999 = vmatpush1.msra.mxu0 0.0
        %1000 = vmatprep.subr.mxu0 0.0
        %1001 = vmatpush1.msra.mxu0 0.0
        %1002 = vmatprep.subr.mxu0 0.0
        %1003 = vmatpush1.msra.mxu0 0.0
        %1004 = vmatprep.subr.mxu0 0.0
        %1005 = vmatpush1.msra.mxu0 0.0
        %1006 = vmatprep.subr.mxu0 0.0
        %1007 = vmatpush1.msra.mxu0 0.0
        %1008 = vmatprep.subr.mxu0 0.0
        %1009 = vmatpush1.msra.mxu0 0.0
        %1010 = vmatprep.subr.mxu0 0.0
        %1011 = vmatpush1.msra.mxu0 0.0
        %1012 = vmatprep.subr.mxu0 0.0
        %1013 = vmatpush1.msra.mxu0 0.0
        %1014 = vmatprep.subr.mxu0 0.0
        %1015 = vmatpush1.msra.mxu0 0.0
        %1016 = vmatprep.subr.mxu0 0.0
        %1017 = vmatpush1.msra.mxu0 0.0
        %1018 = vmatprep.subr.mxu0 0.0
        %1019 = vmatpush1.msra.mxu0 0.0
        %1020 = vmatprep.mubr.f32.mxu0 0.0
        %1021 = vmatmul.mubr.f32.gmra.mrb[0].mxu0 %v954
        %v1022 = vpop.f32.mrb[0].mxu0
        %v1023 = vadd.f32 %v797, %v1022
        %v1024 = vpop.f32.mrb[0].mxu0
        %1025 = vdwg.mxu0
        %1026 = vmax.xlane.f32.xlu0 %v1023
        %v1027 = vpop.xlane.xlu0 %1026
        %v1028 = vsub.f32 %v1023, %v1027
        %v1029 = vmul.f32 %v1028, 1.442695
        %v1030 = vpow.pop %v1029
        %1031 = vadd.xlane.f32.xlu0 %v1030
        %v1032 = vpop.xlane.xlu0 %1031
        %v1033 = vrcp.pop %v1032
        %v1034 = vmul.f32 %v1030, %v1033
        %1051 = vrot.lane.b32.xlu0 %v776, 112
        %v1052 = vpop.permute.xlu0 %1051
        %1053 = vrot.lane.b32.xlu0 %v777, 112
        %v1054 = vpop.permute.xlu0 %1053
        %1055 = vrot.lane.b32.xlu0 %v778, 112
        %v1056 = vpop.permute.xlu0 %1055
        %1057 = vrot.lane.b32.xlu0 %v779, 112
        %v1058 = vpop.permute.xlu0 %1057
        %1059 = vrot.lane.b32.xlu0 %v780, 112
        %v1060 = vpop.permute.xlu0 %1059
        %1061 = vrot.lane.b32.xlu0 %v781, 112
        %v1062 = vpop.permute.xlu0 %1061
        %1063 = vrot.lane.b32.xlu0 %v782, 112
        %v1064 = vpop.permute.xlu0 %1063
        %1065 = vrot.lane.b32.xlu0 %v783, 112
        %v1066 = vpop.permute.xlu0 %1065
        %1067 = vrot.lane.b32.xlu0 %v784, 112
        %v1068 = vpop.permute.xlu0 %1067
        %1069 = vrot.lane.b32.xlu0 %v785, 112
        %v1070 = vpop.permute.xlu0 %1069
        %1071 = vrot.lane.b32.xlu0 %v786, 112
        %v1072 = vpop.permute.xlu0 %1071
        %1073 = vrot.lane.b32.xlu0 %v787, 112
        %v1074 = vpop.permute.xlu0 %1073
        %1075 = vrot.lane.b32.xlu0 %v788, 112
        %v1076 = vpop.permute.xlu0 %1075
        %1077 = vrot.lane.b32.xlu0 %v789, 112
        %v1078 = vpop.permute.xlu0 %1077
        %1079 = vrot.lane.b32.xlu0 %v790, 112
        %v1080 = vpop.permute.xlu0 %1079
        %1081 = vrot.lane.b32.xlu0 %v791, 112
        %v1082 = vpop.permute.xlu0 %1081
        %1099 = vmatprep.subr.mxu0 0.0
        %1100 = vmatpush1.msra.mxu0 %v1052
        %1101 = vmatprep.subr.mxu0 0.0
        %1102 = vmatpush1.msra.mxu0 %v1054
        %1103 = vmatprep.subr.mxu0 0.0
        %1104 = vmatpush1.msra.mxu0 %v1056
        %1105 = vmatprep.subr.mxu0 0.0
        %1106 = vmatpush1.msra.mxu0 %v1058
        %1107 = vmatprep.subr.mxu0 0.0
        %1108 = vmatpush1.msra.mxu0 %v1060
        %1109 = vmatprep.subr.mxu0 0.0
        %1110 = vmatpush1.msra.mxu0 %v1062
        %1111 = vmatprep.subr.mxu0 0.0
        %1112 = vmatpush1.msra.mxu0 %v1064
        %1113 = vmatprep.subr.mxu0 0.0
        %1114 = vmatpush1.msra.mxu0 %v1066
        %1115 = vmatprep.subr.mxu0 0.0
        %1116 = vmatpush1.msra.mxu0 %v1068
        %1117 = vmatprep.subr.mxu0 0.0
        %1118 = vmatpush1.msra.mxu0 %v1070
        %1119 = vmatprep.subr.mxu0 0.0
        %1120 = vmatpush1.msra.mxu0 %v1072
        %1121 = vmatprep.subr.mxu0 0.0
        %1122 = vmatpush1.msra.mxu0 %v1074
        %1123 = vmatprep.subr.mxu0 0.0
        %1124 = vmatpush1.msra.mxu0 %v1076
        %1125 = vmatprep.subr.mxu0 0.0
        %1126 = vmatpush1.msra.mxu0 %v1078
        %1127 = vmatprep.subr.mxu0 0.0
        %1128 = vmatpush1.msra.mxu0 %v1080
        %1129 = vmatprep.subr.mxu0 0.0
        %1130 = vmatpush1.msra.mxu0 %v1082
        %1131 = vmatprep.subr.mxu0 0.0
        %1132 = vmatpush1.msra.mxu0 0.0
        %1133 = vmatprep.subr.mxu0 0.0
        %1134 = vmatpush1.msra.mxu0 0.0
        %1135 = vmatprep.subr.mxu0 0.0
        %1136 = vmatpush1.msra.mxu0 0.0
        %1137 = vmatprep.subr.mxu0 0.0
        %1138 = vmatpush1.msra.mxu0 0.0
        %1139 = vmatprep.subr.mxu0 0.0
        %1140 = vmatpush1.msra.mxu0 0.0
        %1141 = vmatprep.subr.mxu0 0.0
        %1142 = vmatpush1.msra.mxu0 0.0
        %1143 = vmatprep.subr.mxu0 0.0
        %1144 = vmatpush1.msra.mxu0 0.0
        %1145 = vmatprep.subr.mxu0 0.0
        %1146 = vmatpush1.msra.mxu0 0.0
        %1147 = vmatprep.subr.mxu0 0.0
        %1148 = vmatpush1.msra.mxu0 0.0
        %1149 = vmatprep.subr.mxu0 0.0
        %1150 = vmatpush1.msra.mxu0 0.0
        %1151 = vmatprep.subr.mxu0 0.0
        %1152 = vmatpush1.msra.mxu0 0.0
        %1153 = vmatprep.subr.mxu0 0.0
        %1154 = vmatpush1.msra.mxu0 0.0
        %1155 = vmatprep.subr.mxu0 0.0
        %1156 = vmatpush1.msra.mxu0 0.0
        %1157 = vmatprep.subr.mxu0 0.0
        %1158 = vmatpush1.msra.mxu0 0.0
        %1159 = vmatprep.subr.mxu0 0.0
        %1160 = vmatpush1.msra.mxu0 0.0
        %1161 = vmatprep.subr.mxu0 0.0
        %1162 = vmatpush1.msra.mxu0 0.0
        %1163 = vmatprep.mubr.f32.mxu0 0.0
        %1164 = vmatmul.mubr.f32.gmra.mrb[0].mxu0 %v1034
        %v1165 = vpop.f32.mrb[0].mxu0
        %v1166 = vadd.f32 0.0, %v1165
        %v1167 = vpop.f32.mrb[0].mxu0
        %1168 = vdwg.mxu0
        %1169 = vrot.lane.b32.xlu0 %v757, 96
        %v1170 = vpop.permute.xlu0 %1169
        %v1171 = vsel %vm799, %v1170, 0
        %1173 = vmatprep.subr.mxu0 0.0
        %1174 = vmatpush1.msra.mxu0 %v764
        %1175 = vmatprep.subr.mxu0 0.0
        %1176 = vmatpush1.msra.mxu0 %v765
        %1177 = vmatprep.subr.mxu0 0.0
        %1178 = vmatpush1.msra.mxu0 0.0
        %1179 = vmatprep.subr.mxu0 0.0
        %1180 = vmatpush1.msra.mxu0 0.0
        %1181 = vmatprep.subr.mxu0 0.0
        %1182 = vmatpush1.msra.mxu0 0.0
        %1183 = vmatprep.subr.mxu0 0.0
        %1184 = vmatpush1.msra.mxu0 0.0
        %1185 = vmatprep.subr.mxu0 0.0
        %1186 = vmatpush1.msra.mxu0 0.0
        %1187 = vmatprep.subr.mxu0 0.0
        %1188 = vmatpush1.msra.mxu0 0.0
        %1189 = vmatprep.subr.mxu0 0.0
        %1190 = vmatpush1.msra.mxu0 0.0
        %1191 = vmatprep.subr.mxu0 0.0
        %1192 = vmatpush1.msra.mxu0 0.0
        %1193 = vmatprep.subr.mxu0 0.0
        %1194 = vmatpush1.msra.mxu0 0.0
        %1195 = vmatprep.subr.mxu0 0.0
        %1196 = vmatpush1.msra.mxu0 0.0
        %1197 = vmatprep.subr.mxu0 0.0
        %1198 = vmatpush1.msra.mxu0 0.0
        %1199 = vmatprep.subr.mxu0 0.0
        %1200 = vmatpush1.msra.mxu0 0.0
        %1201 = vmatprep.subr.mxu0 0.0
        %1202 = vmatpush1.msra.mxu0 0.0
        %1203 = vmatprep.subr.mxu0 0.0
        %1204 = vmatpush1.msra.mxu0 0.0
        %1205 = vmatprep.subr.mxu0 0.0
        %1206 = vmatpush1.msra.mxu0 0.0
        %1207 = vmatprep.subr.mxu0 0.0
        %1208 = vmatpush1.msra.mxu0 0.0
        %1209 = vmatprep.subr.mxu0 0.0
        %1210 = vmatpush1.msra.mxu0 0.0
        %1211 = vmatprep.subr.mxu0 0.0
        %1212 = vmatpush1.msra.mxu0 0.0
        %1213 = vmatprep.subr.mxu0 0.0
        %1214 = vmatpush1.msra.mxu0 0.0
        %1215 = vmatprep.subr.mxu0 0.0
        %1216 = vmatpush1.msra.mxu0 0.0
        %1217 = vmatprep.subr.mxu0 0.0
        %1218 = vmatpush1.msra.mxu0 0.0
        %1219 = vmatprep.subr.mxu0 0.0
        %1220 = vmatpush1.msra.mxu0 0.0
        %1221 = vmatprep.subr.mxu0 0.0
        %1222 = vmatpush1.msra.mxu0 0.0
        %1223 = vmatprep.subr.mxu0 0.0
        %1224 = vmatpush1.msra.mxu0 0.0
        %1225 = vmatprep.subr.mxu0 0.0
        %1226 = vmatpush1.msra.mxu0 0.0
        %1227 = vmatprep.subr.mxu0 0.0
        %1228 = vmatpush1.msra.mxu0 0.0
        %1229 = vmatprep.subr.mxu0 0.0
        %1230 = vmatpush1.msra.mxu0 0.0
        %1231 = vmatprep.subr.mxu0 0.0
        %1232 = vmatpush1.msra.mxu0 0.0
        %1233 = vmatprep.subr.mxu0 0.0
        %1234 = vmatpush1.msra.mxu0 0.0
        %1235 = vmatprep.subr.mxu0 0.0
        %1236 = vmatpush1.msra.mxu0 0.0
        %1237 = vmatprep.mubr.f32.mxu0 0.0
        %1238 = vmatmul.mubr.f32.gmra.mrb[0].mxu0 %v1171
        %v1239 = vpop.f32.mrb[0].mxu0
        %v1240 = vadd.f32 %v797, %v1239
        %v1241 = vpop.f32.mrb[0].mxu0
        %1242 = vdwg.mxu0
        %1243 = vmax.xlane.f32.xlu0 %v1240
        %v1244 = vpop.xlane.xlu0 %1243
        %v1245 = vsub.f32 %v1240, %v1244
        %v1246 = vmul.f32 %v1245, 1.442695
        %v1247 = vpow.pop %v1246
        %1248 = vadd.xlane.f32.xlu0 %v1247
        %v1249 = vpop.xlane.xlu0 %1248
        %v1250 = vrcp.pop %v1249
        %v1251 = vmul.f32 %v1247, %v1250
        %1252 = vrot.lane.b32.xlu0 %v776, 96
        %v1253 = vpop.permute.xlu0 %1252
        %1254 = vrot.lane.b32.xlu0 %v777, 96
        %v1255 = vpop.permute.xlu0 %1254
        %1256 = vrot.lane.b32.xlu0 %v778, 96
        %v1257 = vpop.permute.xlu0 %1256
        %1258 = vrot.lane.b32.xlu0 %v779, 96
        %v1259 = vpop.permute.xlu0 %1258
        %1260 = vrot.lane.b32.xlu0 %v780, 96
        %v1261 = vpop.permute.xlu0 %1260
        %1262 = vrot.lane.b32.xlu0 %v781, 96
        %v1263 = vpop.permute.xlu0 %1262
        %1264 = vrot.lane.b32.xlu0 %v782, 96
        %v1265 = vpop.permute.xlu0 %1264
        %1266 = vrot.lane.b32.xlu0 %v783, 96
        %v1267 = vpop.permute.xlu0 %1266
        %1268 = vrot.lane.b32.xlu0 %v784, 96
        %v1269 = vpop.permute.xlu0 %1268
        %1270 = vrot.lane.b32.xlu0 %v785, 96
        %v1271 = vpop.permute.xlu0 %1270
        %1272 = vrot.lane.b32.xlu0 %v786, 96
        %v1273 = vpop.permute.xlu0 %1272
        %1274 = vrot.lane.b32.xlu0 %v787, 96
        %v1275 = vpop.permute.xlu0 %1274
        %1276 = vrot.lane.b32.xlu0 %v788, 96
        %v1277 = vpop.permute.xlu0 %1276
        %1278 = vrot.lane.b32.xlu0 %v789, 96
        %v1279 = vpop.permute.xlu0 %1278
        %1280 = vrot.lane.b32.xlu0 %v790, 96
        %v1281 = vpop.permute.xlu0 %1280
        %1282 = vrot.lane.b32.xlu0 %v791, 96
        %v1283 = vpop.permute.xlu0 %1282
        %1300 = vmatprep.subr.mxu0 0.0
        %1301 = vmatpush1.msra.mxu0 %v1253
        %1302 = vmatprep.subr.mxu0 0.0
        %1303 = vmatpush1.msra.mxu0 %v1255
        %1304 = vmatprep.subr.mxu0 0.0
        %1305 = vmatpush1.msra.mxu0 %v1257
        %1306 = vmatprep.subr.mxu0 0.0
        %1307 = vmatpush1.msra.mxu0 %v1259
        %1308 = vmatprep.subr.mxu0 0.0
        %1309 = vmatpush1.msra.mxu0 %v1261
        %1310 = vmatprep.subr.mxu0 0.0
        %1311 = vmatpush1.msra.mxu0 %v1263
        %1312 = vmatprep.subr.mxu0 0.0
        %1313 = vmatpush1.msra.mxu0 %v1265
        %1314 = vmatprep.subr.mxu0 0.0
        %1315 = vmatpush1.msra.mxu0 %v1267
        %1316 = vmatprep.subr.mxu0 0.0
        %1317 = vmatpush1.msra.mxu0 %v1269
        %1318 = vmatprep.subr.mxu0 0.0
        %1319 = vmatpush1.msra.mxu0 %v1271
        %1320 = vmatprep.subr.mxu0 0.0
        %1321 = vmatpush1.msra.mxu0 %v1273
        %1322 = vmatprep.subr.mxu0 0.0
        %1323 = vmatpush1.msra.mxu0 %v1275
        %1324 = vmatprep.subr.mxu0 0.0
        %1325 = vmatpush1.msra.mxu0 %v1277
        %1326 = vmatprep.subr.mxu0 0.0
        %1327 = vmatpush1.msra.mxu0 %v1279
        %1328 = vmatprep.subr.mxu0 0.0
        %1329 = vmatpush1.msra.mxu0 %v1281
        %1330 = vmatprep.subr.mxu0 0.0
        %1331 = vmatpush1.msra.mxu0 %v1283
        %1332 = vmatprep.subr.mxu0 0.0
        %1333 = vmatpush1.msra.mxu0 0.0
        %1334 = vmatprep.subr.mxu0 0.0
        %1335 = vmatpush1.msra.mxu0 0.0
        %1336 = vmatprep.subr.mxu0 0.0
        %1337 = vmatpush1.msra.mxu0 0.0
        %1338 = vmatprep.subr.mxu0 0.0
        %1339 = vmatpush1.msra.mxu0 0.0
        %1340 = vmatprep.subr.mxu0 0.0
        %1341 = vmatpush1.msra.mxu0 0.0
        %1342 = vmatprep.subr.mxu0 0.0
        %1343 = vmatpush1.msra.mxu0 0.0
        %1344 = vmatprep.subr.mxu0 0.0
        %1345 = vmatpush1.msra.mxu0 0.0
        %1346 = vmatprep.subr.mxu0 0.0
        %1347 = vmatpush1.msra.mxu0 0.0
        %1348 = vmatprep.subr.mxu0 0.0
        %1349 = vmatpush1.msra.mxu0 0.0
        %1350 = vmatprep.subr.mxu0 0.0
        %1351 = vmatpush1.msra.mxu0 0.0
        %1352 = vmatprep.subr.mxu0 0.0
        %1353 = vmatpush1.msra.mxu0 0.0
        %1354 = vmatprep.subr.mxu0 0.0
        %1355 = vmatpush1.msra.mxu0 0.0
        %1356 = vmatprep.subr.mxu0 0.0
        %1357 = vmatpush1.msra.mxu0 0.0
        %1358 = vmatprep.subr.mxu0 0.0
        %1359 = vmatpush1.msra.mxu0 0.0
        %1360 = vmatprep.subr.mxu0 0.0
        %1361 = vmatpush1.msra.mxu0 0.0
        %1362 = vmatprep.subr.mxu0 0.0
        %1363 = vmatpush1.msra.mxu0 0.0
        %1364 = vmatprep.mubr.f32.mxu0 0.0
        %1365 = vmatmul.mubr.f32.gmra.mrb[0].mxu0 %v1251
        %v1366 = vpop.f32.mrb[0].mxu0
        %v1367 = vadd.f32 0.0, %v1366
        %v1368 = vpop.f32.mrb[0].mxu0
        %1369 = vdwg.mxu0
        %1370 = vrot.lane.b32.xlu0 %v757, 80
        %v1371 = vpop.permute.xlu0 %1370
        %v1372 = vsel %vm799, %v1371, 0
        %1374 = vmatprep.subr.mxu0 0.0
        %1375 = vmatpush1.msra.mxu0 %v766
        %1376 = vmatprep.subr.mxu0 0.0
        %1377 = vmatpush1.msra.mxu0 %v767
        %1378 = vmatprep.subr.mxu0 0.0
        %1379 = vmatpush1.msra.mxu0 0.0
        %1380 = vmatprep.subr.mxu0 0.0
        %1381 = vmatpush1.msra.mxu0 0.0
        %1382 = vmatprep.subr.mxu0 0.0
        %1383 = vmatpush1.msra.mxu0 0.0
        %1384 = vmatprep.subr.mxu0 0.0
        %1385 = vmatpush1.msra.mxu0 0.0
        %1386 = vmatprep.subr.mxu0 0.0
        %1387 = vmatpush1.msra.mxu0 0.0
        %1388 = vmatprep.subr.mxu0 0.0
        %1389 = vmatpush1.msra.mxu0 0.0
        %1390 = vmatprep.subr.mxu0 0.0
        %1391 = vmatpush1.msra.mxu0 0.0
        %1392 = vmatprep.subr.mxu0 0.0
        %1393 = vmatpush1.msra.mxu0 0.0
        %1394 = vmatprep.subr.mxu0 0.0
        %1395 = vmatpush1.msra.mxu0 0.0
        %1396 = vmatprep.subr.mxu0 0.0
        %1397 = vmatpush1.msra.mxu0 0.0
        %1398 = vmatprep.subr.mxu0 0.0
        %1399 = vmatpush1.msra.mxu0 0.0
        %1400 = vmatprep.subr.mxu0 0.0
        %1401 = vmatpush1.msra.mxu0 0.0
        %1402 = vmatprep.subr.mxu0 0.0
        %1403 = vmatpush1.msra.mxu0 0.0
        %1404 = vmatprep.subr.mxu0 0.0
        %1405 = vmatpush1.msra.mxu0 0.0
        %1406 = vmatprep.subr.mxu0 0.0
        %1407 = vmatpush1.msra.mxu0 0.0
        %1408 = vmatprep.subr.mxu0 0.0
        %1409 = vmatpush1.msra.mxu0 0.0
        %1410 = vmatprep.subr.mxu0 0.0
        %1411 = vmatpush1.msra.mxu0 0.0
        %1412 = vmatprep.subr.mxu0 0.0
        %1413 = vmatpush1.msra.mxu0 0.0
        %1414 = vmatprep.subr.mxu0 0.0
        %1415 = vmatpush1.msra.mxu0 0.0
        %1416 = vmatprep.subr.mxu0 0.0
        %1417 = vmatpush1.msra.mxu0 0.0
        %1418 = vmatprep.subr.mxu0 0.0
        %1419 = vmatpush1.msra.mxu0 0.0
        %1420 = vmatprep.subr.mxu0 0.0
        %1421 = vmatpush1.msra.mxu0 0.0
        %1422 = vmatprep.subr.mxu0 0.0
        %1423 = vmatpush1.msra.mxu0 0.0
        %1424 = vmatprep.subr.mxu0 0.0
        %1425 = vmatpush1.msra.mxu0 0.0
        %1426 = vmatprep.subr.mxu0 0.0
        %1427 = vmatpush1.msra.mxu0 0.0
        %1428 = vmatprep.subr.mxu0 0.0
        %1429 = vmatpush1.msra.mxu0 0.0
        %1430 = vmatprep.subr.mxu0 0.0
        %1431 = vmatpush1.msra.mxu0 0.0
        %1432 = vmatprep.subr.mxu0 0.0
        %1433 = vmatpush1.msra.mxu0 0.0
        %1434 = vmatprep.subr.mxu0 0.0
        %1435 = vmatpush1.msra.mxu0 0.0
        %1436 = vmatprep.subr.mxu0 0.0
        %1437 = vmatpush1.msra.mxu0 0.0
        %1438 = vmatprep.mubr.f32.mxu0 0.0
        %1439 = vmatmul.mubr.f32.gmra.mrb[0].mxu0 %v1372
        %v1440 = vpop.f32.mrb[0].mxu0
        %v1441 = vadd.f32 %v797, %v1440
        %v1442 = vpop.f32.mrb[0].mxu0
        %1443 = vdwg.mxu0
        %1444 = vmax.xlane.f32.xlu0 %v1441
        %v1445 = vpop.xlane.xlu0 %1444
        %v1446 = vsub.f32 %v1441, %v1445
        %v1447 = vmul.f32 %v1446, 1.442695
        %v1448 = vpow.pop %v1447
        %1449 = vadd.xlane.f32.xlu0 %v1448
        %v1450 = vpop.xlane.xlu0 %1449
        %v1451 = vrcp.pop %v1450
        %v1452 = vmul.f32 %v1448, %v1451
        %1453 = vrot.lane.b32.xlu0 %v776, 80
        %v1454 = vpop.permute.xlu0 %1453
        %1455 = vrot.lane.b32.xlu0 %v777, 80
        %v1456 = vpop.permute.xlu0 %1455
        %1457 = vrot.lane.b32.xlu0 %v778, 80
        %v1458 = vpop.permute.xlu0 %1457
        %1459 = vrot.lane.b32.xlu0 %v779, 80
        %v1460 = vpop.permute.xlu0 %1459
        %1461 = vrot.lane.b32.xlu0 %v780, 80
        %v1462 = vpop.permute.xlu0 %1461
        %1463 = vrot.lane.b32.xlu0 %v781, 80
        %v1464 = vpop.permute.xlu0 %1463
        %1465 = vrot.lane.b32.xlu0 %v782, 80
        %v1466 = vpop.permute.xlu0 %1465
        %1467 = vrot.lane.b32.xlu0 %v783, 80
        %v1468 = vpop.permute.xlu0 %1467
        %1469 = vrot.lane.b32.xlu0 %v784, 80
        %v1470 = vpop.permute.xlu0 %1469
        %1471 = vrot.lane.b32.xlu0 %v785, 80
        %v1472 = vpop.permute.xlu0 %1471
        %1473 = vrot.lane.b32.xlu0 %v786, 80
        %v1474 = vpop.permute.xlu0 %1473
        %1475 = vrot.lane.b32.xlu0 %v787, 80
        %v1476 = vpop.permute.xlu0 %1475
        %1477 = vrot.lane.b32.xlu0 %v788, 80
        %v1478 = vpop.permute.xlu0 %1477
        %1479 = vrot.lane.b32.xlu0 %v789, 80
        %v1480 = vpop.permute.xlu0 %1479
        %1481 = vrot.lane.b32.xlu0 %v790, 80
        %v1482 = vpop.permute.xlu0 %1481
        %1483 = vrot.lane.b32.xlu0 %v791, 80
        %v1484 = vpop.permute.xlu0 %1483
        %1501 = vmatprep.subr.mxu0 0.0
        %1502 = vmatpush1.msra.mxu0 %v1454
        %1503 = vmatprep.subr.mxu0 0.0
        %1504 = vmatpush1.msra.mxu0 %v1456
        %1505 = vmatprep.subr.mxu0 0.0
        %1506 = vmatpush1.msra.mxu0 %v1458
        %1507 = vmatprep.subr.mxu0 0.0
        %1508 = vmatpush1.msra.mxu0 %v1460
        %1509 = vmatprep.subr.mxu0 0.0
        %1510 = vmatpush1.msra.mxu0 %v1462
        %1511 = vmatprep.subr.mxu0 0.0
        %1512 = vmatpush1.msra.mxu0 %v1464
        %1513 = vmatprep.subr.mxu0 0.0
        %1514 = vmatpush1.msra.mxu0 %v1466
        %1515 = vmatprep.subr.mxu0 0.0
        %1516 = vmatpush1.msra.mxu0 %v1468
        %1517 = vmatprep.subr.mxu0 0.0
        %1518 = vmatpush1.msra.mxu0 %v1470
        %1519 = vmatprep.subr.mxu0 0.0
        %1520 = vmatpush1.msra.mxu0 %v1472
        %1521 = vmatprep.subr.mxu0 0.0
        %1522 = vmatpush1.msra.mxu0 %v1474
        %1523 = vmatprep.subr.mxu0 0.0
        %1524 = vmatpush1.msra.mxu0 %v1476
        %1525 = vmatprep.subr.mxu0 0.0
        %1526 = vmatpush1.msra.mxu0 %v1478
        %1527 = vmatprep.subr.mxu0 0.0
        %1528 = vmatpush1.msra.mxu0 %v1480
        %1529 = vmatprep.subr.mxu0 0.0
        %1530 = vmatpush1.msra.mxu0 %v1482
        %1531 = vmatprep.subr.mxu0 0.0
        %1532 = vmatpush1.msra.mxu0 %v1484
        %1533 = vmatprep.subr.mxu0 0.0
        %1534 = vmatpush1.msra.mxu0 0.0
        %1535 = vmatprep.subr.mxu0 0.0
        %1536 = vmatpush1.msra.mxu0 0.0
        %1537 = vmatprep.subr.mxu0 0.0
        %1538 = vmatpush1.msra.mxu0 0.0
        %1539 = vmatprep.subr.mxu0 0.0
        %1540 = vmatpush1.msra.mxu0 0.0
        %1541 = vmatprep.subr.mxu0 0.0
        %1542 = vmatpush1.msra.mxu0 0.0
        %1543 = vmatprep.subr.mxu0 0.0
        %1544 = vmatpush1.msra.mxu0 0.0
        %1545 = vmatprep.subr.mxu0 0.0
        %1546 = vmatpush1.msra.mxu0 0.0
        %1547 = vmatprep.subr.mxu0 0.0
        %1548 = vmatpush1.msra.mxu0 0.0
        %1549 = vmatprep.subr.mxu0 0.0
        %1550 = vmatpush1.msra.mxu0 0.0
        %1551 = vmatprep.subr.mxu0 0.0
        %1552 = vmatpush1.msra.mxu0 0.0
        %1553 = vmatprep.subr.mxu0 0.0
        %1554 = vmatpush1.msra.mxu0 0.0
        %1555 = vmatprep.subr.mxu0 0.0
        %1556 = vmatpush1.msra.mxu0 0.0
        %1557 = vmatprep.subr.mxu0 0.0
        %1558 = vmatpush1.msra.mxu0 0.0
        %1559 = vmatprep.subr.mxu0 0.0
        %1560 = vmatpush1.msra.mxu0 0.0
        %1561 = vmatprep.subr.mxu0 0.0
        %1562 = vmatpush1.msra.mxu0 0.0
        %1563 = vmatprep.subr.mxu0 0.0
        %1564 = vmatpush1.msra.mxu0 0.0
        %1565 = vmatprep.mubr.f32.mxu0 0.0
        %1566 = vmatmul.mubr.f32.gmra.mrb[0].mxu0 %v1452
        %v1567 = vpop.f32.mrb[0].mxu0
        %v1568 = vadd.f32 0.0, %v1567
        %v1569 = vpop.f32.mrb[0].mxu0
        %1570 = vdwg.mxu0
        %1571 = vrot.lane.b32.xlu0 %v757, 64
        %v1572 = vpop.permute.xlu0 %1571
        %v1573 = vsel %vm799, %v1572, 0
        %1575 = vmatprep.subr.mxu0 0.0
        %1576 = vmatpush1.msra.mxu0 %v768
        %1577 = vmatprep.subr.mxu0 0.0
        %1578 = vmatpush1.msra.mxu0 %v769
        %1579 = vmatprep.subr.mxu0 0.0
        %1580 = vmatpush1.msra.mxu0 0.0
        %1581 = vmatprep.subr.mxu0 0.0
        %1582 = vmatpush1.msra.mxu0 0.0
        %1583 = vmatprep.subr.mxu0 0.0
        %1584 = vmatpush1.msra.mxu0 0.0
        %1585 = vmatprep.subr.mxu0 0.0
        %1586 = vmatpush1.msra.mxu0 0.0
        %1587 = vmatprep.subr.mxu0 0.0
        %1588 = vmatpush1.msra.mxu0 0.0
        %1589 = vmatprep.subr.mxu0 0.0
        %1590 = vmatpush1.msra.mxu0 0.0
        %1591 = vmatprep.subr.mxu0 0.0
        %1592 = vmatpush1.msra.mxu0 0.0
        %1593 = vmatprep.subr.mxu0 0.0
        %1594 = vmatpush1.msra.mxu0 0.0
        %1595 = vmatprep.subr.mxu0 0.0
        %1596 = vmatpush1.msra.mxu0 0.0
        %1597 = vmatprep.subr.mxu0 0.0
        %1598 = vmatpush1.msra.mxu0 0.0
        %1599 = vmatprep.subr.mxu0 0.0
        %1600 = vmatpush1.msra.mxu0 0.0
        %1601 = vmatprep.subr.mxu0 0.0
        %1602 = vmatpush1.msra.mxu0 0.0
        %1603 = vmatprep.subr.mxu0 0.0
        %1604 = vmatpush1.msra.mxu0 0.0
        %1605 = vmatprep.subr.mxu0 0.0
        %1606 = vmatpush1.msra.mxu0 0.0
        %1607 = vmatprep.subr.mxu0 0.0
        %1608 = vmatpush1.msra.mxu0 0.0
        %1609 = vmatprep.subr.mxu0 0.0
        %1610 = vmatpush1.msra.mxu0 0.0
        %1611 = vmatprep.subr.mxu0 0.0
        %1612 = vmatpush1.msra.mxu0 0.0
        %1613 = vmatprep.subr.mxu0 0.0
        %1614 = vmatpush1.msra.mxu0 0.0
        %1615 = vmatprep.subr.mxu0 0.0
        %1616 = vmatpush1.msra.mxu0 0.0
        %1617 = vmatprep.subr.mxu0 0.0
        %1618 = vmatpush1.msra.mxu0 0.0
        %1619 = vmatprep.subr.mxu0 0.0
        %1620 = vmatpush1.msra.mxu0 0.0
        %1621 = vmatprep.subr.mxu0 0.0
        %1622 = vmatpush1.msra.mxu0 0.0
        %1623 = vmatprep.subr.mxu0 0.0
        %1624 = vmatpush1.msra.mxu0 0.0
        %1625 = vmatprep.subr.mxu0 0.0
        %1626 = vmatpush1.msra.mxu0 0.0
        %1627 = vmatprep.subr.mxu0 0.0
        %1628 = vmatpush1.msra.mxu0 0.0
        %1629 = vmatprep.subr.mxu0 0.0
        %1630 = vmatpush1.msra.mxu0 0.0
        %1631 = vmatprep.subr.mxu0 0.0
        %1632 = vmatpush1.msra.mxu0 0.0
        %1633 = vmatprep.subr.mxu0 0.0
        %1634 = vmatpush1.msra.mxu0 0.0
        %1635 = vmatprep.subr.mxu0 0.0
        %1636 = vmatpush1.msra.mxu0 0.0
        %1637 = vmatprep.subr.mxu0 0.0
        %1638 = vmatpush1.msra.mxu0 0.0
        %1639 = vmatprep.mubr.f32.mxu0 0.0
        %1640 = vmatmul.mubr.f32.gmra.mrb[0].mxu0 %v1573
        %v1641 = vpop.f32.mrb[0].mxu0
        %v1642 = vadd.f32 %v797, %v1641
        %v1643 = vpop.f32.mrb[0].mxu0
        %1644 = vdwg.mxu0
        %1645 = vmax.xlane.f32.xlu0 %v1642
        %v1646 = vpop.xlane.xlu0 %1645
        %v1647 = vsub.f32 %v1642, %v1646
        %v1648 = vmul.f32 %v1647, 1.442695
        %v1649 = vpow.pop %v1648
        %1650 = vadd.xlane.f32.xlu0 %v1649
        %v1651 = vpop.xlane.xlu0 %1650
        %v1652 = vrcp.pop %v1651
        %v1653 = vmul.f32 %v1649, %v1652
        %1654 = vrot.lane.b32.xlu0 %v776, 64
        %v1655 = vpop.permute.xlu0 %1654
        %1656 = vrot.lane.b32.xlu0 %v777, 64
        %v1657 = vpop.permute.xlu0 %1656
        %1658 = vrot.lane.b32.xlu0 %v778, 64
        %v1659 = vpop.permute.xlu0 %1658
        %1660 = vrot.lane.b32.xlu0 %v779, 64
        %v1661 = vpop.permute.xlu0 %1660
        %1662 = vrot.lane.b32.xlu0 %v780, 64
        %v1663 = vpop.permute.xlu0 %1662
        %1664 = vrot.lane.b32.xlu0 %v781, 64
        %v1665 = vpop.permute.xlu0 %1664
        %1666 = vrot.lane.b32.xlu0 %v782, 64
        %v1667 = vpop.permute.xlu0 %1666
        %1668 = vrot.lane.b32.xlu0 %v783, 64
        %v1669 = vpop.permute.xlu0 %1668
        %1670 = vrot.lane.b32.xlu0 %v784, 64
        %v1671 = vpop.permute.xlu0 %1670
        %1672 = vrot.lane.b32.xlu0 %v785, 64
        %v1673 = vpop.permute.xlu0 %1672
        %1674 = vrot.lane.b32.xlu0 %v786, 64
        %v1675 = vpop.permute.xlu0 %1674
        %1676 = vrot.lane.b32.xlu0 %v787, 64
        %v1677 = vpop.permute.xlu0 %1676
        %1678 = vrot.lane.b32.xlu0 %v788, 64
        %v1679 = vpop.permute.xlu0 %1678
        %1680 = vrot.lane.b32.xlu0 %v789, 64
        %v1681 = vpop.permute.xlu0 %1680
        %1682 = vrot.lane.b32.xlu0 %v790, 64
        %v1683 = vpop.permute.xlu0 %1682
        %1684 = vrot.lane.b32.xlu0 %v791, 64
        %v1685 = vpop.permute.xlu0 %1684
        %1702 = vmatprep.subr.mxu0 0.0
        %1703 = vmatpush1.msra.mxu0 %v1655
        %1704 = vmatprep.subr.mxu0 0.0
        %1705 = vmatpush1.msra.mxu0 %v1657
        %1706 = vmatprep.subr.mxu0 0.0
        %1707 = vmatpush1.msra.mxu0 %v1659
        %1708 = vmatprep.subr.mxu0 0.0
        %1709 = vmatpush1.msra.mxu0 %v1661
        %1710 = vmatprep.subr.mxu0 0.0
        %1711 = vmatpush1.msra.mxu0 %v1663
        %1712 = vmatprep.subr.mxu0 0.0
        %1713 = vmatpush1.msra.mxu0 %v1665
        %1714 = vmatprep.subr.mxu0 0.0
        %1715 = vmatpush1.msra.mxu0 %v1667
        %1716 = vmatprep.subr.mxu0 0.0
        %1717 = vmatpush1.msra.mxu0 %v1669
        %1718 = vmatprep.subr.mxu0 0.0
        %1719 = vmatpush1.msra.mxu0 %v1671
        %1720 = vmatprep.subr.mxu0 0.0
        %1721 = vmatpush1.msra.mxu0 %v1673
        %1722 = vmatprep.subr.mxu0 0.0
        %1723 = vmatpush1.msra.mxu0 %v1675
        %1724 = vmatprep.subr.mxu0 0.0
        %1725 = vmatpush1.msra.mxu0 %v1677
        %1726 = vmatprep.subr.mxu0 0.0
        %1727 = vmatpush1.msra.mxu0 %v1679
        %1728 = vmatprep.subr.mxu0 0.0
        %1729 = vmatpush1.msra.mxu0 %v1681
        %1730 = vmatprep.subr.mxu0 0.0
        %1731 = vmatpush1.msra.mxu0 %v1683
        %1732 = vmatprep.subr.mxu0 0.0
        %1733 = vmatpush1.msra.mxu0 %v1685
        %1734 = vmatprep.subr.mxu0 0.0
        %1735 = vmatpush1.msra.mxu0 0.0
        %1736 = vmatprep.subr.mxu0 0.0
        %1737 = vmatpush1.msra.mxu0 0.0
        %1738 = vmatprep.subr.mxu0 0.0
        %1739 = vmatpush1.msra.mxu0 0.0
        %1740 = vmatprep.subr.mxu0 0.0
        %1741 = vmatpush1.msra.mxu0 0.0
        %1742 = vmatprep.subr.mxu0 0.0
        %1743 = vmatpush1.msra.mxu0 0.0
        %1744 = vmatprep.subr.mxu0 0.0
        %1745 = vmatpush1.msra.mxu0 0.0
        %1746 = vmatprep.subr.mxu0 0.0
        %1747 = vmatpush1.msra.mxu0 0.0
        %1748 = vmatprep.subr.mxu0 0.0
        %1749 = vmatpush1.msra.mxu0 0.0
        %1750 = vmatprep.subr.mxu0 0.0
        %1751 = vmatpush1.msra.mxu0 0.0
        %1752 = vmatprep.subr.mxu0 0.0
        %1753 = vmatpush1.msra.mxu0 0.0
        %1754 = vmatprep.subr.mxu0 0.0
        %1755 = vmatpush1.msra.mxu0 0.0
        %1756 = vmatprep.subr.mxu0 0.0
        %1757 = vmatpush1.msra.mxu0 0.0
        %1758 = vmatprep.subr.mxu0 0.0
        %1759 = vmatpush1.msra.mxu0 0.0
        %1760 = vmatprep.subr.mxu0 0.0
        %1761 = vmatpush1.msra.mxu0 0.0
        %1762 = vmatprep.subr.mxu0 0.0
        %1763 = vmatpush1.msra.mxu0 0.0
        %1764 = vmatprep.subr.mxu0 0.0
        %1765 = vmatpush1.msra.mxu0 0.0
        %1766 = vmatprep.mubr.f32.mxu0 0.0
        %1767 = vmatmul.mubr.f32.gmra.mrb[0].mxu0 %v1653
        %v1768 = vpop.f32.mrb[0].mxu0
        %v1769 = vadd.f32 0.0, %v1768
        %v1770 = vpop.f32.mrb[0].mxu0
        %1771 = vdwg.mxu0
        %1772 = vrot.lane.b32.xlu0 %v757, 48
        %v1773 = vpop.permute.xlu0 %1772
        %v1774 = vsel %vm799, %v1773, 0
        %1776 = vmatprep.subr.mxu0 0.0
        %1777 = vmatpush1.msra.mxu0 %v770
        %1778 = vmatprep.subr.mxu0 0.0
        %1779 = vmatpush1.msra.mxu0 %v771
        %1780 = vmatprep.subr.mxu0 0.0
        %1781 = vmatpush1.msra.mxu0 0.0
        %1782 = vmatprep.subr.mxu0 0.0
        %1783 = vmatpush1.msra.mxu0 0.0
        %1784 = vmatprep.subr.mxu0 0.0
        %1785 = vmatpush1.msra.mxu0 0.0
        %1786 = vmatprep.subr.mxu0 0.0
        %1787 = vmatpush1.msra.mxu0 0.0
        %1788 = vmatprep.subr.mxu0 0.0
        %1789 = vmatpush1.msra.mxu0 0.0
        %1790 = vmatprep.subr.mxu0 0.0
        %1791 = vmatpush1.msra.mxu0 0.0
        %1792 = vmatprep.subr.mxu0 0.0
        %1793 = vmatpush1.msra.mxu0 0.0
        %1794 = vmatprep.subr.mxu0 0.0
        %1795 = vmatpush1.msra.mxu0 0.0
        %1796 = vmatprep.subr.mxu0 0.0
        %1797 = vmatpush1.msra.mxu0 0.0
        %1798 = vmatprep.subr.mxu0 0.0
        %1799 = vmatpush1.msra.mxu0 0.0
        %1800 = vmatprep.subr.mxu0 0.0
        %1801 = vmatpush1.msra.mxu0 0.0
        %1802 = vmatprep.subr.mxu0 0.0
        %1803 = vmatpush1.msra.mxu0 0.0
        %1804 = vmatprep.subr.mxu0 0.0
        %1805 = vmatpush1.msra.mxu0 0.0
        %1806 = vmatprep.subr.mxu0 0.0
        %1807 = vmatpush1.msra.mxu0 0.0
        %1808 = vmatprep.subr.mxu0 0.0
        %1809 = vmatpush1.msra.mxu0 0.0
        %1810 = vmatprep.subr.mxu0 0.0
        %1811 = vmatpush1.msra.mxu0 0.0
        %1812 = vmatprep.subr.mxu0 0.0
        %1813 = vmatpush1.msra.mxu0 0.0
        %1814 = vmatprep.subr.mxu0 0.0
        %1815 = vmatpush1.msra.mxu0 0.0
        %1816 = vmatprep.subr.mxu0 0.0
        %1817 = vmatpush1.msra.mxu0 0.0
        %1818 = vmatprep.subr.mxu0 0.0
        %1819 = vmatpush1.msra.mxu0 0.0
        %1820 = vmatprep.subr.mxu0 0.0
        %1821 = vmatpush1.msra.mxu0 0.0
        %1822 = vmatprep.subr.mxu0 0.0
        %1823 = vmatpush1.msra.mxu0 0.0
        %1824 = vmatprep.subr.mxu0 0.0
        %1825 = vmatpush1.msra.mxu0 0.0
        %1826 = vmatprep.subr.mxu0 0.0
        %1827 = vmatpush1.msra.mxu0 0.0
        %1828 = vmatprep.subr.mxu0 0.0
        %1829 = vmatpush1.msra.mxu0 0.0
        %1830 = vmatprep.subr.mxu0 0.0
        %1831 = vmatpush1.msra.mxu0 0.0
        %1832 = vmatprep.subr.mxu0 0.0
        %1833 = vmatpush1.msra.mxu0 0.0
        %1834 = vmatprep.subr.mxu0 0.0
        %1835 = vmatpush1.msra.mxu0 0.0
        %1836 = vmatprep.subr.mxu0 0.0
        %1837 = vmatpush1.msra.mxu0 0.0
        %1838 = vmatprep.subr.mxu0 0.0
        %1839 = vmatpush1.msra.mxu0 0.0
        %1840 = vmatprep.mubr.f32.mxu0 0.0
        %1841 = vmatmul.mubr.f32.gmra.mrb[0].mxu0 %v1774
        %v1842 = vpop.f32.mrb[0].mxu0
        %v1843 = vadd.f32 %v797, %v1842
        %v1844 = vpop.f32.mrb[0].mxu0
        %1845 = vdwg.mxu0
        %1846 = vmax.xlane.f32.xlu0 %v1843
        %v1847 = vpop.xlane.xlu0 %1846
        %v1848 = vsub.f32 %v1843, %v1847
        %v1849 = vmul.f32 %v1848, 1.442695
        %v1850 = vpow.pop %v1849
        %1851 = vadd.xlane.f32.xlu0 %v1850
        %v1852 = vpop.xlane.xlu0 %1851
        %v1853 = vrcp.pop %v1852
        %v1854 = vmul.f32 %v1850, %v1853
        %1855 = vrot.lane.b32.xlu0 %v776, 48
        %v1856 = vpop.permute.xlu0 %1855
        %1857 = vrot.lane.b32.xlu0 %v777, 48
        %v1858 = vpop.permute.xlu0 %1857
        %1859 = vrot.lane.b32.xlu0 %v778, 48
        %v1860 = vpop.permute.xlu0 %1859
        %1861 = vrot.lane.b32.xlu0 %v779, 48
        %v1862 = vpop.permute.xlu0 %1861
        %1863 = vrot.lane.b32.xlu0 %v780, 48
        %v1864 = vpop.permute.xlu0 %1863
        %1865 = vrot.lane.b32.xlu0 %v781, 48
        %v1866 = vpop.permute.xlu0 %1865
        %1867 = vrot.lane.b32.xlu0 %v782, 48
        %v1868 = vpop.permute.xlu0 %1867
        %1869 = vrot.lane.b32.xlu0 %v783, 48
        %v1870 = vpop.permute.xlu0 %1869
        %1871 = vrot.lane.b32.xlu0 %v784, 48
        %v1872 = vpop.permute.xlu0 %1871
        %1873 = vrot.lane.b32.xlu0 %v785, 48
        %v1874 = vpop.permute.xlu0 %1873
        %1875 = vrot.lane.b32.xlu0 %v786, 48
        %v1876 = vpop.permute.xlu0 %1875
        %1877 = vrot.lane.b32.xlu0 %v787, 48
        %v1878 = vpop.permute.xlu0 %1877
        %1879 = vrot.lane.b32.xlu0 %v788, 48
        %v1880 = vpop.permute.xlu0 %1879
        %1881 = vrot.lane.b32.xlu0 %v789, 48
        %v1882 = vpop.permute.xlu0 %1881
        %1883 = vrot.lane.b32.xlu0 %v790, 48
        %v1884 = vpop.permute.xlu0 %1883
        %1885 = vrot.lane.b32.xlu0 %v791, 48
        %v1886 = vpop.permute.xlu0 %1885
        %1903 = vmatprep.subr.mxu0 0.0
        %1904 = vmatpush1.msra.mxu0 %v1856
        %1905 = vmatprep.subr.mxu0 0.0
        %1906 = vmatpush1.msra.mxu0 %v1858
        %1907 = vmatprep.subr.mxu0 0.0
        %1908 = vmatpush1.msra.mxu0 %v1860
        %1909 = vmatprep.subr.mxu0 0.0
        %1910 = vmatpush1.msra.mxu0 %v1862
        %1911 = vmatprep.subr.mxu0 0.0
        %1912 = vmatpush1.msra.mxu0 %v1864
        %1913 = vmatprep.subr.mxu0 0.0
        %1914 = vmatpush1.msra.mxu0 %v1866
        %1915 = vmatprep.subr.mxu0 0.0
        %1916 = vmatpush1.msra.mxu0 %v1868
        %1917 = vmatprep.subr.mxu0 0.0
        %1918 = vmatpush1.msra.mxu0 %v1870
        %1919 = vmatprep.subr.mxu0 0.0
        %1920 = vmatpush1.msra.mxu0 %v1872
        %1921 = vmatprep.subr.mxu0 0.0
        %1922 = vmatpush1.msra.mxu0 %v1874
        %1923 = vmatprep.subr.mxu0 0.0
        %1924 = vmatpush1.msra.mxu0 %v1876
        %1925 = vmatprep.subr.mxu0 0.0
        %1926 = vmatpush1.msra.mxu0 %v1878
        %1927 = vmatprep.subr.mxu0 0.0
        %1928 = vmatpush1.msra.mxu0 %v1880
        %1929 = vmatprep.subr.mxu0 0.0
        %1930 = vmatpush1.msra.mxu0 %v1882
        %1931 = vmatprep.subr.mxu0 0.0
        %1932 = vmatpush1.msra.mxu0 %v1884
        %1933 = vmatprep.subr.mxu0 0.0
        %1934 = vmatpush1.msra.mxu0 %v1886
        %1935 = vmatprep.subr.mxu0 0.0
        %1936 = vmatpush1.msra.mxu0 0.0
        %1937 = vmatprep.subr.mxu0 0.0
        %1938 = vmatpush1.msra.mxu0 0.0
        %1939 = vmatprep.subr.mxu0 0.0
        %1940 = vmatpush1.msra.mxu0 0.0
        %1941 = vmatprep.subr.mxu0 0.0
        %1942 = vmatpush1.msra.mxu0 0.0
        %1943 = vmatprep.subr.mxu0 0.0
        %1944 = vmatpush1.msra.mxu0 0.0
        %1945 = vmatprep.subr.mxu0 0.0
        %1946 = vmatpush1.msra.mxu0 0.0
        %1947 = vmatprep.subr.mxu0 0.0
        %1948 = vmatpush1.msra.mxu0 0.0
        %1949 = vmatprep.subr.mxu0 0.0
        %1950 = vmatpush1.msra.mxu0 0.0
        %1951 = vmatprep.subr.mxu0 0.0
        %1952 = vmatpush1.msra.mxu0 0.0
        %1953 = vmatprep.subr.mxu0 0.0
        %1954 = vmatpush1.msra.mxu0 0.0
        %1955 = vmatprep.subr.mxu0 0.0
        %1956 = vmatpush1.msra.mxu0 0.0
        %1957 = vmatprep.subr.mxu0 0.0
        %1958 = vmatpush1.msra.mxu0 0.0
        %1959 = vmatprep.subr.mxu0 0.0
        %1960 = vmatpush1.msra.mxu0 0.0
        %1961 = vmatprep.subr.mxu0 0.0
        %1962 = vmatpush1.msra.mxu0 0.0
        %1963 = vmatprep.subr.mxu0 0.0
        %1964 = vmatpush1.msra.mxu0 0.0
        %1965 = vmatprep.subr.mxu0 0.0
        %1966 = vmatpush1.msra.mxu0 0.0
        %1967 = vmatprep.mubr.f32.mxu0 0.0
        %1968 = vmatmul.mubr.f32.gmra.mrb[0].mxu0 %v1854
        %v1969 = vpop.f32.mrb[0].mxu0
        %v1970 = vadd.f32 0.0, %v1969
        %v1971 = vpop.f32.mrb[0].mxu0
        %1972 = vdwg.mxu0
        %1973 = vrot.lane.b32.xlu0 %v757, 32
        %v1974 = vpop.permute.xlu0 %1973
        %v1975 = vsel %vm799, %v1974, 0
        %1977 = vmatprep.subr.mxu0 0.0
        %1978 = vmatpush1.msra.mxu0 %v772
        %1979 = vmatprep.subr.mxu0 0.0
        %1980 = vmatpush1.msra.mxu0 %v773
        %1981 = vmatprep.subr.mxu0 0.0
        %1982 = vmatpush1.msra.mxu0 0.0
        %1983 = vmatprep.subr.mxu0 0.0
        %1984 = vmatpush1.msra.mxu0 0.0
        %1985 = vmatprep.subr.mxu0 0.0
        %1986 = vmatpush1.msra.mxu0 0.0
        %1987 = vmatprep.subr.mxu0 0.0
        %1988 = vmatpush1.msra.mxu0 0.0
        %1989 = vmatprep.subr.mxu0 0.0
        %1990 = vmatpush1.msra.mxu0 0.0
        %1991 = vmatprep.subr.mxu0 0.0
        %1992 = vmatpush1.msra.mxu0 0.0
        %1993 = vmatprep.subr.mxu0 0.0
        %1994 = vmatpush1.msra.mxu0 0.0
        %1995 = vmatprep.subr.mxu0 0.0
        %1996 = vmatpush1.msra.mxu0 0.0
        %1997 = vmatprep.subr.mxu0 0.0
        %1998 = vmatpush1.msra.mxu0 0.0
        %1999 = vmatprep.subr.mxu0 0.0
        %2000 = vmatpush1.msra.mxu0 0.0
        %2001 = vmatprep.subr.mxu0 0.0
        %2002 = vmatpush1.msra.mxu0 0.0
        %2003 = vmatprep.subr.mxu0 0.0
        %2004 = vmatpush1.msra.mxu0 0.0
        %2005 = vmatprep.subr.mxu0 0.0
        %2006 = vmatpush1.msra.mxu0 0.0
        %2007 = vmatprep.subr.mxu0 0.0
        %2008 = vmatpush1.msra.mxu0 0.0
        %2009 = vmatprep.subr.mxu0 0.0
        %2010 = vmatpush1.msra.mxu0 0.0
        %2011 = vmatprep.subr.mxu0 0.0
        %2012 = vmatpush1.msra.mxu0 0.0
        %2013 = vmatprep.subr.mxu0 0.0
        %2014 = vmatpush1.msra.mxu0 0.0
        %2015 = vmatprep.subr.mxu0 0.0
        %2016 = vmatpush1.msra.mxu0 0.0
        %2017 = vmatprep.subr.mxu0 0.0
        %2018 = vmatpush1.msra.mxu0 0.0
        %2019 = vmatprep.subr.mxu0 0.0
        %2020 = vmatpush1.msra.mxu0 0.0
        %2021 = vmatprep.subr.mxu0 0.0
        %2022 = vmatpush1.msra.mxu0 0.0
        %2023 = vmatprep.subr.mxu0 0.0
        %2024 = vmatpush1.msra.mxu0 0.0
        %2025 = vmatprep.subr.mxu0 0.0
        %2026 = vmatpush1.msra.mxu0 0.0
        %2027 = vmatprep.subr.mxu0 0.0
        %2028 = vmatpush1.msra.mxu0 0.0
        %2029 = vmatprep.subr.mxu0 0.0
        %2030 = vmatpush1.msra.mxu0 0.0
        %2031 = vmatprep.subr.mxu0 0.0
        %2032 = vmatpush1.msra.mxu0 0.0
        %2033 = vmatprep.subr.mxu0 0.0
        %2034 = vmatpush1.msra.mxu0 0.0
        %2035 = vmatprep.subr.mxu0 0.0
        %2036 = vmatpush1.msra.mxu0 0.0
        %2037 = vmatprep.subr.mxu0 0.0
        %2038 = vmatpush1.msra.mxu0 0.0
        %2039 = vmatprep.subr.mxu0 0.0
        %2040 = vmatpush1.msra.mxu0 0.0
        %2041 = vmatprep.mubr.f32.mxu0 0.0
        %2042 = vmatmul.mubr.f32.gmra.mrb[0].mxu0 %v1975
        %v2043 = vpop.f32.mrb[0].mxu0
        %v2044 = vadd.f32 %v797, %v2043
        %v2045 = vpop.f32.mrb[0].mxu0
        %2046 = vdwg.mxu0
        %2047 = vmax.xlane.f32.xlu0 %v2044
        %v2048 = vpop.xlane.xlu0 %2047
        %v2049 = vsub.f32 %v2044, %v2048
        %v2050 = vmul.f32 %v2049, 1.442695
        %v2051 = vpow.pop %v2050
        %2052 = vadd.xlane.f32.xlu0 %v2051
        %v2053 = vpop.xlane.xlu0 %2052
        %v2054 = vrcp.pop %v2053
        %v2055 = vmul.f32 %v2051, %v2054
        %2056 = vrot.lane.b32.xlu0 %v776, 32
        %v2057 = vpop.permute.xlu0 %2056
        %2058 = vrot.lane.b32.xlu0 %v777, 32
        %v2059 = vpop.permute.xlu0 %2058
        %2060 = vrot.lane.b32.xlu0 %v778, 32
        %v2061 = vpop.permute.xlu0 %2060
        %2062 = vrot.lane.b32.xlu0 %v779, 32
        %v2063 = vpop.permute.xlu0 %2062
        %2064 = vrot.lane.b32.xlu0 %v780, 32
        %v2065 = vpop.permute.xlu0 %2064
        %2066 = vrot.lane.b32.xlu0 %v781, 32
        %v2067 = vpop.permute.xlu0 %2066
        %2068 = vrot.lane.b32.xlu0 %v782, 32
        %v2069 = vpop.permute.xlu0 %2068
        %2070 = vrot.lane.b32.xlu0 %v783, 32
        %v2071 = vpop.permute.xlu0 %2070
        %2072 = vrot.lane.b32.xlu0 %v784, 32
        %v2073 = vpop.permute.xlu0 %2072
        %2074 = vrot.lane.b32.xlu0 %v785, 32
        %v2075 = vpop.permute.xlu0 %2074
        %2076 = vrot.lane.b32.xlu0 %v786, 32
        %v2077 = vpop.permute.xlu0 %2076
        %2078 = vrot.lane.b32.xlu0 %v787, 32
        %v2079 = vpop.permute.xlu0 %2078
        %2080 = vrot.lane.b32.xlu0 %v788, 32
        %v2081 = vpop.permute.xlu0 %2080
        %2082 = vrot.lane.b32.xlu0 %v789, 32
        %v2083 = vpop.permute.xlu0 %2082
        %2084 = vrot.lane.b32.xlu0 %v790, 32
        %v2085 = vpop.permute.xlu0 %2084
        %2086 = vrot.lane.b32.xlu0 %v791, 32
        %v2087 = vpop.permute.xlu0 %2086
        %2104 = vmatprep.subr.mxu0 0.0
        %2105 = vmatpush1.msra.mxu0 %v2057
        %2106 = vmatprep.subr.mxu0 0.0
        %2107 = vmatpush1.msra.mxu0 %v2059
        %2108 = vmatprep.subr.mxu0 0.0
        %2109 = vmatpush1.msra.mxu0 %v2061
        %2110 = vmatprep.subr.mxu0 0.0
        %2111 = vmatpush1.msra.mxu0 %v2063
        %2112 = vmatprep.subr.mxu0 0.0
        %2113 = vmatpush1.msra.mxu0 %v2065
        %2114 = vmatprep.subr.mxu0 0.0
        %2115 = vmatpush1.msra.mxu0 %v2067
        %2116 = vmatprep.subr.mxu0 0.0
        %2117 = vmatpush1.msra.mxu0 %v2069
        %2118 = vmatprep.subr.mxu0 0.0
        %2119 = vmatpush1.msra.mxu0 %v2071
        %2120 = vmatprep.subr.mxu0 0.0
        %2121 = vmatpush1.msra.mxu0 %v2073
        %2122 = vmatprep.subr.mxu0 0.0
        %2123 = vmatpush1.msra.mxu0 %v2075
        %2124 = vmatprep.subr.mxu0 0.0
        %2125 = vmatpush1.msra.mxu0 %v2077
        %2126 = vmatprep.subr.mxu0 0.0
        %2127 = vmatpush1.msra.mxu0 %v2079
        %2128 = vmatprep.subr.mxu0 0.0
        %2129 = vmatpush1.msra.mxu0 %v2081
        %2130 = vmatprep.subr.mxu0 0.0
        %2131 = vmatpush1.msra.mxu0 %v2083
        %2132 = vmatprep.subr.mxu0 0.0
        %2133 = vmatpush1.msra.mxu0 %v2085
        %2134 = vmatprep.subr.mxu0 0.0
        %2135 = vmatpush1.msra.mxu0 %v2087
        %2136 = vmatprep.subr.mxu0 0.0
        %2137 = vmatpush1.msra.mxu0 0.0
        %2138 = vmatprep.subr.mxu0 0.0
        %2139 = vmatpush1.msra.mxu0 0.0
        %2140 = vmatprep.subr.mxu0 0.0
        %2141 = vmatpush1.msra.mxu0 0.0
        %2142 = vmatprep.subr.mxu0 0.0
        %2143 = vmatpush1.msra.mxu0 0.0
        %2144 = vmatprep.subr.mxu0 0.0
        %2145 = vmatpush1.msra.mxu0 0.0
        %2146 = vmatprep.subr.mxu0 0.0
        %2147 = vmatpush1.msra.mxu0 0.0
        %2148 = vmatprep.subr.mxu0 0.0
        %2149 = vmatpush1.msra.mxu0 0.0
        %2150 = vmatprep.subr.mxu0 0.0
        %2151 = vmatpush1.msra.mxu0 0.0
        %2152 = vmatprep.subr.mxu0 0.0
        %2153 = vmatpush1.msra.mxu0 0.0
        %2154 = vmatprep.subr.mxu0 0.0
        %2155 = vmatpush1.msra.mxu0 0.0
        %2156 = vmatprep.subr.mxu0 0.0
        %2157 = vmatpush1.msra.mxu0 0.0
        %2158 = vmatprep.subr.mxu0 0.0
        %2159 = vmatpush1.msra.mxu0 0.0
        %2160 = vmatprep.subr.mxu0 0.0
        %2161 = vmatpush1.msra.mxu0 0.0
        %2162 = vmatprep.subr.mxu0 0.0
        %2163 = vmatpush1.msra.mxu0 0.0
        %2164 = vmatprep.subr.mxu0 0.0
        %2165 = vmatpush1.msra.mxu0 0.0
        %2166 = vmatprep.subr.mxu0 0.0
        %2167 = vmatpush1.msra.mxu0 0.0
        %2168 = vmatprep.mubr.f32.mxu0 0.0
        %2169 = vmatmul.mubr.f32.gmra.mrb[0].mxu0 %v2055
        %v2170 = vpop.f32.mrb[0].mxu0
        %v2171 = vadd.f32 0.0, %v2170
        %v2172 = vpop.f32.mrb[0].mxu0
        %2173 = vdwg.mxu0
        %2174 = vrot.lane.b32.xlu0 %v757, 16
        %v2175 = vpop.permute.xlu0 %2174
        %v2176 = vsel %vm799, %v2175, 0
        %2178 = vmatprep.subr.mxu0 0.0
        %2179 = vmatpush1.msra.mxu0 %v774
        %2180 = vmatprep.subr.mxu0 0.0
        %2181 = vmatpush1.msra.mxu0 %v775
        %2182 = vmatprep.subr.mxu0 0.0
        %2183 = vmatpush1.msra.mxu0 0.0
        %2184 = vmatprep.subr.mxu0 0.0
        %2185 = vmatpush1.msra.mxu0 0.0
        %2186 = vmatprep.subr.mxu0 0.0
        %2187 = vmatpush1.msra.mxu0 0.0
        %2188 = vmatprep.subr.mxu0 0.0
        %2189 = vmatpush1.msra.mxu0 0.0
        %2190 = vmatprep.subr.mxu0 0.0
        %2191 = vmatpush1.msra.mxu0 0.0
        %2192 = vmatprep.subr.mxu0 0.0
        %2193 = vmatpush1.msra.mxu0 0.0
        %2194 = vmatprep.subr.mxu0 0.0
        %2195 = vmatpush1.msra.mxu0 0.0
        %2196 = vmatprep.subr.mxu0 0.0
        %2197 = vmatpush1.msra.mxu0 0.0
        %2198 = vmatprep.subr.mxu0 0.0
        %2199 = vmatpush1.msra.mxu0 0.0
        %2200 = vmatprep.subr.mxu0 0.0
        %2201 = vmatpush1.msra.mxu0 0.0
        %2202 = vmatprep.subr.mxu0 0.0
        %2203 = vmatpush1.msra.mxu0 0.0
        %2204 = vmatprep.subr.mxu0 0.0
        %2205 = vmatpush1.msra.mxu0 0.0
        %2206 = vmatprep.subr.mxu0 0.0
        %2207 = vmatpush1.msra.mxu0 0.0
        %2208 = vmatprep.subr.mxu0 0.0
        %2209 = vmatpush1.msra.mxu0 0.0
        %2210 = vmatprep.subr.mxu0 0.0
        %2211 = vmatpush1.msra.mxu0 0.0
        %2212 = vmatprep.subr.mxu0 0.0
        %2213 = vmatpush1.msra.mxu0 0.0
        %2214 = vmatprep.subr.mxu0 0.0
        %2215 = vmatpush1.msra.mxu0 0.0
        %2216 = vmatprep.subr.mxu0 0.0
        %2217 = vmatpush1.msra.mxu0 0.0
        %2218 = vmatprep.subr.mxu0 0.0
        %2219 = vmatpush1.msra.mxu0 0.0
        %2220 = vmatprep.subr.mxu0 0.0
        %2221 = vmatpush1.msra.mxu0 0.0
        %2222 = vmatprep.subr.mxu0 0.0
        %2223 = vmatpush1.msra.mxu0 0.0
        %2224 = vmatprep.subr.mxu0 0.0
        %2225 = vmatpush1.msra.mxu0 0.0
        %2226 = vmatprep.subr.mxu0 0.0
        %2227 = vmatpush1.msra.mxu0 0.0
        %2228 = vmatprep.subr.mxu0 0.0
        %2229 = vmatpush1.msra.mxu0 0.0
        %2230 = vmatprep.subr.mxu0 0.0
        %2231 = vmatpush1.msra.mxu0 0.0
        %2232 = vmatprep.subr.mxu0 0.0
        %2233 = vmatpush1.msra.mxu0 0.0
        %2234 = vmatprep.subr.mxu0 0.0
        %2235 = vmatpush1.msra.mxu0 0.0
        %2236 = vmatprep.subr.mxu0 0.0
        %2237 = vmatpush1.msra.mxu0 0.0
        %2238 = vmatprep.subr.mxu0 0.0
        %2239 = vmatpush1.msra.mxu0 0.0
        %2240 = vmatprep.subr.mxu0 0.0
        %2241 = vmatpush1.msra.mxu0 0.0
        %2242 = vmatprep.mubr.f32.mxu0 0.0
        %2243 = vmatmul.mubr.f32.gmra.mrb[0].mxu0 %v2176
        %v2244 = vpop.f32.mrb[0].mxu0
        %v2245 = vadd.f32 %v797, %v2244
        %v2246 = vpop.f32.mrb[0].mxu0
        %2247 = vdwg.mxu0
        %2248 = vmax.xlane.f32.xlu0 %v2245
        %v2249 = vpop.xlane.xlu0 %2248
        %v2250 = vsub.f32 %v2245, %v2249
        %v2251 = vmul.f32 %v2250, 1.442695
        %v2252 = vpow.pop %v2251
        %2253 = vadd.xlane.f32.xlu0 %v2252
        %v2254 = vpop.xlane.xlu0 %2253
        %v2255 = vrcp.pop %v2254
        %v2256 = vmul.f32 %v2252, %v2255
        %2257 = vrot.lane.b32.xlu0 %v776, 16
        %v2258 = vpop.permute.xlu0 %2257
        %2259 = vrot.lane.b32.xlu0 %v777, 16
        %v2260 = vpop.permute.xlu0 %2259
        %2261 = vrot.lane.b32.xlu0 %v778, 16
        %v2262 = vpop.permute.xlu0 %2261
        %2263 = vrot.lane.b32.xlu0 %v779, 16
        %v2264 = vpop.permute.xlu0 %2263
        %2265 = vrot.lane.b32.xlu0 %v780, 16
        %v2266 = vpop.permute.xlu0 %2265
        %2267 = vrot.lane.b32.xlu0 %v781, 16
        %v2268 = vpop.permute.xlu0 %2267
        %2269 = vrot.lane.b32.xlu0 %v782, 16
        %v2270 = vpop.permute.xlu0 %2269
        %2271 = vrot.lane.b32.xlu0 %v783, 16
        %v2272 = vpop.permute.xlu0 %2271
        %2273 = vrot.lane.b32.xlu0 %v784, 16
        %v2274 = vpop.permute.xlu0 %2273
        %2275 = vrot.lane.b32.xlu0 %v785, 16
        %v2276 = vpop.permute.xlu0 %2275
        %2277 = vrot.lane.b32.xlu0 %v786, 16
        %v2278 = vpop.permute.xlu0 %2277
        %2279 = vrot.lane.b32.xlu0 %v787, 16
        %v2280 = vpop.permute.xlu0 %2279
        %2281 = vrot.lane.b32.xlu0 %v788, 16
        %v2282 = vpop.permute.xlu0 %2281
        %2283 = vrot.lane.b32.xlu0 %v789, 16
        %v2284 = vpop.permute.xlu0 %2283
        %2285 = vrot.lane.b32.xlu0 %v790, 16
        %v2286 = vpop.permute.xlu0 %2285
        %2287 = vrot.lane.b32.xlu0 %v791, 16
        %v2288 = vpop.permute.xlu0 %2287
        %2305 = vmatprep.subr.mxu0 0.0
        %2306 = vmatpush1.msra.mxu0 %v2258
        %2307 = vmatprep.subr.mxu0 0.0
        %2308 = vmatpush1.msra.mxu0 %v2260
        %2309 = vmatprep.subr.mxu0 0.0
        %2310 = vmatpush1.msra.mxu0 %v2262
        %2311 = vmatprep.subr.mxu0 0.0
        %2312 = vmatpush1.msra.mxu0 %v2264
        %2313 = vmatprep.subr.mxu0 0.0
        %2314 = vmatpush1.msra.mxu0 %v2266
        %2315 = vmatprep.subr.mxu0 0.0
        %2316 = vmatpush1.msra.mxu0 %v2268
        %2317 = vmatprep.subr.mxu0 0.0
        %2318 = vmatpush1.msra.mxu0 %v2270
        %2319 = vmatprep.subr.mxu0 0.0
        %2320 = vmatpush1.msra.mxu0 %v2272
        %2321 = vmatprep.subr.mxu0 0.0
        %2322 = vmatpush1.msra.mxu0 %v2274
        %2323 = vmatprep.subr.mxu0 0.0
        %2324 = vmatpush1.msra.mxu0 %v2276
        %2325 = vmatprep.subr.mxu0 0.0
        %2326 = vmatpush1.msra.mxu0 %v2278
        %2327 = vmatprep.subr.mxu0 0.0
        %2328 = vmatpush1.msra.mxu0 %v2280
        %2329 = vmatprep.subr.mxu0 0.0
        %2330 = vmatpush1.msra.mxu0 %v2282
        %2331 = vmatprep.subr.mxu0 0.0
        %2332 = vmatpush1.msra.mxu0 %v2284
        %2333 = vmatprep.subr.mxu0 0.0
        %2334 = vmatpush1.msra.mxu0 %v2286
        %2335 = vmatprep.subr.mxu0 0.0
        %2336 = vmatpush1.msra.mxu0 %v2288
        %2337 = vmatprep.subr.mxu0 0.0
        %2338 = vmatpush1.msra.mxu0 0.0
        %2339 = vmatprep.subr.mxu0 0.0
        %2340 = vmatpush1.msra.mxu0 0.0
        %2341 = vmatprep.subr.mxu0 0.0
        %2342 = vmatpush1.msra.mxu0 0.0
        %2343 = vmatprep.subr.mxu0 0.0
        %2344 = vmatpush1.msra.mxu0 0.0
        %2345 = vmatprep.subr.mxu0 0.0
        %2346 = vmatpush1.msra.mxu0 0.0
        %2347 = vmatprep.subr.mxu0 0.0
        %2348 = vmatpush1.msra.mxu0 0.0
        %2349 = vmatprep.subr.mxu0 0.0
        %2350 = vmatpush1.msra.mxu0 0.0
        %2351 = vmatprep.subr.mxu0 0.0
        %2352 = vmatpush1.msra.mxu0 0.0
        %2353 = vmatprep.subr.mxu0 0.0
        %2354 = vmatpush1.msra.mxu0 0.0
        %2355 = vmatprep.subr.mxu0 0.0
        %2356 = vmatpush1.msra.mxu0 0.0
        %2357 = vmatprep.subr.mxu0 0.0
        %2358 = vmatpush1.msra.mxu0 0.0
        %2359 = vmatprep.subr.mxu0 0.0
        %2360 = vmatpush1.msra.mxu0 0.0
        %2361 = vmatprep.subr.mxu0 0.0
        %2362 = vmatpush1.msra.mxu0 0.0
        %2363 = vmatprep.subr.mxu0 0.0
        %2364 = vmatpush1.msra.mxu0 0.0
        %2365 = vmatprep.subr.mxu0 0.0
        %2366 = vmatpush1.msra.mxu0 0.0
        %2367 = vmatprep.subr.mxu0 0.0
        %2368 = vmatpush1.msra.mxu0 0.0
        %2369 = vmatprep.mubr.f32.mxu0 0.0
        %2370 = vmatmul.mubr.f32.gmra.mrb[0].mxu0 %v2256
        %v2371 = vpop.f32.mrb[0].mxu0
        %v2372 = vadd.f32 0.0, %v2371
        %v2373 = vpop.f32.mrb[0].mxu0
        %2374 = vdwg.mxu0
        %2376 = vrot.lane.b32.xlu0 %v1166, 16
        %v2377 = vpop.permute.xlu0 %2376
        %2380 = vrot.lane.b32.xlu0 %v1367, 32
        %v2381 = vpop.permute.xlu0 %2380
        %2384 = vrot.lane.b32.xlu0 %v1568, 48
        %v2385 = vpop.permute.xlu0 %2384
        %2388 = vrot.lane.b32.xlu0 %v1769, 64
        %v2389 = vpop.permute.xlu0 %2388
        %2392 = vrot.lane.b32.xlu0 %v1970, 80
        %v2393 = vpop.permute.xlu0 %2392
        %2396 = vrot.lane.b32.xlu0 %v2171, 96
        %v2397 = vpop.permute.xlu0 %2396
        %2400 = vrot.lane.b32.xlu0 %v2372, 112
        %v2401 = vpop.permute.xlu0 %2400
        %v2403 = vsel %vm799, %v949, %v2377
        %vm2404 = vcmask 261120
        %v2405 = vsel %vm2404, %v2403, %v2381
        %vm2406 = vcmask 392192
        %v2407 = vsel %vm2406, %v2405, %v2385
        %vm2408 = vcmask 523264
        %v2409 = vsel %vm2408, %v2407, %v2389
        %vm2410 = vcmask 654336
        %v2411 = vsel %vm2410, %v2409, %v2393
        %vm2412 = vcmask 785408
        %v2413 = vsel %vm2412, %v2411, %v2397
        %vm2414 = vcmask 916480
        %v2415 = vsel %vm2414, %v2413, %v2401
        %v2416 = vld [vmem:[#allocation8] sm:$0xff]
        %v2417 = vld [vmem:[#allocation8 + $0x8] sm:$0xff]
        %v2418 = vld [vmem:[#allocation8 + $0x10] sm:$0xff]
        %v2419 = vld [vmem:[#allocation8 + $0x18] sm:$0xff]
        %v2420 = vld [vmem:[#allocation8 + $0x20] sm:$0xff]
        %v2421 = vld [vmem:[#allocation8 + $0x28] sm:$0xff]
        %v2422 = vld [vmem:[#allocation8 + $0x30] sm:$0xff]
        %v2423 = vld [vmem:[#allocation8 + $0x38] sm:$0xff]
        %v2424 = vld [vmem:[#allocation8 + $0x40] sm:$0xff]
        %v2425 = vld [vmem:[#allocation8 + $0x48] sm:$0xff]
        %v2426 = vld [vmem:[#allocation8 + $0x50] sm:$0xff]
        %v2427 = vld [vmem:[#allocation8 + $0x58] sm:$0xff]
        %v2428 = vld [vmem:[#allocation8 + $0x60] sm:$0xff]
        %v2429 = vld [vmem:[#allocation8 + $0x68] sm:$0xff]
        %v2430 = vld [vmem:[#allocation8 + $0x70] sm:$0xff]
        %v2431 = vld [vmem:[#allocation8 + $0x78] sm:$0xff]
        %v2432 = vld [vmem:[#allocation10] sm:$0x1]
        %v2434 = vlaneseq
        %v2435 = vshrl.u32 %v2434, 7
        %v2436 = vsub.s32 0, %v2435
        %v2437 = vrot.slane %v2432, %v2436
        %2439 = vmatprep.subr.mxu0 0.0
        %2440 = vmatpush1.msra.mxu0 %v2416
        %2441 = vmatprep.subr.mxu0 0.0
        %2442 = vmatpush1.msra.mxu0 %v2417
        %2443 = vmatprep.subr.mxu0 0.0
        %2444 = vmatpush1.msra.mxu0 %v2418
        %2445 = vmatprep.subr.mxu0 0.0
        %2446 = vmatpush1.msra.mxu0 %v2419
        %2447 = vmatprep.subr.mxu0 0.0
        %2448 = vmatpush1.msra.mxu0 %v2420
        %2449 = vmatprep.subr.mxu0 0.0
        %2450 = vmatpush1.msra.mxu0 %v2421
        %2451 = vmatprep.subr.mxu0 0.0
        %2452 = vmatpush1.msra.mxu0 %v2422
        %2453 = vmatprep.subr.mxu0 0.0
        %2454 = vmatpush1.msra.mxu0 %v2423
        %2455 = vmatprep.subr.mxu0 0.0
        %2456 = vmatpush1.msra.mxu0 %v2424
        %2457 = vmatprep.subr.mxu0 0.0
        %2458 = vmatpush1.msra.mxu0 %v2425
        %2459 = vmatprep.subr.mxu0 0.0
        %2460 = vmatpush1.msra.mxu0 %v2426
        %2461 = vmatprep.subr.mxu0 0.0
        %2462 = vmatpush1.msra.mxu0 %v2427
        %2463 = vmatprep.subr.mxu0 0.0
        %2464 = vmatpush1.msra.mxu0 %v2428
        %2465 = vmatprep.subr.mxu0 0.0
        %2466 = vmatpush1.msra.mxu0 %v2429
        %2467 = vmatprep.subr.mxu0 0.0
        %2468 = vmatpush1.msra.mxu0 %v2430
        %2469 = vmatprep.subr.mxu0 0.0
        %2470 = vmatpush1.msra.mxu0 %v2431
        %2471 = vmatprep.subr.mxu0 0.0
        %2472 = vmatpush1.msra.mxu0 0.0
        %2473 = vmatprep.subr.mxu0 0.0
        %2474 = vmatpush1.msra.mxu0 0.0
        %2475 = vmatprep.subr.mxu0 0.0
        %2476 = vmatpush1.msra.mxu0 0.0
        %2477 = vmatprep.subr.mxu0 0.0
        %2478 = vmatpush1.msra.mxu0 0.0
        %2479 = vmatprep.subr.mxu0 0.0
        %2480 = vmatpush1.msra.mxu0 0.0
        %2481 = vmatprep.subr.mxu0 0.0
        %2482 = vmatpush1.msra.mxu0 0.0
        %2483 = vmatprep.subr.mxu0 0.0
        %2484 = vmatpush1.msra.mxu0 0.0
        %2485 = vmatprep.subr.mxu0 0.0
        %2486 = vmatpush1.msra.mxu0 0.0
        %2487 = vmatprep.subr.mxu0 0.0
        %2488 = vmatpush1.msra.mxu0 0.0
        %2489 = vmatprep.subr.mxu0 0.0
        %2490 = vmatpush1.msra.mxu0 0.0
        %2491 = vmatprep.subr.mxu0 0.0
        %2492 = vmatpush1.msra.mxu0 0.0
        %2493 = vmatprep.subr.mxu0 0.0
        %2494 = vmatpush1.msra.mxu0 0.0
        %2495 = vmatprep.subr.mxu0 0.0
        %2496 = vmatpush1.msra.mxu0 0.0
        %2497 = vmatprep.subr.mxu0 0.0
        %2498 = vmatpush1.msra.mxu0 0.0
        %2499 = vmatprep.subr.mxu0 0.0
        %2500 = vmatpush1.msra.mxu0 0.0
        %2501 = vmatprep.subr.mxu0 0.0
        %2502 = vmatpush1.msra.mxu0 0.0
        %2503 = vmatprep.mubr.f32.mxu0 0.0
        %2504 = vmatmul.mubr.f32.gmra.mrb[0].mxu0 %v2415
        %v2505 = vpop.f32.mrb[0].mxu0
        %v2506 = vadd.f32 %v2437, %v2505
        %v2507 = vpop.f32.mrb[0].mxu0
        %2508 = vdwg.mxu0
        %s2509 = scalar_lea.vmem [#allocation5], 128
        %v2510 = vld [vmem:[%s2509] sm:$0xff]
        %v2511 = vld [vmem:[%s2509 + $0x8] sm:$0xff]
        %v2512 = vld [vmem:[%s2509 + $0x10] sm:$0xff]
        %v2513 = vld [vmem:[%s2509 + $0x18] sm:$0xff]
        %v2514 = vld [vmem:[%s2509 + $0x20] sm:$0xff]
        %v2515 = vld [vmem:[%s2509 + $0x28] sm:$0xff]
        %v2516 = vld [vmem:[%s2509 + $0x30] sm:$0xff]
        %v2517 = vld [vmem:[%s2509 + $0x38] sm:$0xff]
        %v2518 = vld [vmem:[%s2509 + $0x40] sm:$0xff]
        %v2519 = vld [vmem:[%s2509 + $0x48] sm:$0xff]
        %v2520 = vld [vmem:[%s2509 + $0x50] sm:$0xff]
        %v2521 = vld [vmem:[%s2509 + $0x58] sm:$0xff]
        %v2522 = vld [vmem:[%s2509 + $0x60] sm:$0xff]
        %v2523 = vld [vmem:[%s2509 + $0x68] sm:$0xff]
        %v2524 = vld [vmem:[%s2509 + $0x70] sm:$0xff]
        %v2525 = vld [vmem:[%s2509 + $0x78] sm:$0xff]
        %s2526 = scalar_lea.vmem [#allocation7], 1
        %v2527 = vld [vmem:[%s2526] sm:$0x1]
        %v2529 = vlaneseq
        %v2530 = vshrl.u32 %v2529, 7
        %v2531 = vsub.s32 0, %v2530
        %v2532 = vrot.slane %v2527, %v2531
        %2534 = vmatprep.subr.mxu0 0.0
        %2535 = vmatpush1.msra.mxu0 %v2510
        %2536 = vmatprep.subr.mxu0 0.0
        %2537 = vmatpush1.msra.mxu0 %v2511
        %2538 = vmatprep.subr.mxu0 0.0
        %2539 = vmatpush1.msra.mxu0 %v2512
        %2540 = vmatprep.subr.mxu0 0.0
        %2541 = vmatpush1.msra.mxu0 %v2513
        %2542 = vmatprep.subr.mxu0 0.0
        %2543 = vmatpush1.msra.mxu0 %v2514
        %2544 = vmatprep.subr.mxu0 0.0
        %2545 = vmatpush1.msra.mxu0 %v2515
        %2546 = vmatprep.subr.mxu0 0.0
        %2547 = vmatpush1.msra.mxu0 %v2516
        %2548 = vmatprep.subr.mxu0 0.0
        %2549 = vmatpush1.msra.mxu0 %v2517
        %2550 = vmatprep.subr.mxu0 0.0
        %2551 = vmatpush1.msra.mxu0 %v2518
        %2552 = vmatprep.subr.mxu0 0.0
        %2553 = vmatpush1.msra.mxu0 %v2519
        %2554 = vmatprep.subr.mxu0 0.0
        %2555 = vmatpush1.msra.mxu0 %v2520
        %2556 = vmatprep.subr.mxu0 0.0
        %2557 = vmatpush1.msra.mxu0 %v2521
        %2558 = vmatprep.subr.mxu0 0.0
        %2559 = vmatpush1.msra.mxu0 %v2522
        %2560 = vmatprep.subr.mxu0 0.0
        %2561 = vmatpush1.msra.mxu0 %v2523
        %2562 = vmatprep.subr.mxu0 0.0
        %2563 = vmatpush1.msra.mxu0 %v2524
        %2564 = vmatprep.subr.mxu0 0.0
        %2565 = vmatpush1.msra.mxu0 %v2525
        %2566 = vmatprep.subr.mxu0 0.0
        %2567 = vmatpush1.msra.mxu0 0.0
        %2568 = vmatprep.subr.mxu0 0.0
        %2569 = vmatpush1.msra.mxu0 0.0
        %2570 = vmatprep.subr.mxu0 0.0
        %2571 = vmatpush1.msra.mxu0 0.0
        %2572 = vmatprep.subr.mxu0 0.0
        %2573 = vmatpush1.msra.mxu0 0.0
        %2574 = vmatprep.subr.mxu0 0.0
        %2575 = vmatpush1.msra.mxu0 0.0
        %2576 = vmatprep.subr.mxu0 0.0
        %2577 = vmatpush1.msra.mxu0 0.0
        %2578 = vmatprep.subr.mxu0 0.0
        %2579 = vmatpush1.msra.mxu0 0.0
        %2580 = vmatprep.subr.mxu0 0.0
        %2581 = vmatpush1.msra.mxu0 0.0
        %2582 = vmatprep.subr.mxu0 0.0
        %2583 = vmatpush1.msra.mxu0 0.0
        %2584 = vmatprep.subr.mxu0 0.0
        %2585 = vmatpush1.msra.mxu0 0.0
        %2586 = vmatprep.subr.mxu0 0.0
        %2587 = vmatpush1.msra.mxu0 0.0
        %2588 = vmatprep.subr.mxu0 0.0
        %2589 = vmatpush1.msra.mxu0 0.0
        %2590 = vmatprep.subr.mxu0 0.0
        %2591 = vmatpush1.msra.mxu0 0.0
        %2592 = vmatprep.subr.mxu0 0.0
        %2593 = vmatpush1.msra.mxu0 0.0
        %2594 = vmatprep.subr.mxu0 0.0
        %2595 = vmatpush1.msra.mxu0 0.0
        %2596 = vmatprep.subr.mxu0 0.0
        %2597 = vmatpush1.msra.mxu0 0.0
        %2598 = vmatprep.mubr.f32.mxu0 0.0
        %2599 = vmatmul.mubr.f32.gmra.mrb[0].mxu0 %v2506
        %v2600 = vpop.f32.mrb[0].mxu0
        %v2601 = vadd.f32 %v2532, %v2600
        %v2602 = vpop.f32.mrb[0].mxu0
        %2603 = vdwg.mxu0
        %v2604 = vld [vmem:[#allocation16] sm:$0xff]
        %v2605 = vld [vmem:[#allocation16 + $0x8] sm:$0xff]
        %v2606 = vld [vmem:[#allocation16 + $0x10] sm:$0xff]
        %v2607 = vld [vmem:[#allocation16 + $0x18] sm:$0xff]
        %v2608 = vld [vmem:[#allocation16 + $0x20] sm:$0xff]
        %v2609 = vld [vmem:[#allocation16 + $0x28] sm:$0xff]
        %v2610 = vld [vmem:[#allocation16 + $0x30] sm:$0xff]
        %v2611 = vld [vmem:[#allocation16 + $0x38] sm:$0xff]
        %v2612 = vld [vmem:[#allocation16 + $0x40] sm:$0xff]
        %v2613 = vld [vmem:[#allocation16 + $0x48] sm:$0xff]
        %v2614 = vld [vmem:[#allocation16 + $0x50] sm:$0xff]
        %v2615 = vld [vmem:[#allocation16 + $0x58] sm:$0xff]
        %v2616 = vld [vmem:[#allocation16 + $0x60] sm:$0xff]
        %v2617 = vld [vmem:[#allocation16 + $0x68] sm:$0xff]
        %v2618 = vld [vmem:[#allocation16 + $0x70] sm:$0xff]
        %v2619 = vld [vmem:[#allocation16 + $0x78] sm:$0xff]
        %v2620 = vld [vmem:[#allocation17] sm:$0xff]
        %v2621 = vld [vmem:[#allocation17 + $0x8] sm:$0xff]
        %v2622 = vld [vmem:[#allocation17 + $0x10] sm:$0xff]
        %v2623 = vld [vmem:[#allocation17 + $0x18] sm:$0xff]
        %v2624 = vld [vmem:[#allocation17 + $0x20] sm:$0xff]
        %v2625 = vld [vmem:[#allocation17 + $0x28] sm:$0xff]
        %v2626 = vld [vmem:[#allocation17 + $0x30] sm:$0xff]
        %v2627 = vld [vmem:[#allocation17 + $0x38] sm:$0xff]
        %v2628 = vld [vmem:[#allocation17 + $0x40] sm:$0xff]
        %v2629 = vld [vmem:[#allocation17 + $0x48] sm:$0xff]
        %v2630 = vld [vmem:[#allocation17 + $0x50] sm:$0xff]
        %v2631 = vld [vmem:[#allocation17 + $0x58] sm:$0xff]
        %v2632 = vld [vmem:[#allocation17 + $0x60] sm:$0xff]
        %v2633 = vld [vmem:[#allocation17 + $0x68] sm:$0xff]
        %v2634 = vld [vmem:[#allocation17 + $0x70] sm:$0xff]
        %v2635 = vld [vmem:[#allocation17 + $0x78] sm:$0xff]
        %v2636 = vld [vmem:[#allocation19] sm:$0x1]
        %v2638 = vlaneseq
        %v2639 = vshrl.u32 %v2638, 7
        %v2640 = vsub.s32 0, %v2639
        %v2641 = vrot.slane %v2636, %v2640
        %v2644 = vsel %vm799, %v2601, 0
        %2646 = vmatprep.subr.mxu0 0.0
        %2647 = vmatpush1.msra.mxu0 %v2604
        %2648 = vmatprep.subr.mxu0 0.0
        %2649 = vmatpush1.msra.mxu0 %v2605
        %2650 = vmatprep.subr.mxu0 0.0
        %2651 = vmatpush1.msra.mxu0 0.0
        %2652 = vmatprep.subr.mxu0 0.0
        %2653 = vmatpush1.msra.mxu0 0.0
        %2654 = vmatprep.subr.mxu0 0.0
        %2655 = vmatpush1.msra.mxu0 0.0
        %2656 = vmatprep.subr.mxu0 0.0
        %2657 = vmatpush1.msra.mxu0 0.0
        %2658 = vmatprep.subr.mxu0 0.0
        %2659 = vmatpush1.msra.mxu0 0.0
        %2660 = vmatprep.subr.mxu0 0.0
        %2661 = vmatpush1.msra.mxu0 0.0
        %2662 = vmatprep.subr.mxu0 0.0
        %2663 = vmatpush1.msra.mxu0 0.0
        %2664 = vmatprep.subr.mxu0 0.0
        %2665 = vmatpush1.msra.mxu0 0.0
        %2666 = vmatprep.subr.mxu0 0.0
        %2667 = vmatpush1.msra.mxu0 0.0
        %2668 = vmatprep.subr.mxu0 0.0
        %2669 = vmatpush1.msra.mxu0 0.0
        %2670 = vmatprep.subr.mxu0 0.0
        %2671 = vmatpush1.msra.mxu0 0.0
        %2672 = vmatprep.subr.mxu0 0.0
        %2673 = vmatpush1.msra.mxu0 0.0
        %2674 = vmatprep.subr.mxu0 0.0
        %2675 = vmatpush1.msra.mxu0 0.0
        %2676 = vmatprep.subr.mxu0 0.0
        %2677 = vmatpush1.msra.mxu0 0.0
        %2678 = vmatprep.subr.mxu0 0.0
        %2679 = vmatpush1.msra.mxu0 0.0
        %2680 = vmatprep.subr.mxu0 0.0
        %2681 = vmatpush1.msra.mxu0 0.0
        %2682 = vmatprep.subr.mxu0 0.0
        %2683 = vmatpush1.msra.mxu0 0.0
        %2684 = vmatprep.subr.mxu0 0.0
        %2685 = vmatpush1.msra.mxu0 0.0
        %2686 = vmatprep.subr.mxu0 0.0
        %2687 = vmatpush1.msra.mxu0 0.0
        %2688 = vmatprep.subr.mxu0 0.0
        %2689 = vmatpush1.msra.mxu0 0.0
        %2690 = vmatprep.subr.mxu0 0.0
        %2691 = vmatpush1.msra.mxu0 0.0
        %2692 = vmatprep.subr.mxu0 0.0
        %2693 = vmatpush1.msra.mxu0 0.0
        %2694 = vmatprep.subr.mxu0 0.0
        %2695 = vmatpush1.msra.mxu0 0.0
        %2696 = vmatprep.subr.mxu0 0.0
        %2697 = vmatpush1.msra.mxu0 0.0
        %2698 = vmatprep.subr.mxu0 0.0
        %2699 = vmatpush1.msra.mxu0 0.0
        %2700 = vmatprep.subr.mxu0 0.0
        %2701 = vmatpush1.msra.mxu0 0.0
        %2702 = vmatprep.subr.mxu0 0.0
        %2703 = vmatpush1.msra.mxu0 0.0
        %2704 = vmatprep.subr.mxu0 0.0
        %2705 = vmatpush1.msra.mxu0 0.0
        %2706 = vmatprep.subr.mxu0 0.0
        %2707 = vmatpush1.msra.mxu0 0.0
        %2708 = vmatprep.subr.mxu0 0.0
        %2709 = vmatpush1.msra.mxu0 0.0
        %2710 = vmatprep.mubr.f32.mxu0 0.0
        %2711 = vmatmul.mubr.f32.gmra.mrb[0].mxu0 %v2644
        %v2712 = vpop.f32.mrb[0].mxu0
        %v2713 = vadd.f32 %v2641, %v2712
        %v2714 = vpop.f32.mrb[0].mxu0
        %2715 = vdwg.mxu0
        %2716 = vmax.xlane.f32.xlu0 %v2713
        %v2717 = vpop.xlane.xlu0 %2716
        %v2718 = vsub.f32 %v2713, %v2717
        %v2719 = vmul.f32 %v2718, 1.442695
        %v2720 = vpow.pop %v2719
        %2721 = vadd.xlane.f32.xlu0 %v2720
        %v2722 = vpop.xlane.xlu0 %2721
        %v2723 = vrcp.pop %v2722
        %v2724 = vmul.f32 %v2720, %v2723
        %2725 = vmatprep.subr.mxu0 0.0
        %2726 = vmatpush1.msra.mxu0 %v2620
        %2727 = vmatprep.subr.mxu0 0.0
        %2728 = vmatpush1.msra.mxu0 %v2621
        %2729 = vmatprep.subr.mxu0 0.0
        %2730 = vmatpush1.msra.mxu0 %v2622
        %2731 = vmatprep.subr.mxu0 0.0
        %2732 = vmatpush1.msra.mxu0 %v2623
        %2733 = vmatprep.subr.mxu0 0.0
        %2734 = vmatpush1.msra.mxu0 %v2624
        %2735 = vmatprep.subr.mxu0 0.0
        %2736 = vmatpush1.msra.mxu0 %v2625
        %2737 = vmatprep.subr.mxu0 0.0
        %2738 = vmatpush1.msra.mxu0 %v2626
        %2739 = vmatprep.subr.mxu0 0.0
        %2740 = vmatpush1.msra.mxu0 %v2627
        %2741 = vmatprep.subr.mxu0 0.0
        %2742 = vmatpush1.msra.mxu0 %v2628
        %2743 = vmatprep.subr.mxu0 0.0
        %2744 = vmatpush1.msra.mxu0 %v2629
        %2745 = vmatprep.subr.mxu0 0.0
        %2746 = vmatpush1.msra.mxu0 %v2630
        %2747 = vmatprep.subr.mxu0 0.0
        %2748 = vmatpush1.msra.mxu0 %v2631
        %2749 = vmatprep.subr.mxu0 0.0
        %2750 = vmatpush1.msra.mxu0 %v2632
        %2751 = vmatprep.subr.mxu0 0.0
        %2752 = vmatpush1.msra.mxu0 %v2633
        %2753 = vmatprep.subr.mxu0 0.0
        %2754 = vmatpush1.msra.mxu0 %v2634
        %2755 = vmatprep.subr.mxu0 0.0
        %2756 = vmatpush1.msra.mxu0 %v2635
        %2757 = vmatprep.subr.mxu0 0.0
        %2758 = vmatpush1.msra.mxu0 0.0
        %2759 = vmatprep.subr.mxu0 0.0
        %2760 = vmatpush1.msra.mxu0 0.0
        %2761 = vmatprep.subr.mxu0 0.0
        %2762 = vmatpush1.msra.mxu0 0.0
        %2763 = vmatprep.subr.mxu0 0.0
        %2764 = vmatpush1.msra.mxu0 0.0
        %2765 = vmatprep.subr.mxu0 0.0
        %2766 = vmatpush1.msra.mxu0 0.0
        %2767 = vmatprep.subr.mxu0 0.0
        %2768 = vmatpush1.msra.mxu0 0.0
        %2769 = vmatprep.subr.mxu0 0.0
        %2770 = vmatpush1.msra.mxu0 0.0
        %2771 = vmatprep.subr.mxu0 0.0
        %2772 = vmatpush1.msra.mxu0 0.0
        %2773 = vmatprep.subr.mxu0 0.0
        %2774 = vmatpush1.msra.mxu0 0.0
        %2775 = vmatprep.subr.mxu0 0.0
        %2776 = vmatpush1.msra.mxu0 0.0
        %2777 = vmatprep.subr.mxu0 0.0
        %2778 = vmatpush1.msra.mxu0 0.0
        %2779 = vmatprep.subr.mxu0 0.0
        %2780 = vmatpush1.msra.mxu0 0.0
        %2781 = vmatprep.subr.mxu0 0.0
        %2782 = vmatpush1.msra.mxu0 0.0
        %2783 = vmatprep.subr.mxu0 0.0
        %2784 = vmatpush1.msra.mxu0 0.0
        %2785 = vmatprep.subr.mxu0 0.0
        %2786 = vmatpush1.msra.mxu0 0.0
        %2787 = vmatprep.subr.mxu0 0.0
        %2788 = vmatpush1.msra.mxu0 0.0
        %2789 = vmatprep.mubr.f32.mxu0 0.0
        %2790 = vmatmul.mubr.f32.gmra.mrb[0].mxu0 %v2724
        %v2791 = vpop.f32.mrb[0].mxu0
        %v2792 = vadd.f32 0.0, %v2791
        %v2793 = vpop.f32.mrb[0].mxu0
        %2794 = vdwg.mxu0
        %2795 = vrot.lane.b32.xlu0 %v2601, 112
        %v2796 = vpop.permute.xlu0 %2795
        %v2797 = vsel %vm799, %v2796, 0
        %2799 = vmatprep.subr.mxu0 0.0
        %2800 = vmatpush1.msra.mxu0 %v2606
        %2801 = vmatprep.subr.mxu0 0.0
        %2802 = vmatpush1.msra.mxu0 %v2607
        %2803 = vmatprep.subr.mxu0 0.0
        %2804 = vmatpush1.msra.mxu0 0.0
        %2805 = vmatprep.subr.mxu0 0.0
        %2806 = vmatpush1.msra.mxu0 0.0
        %2807 = vmatprep.subr.mxu0 0.0
        %2808 = vmatpush1.msra.mxu0 0.0
        %2809 = vmatprep.subr.mxu0 0.0
        %2810 = vmatpush1.msra.mxu0 0.0
        %2811 = vmatprep.subr.mxu0 0.0
        %2812 = vmatpush1.msra.mxu0 0.0
        %2813 = vmatprep.subr.mxu0 0.0
        %2814 = vmatpush1.msra.mxu0 0.0
        %2815 = vmatprep.subr.mxu0 0.0
        %2816 = vmatpush1.msra.mxu0 0.0
        %2817 = vmatprep.subr.mxu0 0.0
        %2818 = vmatpush1.msra.mxu0 0.0
        %2819 = vmatprep.subr.mxu0 0.0
        %2820 = vmatpush1.msra.mxu0 0.0
        %2821 = vmatprep.subr.mxu0 0.0
        %2822 = vmatpush1.msra.mxu0 0.0
        %2823 = vmatprep.subr.mxu0 0.0
        %2824 = vmatpush1.msra.mxu0 0.0
        %2825 = vmatprep.subr.mxu0 0.0
        %2826 = vmatpush1.msra.mxu0 0.0
        %2827 = vmatprep.subr.mxu0 0.0
        %2828 = vmatpush1.msra.mxu0 0.0
        %2829 = vmatprep.subr.mxu0 0.0
        %2830 = vmatpush1.msra.mxu0 0.0
        %2831 = vmatprep.subr.mxu0 0.0
        %2832 = vmatpush1.msra.mxu0 0.0
        %2833 = vmatprep.subr.mxu0 0.0
        %2834 = vmatpush1.msra.mxu0 0.0
        %2835 = vmatprep.subr.mxu0 0.0
        %2836 = vmatpush1.msra.mxu0 0.0
        %2837 = vmatprep.subr.mxu0 0.0
        %2838 = vmatpush1.msra.mxu0 0.0
        %2839 = vmatprep.subr.mxu0 0.0
        %2840 = vmatpush1.msra.mxu0 0.0
        %2841 = vmatprep.subr.mxu0 0.0
        %2842 = vmatpush1.msra.mxu0 0.0
        %2843 = vmatprep.subr.mxu0 0.0
        %2844 = vmatpush1.msra.mxu0 0.0
        %2845 = vmatprep.subr.mxu0 0.0
        %2846 = vmatpush1.msra.mxu0 0.0
        %2847 = vmatprep.subr.mxu0 0.0
        %2848 = vmatpush1.msra.mxu0 0.0
        %2849 = vmatprep.subr.mxu0 0.0
        %2850 = vmatpush1.msra.mxu0 0.0
        %2851 = vmatprep.subr.mxu0 0.0
        %2852 = vmatpush1.msra.mxu0 0.0
        %2853 = vmatprep.subr.mxu0 0.0
        %2854 = vmatpush1.msra.mxu0 0.0
        %2855 = vmatprep.subr.mxu0 0.0
        %2856 = vmatpush1.msra.mxu0 0.0
        %2857 = vmatprep.subr.mxu0 0.0
        %2858 = vmatpush1.msra.mxu0 0.0
        %2859 = vmatprep.subr.mxu0 0.0
        %2860 = vmatpush1.msra.mxu0 0.0
        %2861 = vmatprep.subr.mxu0 0.0
        %2862 = vmatpush1.msra.mxu0 0.0
        %2863 = vmatprep.mubr.f32.mxu0 0.0
        %2864 = vmatmul.mubr.f32.gmra.mrb[0].mxu0 %v2797
        %v2865 = vpop.f32.mrb[0].mxu0
        %v2866 = vadd.f32 %v2641, %v2865
        %v2867 = vpop.f32.mrb[0].mxu0
        %2868 = vdwg.mxu0
        %2869 = vmax.xlane.f32.xlu0 %v2866
        %v2870 = vpop.xlane.xlu0 %2869
        %v2871 = vsub.f32 %v2866, %v2870
        %v2872 = vmul.f32 %v2871, 1.442695
        %v2873 = vpow.pop %v2872
        %2874 = vadd.xlane.f32.xlu0 %v2873
        %v2875 = vpop.xlane.xlu0 %2874
        %v2876 = vrcp.pop %v2875
        %v2877 = vmul.f32 %v2873, %v2876
        %2894 = vrot.lane.b32.xlu0 %v2620, 112
        %v2895 = vpop.permute.xlu0 %2894
        %2896 = vrot.lane.b32.xlu0 %v2621, 112
        %v2897 = vpop.permute.xlu0 %2896
        %2898 = vrot.lane.b32.xlu0 %v2622, 112
        %v2899 = vpop.permute.xlu0 %2898
        %2900 = vrot.lane.b32.xlu0 %v2623, 112
        %v2901 = vpop.permute.xlu0 %2900
        %2902 = vrot.lane.b32.xlu0 %v2624, 112
        %v2903 = vpop.permute.xlu0 %2902
        %2904 = vrot.lane.b32.xlu0 %v2625, 112
        %v2905 = vpop.permute.xlu0 %2904
        %2906 = vrot.lane.b32.xlu0 %v2626, 112
        %v2907 = vpop.permute.xlu0 %2906
        %2908 = vrot.lane.b32.xlu0 %v2627, 112
        %v2909 = vpop.permute.xlu0 %2908
        %2910 = vrot.lane.b32.xlu0 %v2628, 112
        %v2911 = vpop.permute.xlu0 %2910
        %2912 = vrot.lane.b32.xlu0 %v2629, 112
        %v2913 = vpop.permute.xlu0 %2912
        %2914 = vrot.lane.b32.xlu0 %v2630, 112
        %v2915 = vpop.permute.xlu0 %2914
        %2916 = vrot.lane.b32.xlu0 %v2631, 112
        %v2917 = vpop.permute.xlu0 %2916
        %2918 = vrot.lane.b32.xlu0 %v2632, 112
        %v2919 = vpop.permute.xlu0 %2918
        %2920 = vrot.lane.b32.xlu0 %v2633, 112
        %v2921 = vpop.permute.xlu0 %2920
        %2922 = vrot.lane.b32.xlu0 %v2634, 112
        %v2923 = vpop.permute.xlu0 %2922
        %2924 = vrot.lane.b32.xlu0 %v2635, 112
        %v2925 = vpop.permute.xlu0 %2924
        %2942 = vmatprep.subr.mxu0 0.0
        %2943 = vmatpush1.msra.mxu0 %v2895
        %2944 = vmatprep.subr.mxu0 0.0
        %2945 = vmatpush1.msra.mxu0 %v2897
        %2946 = vmatprep.subr.mxu0 0.0
        %2947 = vmatpush1.msra.mxu0 %v2899
        %2948 = vmatprep.subr.mxu0 0.0
        %2949 = vmatpush1.msra.mxu0 %v2901
        %2950 = vmatprep.subr.mxu0 0.0
        %2951 = vmatpush1.msra.mxu0 %v2903
        %2952 = vmatprep.subr.mxu0 0.0
        %2953 = vmatpush1.msra.mxu0 %v2905
        %2954 = vmatprep.subr.mxu0 0.0
        %2955 = vmatpush1.msra.mxu0 %v2907
        %2956 = vmatprep.subr.mxu0 0.0
        %2957 = vmatpush1.msra.mxu0 %v2909
        %2958 = vmatprep.subr.mxu0 0.0
        %2959 = vmatpush1.msra.mxu0 %v2911
        %2960 = vmatprep.subr.mxu0 0.0
        %2961 = vmatpush1.msra.mxu0 %v2913
        %2962 = vmatprep.subr.mxu0 0.0
        %2963 = vmatpush1.msra.mxu0 %v2915
        %2964 = vmatprep.subr.mxu0 0.0
        %2965 = vmatpush1.msra.mxu0 %v2917
        %2966 = vmatprep.subr.mxu0 0.0
        %2967 = vmatpush1.msra.mxu0 %v2919
        %2968 = vmatprep.subr.mxu0 0.0
        %2969 = vmatpush1.msra.mxu0 %v2921
        %2970 = vmatprep.subr.mxu0 0.0
        %2971 = vmatpush1.msra.mxu0 %v2923
        %2972 = vmatprep.subr.mxu0 0.0
        %2973 = vmatpush1.msra.mxu0 %v2925
        %2974 = vmatprep.subr.mxu0 0.0
        %2975 = vmatpush1.msra.mxu0 0.0
        %2976 = vmatprep.subr.mxu0 0.0
        %2977 = vmatpush1.msra.mxu0 0.0
        %2978 = vmatprep.subr.mxu0 0.0
        %2979 = vmatpush1.msra.mxu0 0.0
        %2980 = vmatprep.subr.mxu0 0.0
        %2981 = vmatpush1.msra.mxu0 0.0
        %2982 = vmatprep.subr.mxu0 0.0
        %2983 = vmatpush1.msra.mxu0 0.0
        %2984 = vmatprep.subr.mxu0 0.0
        %2985 = vmatpush1.msra.mxu0 0.0
        %2986 = vmatprep.subr.mxu0 0.0
        %2987 = vmatpush1.msra.mxu0 0.0
        %2988 = vmatprep.subr.mxu0 0.0
        %2989 = vmatpush1.msra.mxu0 0.0
        %2990 = vmatprep.subr.mxu0 0.0
        %2991 = vmatpush1.msra.mxu0 0.0
        %2992 = vmatprep.subr.mxu0 0.0
        %2993 = vmatpush1.msra.mxu0 0.0
        %2994 = vmatprep.subr.mxu0 0.0
        %2995 = vmatpush1.msra.mxu0 0.0
        %2996 = vmatprep.subr.mxu0 0.0
        %2997 = vmatpush1.msra.mxu0 0.0
        %2998 = vmatprep.subr.mxu0 0.0
        %2999 = vmatpush1.msra.mxu0 0.0
        %3000 = vmatprep.subr.mxu0 0.0
        %3001 = vmatpush1.msra.mxu0 0.0
        %3002 = vmatprep.subr.mxu0 0.0
        %3003 = vmatpush1.msra.mxu0 0.0
        %3004 = vmatprep.subr.mxu0 0.0
        %3005 = vmatpush1.msra.mxu0 0.0
        %3006 = vmatprep.mubr.f32.mxu0 0.0
        %3007 = vmatmul.mubr.f32.gmra.mrb[0].mxu0 %v2877
        %v3008 = vpop.f32.mrb[0].mxu0
        %v3009 = vadd.f32 0.0, %v3008
        %v3010 = vpop.f32.mrb[0].mxu0
        %3011 = vdwg.mxu0
        %3012 = vrot.lane.b32.xlu0 %v2601, 96
        %v3013 = vpop.permute.xlu0 %3012
        %v3014 = vsel %vm799, %v3013, 0
        %3016 = vmatprep.subr.mxu0 0.0
        %3017 = vmatpush1.msra.mxu0 %v2608
        %3018 = vmatprep.subr.mxu0 0.0
        %3019 = vmatpush1.msra.mxu0 %v2609
        %3020 = vmatprep.subr.mxu0 0.0
        %3021 = vmatpush1.msra.mxu0 0.0
        %3022 = vmatprep.subr.mxu0 0.0
        %3023 = vmatpush1.msra.mxu0 0.0
        %3024 = vmatprep.subr.mxu0 0.0
        %3025 = vmatpush1.msra.mxu0 0.0
        %3026 = vmatprep.subr.mxu0 0.0
        %3027 = vmatpush1.msra.mxu0 0.0
        %3028 = vmatprep.subr.mxu0 0.0
        %3029 = vmatpush1.msra.mxu0 0.0
        %3030 = vmatprep.subr.mxu0 0.0
        %3031 = vmatpush1.msra.mxu0 0.0
        %3032 = vmatprep.subr.mxu0 0.0
        %3033 = vmatpush1.msra.mxu0 0.0
        %3034 = vmatprep.subr.mxu0 0.0
        %3035 = vmatpush1.msra.mxu0 0.0
        %3036 = vmatprep.subr.mxu0 0.0
        %3037 = vmatpush1.msra.mxu0 0.0
        %3038 = vmatprep.subr.mxu0 0.0
        %3039 = vmatpush1.msra.mxu0 0.0
        %3040 = vmatprep.subr.mxu0 0.0
        %3041 = vmatpush1.msra.mxu0 0.0
        %3042 = vmatprep.subr.mxu0 0.0
        %3043 = vmatpush1.msra.mxu0 0.0
        %3044 = vmatprep.subr.mxu0 0.0
        %3045 = vmatpush1.msra.mxu0 0.0
        %3046 = vmatprep.subr.mxu0 0.0
        %3047 = vmatpush1.msra.mxu0 0.0
        %3048 = vmatprep.subr.mxu0 0.0
        %3049 = vmatpush1.msra.mxu0 0.0
        %3050 = vmatprep.subr.mxu0 0.0
        %3051 = vmatpush1.msra.mxu0 0.0
        %3052 = vmatprep.subr.mxu0 0.0
        %3053 = vmatpush1.msra.mxu0 0.0
        %3054 = vmatprep.subr.mxu0 0.0
        %3055 = vmatpush1.msra.mxu0 0.0
        %3056 = vmatprep.subr.mxu0 0.0
        %3057 = vmatpush1.msra.mxu0 0.0
        %3058 = vmatprep.subr.mxu0 0.0
        %3059 = vmatpush1.msra.mxu0 0.0
        %3060 = vmatprep.subr.mxu0 0.0
        %3061 = vmatpush1.msra.mxu0 0.0
        %3062 = vmatprep.subr.mxu0 0.0
        %3063 = vmatpush1.msra.mxu0 0.0
        %3064 = vmatprep.subr.mxu0 0.0
        %3065 = vmatpush1.msra.mxu0 0.0
        %3066 = vmatprep.subr.mxu0 0.0
        %3067 = vmatpush1.msra.mxu0 0.0
        %3068 = vmatprep.subr.mxu0 0.0
        %3069 = vmatpush1.msra.mxu0 0.0
        %3070 = vmatprep.subr.mxu0 0.0
        %3071 = vmatpush1.msra.mxu0 0.0
        %3072 = vmatprep.subr.mxu0 0.0
        %3073 = vmatpush1.msra.mxu0 0.0
        %3074 = vmatprep.subr.mxu0 0.0
        %3075 = vmatpush1.msra.mxu0 0.0
        %3076 = vmatprep.subr.mxu0 0.0
        %3077 = vmatpush1.msra.mxu0 0.0
        %3078 = vmatprep.subr.mxu0 0.0
        %3079 = vmatpush1.msra.mxu0 0.0
        %3080 = vmatprep.mubr.f32.mxu0 0.0
        %3081 = vmatmul.mubr.f32.gmra.mrb[0].mxu0 %v3014
        %v3082 = vpop.f32.mrb[0].mxu0
        %v3083 = vadd.f32 %v2641, %v3082
        %v3084 = vpop.f32.mrb[0].mxu0
        %3085 = vdwg.mxu0
        %3086 = vmax.xlane.f32.xlu0 %v3083
        %v3087 = vpop.xlane.xlu0 %3086
        %v3088 = vsub.f32 %v3083, %v3087
        %v3089 = vmul.f32 %v3088, 1.442695
        %v3090 = vpow.pop %v3089
        %3091 = vadd.xlane.f32.xlu0 %v3090
        %v3092 = vpop.xlane.xlu0 %3091
        %v3093 = vrcp.pop %v3092
        %v3094 = vmul.f32 %v3090, %v3093
        %3095 = vrot.lane.b32.xlu0 %v2620, 96
        %v3096 = vpop.permute.xlu0 %3095
        %3097 = vrot.lane.b32.xlu0 %v2621, 96
        %v3098 = vpop.permute.xlu0 %3097
        %3099 = vrot.lane.b32.xlu0 %v2622, 96
        %v3100 = vpop.permute.xlu0 %3099
        %3101 = vrot.lane.b32.xlu0 %v2623, 96
        %v3102 = vpop.permute.xlu0 %3101
        %3103 = vrot.lane.b32.xlu0 %v2624, 96
        %v3104 = vpop.permute.xlu0 %3103
        %3105 = vrot.lane.b32.xlu0 %v2625, 96
        %v3106 = vpop.permute.xlu0 %3105
        %3107 = vrot.lane.b32.xlu0 %v2626, 96
        %v3108 = vpop.permute.xlu0 %3107
        %3109 = vrot.lane.b32.xlu0 %v2627, 96
        %v3110 = vpop.permute.xlu0 %3109
        %3111 = vrot.lane.b32.xlu0 %v2628, 96
        %v3112 = vpop.permute.xlu0 %3111
        %3113 = vrot.lane.b32.xlu0 %v2629, 96
        %v3114 = vpop.permute.xlu0 %3113
        %3115 = vrot.lane.b32.xlu0 %v2630, 96
        %v3116 = vpop.permute.xlu0 %3115
        %3117 = vrot.lane.b32.xlu0 %v2631, 96
        %v3118 = vpop.permute.xlu0 %3117
        %3119 = vrot.lane.b32.xlu0 %v2632, 96
        %v3120 = vpop.permute.xlu0 %3119
        %3121 = vrot.lane.b32.xlu0 %v2633, 96
        %v3122 = vpop.permute.xlu0 %3121
        %3123 = vrot.lane.b32.xlu0 %v2634, 96
        %v3124 = vpop.permute.xlu0 %3123
        %3125 = vrot.lane.b32.xlu0 %v2635, 96
        %v3126 = vpop.permute.xlu0 %3125
        %3143 = vmatprep.subr.mxu0 0.0
        %3144 = vmatpush1.msra.mxu0 %v3096
        %3145 = vmatprep.subr.mxu0 0.0
        %3146 = vmatpush1.msra.mxu0 %v3098
        %3147 = vmatprep.subr.mxu0 0.0
        %3148 = vmatpush1.msra.mxu0 %v3100
        %3149 = vmatprep.subr.mxu0 0.0
        %3150 = vmatpush1.msra.mxu0 %v3102
        %3151 = vmatprep.subr.mxu0 0.0
        %3152 = vmatpush1.msra.mxu0 %v3104
        %3153 = vmatprep.subr.mxu0 0.0
        %3154 = vmatpush1.msra.mxu0 %v3106
        %3155 = vmatprep.subr.mxu0 0.0
        %3156 = vmatpush1.msra.mxu0 %v3108
        %3157 = vmatprep.subr.mxu0 0.0
        %3158 = vmatpush1.msra.mxu0 %v3110
        %3159 = vmatprep.subr.mxu0 0.0
        %3160 = vmatpush1.msra.mxu0 %v3112
        %3161 = vmatprep.subr.mxu0 0.0
        %3162 = vmatpush1.msra.mxu0 %v3114
        %3163 = vmatprep.subr.mxu0 0.0
        %3164 = vmatpush1.msra.mxu0 %v3116
        %3165 = vmatprep.subr.mxu0 0.0
        %3166 = vmatpush1.msra.mxu0 %v3118
        %3167 = vmatprep.subr.mxu0 0.0
        %3168 = vmatpush1.msra.mxu0 %v3120
        %3169 = vmatprep.subr.mxu0 0.0
        %3170 = vmatpush1.msra.mxu0 %v3122
        %3171 = vmatprep.subr.mxu0 0.0
        %3172 = vmatpush1.msra.mxu0 %v3124
        %3173 = vmatprep.subr.mxu0 0.0
        %3174 = vmatpush1.msra.mxu0 %v3126
        %3175 = vmatprep.subr.mxu0 0.0
        %3176 = vmatpush1.msra.mxu0 0.0
        %3177 = vmatprep.subr.mxu0 0.0
        %3178 = vmatpush1.msra.mxu0 0.0
        %3179 = vmatprep.subr.mxu0 0.0
        %3180 = vmatpush1.msra.mxu0 0.0
        %3181 = vmatprep.subr.mxu0 0.0
        %3182 = vmatpush1.msra.mxu0 0.0
        %3183 = vmatprep.subr.mxu0 0.0
        %3184 = vmatpush1.msra.mxu0 0.0
        %3185 = vmatprep.subr.mxu0 0.0
        %3186 = vmatpush1.msra.mxu0 0.0
        %3187 = vmatprep.subr.mxu0 0.0
        %3188 = vmatpush1.msra.mxu0 0.0
        %3189 = vmatprep.subr.mxu0 0.0
        %3190 = vmatpush1.msra.mxu0 0.0
        %3191 = vmatprep.subr.mxu0 0.0
        %3192 = vmatpush1.msra.mxu0 0.0
        %3193 = vmatprep.subr.mxu0 0.0
        %3194 = vmatpush1.msra.mxu0 0.0
        %3195 = vmatprep.subr.mxu0 0.0
        %3196 = vmatpush1.msra.mxu0 0.0
        %3197 = vmatprep.subr.mxu0 0.0
        %3198 = vmatpush1.msra.mxu0 0.0
        %3199 = vmatprep.subr.mxu0 0.0
        %3200 = vmatpush1.msra.mxu0 0.0
        %3201 = vmatprep.subr.mxu0 0.0
        %3202 = vmatpush1.msra.mxu0 0.0
        %3203 = vmatprep.subr.mxu0 0.0
        %3204 = vmatpush1.msra.mxu0 0.0
        %3205 = vmatprep.subr.mxu0 0.0
        %3206 = vmatpush1.msra.mxu0 0.0
        %3207 = vmatprep.mubr.f32.mxu0 0.0
        %3208 = vmatmul.mubr.f32.gmra.mrb[0].mxu0 %v3094
        %v3209 = vpop.f32.mrb[0].mxu0
        %v3210 = vadd.f32 0.0, %v3209
        %v3211 = vpop.f32.mrb[0].mxu0
        %3212 = vdwg.mxu0
        %3213 = vrot.lane.b32.xlu0 %v2601, 80
        %v3214 = vpop.permute.xlu0 %3213
        %v3215 = vsel %vm799, %v3214, 0
        %3217 = vmatprep.subr.mxu0 0.0
        %3218 = vmatpush1.msra.mxu0 %v2610
        %3219 = vmatprep.subr.mxu0 0.0
        %3220 = vmatpush1.msra.mxu0 %v2611
        %3221 = vmatprep.subr.mxu0 0.0
        %3222 = vmatpush1.msra.mxu0 0.0
        %3223 = vmatprep.subr.mxu0 0.0
        %3224 = vmatpush1.msra.mxu0 0.0
        %3225 = vmatprep.subr.mxu0 0.0
        %3226 = vmatpush1.msra.mxu0 0.0
        %3227 = vmatprep.subr.mxu0 0.0
        %3228 = vmatpush1.msra.mxu0 0.0
        %3229 = vmatprep.subr.mxu0 0.0
        %3230 = vmatpush1.msra.mxu0 0.0
        %3231 = vmatprep.subr.mxu0 0.0
        %3232 = vmatpush1.msra.mxu0 0.0
        %3233 = vmatprep.subr.mxu0 0.0
        %3234 = vmatpush1.msra.mxu0 0.0
        %3235 = vmatprep.subr.mxu0 0.0
        %3236 = vmatpush1.msra.mxu0 0.0
        %3237 = vmatprep.subr.mxu0 0.0
        %3238 = vmatpush1.msra.mxu0 0.0
        %3239 = vmatprep.subr.mxu0 0.0
        %3240 = vmatpush1.msra.mxu0 0.0
        %3241 = vmatprep.subr.mxu0 0.0
        %3242 = vmatpush1.msra.mxu0 0.0
        %3243 = vmatprep.subr.mxu0 0.0
        %3244 = vmatpush1.msra.mxu0 0.0
        %3245 = vmatprep.subr.mxu0 0.0
        %3246 = vmatpush1.msra.mxu0 0.0
        %3247 = vmatprep.subr.mxu0 0.0
        %3248 = vmatpush1.msra.mxu0 0.0
        %3249 = vmatprep.subr.mxu0 0.0
        %3250 = vmatpush1.msra.mxu0 0.0
        %3251 = vmatprep.subr.mxu0 0.0
        %3252 = vmatpush1.msra.mxu0 0.0
        %3253 = vmatprep.subr.mxu0 0.0
        %3254 = vmatpush1.msra.mxu0 0.0
        %3255 = vmatprep.subr.mxu0 0.0
        %3256 = vmatpush1.msra.mxu0 0.0
        %3257 = vmatprep.subr.mxu0 0.0
        %3258 = vmatpush1.msra.mxu0 0.0
        %3259 = vmatprep.subr.mxu0 0.0
        %3260 = vmatpush1.msra.mxu0 0.0
        %3261 = vmatprep.subr.mxu0 0.0
        %3262 = vmatpush1.msra.mxu0 0.0
        %3263 = vmatprep.subr.mxu0 0.0
        %3264 = vmatpush1.msra.mxu0 0.0
        %3265 = vmatprep.subr.mxu0 0.0
        %3266 = vmatpush1.msra.mxu0 0.0
        %3267 = vmatprep.subr.mxu0 0.0
        %3268 = vmatpush1.msra.mxu0 0.0
        %3269 = vmatprep.subr.mxu0 0.0
        %3270 = vmatpush1.msra.mxu0 0.0
        %3271 = vmatprep.subr.mxu0 0.0
        %3272 = vmatpush1.msra.mxu0 0.0
        %3273 = vmatprep.subr.mxu0 0.0
        %3274 = vmatpush1.msra.mxu0 0.0
        %3275 = vmatprep.subr.mxu0 0.0
        %3276 = vmatpush1.msra.mxu0 0.0
        %3277 = vmatprep.subr.mxu0 0.0
        %3278 = vmatpush1.msra.mxu0 0.0
        %3279 = vmatprep.subr.mxu0 0.0
        %3280 = vmatpush1.msra.mxu0 0.0
        %3281 = vmatprep.mubr.f32.mxu0 0.0
        %3282 = vmatmul.mubr.f32.gmra.mrb[0].mxu0 %v3215
        %v3283 = vpop.f32.mrb[0].mxu0
        %v3284 = vadd.f32 %v2641, %v3283
        %v3285 = vpop.f32.mrb[0].mxu0
        %3286 = vdwg.mxu0
        %3287 = vmax.xlane.f32.xlu0 %v3284
        %v3288 = vpop.xlane.xlu0 %3287
        %v3289 = vsub.f32 %v3284, %v3288
        %v3290 = vmul.f32 %v3289, 1.442695
        %v3291 = vpow.pop %v3290
        %3292 = vadd.xlane.f32.xlu0 %v3291
        %v3293 = vpop.xlane.xlu0 %3292
        %v3294 = vrcp.pop %v3293
        %v3295 = vmul.f32 %v3291, %v3294
        %3296 = vrot.lane.b32.xlu0 %v2620, 80
        %v3297 = vpop.permute.xlu0 %3296
        %3298 = vrot.lane.b32.xlu0 %v2621, 80
        %v3299 = vpop.permute.xlu0 %3298
        %3300 = vrot.lane.b32.xlu0 %v2622, 80
        %v3301 = vpop.permute.xlu0 %3300
        %3302 = vrot.lane.b32.xlu0 %v2623, 80
        %v3303 = vpop.permute.xlu0 %3302
        %3304 = vrot.lane.b32.xlu0 %v2624, 80
        %v3305 = vpop.permute.xlu0 %3304
        %3306 = vrot.lane.b32.xlu0 %v2625, 80
        %v3307 = vpop.permute.xlu0 %3306
        %3308 = vrot.lane.b32.xlu0 %v2626, 80
        %v3309 = vpop.permute.xlu0 %3308
        %3310 = vrot.lane.b32.xlu0 %v2627, 80
        %v3311 = vpop.permute.xlu0 %3310
        %3312 = vrot.lane.b32.xlu0 %v2628, 80
        %v3313 = vpop.permute.xlu0 %3312
        %3314 = vrot.lane.b32.xlu0 %v2629, 80
        %v3315 = vpop.permute.xlu0 %3314
        %3316 = vrot.lane.b32.xlu0 %v2630, 80
        %v3317 = vpop.permute.xlu0 %3316
        %3318 = vrot.lane.b32.xlu0 %v2631, 80
        %v3319 = vpop.permute.xlu0 %3318
        %3320 = vrot.lane.b32.xlu0 %v2632, 80
        %v3321 = vpop.permute.xlu0 %3320
        %3322 = vrot.lane.b32.xlu0 %v2633, 80
        %v3323 = vpop.permute.xlu0 %3322
        %3324 = vrot.lane.b32.xlu0 %v2634, 80
        %v3325 = vpop.permute.xlu0 %3324
        %3326 = vrot.lane.b32.xlu0 %v2635, 80
        %v3327 = vpop.permute.xlu0 %3326
        %3344 = vmatprep.subr.mxu0 0.0
        %3345 = vmatpush1.msra.mxu0 %v3297
        %3346 = vmatprep.subr.mxu0 0.0
        %3347 = vmatpush1.msra.mxu0 %v3299
        %3348 = vmatprep.subr.mxu0 0.0
        %3349 = vmatpush1.msra.mxu0 %v3301
        %3350 = vmatprep.subr.mxu0 0.0
        %3351 = vmatpush1.msra.mxu0 %v3303
        %3352 = vmatprep.subr.mxu0 0.0
        %3353 = vmatpush1.msra.mxu0 %v3305
        %3354 = vmatprep.subr.mxu0 0.0
        %3355 = vmatpush1.msra.mxu0 %v3307
        %3356 = vmatprep.subr.mxu0 0.0
        %3357 = vmatpush1.msra.mxu0 %v3309
        %3358 = vmatprep.subr.mxu0 0.0
        %3359 = vmatpush1.msra.mxu0 %v3311
        %3360 = vmatprep.subr.mxu0 0.0
        %3361 = vmatpush1.msra.mxu0 %v3313
        %3362 = vmatprep.subr.mxu0 0.0
        %3363 = vmatpush1.msra.mxu0 %v3315
        %3364 = vmatprep.subr.mxu0 0.0
        %3365 = vmatpush1.msra.mxu0 %v3317
        %3366 = vmatprep.subr.mxu0 0.0
        %3367 = vmatpush1.msra.mxu0 %v3319
        %3368 = vmatprep.subr.mxu0 0.0
        %3369 = vmatpush1.msra.mxu0 %v3321
        %3370 = vmatprep.subr.mxu0 0.0
        %3371 = vmatpush1.msra.mxu0 %v3323
        %3372 = vmatprep.subr.mxu0 0.0
        %3373 = vmatpush1.msra.mxu0 %v3325
        %3374 = vmatprep.subr.mxu0 0.0
        %3375 = vmatpush1.msra.mxu0 %v3327
        %3376 = vmatprep.subr.mxu0 0.0
        %3377 = vmatpush1.msra.mxu0 0.0
        %3378 = vmatprep.subr.mxu0 0.0
        %3379 = vmatpush1.msra.mxu0 0.0
        %3380 = vmatprep.subr.mxu0 0.0
        %3381 = vmatpush1.msra.mxu0 0.0
        %3382 = vmatprep.subr.mxu0 0.0
        %3383 = vmatpush1.msra.mxu0 0.0
        %3384 = vmatprep.subr.mxu0 0.0
        %3385 = vmatpush1.msra.mxu0 0.0
        %3386 = vmatprep.subr.mxu0 0.0
        %3387 = vmatpush1.msra.mxu0 0.0
        %3388 = vmatprep.subr.mxu0 0.0
        %3389 = vmatpush1.msra.mxu0 0.0
        %3390 = vmatprep.subr.mxu0 0.0
        %3391 = vmatpush1.msra.mxu0 0.0
        %3392 = vmatprep.subr.mxu0 0.0
        %3393 = vmatpush1.msra.mxu0 0.0
        %3394 = vmatprep.subr.mxu0 0.0
        %3395 = vmatpush1.msra.mxu0 0.0
        %3396 = vmatprep.subr.mxu0 0.0
        %3397 = vmatpush1.msra.mxu0 0.0
        %3398 = vmatprep.subr.mxu0 0.0
        %3399 = vmatpush1.msra.mxu0 0.0
        %3400 = vmatprep.subr.mxu0 0.0
        %3401 = vmatpush1.msra.mxu0 0.0
        %3402 = vmatprep.subr.mxu0 0.0
        %3403 = vmatpush1.msra.mxu0 0.0
        %3404 = vmatprep.subr.mxu0 0.0
        %3405 = vmatpush1.msra.mxu0 0.0
        %3406 = vmatprep.subr.mxu0 0.0
        %3407 = vmatpush1.msra.mxu0 0.0
        %3408 = vmatprep.mubr.f32.mxu0 0.0
        %3409 = vmatmul.mubr.f32.gmra.mrb[0].mxu0 %v3295
        %v3410 = vpop.f32.mrb[0].mxu0
        %v3411 = vadd.f32 0.0, %v3410
        %v3412 = vpop.f32.mrb[0].mxu0
        %3413 = vdwg.mxu0
        %3414 = vrot.lane.b32.xlu0 %v2601, 64
        %v3415 = vpop.permute.xlu0 %3414
        %v3416 = vsel %vm799, %v3415, 0
        %3418 = vmatprep.subr.mxu0 0.0
        %3419 = vmatpush1.msra.mxu0 %v2612
        %3420 = vmatprep.subr.mxu0 0.0
        %3421 = vmatpush1.msra.mxu0 %v2613
        %3422 = vmatprep.subr.mxu0 0.0
        %3423 = vmatpush1.msra.mxu0 0.0
        %3424 = vmatprep.subr.mxu0 0.0
        %3425 = vmatpush1.msra.mxu0 0.0
        %3426 = vmatprep.subr.mxu0 0.0
        %3427 = vmatpush1.msra.mxu0 0.0
        %3428 = vmatprep.subr.mxu0 0.0
        %3429 = vmatpush1.msra.mxu0 0.0
        %3430 = vmatprep.subr.mxu0 0.0
        %3431 = vmatpush1.msra.mxu0 0.0
        %3432 = vmatprep.subr.mxu0 0.0
        %3433 = vmatpush1.msra.mxu0 0.0
        %3434 = vmatprep.subr.mxu0 0.0
        %3435 = vmatpush1.msra.mxu0 0.0
        %3436 = vmatprep.subr.mxu0 0.0
        %3437 = vmatpush1.msra.mxu0 0.0
        %3438 = vmatprep.subr.mxu0 0.0
        %3439 = vmatpush1.msra.mxu0 0.0
        %3440 = vmatprep.subr.mxu0 0.0
        %3441 = vmatpush1.msra.mxu0 0.0
        %3442 = vmatprep.subr.mxu0 0.0
        %3443 = vmatpush1.msra.mxu0 0.0
        %3444 = vmatprep.subr.mxu0 0.0
        %3445 = vmatpush1.msra.mxu0 0.0
        %3446 = vmatprep.subr.mxu0 0.0
        %3447 = vmatpush1.msra.mxu0 0.0
        %3448 = vmatprep.subr.mxu0 0.0
        %3449 = vmatpush1.msra.mxu0 0.0
        %3450 = vmatprep.subr.mxu0 0.0
        %3451 = vmatpush1.msra.mxu0 0.0
        %3452 = vmatprep.subr.mxu0 0.0
        %3453 = vmatpush1.msra.mxu0 0.0
        %3454 = vmatprep.subr.mxu0 0.0
        %3455 = vmatpush1.msra.mxu0 0.0
        %3456 = vmatprep.subr.mxu0 0.0
        %3457 = vmatpush1.msra.mxu0 0.0
        %3458 = vmatprep.subr.mxu0 0.0
        %3459 = vmatpush1.msra.mxu0 0.0
        %3460 = vmatprep.subr.mxu0 0.0
        %3461 = vmatpush1.msra.mxu0 0.0
        %3462 = vmatprep.subr.mxu0 0.0
        %3463 = vmatpush1.msra.mxu0 0.0
        %3464 = vmatprep.subr.mxu0 0.0
        %3465 = vmatpush1.msra.mxu0 0.0
        %3466 = vmatprep.subr.mxu0 0.0
        %3467 = vmatpush1.msra.mxu0 0.0
        %3468 = vmatprep.subr.mxu0 0.0
        %3469 = vmatpush1.msra.mxu0 0.0
        %3470 = vmatprep.subr.mxu0 0.0
        %3471 = vmatpush1.msra.mxu0 0.0
        %3472 = vmatprep.subr.mxu0 0.0
        %3473 = vmatpush1.msra.mxu0 0.0
        %3474 = vmatprep.subr.mxu0 0.0
        %3475 = vmatpush1.msra.mxu0 0.0
        %3476 = vmatprep.subr.mxu0 0.0
        %3477 = vmatpush1.msra.mxu0 0.0
        %3478 = vmatprep.subr.mxu0 0.0
        %3479 = vmatpush1.msra.mxu0 0.0
        %3480 = vmatprep.subr.mxu0 0.0
        %3481 = vmatpush1.msra.mxu0 0.0
        %3482 = vmatprep.mubr.f32.mxu0 0.0
        %3483 = vmatmul.mubr.f32.gmra.mrb[0].mxu0 %v3416
        %v3484 = vpop.f32.mrb[0].mxu0
        %v3485 = vadd.f32 %v2641, %v3484
        %v3486 = vpop.f32.mrb[0].mxu0
        %3487 = vdwg.mxu0
        %3488 = vmax.xlane.f32.xlu0 %v3485
        %v3489 = vpop.xlane.xlu0 %3488
        %v3490 = vsub.f32 %v3485, %v3489
        %v3491 = vmul.f32 %v3490, 1.442695
        %v3492 = vpow.pop %v3491
        %3493 = vadd.xlane.f32.xlu0 %v3492
        %v3494 = vpop.xlane.xlu0 %3493
        %v3495 = vrcp.pop %v3494
        %v3496 = vmul.f32 %v3492, %v3495
        %3497 = vrot.lane.b32.xlu0 %v2620, 64
        %v3498 = vpop.permute.xlu0 %3497
        %3499 = vrot.lane.b32.xlu0 %v2621, 64
        %v3500 = vpop.permute.xlu0 %3499
        %3501 = vrot.lane.b32.xlu0 %v2622, 64
        %v3502 = vpop.permute.xlu0 %3501
        %3503 = vrot.lane.b32.xlu0 %v2623, 64
        %v3504 = vpop.permute.xlu0 %3503
        %3505 = vrot.lane.b32.xlu0 %v2624, 64
        %v3506 = vpop.permute.xlu0 %3505
        %3507 = vrot.lane.b32.xlu0 %v2625, 64
        %v3508 = vpop.permute.xlu0 %3507
        %3509 = vrot.lane.b32.xlu0 %v2626, 64
        %v3510 = vpop.permute.xlu0 %3509
        %3511 = vrot.lane.b32.xlu0 %v2627, 64
        %v3512 = vpop.permute.xlu0 %3511
        %3513 = vrot.lane.b32.xlu0 %v2628, 64
        %v3514 = vpop.permute.xlu0 %3513
        %3515 = vrot.lane.b32.xlu0 %v2629, 64
        %v3516 = vpop.permute.xlu0 %3515
        %3517 = vrot.lane.b32.xlu0 %v2630, 64
        %v3518 = vpop.permute.xlu0 %3517
        %3519 = vrot.lane.b32.xlu0 %v2631, 64
        %v3520 = vpop.permute.xlu0 %3519
        %3521 = vrot.lane.b32.xlu0 %v2632, 64
        %v3522 = vpop.permute.xlu0 %3521
        %3523 = vrot.lane.b32.xlu0 %v2633, 64
        %v3524 = vpop.permute.xlu0 %3523
        %3525 = vrot.lane.b32.xlu0 %v2634, 64
        %v3526 = vpop.permute.xlu0 %3525
        %3527 = vrot.lane.b32.xlu0 %v2635, 64
        %v3528 = vpop.permute.xlu0 %3527
        %3545 = vmatprep.subr.mxu0 0.0
        %3546 = vmatpush1.msra.mxu0 %v3498
        %3547 = vmatprep.subr.mxu0 0.0
        %3548 = vmatpush1.msra.mxu0 %v3500
        %3549 = vmatprep.subr.mxu0 0.0
        %3550 = vmatpush1.msra.mxu0 %v3502
        %3551 = vmatprep.subr.mxu0 0.0
        %3552 = vmatpush1.msra.mxu0 %v3504
        %3553 = vmatprep.subr.mxu0 0.0
        %3554 = vmatpush1.msra.mxu0 %v3506
        %3555 = vmatprep.subr.mxu0 0.0
        %3556 = vmatpush1.msra.mxu0 %v3508
        %3557 = vmatprep.subr.mxu0 0.0
        %3558 = vmatpush1.msra.mxu0 %v3510
        %3559 = vmatprep.subr.mxu0 0.0
        %3560 = vmatpush1.msra.mxu0 %v3512
        %3561 = vmatprep.subr.mxu0 0.0
        %3562 = vmatpush1.msra.mxu0 %v3514
        %3563 = vmatprep.subr.mxu0 0.0
        %3564 = vmatpush1.msra.mxu0 %v3516
        %3565 = vmatprep.subr.mxu0 0.0
        %3566 = vmatpush1.msra.mxu0 %v3518
        %3567 = vmatprep.subr.mxu0 0.0
        %3568 = vmatpush1.msra.mxu0 %v3520
        %3569 = vmatprep.subr.mxu0 0.0
        %3570 = vmatpush1.msra.mxu0 %v3522
        %3571 = vmatprep.subr.mxu0 0.0
        %3572 = vmatpush1.msra.mxu0 %v3524
        %3573 = vmatprep.subr.mxu0 0.0
        %3574 = vmatpush1.msra.mxu0 %v3526
        %3575 = vmatprep.subr.mxu0 0.0
        %3576 = vmatpush1.msra.mxu0 %v3528
        %3577 = vmatprep.subr.mxu0 0.0
        %3578 = vmatpush1.msra.mxu0 0.0
        %3579 = vmatprep.subr.mxu0 0.0
        %3580 = vmatpush1.msra.mxu0 0.0
        %3581 = vmatprep.subr.mxu0 0.0
        %3582 = vmatpush1.msra.mxu0 0.0
        %3583 = vmatprep.subr.mxu0 0.0
        %3584 = vmatpush1.msra.mxu0 0.0
        %3585 = vmatprep.subr.mxu0 0.0
        %3586 = vmatpush1.msra.mxu0 0.0
        %3587 = vmatprep.subr.mxu0 0.0
        %3588 = vmatpush1.msra.mxu0 0.0
        %3589 = vmatprep.subr.mxu0 0.0
        %3590 = vmatpush1.msra.mxu0 0.0
        %3591 = vmatprep.subr.mxu0 0.0
        %3592 = vmatpush1.msra.mxu0 0.0
        %3593 = vmatprep.subr.mxu0 0.0
        %3594 = vmatpush1.msra.mxu0 0.0
        %3595 = vmatprep.subr.mxu0 0.0
        %3596 = vmatpush1.msra.mxu0 0.0
        %3597 = vmatprep.subr.mxu0 0.0
        %3598 = vmatpush1.msra.mxu0 0.0
        %3599 = vmatprep.subr.mxu0 0.0
        %3600 = vmatpush1.msra.mxu0 0.0
        %3601 = vmatprep.subr.mxu0 0.0
        %3602 = vmatpush1.msra.mxu0 0.0
        %3603 = vmatprep.subr.mxu0 0.0
        %3604 = vmatpush1.msra.mxu0 0.0
        %3605 = vmatprep.subr.mxu0 0.0
        %3606 = vmatpush1.msra.mxu0 0.0
        %3607 = vmatprep.subr.mxu0 0.0
        %3608 = vmatpush1.msra.mxu0 0.0
        %3609 = vmatprep.mubr.f32.mxu0 0.0
        %3610 = vmatmul.mubr.f32.gmra.mrb[0].mxu0 %v3496
        %v3611 = vpop.f32.mrb[0].mxu0
        %v3612 = vadd.f32 0.0, %v3611
        %v3613 = vpop.f32.mrb[0].mxu0
        %3614 = vdwg.mxu0
        %3615 = vrot.lane.b32.xlu0 %v2601, 48
        %v3616 = vpop.permute.xlu0 %3615
        %v3617 = vsel %vm799, %v3616, 0
        %3619 = vmatprep.subr.mxu0 0.0
        %3620 = vmatpush1.msra.mxu0 %v2614
        %3621 = vmatprep.subr.mxu0 0.0
        %3622 = vmatpush1.msra.mxu0 %v2615
        %3623 = vmatprep.subr.mxu0 0.0
        %3624 = vmatpush1.msra.mxu0 0.0
        %3625 = vmatprep.subr.mxu0 0.0
        %3626 = vmatpush1.msra.mxu0 0.0
        %3627 = vmatprep.subr.mxu0 0.0
        %3628 = vmatpush1.msra.mxu0 0.0
        %3629 = vmatprep.subr.mxu0 0.0
        %3630 = vmatpush1.msra.mxu0 0.0
        %3631 = vmatprep.subr.mxu0 0.0
        %3632 = vmatpush1.msra.mxu0 0.0
        %3633 = vmatprep.subr.mxu0 0.0
        %3634 = vmatpush1.msra.mxu0 0.0
        %3635 = vmatprep.subr.mxu0 0.0
        %3636 = vmatpush1.msra.mxu0 0.0
        %3637 = vmatprep.subr.mxu0 0.0
        %3638 = vmatpush1.msra.mxu0 0.0
        %3639 = vmatprep.subr.mxu0 0.0
        %3640 = vmatpush1.msra.mxu0 0.0
        %3641 = vmatprep.subr.mxu0 0.0
        %3642 = vmatpush1.msra.mxu0 0.0
        %3643 = vmatprep.subr.mxu0 0.0
        %3644 = vmatpush1.msra.mxu0 0.0
        %3645 = vmatprep.subr.mxu0 0.0
        %3646 = vmatpush1.msra.mxu0 0.0
        %3647 = vmatprep.subr.mxu0 0.0
        %3648 = vmatpush1.msra.mxu0 0.0
        %3649 = vmatprep.subr.mxu0 0.0
        %3650 = vmatpush1.msra.mxu0 0.0
        %3651 = vmatprep.subr.mxu0 0.0
        %3652 = vmatpush1.msra.mxu0 0.0
        %3653 = vmatprep.subr.mxu0 0.0
        %3654 = vmatpush1.msra.mxu0 0.0
        %3655 = vmatprep.subr.mxu0 0.0
        %3656 = vmatpush1.msra.mxu0 0.0
        %3657 = vmatprep.subr.mxu0 0.0
        %3658 = vmatpush1.msra.mxu0 0.0
        %3659 = vmatprep.subr.mxu0 0.0
        %3660 = vmatpush1.msra.mxu0 0.0
        %3661 = vmatprep.subr.mxu0 0.0
        %3662 = vmatpush1.msra.mxu0 0.0
        %3663 = vmatprep.subr.mxu0 0.0
        %3664 = vmatpush1.msra.mxu0 0.0
        %3665 = vmatprep.subr.mxu0 0.0
        %3666 = vmatpush1.msra.mxu0 0.0
        %3667 = vmatprep.subr.mxu0 0.0
        %3668 = vmatpush1.msra.mxu0 0.0
        %3669 = vmatprep.subr.mxu0 0.0
        %3670 = vmatpush1.msra.mxu0 0.0
        %3671 = vmatprep.subr.mxu0 0.0
        %3672 = vmatpush1.msra.mxu0 0.0
        %3673 = vmatprep.subr.mxu0 0.0
        %3674 = vmatpush1.msra.mxu0 0.0
        %3675 = vmatprep.subr.mxu0 0.0
        %3676 = vmatpush1.msra.mxu0 0.0
        %3677 = vmatprep.subr.mxu0 0.0
        %3678 = vmatpush1.msra.mxu0 0.0
        %3679 = vmatprep.subr.mxu0 0.0
        %3680 = vmatpush1.msra.mxu0 0.0
        %3681 = vmatprep.subr.mxu0 0.0
        %3682 = vmatpush1.msra.mxu0 0.0
        %3683 = vmatprep.mubr.f32.mxu0 0.0
        %3684 = vmatmul.mubr.f32.gmra.mrb[0].mxu0 %v3617
        %v3685 = vpop.f32.mrb[0].mxu0
        %v3686 = vadd.f32 %v2641, %v3685
        %v3687 = vpop.f32.mrb[0].mxu0
        %3688 = vdwg.mxu0
        %3689 = vmax.xlane.f32.xlu0 %v3686
        %v3690 = vpop.xlane.xlu0 %3689
        %v3691 = vsub.f32 %v3686, %v3690
        %v3692 = vmul.f32 %v3691, 1.442695
        %v3693 = vpow.pop %v3692
        %3694 = vadd.xlane.f32.xlu0 %v3693
        %v3695 = vpop.xlane.xlu0 %3694
        %v3696 = vrcp.pop %v3695
        %v3697 = vmul.f32 %v3693, %v3696
        %3698 = vrot.lane.b32.xlu0 %v2620, 48
        %v3699 = vpop.permute.xlu0 %3698
        %3700 = vrot.lane.b32.xlu0 %v2621, 48
        %v3701 = vpop.permute.xlu0 %3700
        %3702 = vrot.lane.b32.xlu0 %v2622, 48
        %v3703 = vpop.permute.xlu0 %3702
        %3704 = vrot.lane.b32.xlu0 %v2623, 48
        %v3705 = vpop.permute.xlu0 %3704
        %3706 = vrot.lane.b32.xlu0 %v2624, 48
        %v3707 = vpop.permute.xlu0 %3706
        %3708 = vrot.lane.b32.xlu0 %v2625, 48
        %v3709 = vpop.permute.xlu0 %3708
        %3710 = vrot.lane.b32.xlu0 %v2626, 48
        %v3711 = vpop.permute.xlu0 %3710
        %3712 = vrot.lane.b32.xlu0 %v2627, 48
        %v3713 = vpop.permute.xlu0 %3712
        %3714 = vrot.lane.b32.xlu0 %v2628, 48
        %v3715 = vpop.permute.xlu0 %3714
        %3716 = vrot.lane.b32.xlu0 %v2629, 48
        %v3717 = vpop.permute.xlu0 %3716
        %3718 = vrot.lane.b32.xlu0 %v2630, 48
        %v3719 = vpop.permute.xlu0 %3718
        %3720 = vrot.lane.b32.xlu0 %v2631, 48
        %v3721 = vpop.permute.xlu0 %3720
        %3722 = vrot.lane.b32.xlu0 %v2632, 48
        %v3723 = vpop.permute.xlu0 %3722
        %3724 = vrot.lane.b32.xlu0 %v2633, 48
        %v3725 = vpop.permute.xlu0 %3724
        %3726 = vrot.lane.b32.xlu0 %v2634, 48
        %v3727 = vpop.permute.xlu0 %3726
        %3728 = vrot.lane.b32.xlu0 %v2635, 48
        %v3729 = vpop.permute.xlu0 %3728
        %3746 = vmatprep.subr.mxu0 0.0
        %3747 = vmatpush1.msra.mxu0 %v3699
        %3748 = vmatprep.subr.mxu0 0.0
        %3749 = vmatpush1.msra.mxu0 %v3701
        %3750 = vmatprep.subr.mxu0 0.0
        %3751 = vmatpush1.msra.mxu0 %v3703
        %3752 = vmatprep.subr.mxu0 0.0
        %3753 = vmatpush1.msra.mxu0 %v3705
        %3754 = vmatprep.subr.mxu0 0.0
        %3755 = vmatpush1.msra.mxu0 %v3707
        %3756 = vmatprep.subr.mxu0 0.0
        %3757 = vmatpush1.msra.mxu0 %v3709
        %3758 = vmatprep.subr.mxu0 0.0
        %3759 = vmatpush1.msra.mxu0 %v3711
        %3760 = vmatprep.subr.mxu0 0.0
        %3761 = vmatpush1.msra.mxu0 %v3713
        %3762 = vmatprep.subr.mxu0 0.0
        %3763 = vmatpush1.msra.mxu0 %v3715
        %3764 = vmatprep.subr.mxu0 0.0
        %3765 = vmatpush1.msra.mxu0 %v3717
        %3766 = vmatprep.subr.mxu0 0.0
        %3767 = vmatpush1.msra.mxu0 %v3719
        %3768 = vmatprep.subr.mxu0 0.0
        %3769 = vmatpush1.msra.mxu0 %v3721
        %3770 = vmatprep.subr.mxu0 0.0
        %3771 = vmatpush1.msra.mxu0 %v3723
        %3772 = vmatprep.subr.mxu0 0.0
        %3773 = vmatpush1.msra.mxu0 %v3725
        %3774 = vmatprep.subr.mxu0 0.0
        %3775 = vmatpush1.msra.mxu0 %v3727
        %3776 = vmatprep.subr.mxu0 0.0
        %3777 = vmatpush1.msra.mxu0 %v3729
        %3778 = vmatprep.subr.mxu0 0.0
        %3779 = vmatpush1.msra.mxu0 0.0
        %3780 = vmatprep.subr.mxu0 0.0
        %3781 = vmatpush1.msra.mxu0 0.0
        %3782 = vmatprep.subr.mxu0 0.0
        %3783 = vmatpush1.msra.mxu0 0.0
        %3784 = vmatprep.subr.mxu0 0.0
        %3785 = vmatpush1.msra.mxu0 0.0
        %3786 = vmatprep.subr.mxu0 0.0
        %3787 = vmatpush1.msra.mxu0 0.0
        %3788 = vmatprep.subr.mxu0 0.0
        %3789 = vmatpush1.msra.mxu0 0.0
        %3790 = vmatprep.subr.mxu0 0.0
        %3791 = vmatpush1.msra.mxu0 0.0
        %3792 = vmatprep.subr.mxu0 0.0
        %3793 = vmatpush1.msra.mxu0 0.0
        %3794 = vmatprep.subr.mxu0 0.0
        %3795 = vmatpush1.msra.mxu0 0.0
        %3796 = vmatprep.subr.mxu0 0.0
        %3797 = vmatpush1.msra.mxu0 0.0
        %3798 = vmatprep.subr.mxu0 0.0
        %3799 = vmatpush1.msra.mxu0 0.0
        %3800 = vmatprep.subr.mxu0 0.0
        %3801 = vmatpush1.msra.mxu0 0.0
        %3802 = vmatprep.subr.mxu0 0.0
        %3803 = vmatpush1.msra.mxu0 0.0
        %3804 = vmatprep.subr.mxu0 0.0
        %3805 = vmatpush1.msra.mxu0 0.0
        %3806 = vmatprep.subr.mxu0 0.0
        %3807 = vmatpush1.msra.mxu0 0.0
        %3808 = vmatprep.subr.mxu0 0.0
        %3809 = vmatpush1.msra.mxu0 0.0
        %3810 = vmatprep.mubr.f32.mxu0 0.0
        %3811 = vmatmul.mubr.f32.gmra.mrb[0].mxu0 %v3697
        %v3812 = vpop.f32.mrb[0].mxu0
        %v3813 = vadd.f32 0.0, %v3812
        %v3814 = vpop.f32.mrb[0].mxu0
        %3815 = vdwg.mxu0
        %3816 = vrot.lane.b32.xlu0 %v2601, 32
        %v3817 = vpop.permute.xlu0 %3816
        %v3818 = vsel %vm799, %v3817, 0
        %3820 = vmatprep.subr.mxu0 0.0
        %3821 = vmatpush1.msra.mxu0 %v2616
        %3822 = vmatprep.subr.mxu0 0.0
        %3823 = vmatpush1.msra.mxu0 %v2617
        %3824 = vmatprep.subr.mxu0 0.0
        %3825 = vmatpush1.msra.mxu0 0.0
        %3826 = vmatprep.subr.mxu0 0.0
        %3827 = vmatpush1.msra.mxu0 0.0
        %3828 = vmatprep.subr.mxu0 0.0
        %3829 = vmatpush1.msra.mxu0 0.0
        %3830 = vmatprep.subr.mxu0 0.0
        %3831 = vmatpush1.msra.mxu0 0.0
        %3832 = vmatprep.subr.mxu0 0.0
        %3833 = vmatpush1.msra.mxu0 0.0
        %3834 = vmatprep.subr.mxu0 0.0
        %3835 = vmatpush1.msra.mxu0 0.0
        %3836 = vmatprep.subr.mxu0 0.0
        %3837 = vmatpush1.msra.mxu0 0.0
        %3838 = vmatprep.subr.mxu0 0.0
        %3839 = vmatpush1.msra.mxu0 0.0
        %3840 = vmatprep.subr.mxu0 0.0
        %3841 = vmatpush1.msra.mxu0 0.0
        %3842 = vmatprep.subr.mxu0 0.0
        %3843 = vmatpush1.msra.mxu0 0.0
        %3844 = vmatprep.subr.mxu0 0.0
        %3845 = vmatpush1.msra.mxu0 0.0
        %3846 = vmatprep.subr.mxu0 0.0
        %3847 = vmatpush1.msra.mxu0 0.0
        %3848 = vmatprep.subr.mxu0 0.0
        %3849 = vmatpush1.msra.mxu0 0.0
        %3850 = vmatprep.subr.mxu0 0.0
        %3851 = vmatpush1.msra.mxu0 0.0
        %3852 = vmatprep.subr.mxu0 0.0
        %3853 = vmatpush1.msra.mxu0 0.0
        %3854 = vmatprep.subr.mxu0 0.0
        %3855 = vmatpush1.msra.mxu0 0.0
        %3856 = vmatprep.subr.mxu0 0.0
        %3857 = vmatpush1.msra.mxu0 0.0
        %3858 = vmatprep.subr.mxu0 0.0
        %3859 = vmatpush1.msra.mxu0 0.0
        %3860 = vmatprep.subr.mxu0 0.0
        %3861 = vmatpush1.msra.mxu0 0.0
        %3862 = vmatprep.subr.mxu0 0.0
        %3863 = vmatpush1.msra.mxu0 0.0
        %3864 = vmatprep.subr.mxu0 0.0
        %3865 = vmatpush1.msra.mxu0 0.0
        %3866 = vmatprep.subr.mxu0 0.0
        %3867 = vmatpush1.msra.mxu0 0.0
        %3868 = vmatprep.subr.mxu0 0.0
        %3869 = vmatpush1.msra.mxu0 0.0
        %3870 = vmatprep.subr.mxu0 0.0
        %3871 = vmatpush1.msra.mxu0 0.0
        %3872 = vmatprep.subr.mxu0 0.0
        %3873 = vmatpush1.msra.mxu0 0.0
        %3874 = vmatprep.subr.mxu0 0.0
        %3875 = vmatpush1.msra.mxu0 0.0
        %3876 = vmatprep.subr.mxu0 0.0
        %3877 = vmatpush1.msra.mxu0 0.0
        %3878 = vmatprep.subr.mxu0 0.0
        %3879 = vmatpush1.msra.mxu0 0.0
        %3880 = vmatprep.subr.mxu0 0.0
        %3881 = vmatpush1.msra.mxu0 0.0
        %3882 = vmatprep.subr.mxu0 0.0
        %3883 = vmatpush1.msra.mxu0 0.0
        %3884 = vmatprep.mubr.f32.mxu0 0.0
        %3885 = vmatmul.mubr.f32.gmra.mrb[0].mxu0 %v3818
        %v3886 = vpop.f32.mrb[0].mxu0
        %v3887 = vadd.f32 %v2641, %v3886
        %v3888 = vpop.f32.mrb[0].mxu0
        %3889 = vdwg.mxu0
        %3890 = vmax.xlane.f32.xlu0 %v3887
        %v3891 = vpop.xlane.xlu0 %3890
        %v3892 = vsub.f32 %v3887, %v3891
        %v3893 = vmul.f32 %v3892, 1.442695
        %v3894 = vpow.pop %v3893
        %3895 = vadd.xlane.f32.xlu0 %v3894
        %v3896 = vpop.xlane.xlu0 %3895
        %v3897 = vrcp.pop %v3896
        %v3898 = vmul.f32 %v3894, %v3897
        %3899 = vrot.lane.b32.xlu0 %v2620, 32
        %v3900 = vpop.permute.xlu0 %3899
        %3901 = vrot.lane.b32.xlu0 %v2621, 32
        %v3902 = vpop.permute.xlu0 %3901
        %3903 = vrot.lane.b32.xlu0 %v2622, 32
        %v3904 = vpop.permute.xlu0 %3903
        %3905 = vrot.lane.b32.xlu0 %v2623, 32
        %v3906 = vpop.permute.xlu0 %3905
        %3907 = vrot.lane.b32.xlu0 %v2624, 32
        %v3908 = vpop.permute.xlu0 %3907
        %3909 = vrot.lane.b32.xlu0 %v2625, 32
        %v3910 = vpop.permute.xlu0 %3909
        %3911 = vrot.lane.b32.xlu0 %v2626, 32
        %v3912 = vpop.permute.xlu0 %3911
        %3913 = vrot.lane.b32.xlu0 %v2627, 32
        %v3914 = vpop.permute.xlu0 %3913
        %3915 = vrot.lane.b32.xlu0 %v2628, 32
        %v3916 = vpop.permute.xlu0 %3915
        %3917 = vrot.lane.b32.xlu0 %v2629, 32
        %v3918 = vpop.permute.xlu0 %3917
        %3919 = vrot.lane.b32.xlu0 %v2630, 32
        %v3920 = vpop.permute.xlu0 %3919
        %3921 = vrot.lane.b32.xlu0 %v2631, 32
        %v3922 = vpop.permute.xlu0 %3921
        %3923 = vrot.lane.b32.xlu0 %v2632, 32
        %v3924 = vpop.permute.xlu0 %3923
        %3925 = vrot.lane.b32.xlu0 %v2633, 32
        %v3926 = vpop.permute.xlu0 %3925
        %3927 = vrot.lane.b32.xlu0 %v2634, 32
        %v3928 = vpop.permute.xlu0 %3927
        %3929 = vrot.lane.b32.xlu0 %v2635, 32
        %v3930 = vpop.permute.xlu0 %3929
        %3947 = vmatprep.subr.mxu0 0.0
        %3948 = vmatpush1.msra.mxu0 %v3900
        %3949 = vmatprep.subr.mxu0 0.0
        %3950 = vmatpush1.msra.mxu0 %v3902
        %3951 = vmatprep.subr.mxu0 0.0
        %3952 = vmatpush1.msra.mxu0 %v3904
        %3953 = vmatprep.subr.mxu0 0.0
        %3954 = vmatpush1.msra.mxu0 %v3906
        %3955 = vmatprep.subr.mxu0 0.0
        %3956 = vmatpush1.msra.mxu0 %v3908
        %3957 = vmatprep.subr.mxu0 0.0
        %3958 = vmatpush1.msra.mxu0 %v3910
        %3959 = vmatprep.subr.mxu0 0.0
        %3960 = vmatpush1.msra.mxu0 %v3912
        %3961 = vmatprep.subr.mxu0 0.0
        %3962 = vmatpush1.msra.mxu0 %v3914
        %3963 = vmatprep.subr.mxu0 0.0
        %3964 = vmatpush1.msra.mxu0 %v3916
        %3965 = vmatprep.subr.mxu0 0.0
        %3966 = vmatpush1.msra.mxu0 %v3918
        %3967 = vmatprep.subr.mxu0 0.0
        %3968 = vmatpush1.msra.mxu0 %v3920
        %3969 = vmatprep.subr.mxu0 0.0
        %3970 = vmatpush1.msra.mxu0 %v3922
        %3971 = vmatprep.subr.mxu0 0.0
        %3972 = vmatpush1.msra.mxu0 %v3924
        %3973 = vmatprep.subr.mxu0 0.0
        %3974 = vmatpush1.msra.mxu0 %v3926
        %3975 = vmatprep.subr.mxu0 0.0
        %3976 = vmatpush1.msra.mxu0 %v3928
        %3977 = vmatprep.subr.mxu0 0.0
        %3978 = vmatpush1.msra.mxu0 %v3930
        %3979 = vmatprep.subr.mxu0 0.0
        %3980 = vmatpush1.msra.mxu0 0.0
        %3981 = vmatprep.subr.mxu0 0.0
        %3982 = vmatpush1.msra.mxu0 0.0
        %3983 = vmatprep.subr.mxu0 0.0
        %3984 = vmatpush1.msra.mxu0 0.0
        %3985 = vmatprep.subr.mxu0 0.0
        %3986 = vmatpush1.msra.mxu0 0.0
        %3987 = vmatprep.subr.mxu0 0.0
        %3988 = vmatpush1.msra.mxu0 0.0
        %3989 = vmatprep.subr.mxu0 0.0
        %3990 = vmatpush1.msra.mxu0 0.0
        %3991 = vmatprep.subr.mxu0 0.0
        %3992 = vmatpush1.msra.mxu0 0.0
        %3993 = vmatprep.subr.mxu0 0.0
        %3994 = vmatpush1.msra.mxu0 0.0
        %3995 = vmatprep.subr.mxu0 0.0
        %3996 = vmatpush1.msra.mxu0 0.0
        %3997 = vmatprep.subr.mxu0 0.0
        %3998 = vmatpush1.msra.mxu0 0.0
        %3999 = vmatprep.subr.mxu0 0.0
        %4000 = vmatpush1.msra.mxu0 0.0
        %4001 = vmatprep.subr.mxu0 0.0
        %4002 = vmatpush1.msra.mxu0 0.0
        %4003 = vmatprep.subr.mxu0 0.0
        %4004 = vmatpush1.msra.mxu0 0.0
        %4005 = vmatprep.subr.mxu0 0.0
        %4006 = vmatpush1.msra.mxu0 0.0
        %4007 = vmatprep.subr.mxu0 0.0
        %4008 = vmatpush1.msra.mxu0 0.0
        %4009 = vmatprep.subr.mxu0 0.0
        %4010 = vmatpush1.msra.mxu0 0.0
        %4011 = vmatprep.mubr.f32.mxu0 0.0
        %4012 = vmatmul.mubr.f32.gmra.mrb[0].mxu0 %v3898
        %v4013 = vpop.f32.mrb[0].mxu0
        %v4014 = vadd.f32 0.0, %v4013
        %v4015 = vpop.f32.mrb[0].mxu0
        %4016 = vdwg.mxu0
        %4017 = vrot.lane.b32.xlu0 %v2601, 16
        %v4018 = vpop.permute.xlu0 %4017
        %v4019 = vsel %vm799, %v4018, 0
        %4021 = vmatprep.subr.mxu0 0.0
        %4022 = vmatpush1.msra.mxu0 %v2618
        %4023 = vmatprep.subr.mxu0 0.0
        %4024 = vmatpush1.msra.mxu0 %v2619
        %4025 = vmatprep.subr.mxu0 0.0
        %4026 = vmatpush1.msra.mxu0 0.0
        %4027 = vmatprep.subr.mxu0 0.0
        %4028 = vmatpush1.msra.mxu0 0.0
        %4029 = vmatprep.subr.mxu0 0.0
        %4030 = vmatpush1.msra.mxu0 0.0
        %4031 = vmatprep.subr.mxu0 0.0
        %4032 = vmatpush1.msra.mxu0 0.0
        %4033 = vmatprep.subr.mxu0 0.0
        %4034 = vmatpush1.msra.mxu0 0.0
        %4035 = vmatprep.subr.mxu0 0.0
        %4036 = vmatpush1.msra.mxu0 0.0
        %4037 = vmatprep.subr.mxu0 0.0
        %4038 = vmatpush1.msra.mxu0 0.0
        %4039 = vmatprep.subr.mxu0 0.0
        %4040 = vmatpush1.msra.mxu0 0.0
        %4041 = vmatprep.subr.mxu0 0.0
        %4042 = vmatpush1.msra.mxu0 0.0
        %4043 = vmatprep.subr.mxu0 0.0
        %4044 = vmatpush1.msra.mxu0 0.0
        %4045 = vmatprep.subr.mxu0 0.0
        %4046 = vmatpush1.msra.mxu0 0.0
        %4047 = vmatprep.subr.mxu0 0.0
        %4048 = vmatpush1.msra.mxu0 0.0
        %4049 = vmatprep.subr.mxu0 0.0
        %4050 = vmatpush1.msra.mxu0 0.0
        %4051 = vmatprep.subr.mxu0 0.0
        %4052 = vmatpush1.msra.mxu0 0.0
        %4053 = vmatprep.subr.mxu0 0.0
        %4054 = vmatpush1.msra.mxu0 0.0
        %4055 = vmatprep.subr.mxu0 0.0
        %4056 = vmatpush1.msra.mxu0 0.0
        %4057 = vmatprep.subr.mxu0 0.0
        %4058 = vmatpush1.msra.mxu0 0.0
        %4059 = vmatprep.subr.mxu0 0.0
        %4060 = vmatpush1.msra.mxu0 0.0
        %4061 = vmatprep.subr.mxu0 0.0
        %4062 = vmatpush1.msra.mxu0 0.0
        %4063 = vmatprep.subr.mxu0 0.0
        %4064 = vmatpush1.msra.mxu0 0.0
        %4065 = vmatprep.subr.mxu0 0.0
        %4066 = vmatpush1.msra.mxu0 0.0
        %4067 = vmatprep.subr.mxu0 0.0
        %4068 = vmatpush1.msra.mxu0 0.0
        %4069 = vmatprep.subr.mxu0 0.0
        %4070 = vmatpush1.msra.mxu0 0.0
        %4071 = vmatprep.subr.mxu0 0.0
        %4072 = vmatpush1.msra.mxu0 0.0
        %4073 = vmatprep.subr.mxu0 0.0
        %4074 = vmatpush1.msra.mxu0 0.0
        %4075 = vmatprep.subr.mxu0 0.0
        %4076 = vmatpush1.msra.mxu0 0.0
        %4077 = vmatprep.subr.mxu0 0.0
        %4078 = vmatpush1.msra.mxu0 0.0
        %4079 = vmatprep.subr.mxu0 0.0
        %4080 = vmatpush1.msra.mxu0 0.0
        %4081 = vmatprep.subr.mxu0 0.0
        %4082 = vmatpush1.msra.mxu0 0.0
        %4083 = vmatprep.subr.mxu0 0.0
        %4084 = vmatpush1.msra.mxu0 0.0
        %4085 = vmatprep.mubr.f32.mxu0 0.0
        %4086 = vmatmul.mubr.f32.gmra.mrb[0].mxu0 %v4019
        %v4087 = vpop.f32.mrb[0].mxu0
        %v4088 = vadd.f32 %v2641, %v4087
        %v4089 = vpop.f32.mrb[0].mxu0
        %4090 = vdwg.mxu0
        %4091 = vmax.xlane.f32.xlu0 %v4088
        %v4092 = vpop.xlane.xlu0 %4091
        %v4093 = vsub.f32 %v4088, %v4092
        %v4094 = vmul.f32 %v4093, 1.442695
        %v4095 = vpow.pop %v4094
        %4096 = vadd.xlane.f32.xlu0 %v4095
        %v4097 = vpop.xlane.xlu0 %4096
        %v4098 = vrcp.pop %v4097
        %v4099 = vmul.f32 %v4095, %v4098
        %4100 = vrot.lane.b32.xlu0 %v2620, 16
        %v4101 = vpop.permute.xlu0 %4100
        %4102 = vrot.lane.b32.xlu0 %v2621, 16
        %v4103 = vpop.permute.xlu0 %4102
        %4104 = vrot.lane.b32.xlu0 %v2622, 16
        %v4105 = vpop.permute.xlu0 %4104
        %4106 = vrot.lane.b32.xlu0 %v2623, 16
        %v4107 = vpop.permute.xlu0 %4106
        %4108 = vrot.lane.b32.xlu0 %v2624, 16
        %v4109 = vpop.permute.xlu0 %4108
        %4110 = vrot.lane.b32.xlu0 %v2625, 16
        %v4111 = vpop.permute.xlu0 %4110
        %4112 = vrot.lane.b32.xlu0 %v2626, 16
        %v4113 = vpop.permute.xlu0 %4112
        %4114 = vrot.lane.b32.xlu0 %v2627, 16
        %v4115 = vpop.permute.xlu0 %4114
        %4116 = vrot.lane.b32.xlu0 %v2628, 16
        %v4117 = vpop.permute.xlu0 %4116
        %4118 = vrot.lane.b32.xlu0 %v2629, 16
        %v4119 = vpop.permute.xlu0 %4118
        %4120 = vrot.lane.b32.xlu0 %v2630, 16
        %v4121 = vpop.permute.xlu0 %4120
        %4122 = vrot.lane.b32.xlu0 %v2631, 16
        %v4123 = vpop.permute.xlu0 %4122
        %4124 = vrot.lane.b32.xlu0 %v2632, 16
        %v4125 = vpop.permute.xlu0 %4124
        %4126 = vrot.lane.b32.xlu0 %v2633, 16
        %v4127 = vpop.permute.xlu0 %4126
        %4128 = vrot.lane.b32.xlu0 %v2634, 16
        %v4129 = vpop.permute.xlu0 %4128
        %4130 = vrot.lane.b32.xlu0 %v2635, 16
        %v4131 = vpop.permute.xlu0 %4130
        %4148 = vmatprep.subr.mxu0 0.0
        %4149 = vmatpush1.msra.mxu0 %v4101
        %4150 = vmatprep.subr.mxu0 0.0
        %4151 = vmatpush1.msra.mxu0 %v4103
        %4152 = vmatprep.subr.mxu0 0.0
        %4153 = vmatpush1.msra.mxu0 %v4105
        %4154 = vmatprep.subr.mxu0 0.0
        %4155 = vmatpush1.msra.mxu0 %v4107
        %4156 = vmatprep.subr.mxu0 0.0
        %4157 = vmatpush1.msra.mxu0 %v4109
        %4158 = vmatprep.subr.mxu0 0.0
        %4159 = vmatpush1.msra.mxu0 %v4111
        %4160 = vmatprep.subr.mxu0 0.0
        %4161 = vmatpush1.msra.mxu0 %v4113
        %4162 = vmatprep.subr.mxu0 0.0
        %4163 = vmatpush1.msra.mxu0 %v4115
        %4164 = vmatprep.subr.mxu0 0.0
        %4165 = vmatpush1.msra.mxu0 %v4117
        %4166 = vmatprep.subr.mxu0 0.0
        %4167 = vmatpush1.msra.mxu0 %v4119
        %4168 = vmatprep.subr.mxu0 0.0
        %4169 = vmatpush1.msra.mxu0 %v4121
        %4170 = vmatprep.subr.mxu0 0.0
        %4171 = vmatpush1.msra.mxu0 %v4123
        %4172 = vmatprep.subr.mxu0 0.0
        %4173 = vmatpush1.msra.mxu0 %v4125
        %4174 = vmatprep.subr.mxu0 0.0
        %4175 = vmatpush1.msra.mxu0 %v4127
        %4176 = vmatprep.subr.mxu0 0.0
        %4177 = vmatpush1.msra.mxu0 %v4129
        %4178 = vmatprep.subr.mxu0 0.0
        %4179 = vmatpush1.msra.mxu0 %v4131
        %4180 = vmatprep.subr.mxu0 0.0
        %4181 = vmatpush1.msra.mxu0 0.0
        %4182 = vmatprep.subr.mxu0 0.0
        %4183 = vmatpush1.msra.mxu0 0.0
        %4184 = vmatprep.subr.mxu0 0.0
        %4185 = vmatpush1.msra.mxu0 0.0
        %4186 = vmatprep.subr.mxu0 0.0
        %4187 = vmatpush1.msra.mxu0 0.0
        %4188 = vmatprep.subr.mxu0 0.0
        %4189 = vmatpush1.msra.mxu0 0.0
        %4190 = vmatprep.subr.mxu0 0.0
        %4191 = vmatpush1.msra.mxu0 0.0
        %4192 = vmatprep.subr.mxu0 0.0
        %4193 = vmatpush1.msra.mxu0 0.0
        %4194 = vmatprep.subr.mxu0 0.0
        %4195 = vmatpush1.msra.mxu0 0.0
        %4196 = vmatprep.subr.mxu0 0.0
        %4197 = vmatpush1.msra.mxu0 0.0
        %4198 = vmatprep.subr.mxu0 0.0
        %4199 = vmatpush1.msra.mxu0 0.0
        %4200 = vmatprep.subr.mxu0 0.0
        %4201 = vmatpush1.msra.mxu0 0.0
        %4202 = vmatprep.subr.mxu0 0.0
        %4203 = vmatpush1.msra.mxu0 0.0
        %4204 = vmatprep.subr.mxu0 0.0
        %4205 = vmatpush1.msra.mxu0 0.0
        %4206 = vmatprep.subr.mxu0 0.0
        %4207 = vmatpush1.msra.mxu0 0.0
        %4208 = vmatprep.subr.mxu0 0.0
        %4209 = vmatpush1.msra.mxu0 0.0
        %4210 = vmatprep.subr.mxu0 0.0
        %4211 = vmatpush1.msra.mxu0 0.0
        %4212 = vmatprep.mubr.f32.mxu0 0.0
        %4213 = vmatmul.mubr.f32.gmra.mrb[0].mxu0 %v4099
        %v4214 = vpop.f32.mrb[0].mxu0
        %v4215 = vadd.f32 0.0, %v4214
        %v4216 = vpop.f32.mrb[0].mxu0
        %4217 = vdwg.mxu0
        %4219 = vrot.lane.b32.xlu0 %v3009, 16
        %v4220 = vpop.permute.xlu0 %4219
        %4223 = vrot.lane.b32.xlu0 %v3210, 32
        %v4224 = vpop.permute.xlu0 %4223
        %4227 = vrot.lane.b32.xlu0 %v3411, 48
        %v4228 = vpop.permute.xlu0 %4227
        %4231 = vrot.lane.b32.xlu0 %v3612, 64
        %v4232 = vpop.permute.xlu0 %4231
        %4235 = vrot.lane.b32.xlu0 %v3813, 80
        %v4236 = vpop.permute.xlu0 %4235
        %4239 = vrot.lane.b32.xlu0 %v4014, 96
        %v4240 = vpop.permute.xlu0 %4239
        %4243 = vrot.lane.b32.xlu0 %v4215, 112
        %v4244 = vpop.permute.xlu0 %4243
        %v4246 = vsel %vm799, %v2792, %v4220
        %v4247 = vsel %vm2404, %v4246, %v4224
        %v4248 = vsel %vm2406, %v4247, %v4228
        %v4249 = vsel %vm2408, %v4248, %v4232
        %v4250 = vsel %vm2410, %v4249, %v4236
        %v4251 = vsel %vm2412, %v4250, %v4240
        %v4252 = vsel %vm2414, %v4251, %v4244
        %s4253 = scalar_lea.vmem [#allocation8], 128
        %v4254 = vld [vmem:[%s4253] sm:$0xff]
        %v4255 = vld [vmem:[%s4253 + $0x8] sm:$0xff]
        %v4256 = vld [vmem:[%s4253 + $0x10] sm:$0xff]
        %v4257 = vld [vmem:[%s4253 + $0x18] sm:$0xff]
        %v4258 = vld [vmem:[%s4253 + $0x20] sm:$0xff]
        %v4259 = vld [vmem:[%s4253 + $0x28] sm:$0xff]
        %v4260 = vld [vmem:[%s4253 + $0x30] sm:$0xff]
        %v4261 = vld [vmem:[%s4253 + $0x38] sm:$0xff]
        %v4262 = vld [vmem:[%s4253 + $0x40] sm:$0xff]
        %v4263 = vld [vmem:[%s4253 + $0x48] sm:$0xff]
        %v4264 = vld [vmem:[%s4253 + $0x50] sm:$0xff]
        %v4265 = vld [vmem:[%s4253 + $0x58] sm:$0xff]
        %v4266 = vld [vmem:[%s4253 + $0x60] sm:$0xff]
        %v4267 = vld [vmem:[%s4253 + $0x68] sm:$0xff]
        %v4268 = vld [vmem:[%s4253 + $0x70] sm:$0xff]
        %v4269 = vld [vmem:[%s4253 + $0x78] sm:$0xff]
        %s4270 = scalar_lea.vmem [#allocation10], 1
        %v4271 = vld [vmem:[%s4270] sm:$0x1]
        %v4273 = vlaneseq
        %v4274 = vshrl.u32 %v4273, 7
        %v4275 = vsub.s32 0, %v4274
        %v4276 = vrot.slane %v4271, %v4275
        %4278 = vmatprep.subr.mxu0 0.0
        %4279 = vmatpush1.msra.mxu0 %v4254
        %4280 = vmatprep.subr.mxu0 0.0
        %4281 = vmatpush1.msra.mxu0 %v4255
        %4282 = vmatprep.subr.mxu0 0.0
        %4283 = vmatpush1.msra.mxu0 %v4256
        %4284 = vmatprep.subr.mxu0 0.0
        %4285 = vmatpush1.msra.mxu0 %v4257
        %4286 = vmatprep.subr.mxu0 0.0
        %4287 = vmatpush1.msra.mxu0 %v4258
        %4288 = vmatprep.subr.mxu0 0.0
        %4289 = vmatpush1.msra.mxu0 %v4259
        %4290 = vmatprep.subr.mxu0 0.0
        %4291 = vmatpush1.msra.mxu0 %v4260
        %4292 = vmatprep.subr.mxu0 0.0
        %4293 = vmatpush1.msra.mxu0 %v4261
        %4294 = vmatprep.subr.mxu0 0.0
        %4295 = vmatpush1.msra.mxu0 %v4262
        %4296 = vmatprep.subr.mxu0 0.0
        %4297 = vmatpush1.msra.mxu0 %v4263
        %4298 = vmatprep.subr.mxu0 0.0
        %4299 = vmatpush1.msra.mxu0 %v4264
        %4300 = vmatprep.subr.mxu0 0.0
        %4301 = vmatpush1.msra.mxu0 %v4265
        %4302 = vmatprep.subr.mxu0 0.0
        %4303 = vmatpush1.msra.mxu0 %v4266
        %4304 = vmatprep.subr.mxu0 0.0
        %4305 = vmatpush1.msra.mxu0 %v4267
        %4306 = vmatprep.subr.mxu0 0.0
        %4307 = vmatpush1.msra.mxu0 %v4268
        %4308 = vmatprep.subr.mxu0 0.0
        %4309 = vmatpush1.msra.mxu0 %v4269
        %4310 = vmatprep.subr.mxu0 0.0
        %4311 = vmatpush1.msra.mxu0 0.0
        %4312 = vmatprep.subr.mxu0 0.0
        %4313 = vmatpush1.msra.mxu0 0.0
        %4314 = vmatprep.subr.mxu0 0.0
        %4315 = vmatpush1.msra.mxu0 0.0
        %4316 = vmatprep.subr.mxu0 0.0
        %4317 = vmatpush1.msra.mxu0 0.0
        %4318 = vmatprep.subr.mxu0 0.0
        %4319 = vmatpush1.msra.mxu0 0.0
        %4320 = vmatprep.subr.mxu0 0.0
        %4321 = vmatpush1.msra.mxu0 0.0
        %4322 = vmatprep.subr.mxu0 0.0
        %4323 = vmatpush1.msra.mxu0 0.0
        %4324 = vmatprep.subr.mxu0 0.0
        %4325 = vmatpush1.msra.mxu0 0.0
        %4326 = vmatprep.subr.mxu0 0.0
        %4327 = vmatpush1.msra.mxu0 0.0
        %4328 = vmatprep.subr.mxu0 0.0
        %4329 = vmatpush1.msra.mxu0 0.0
        %4330 = vmatprep.subr.mxu0 0.0
        %4331 = vmatpush1.msra.mxu0 0.0
        %4332 = vmatprep.subr.mxu0 0.0
        %4333 = vmatpush1.msra.mxu0 0.0
        %4334 = vmatprep.subr.mxu0 0.0
        %4335 = vmatpush1.msra.mxu0 0.0
        %4336 = vmatprep.subr.mxu0 0.0
        %4337 = vmatpush1.msra.mxu0 0.0
        %4338 = vmatprep.subr.mxu0 0.0
        %4339 = vmatpush1.msra.mxu0 0.0
        %4340 = vmatprep.subr.mxu0 0.0
        %4341 = vmatpush1.msra.mxu0 0.0
        %4342 = vmatprep.mubr.f32.mxu0 0.0
        %4343 = vmatmul.mubr.f32.gmra.mrb[0].mxu0 %v4252
        %v4344 = vpop.f32.mrb[0].mxu0
        %v4345 = vadd.f32 %v4276, %v4344
        %v4346 = vpop.f32.mrb[0].mxu0
        %4347 = vdwg.mxu0
        %s4348 = scalar_lea.vmem [#allocation5], 256
        %v4349 = vld [vmem:[%s4348] sm:$0xff]
        %v4350 = vld [vmem:[%s4348 + $0x8] sm:$0xff]
        %v4351 = vld [vmem:[%s4348 + $0x10] sm:$0xff]
        %v4352 = vld [vmem:[%s4348 + $0x18] sm:$0xff]
        %v4353 = vld [vmem:[%s4348 + $0x20] sm:$0xff]
        %v4354 = vld [vmem:[%s4348 + $0x28] sm:$0xff]
        %v4355 = vld [vmem:[%s4348 + $0x30] sm:$0xff]
        %v4356 = vld [vmem:[%s4348 + $0x38] sm:$0xff]
        %v4357 = vld [vmem:[%s4348 + $0x40] sm:$0xff]
        %v4358 = vld [vmem:[%s4348 + $0x48] sm:$0xff]
        %v4359 = vld [vmem:[%s4348 + $0x50] sm:$0xff]
        %v4360 = vld [vmem:[%s4348 + $0x58] sm:$0xff]
        %v4361 = vld [vmem:[%s4348 + $0x60] sm:$0xff]
        %v4362 = vld [vmem:[%s4348 + $0x68] sm:$0xff]
        %v4363 = vld [vmem:[%s4348 + $0x70] sm:$0xff]
        %v4364 = vld [vmem:[%s4348 + $0x78] sm:$0xff]
        %s4365 = scalar_lea.vmem [#allocation7], 2
        %v4366 = vld [vmem:[%s4365] sm:$0x1]
        %v4368 = vlaneseq
        %v4369 = vshrl.u32 %v4368, 7
        %v4370 = vsub.s32 0, %v4369
        %v4371 = vrot.slane %v4366, %v4370
        %4373 = vmatprep.subr.mxu0 0.0
        %4374 = vmatpush1.msra.mxu0 %v4349
        %4375 = vmatprep.subr.mxu0 0.0
        %4376 = vmatpush1.msra.mxu0 %v4350
        %4377 = vmatprep.subr.mxu0 0.0
        %4378 = vmatpush1.msra.mxu0 %v4351
        %4379 = vmatprep.subr.mxu0 0.0
        %4380 = vmatpush1.msra.mxu0 %v4352
        %4381 = vmatprep.subr.mxu0 0.0
        %4382 = vmatpush1.msra.mxu0 %v4353
        %4383 = vmatprep.subr.mxu0 0.0
        %4384 = vmatpush1.msra.mxu0 %v4354
        %4385 = vmatprep.subr.mxu0 0.0
        %4386 = vmatpush1.msra.mxu0 %v4355
        %4387 = vmatprep.subr.mxu0 0.0
        %4388 = vmatpush1.msra.mxu0 %v4356
        %4389 = vmatprep.subr.mxu0 0.0
        %4390 = vmatpush1.msra.mxu0 %v4357
        %4391 = vmatprep.subr.mxu0 0.0
        %4392 = vmatpush1.msra.mxu0 %v4358
        %4393 = vmatprep.subr.mxu0 0.0
        %4394 = vmatpush1.msra.mxu0 %v4359
        %4395 = vmatprep.subr.mxu0 0.0
        %4396 = vmatpush1.msra.mxu0 %v4360
        %4397 = vmatprep.subr.mxu0 0.0
        %4398 = vmatpush1.msra.mxu0 %v4361
        %4399 = vmatprep.subr.mxu0 0.0
        %4400 = vmatpush1.msra.mxu0 %v4362
        %4401 = vmatprep.subr.mxu0 0.0
        %4402 = vmatpush1.msra.mxu0 %v4363
        %4403 = vmatprep.subr.mxu0 0.0
        %4404 = vmatpush1.msra.mxu0 %v4364
        %4405 = vmatprep.subr.mxu0 0.0
        %4406 = vmatpush1.msra.mxu0 0.0
        %4407 = vmatprep.subr.mxu0 0.0
        %4408 = vmatpush1.msra.mxu0 0.0
        %4409 = vmatprep.subr.mxu0 0.0
        %4410 = vmatpush1.msra.mxu0 0.0
        %4411 = vmatprep.subr.mxu0 0.0
        %4412 = vmatpush1.msra.mxu0 0.0
        %4413 = vmatprep.subr.mxu0 0.0
        %4414 = vmatpush1.msra.mxu0 0.0
        %4415 = vmatprep.subr.mxu0 0.0
        %4416 = vmatpush1.msra.mxu0 0.0
        %4417 = vmatprep.subr.mxu0 0.0
        %4418 = vmatpush1.msra.mxu0 0.0
        %4419 = vmatprep.subr.mxu0 0.0
        %4420 = vmatpush1.msra.mxu0 0.0
        %4421 = vmatprep.subr.mxu0 0.0
        %4422 = vmatpush1.msra.mxu0 0.0
        %4423 = vmatprep.subr.mxu0 0.0
        %4424 = vmatpush1.msra.mxu0 0.0
        %4425 = vmatprep.subr.mxu0 0.0
        %4426 = vmatpush1.msra.mxu0 0.0
        %4427 = vmatprep.subr.mxu0 0.0
        %4428 = vmatpush1.msra.mxu0 0.0
        %4429 = vmatprep.subr.mxu0 0.0
        %4430 = vmatpush1.msra.mxu0 0.0
        %4431 = vmatprep.subr.mxu0 0.0
        %4432 = vmatpush1.msra.mxu0 0.0
        %4433 = vmatprep.subr.mxu0 0.0
        %4434 = vmatpush1.msra.mxu0 0.0
        %4435 = vmatprep.subr.mxu0 0.0
        %4436 = vmatpush1.msra.mxu0 0.0
        %4437 = vmatprep.mubr.f32.mxu0 0.0
        %4438 = vmatmul.mubr.f32.gmra.mrb[0].mxu0 %v4345
        %v4439 = vpop.f32.mrb[0].mxu0
        %v4440 = vadd.f32 %v4371, %v4439
        %v4441 = vpop.f32.mrb[0].mxu0
        %4442 = vdwg.mxu0
        %v4443 = vld [vmem:[#allocation20] sm:$0xff]
        %v4444 = vld [vmem:[#allocation20 + $0x8] sm:$0xff]
        %v4445 = vld [vmem:[#allocation20 + $0x10] sm:$0xff]
        %v4446 = vld [vmem:[#allocation20 + $0x18] sm:$0xff]
        %v4447 = vld [vmem:[#allocation20 + $0x20] sm:$0xff]
        %v4448 = vld [vmem:[#allocation20 + $0x28] sm:$0xff]
        %v4449 = vld [vmem:[#allocation20 + $0x30] sm:$0xff]
        %v4450 = vld [vmem:[#allocation20 + $0x38] sm:$0xff]
        %v4451 = vld [vmem:[#allocation20 + $0x40] sm:$0xff]
        %v4452 = vld [vmem:[#allocation20 + $0x48] sm:$0xff]
        %v4453 = vld [vmem:[#allocation20 + $0x50] sm:$0xff]
        %v4454 = vld [vmem:[#allocation20 + $0x58] sm:$0xff]
        %v4455 = vld [vmem:[#allocation20 + $0x60] sm:$0xff]
        %v4456 = vld [vmem:[#allocation20 + $0x68] sm:$0xff]
        %v4457 = vld [vmem:[#allocation20 + $0x70] sm:$0xff]
        %v4458 = vld [vmem:[#allocation20 + $0x78] sm:$0xff]
        %v4459 = vld [vmem:[#allocation22] sm:$0xff]
        %v4460 = vld [vmem:[#allocation22 + $0x8] sm:$0xff]
        %v4461 = vld [vmem:[#allocation22 + $0x10] sm:$0xff]
        %v4462 = vld [vmem:[#allocation22 + $0x18] sm:$0xff]
        %v4463 = vld [vmem:[#allocation22 + $0x20] sm:$0xff]
        %v4464 = vld [vmem:[#allocation22 + $0x28] sm:$0xff]
        %v4465 = vld [vmem:[#allocation22 + $0x30] sm:$0xff]
        %v4466 = vld [vmem:[#allocation22 + $0x38] sm:$0xff]
        %v4467 = vld [vmem:[#allocation22 + $0x40] sm:$0xff]
        %v4468 = vld [vmem:[#allocation22 + $0x48] sm:$0xff]
        %v4469 = vld [vmem:[#allocation22 + $0x50] sm:$0xff]
        %v4470 = vld [vmem:[#allocation22 + $0x58] sm:$0xff]
        %v4471 = vld [vmem:[#allocation22 + $0x60] sm:$0xff]
        %v4472 = vld [vmem:[#allocation22 + $0x68] sm:$0xff]
        %v4473 = vld [vmem:[#allocation22 + $0x70] sm:$0xff]
        %v4474 = vld [vmem:[#allocation22 + $0x78] sm:$0xff]
        %v4475 = vld [vmem:[#allocation23] sm:$0x1]
        %v4477 = vlaneseq
        %v4478 = vshrl.u32 %v4477, 7
        %v4479 = vsub.s32 0, %v4478
        %v4480 = vrot.slane %v4475, %v4479
        %v4483 = vsel %vm799, %v4440, 0
        %4485 = vmatprep.subr.mxu0 0.0
        %4486 = vmatpush1.msra.mxu0 %v4443
        %4487 = vmatprep.subr.mxu0 0.0
        %4488 = vmatpush1.msra.mxu0 %v4444
        %4489 = vmatprep.subr.mxu0 0.0
        %4490 = vmatpush1.msra.mxu0 0.0
        %4491 = vmatprep.subr.mxu0 0.0
        %4492 = vmatpush1.msra.mxu0 0.0
        %4493 = vmatprep.subr.mxu0 0.0
        %4494 = vmatpush1.msra.mxu0 0.0
        %4495 = vmatprep.subr.mxu0 0.0
        %4496 = vmatpush1.msra.mxu0 0.0
        %4497 = vmatprep.subr.mxu0 0.0
        %4498 = vmatpush1.msra.mxu0 0.0
        %4499 = vmatprep.subr.mxu0 0.0
        %4500 = vmatpush1.msra.mxu0 0.0
        %4501 = vmatprep.subr.mxu0 0.0
        %4502 = vmatpush1.msra.mxu0 0.0
        %4503 = vmatprep.subr.mxu0 0.0
        %4504 = vmatpush1.msra.mxu0 0.0
        %4505 = vmatprep.subr.mxu0 0.0
        %4506 = vmatpush1.msra.mxu0 0.0
        %4507 = vmatprep.subr.mxu0 0.0
        %4508 = vmatpush1.msra.mxu0 0.0
        %4509 = vmatprep.subr.mxu0 0.0
        %4510 = vmatpush1.msra.mxu0 0.0
        %4511 = vmatprep.subr.mxu0 0.0
        %4512 = vmatpush1.msra.mxu0 0.0
        %4513 = vmatprep.subr.mxu0 0.0
        %4514 = vmatpush1.msra.mxu0 0.0
        %4515 = vmatprep.subr.mxu0 0.0
        %4516 = vmatpush1.msra.mxu0 0.0
        %4517 = vmatprep.subr.mxu0 0.0
        %4518 = vmatpush1.msra.mxu0 0.0
        %4519 = vmatprep.subr.mxu0 0.0
        %4520 = vmatpush1.msra.mxu0 0.0
        %4521 = vmatprep.subr.mxu0 0.0
        %4522 = vmatpush1.msra.mxu0 0.0
        %4523 = vmatprep.subr.mxu0 0.0
        %4524 = vmatpush1.msra.mxu0 0.0
        %4525 = vmatprep.subr.mxu0 0.0
        %4526 = vmatpush1.msra.mxu0 0.0
        %4527 = vmatprep.subr.mxu0 0.0
        %4528 = vmatpush1.msra.mxu0 0.0
        %4529 = vmatprep.subr.mxu0 0.0
        %4530 = vmatpush1.msra.mxu0 0.0
        %4531 = vmatprep.subr.mxu0 0.0
        %4532 = vmatpush1.msra.mxu0 0.0
        %4533 = vmatprep.subr.mxu0 0.0
        %4534 = vmatpush1.msra.mxu0 0.0
        %4535 = vmatprep.subr.mxu0 0.0
        %4536 = vmatpush1.msra.mxu0 0.0
        %4537 = vmatprep.subr.mxu0 0.0
        %4538 = vmatpush1.msra.mxu0 0.0
        %4539 = vmatprep.subr.mxu0 0.0
        %4540 = vmatpush1.msra.mxu0 0.0
        %4541 = vmatprep.subr.mxu0 0.0
        %4542 = vmatpush1.msra.mxu0 0.0
        %4543 = vmatprep.subr.mxu0 0.0
        %4544 = vmatpush1.msra.mxu0 0.0
        %4545 = vmatprep.subr.mxu0 0.0
        %4546 = vmatpush1.msra.mxu0 0.0
        %4547 = vmatprep.subr.mxu0 0.0
        %4548 = vmatpush1.msra.mxu0 0.0
        %4549 = vmatprep.mubr.f32.mxu0 0.0
        %4550 = vmatmul.mubr.f32.gmra.mrb[0].mxu0 %v4483
        %v4551 = vpop.f32.mrb[0].mxu0
        %v4552 = vadd.f32 %v4480, %v4551
        %v4553 = vpop.f32.mrb[0].mxu0
        %4554 = vdwg.mxu0
        %4555 = vmax.xlane.f32.xlu0 %v4552
        %v4556 = vpop.xlane.xlu0 %4555
        %v4557 = vsub.f32 %v4552, %v4556
        %v4558 = vmul.f32 %v4557, 1.442695
        %v4559 = vpow.pop %v4558
        %4560 = vadd.xlane.f32.xlu0 %v4559
        %v4561 = vpop.xlane.xlu0 %4560
        %v4562 = vrcp.pop %v4561
        %v4563 = vmul.f32 %v4559, %v4562
        %4564 = vmatprep.subr.mxu0 0.0
        %4565 = vmatpush1.msra.mxu0 %v4459
        %4566 = vmatprep.subr.mxu0 0.0
        %4567 = vmatpush1.msra.mxu0 %v4460
        %4568 = vmatprep.subr.mxu0 0.0
        %4569 = vmatpush1.msra.mxu0 %v4461
        %4570 = vmatprep.subr.mxu0 0.0
        %4571 = vmatpush1.msra.mxu0 %v4462
        %4572 = vmatprep.subr.mxu0 0.0
        %4573 = vmatpush1.msra.mxu0 %v4463
        %4574 = vmatprep.subr.mxu0 0.0
        %4575 = vmatpush1.msra.mxu0 %v4464
        %4576 = vmatprep.subr.mxu0 0.0
        %4577 = vmatpush1.msra.mxu0 %v4465
        %4578 = vmatprep.subr.mxu0 0.0
        %4579 = vmatpush1.msra.mxu0 %v4466
        %4580 = vmatprep.subr.mxu0 0.0
        %4581 = vmatpush1.msra.mxu0 %v4467
        %4582 = vmatprep.subr.mxu0 0.0
        %4583 = vmatpush1.msra.mxu0 %v4468
        %4584 = vmatprep.subr.mxu0 0.0
        %4585 = vmatpush1.msra.mxu0 %v4469
        %4586 = vmatprep.subr.mxu0 0.0
        %4587 = vmatpush1.msra.mxu0 %v4470
        %4588 = vmatprep.subr.mxu0 0.0
        %4589 = vmatpush1.msra.mxu0 %v4471
        %4590 = vmatprep.subr.mxu0 0.0
        %4591 = vmatpush1.msra.mxu0 %v4472
        %4592 = vmatprep.subr.mxu0 0.0
        %4593 = vmatpush1.msra.mxu0 %v4473
        %4594 = vmatprep.subr.mxu0 0.0
        %4595 = vmatpush1.msra.mxu0 %v4474
        %4596 = vmatprep.subr.mxu0 0.0
        %4597 = vmatpush1.msra.mxu0 0.0
        %4598 = vmatprep.subr.mxu0 0.0
        %4599 = vmatpush1.msra.mxu0 0.0
        %4600 = vmatprep.subr.mxu0 0.0
        %4601 = vmatpush1.msra.mxu0 0.0
        %4602 = vmatprep.subr.mxu0 0.0
        %4603 = vmatpush1.msra.mxu0 0.0
        %4604 = vmatprep.subr.mxu0 0.0
        %4605 = vmatpush1.msra.mxu0 0.0
        %4606 = vmatprep.subr.mxu0 0.0
        %4607 = vmatpush1.msra.mxu0 0.0
        %4608 = vmatprep.subr.mxu0 0.0
        %4609 = vmatpush1.msra.mxu0 0.0
        %4610 = vmatprep.subr.mxu0 0.0
        %4611 = vmatpush1.msra.mxu0 0.0
        %4612 = vmatprep.subr.mxu0 0.0
        %4613 = vmatpush1.msra.mxu0 0.0
        %4614 = vmatprep.subr.mxu0 0.0
        %4615 = vmatpush1.msra.mxu0 0.0
        %4616 = vmatprep.subr.mxu0 0.0
        %4617 = vmatpush1.msra.mxu0 0.0
        %4618 = vmatprep.subr.mxu0 0.0
        %4619 = vmatpush1.msra.mxu0 0.0
        %4620 = vmatprep.subr.mxu0 0.0
        %4621 = vmatpush1.msra.mxu0 0.0
        %4622 = vmatprep.subr.mxu0 0.0
        %4623 = vmatpush1.msra.mxu0 0.0
        %4624 = vmatprep.subr.mxu0 0.0
        %4625 = vmatpush1.msra.mxu0 0.0
        %4626 = vmatprep.subr.mxu0 0.0
        %4627 = vmatpush1.msra.mxu0 0.0
        %4628 = vmatprep.mubr.f32.mxu0 0.0
        %4629 = vmatmul.mubr.f32.gmra.mrb[0].mxu0 %v4563
        %v4630 = vpop.f32.mrb[0].mxu0
        %v4631 = vadd.f32 0.0, %v4630
        %v4632 = vpop.f32.mrb[0].mxu0
        %4633 = vdwg.mxu0
        %4634 = vrot.lane.b32.xlu0 %v4440, 112
        %v4635 = vpop.permute.xlu0 %4634
        %v4636 = vsel %vm799, %v4635, 0
        %4638 = vmatprep.subr.mxu0 0.0
        %4639 = vmatpush1.msra.mxu0 %v4445
        %4640 = vmatprep.subr.mxu0 0.0
        %4641 = vmatpush1.msra.mxu0 %v4446
        %4642 = vmatprep.subr.mxu0 0.0
        %4643 = vmatpush1.msra.mxu0 0.0
        %4644 = vmatprep.subr.mxu0 0.0
        %4645 = vmatpush1.msra.mxu0 0.0
        %4646 = vmatprep.subr.mxu0 0.0
        %4647 = vmatpush1.msra.mxu0 0.0
        %4648 = vmatprep.subr.mxu0 0.0
        %4649 = vmatpush1.msra.mxu0 0.0
        %4650 = vmatprep.subr.mxu0 0.0
        %4651 = vmatpush1.msra.mxu0 0.0
        %4652 = vmatprep.subr.mxu0 0.0
        %4653 = vmatpush1.msra.mxu0 0.0
        %4654 = vmatprep.subr.mxu0 0.0
        %4655 = vmatpush1.msra.mxu0 0.0
        %4656 = vmatprep.subr.mxu0 0.0
        %4657 = vmatpush1.msra.mxu0 0.0
        %4658 = vmatprep.subr.mxu0 0.0
        %4659 = vmatpush1.msra.mxu0 0.0
        %4660 = vmatprep.subr.mxu0 0.0
        %4661 = vmatpush1.msra.mxu0 0.0
        %4662 = vmatprep.subr.mxu0 0.0
        %4663 = vmatpush1.msra.mxu0 0.0
        %4664 = vmatprep.subr.mxu0 0.0
        %4665 = vmatpush1.msra.mxu0 0.0
        %4666 = vmatprep.subr.mxu0 0.0
        %4667 = vmatpush1.msra.mxu0 0.0
        %4668 = vmatprep.subr.mxu0 0.0
        %4669 = vmatpush1.msra.mxu0 0.0
        %4670 = vmatprep.subr.mxu0 0.0
        %4671 = vmatpush1.msra.mxu0 0.0
        %4672 = vmatprep.subr.mxu0 0.0
        %4673 = vmatpush1.msra.mxu0 0.0
        %4674 = vmatprep.subr.mxu0 0.0
        %4675 = vmatpush1.msra.mxu0 0.0
        %4676 = vmatprep.subr.mxu0 0.0
        %4677 = vmatpush1.msra.mxu0 0.0
        %4678 = vmatprep.subr.mxu0 0.0
        %4679 = vmatpush1.msra.mxu0 0.0
        %4680 = vmatprep.subr.mxu0 0.0
        %4681 = vmatpush1.msra.mxu0 0.0
        %4682 = vmatprep.subr.mxu0 0.0
        %4683 = vmatpush1.msra.mxu0 0.0
        %4684 = vmatprep.subr.mxu0 0.0
        %4685 = vmatpush1.msra.mxu0 0.0
        %4686 = vmatprep.subr.mxu0 0.0
        %4687 = vmatpush1.msra.mxu0 0.0
        %4688 = vmatprep.subr.mxu0 0.0
        %4689 = vmatpush1.msra.mxu0 0.0
        %4690 = vmatprep.subr.mxu0 0.0
        %4691 = vmatpush1.msra.mxu0 0.0
        %4692 = vmatprep.subr.mxu0 0.0
        %4693 = vmatpush1.msra.mxu0 0.0
        %4694 = vmatprep.subr.mxu0 0.0
        %4695 = vmatpush1.msra.mxu0 0.0
        %4696 = vmatprep.subr.mxu0 0.0
        %4697 = vmatpush1.msra.mxu0 0.0
        %4698 = vmatprep.subr.mxu0 0.0
        %4699 = vmatpush1.msra.mxu0 0.0
        %4700 = vmatprep.subr.mxu0 0.0
        %4701 = vmatpush1.msra.mxu0 0.0
        %4702 = vmatprep.mubr.f32.mxu0 0.0
        %4703 = vmatmul.mubr.f32.gmra.mrb[0].mxu0 %v4636
        %v4704 = vpop.f32.mrb[0].mxu0
        %v4705 = vadd.f32 %v4480, %v4704
        %v4706 = vpop.f32.mrb[0].mxu0
        %4707 = vdwg.mxu0
        %4708 = vmax.xlane.f32.xlu0 %v4705
        %v4709 = vpop.xlane.xlu0 %4708
        %v4710 = vsub.f32 %v4705, %v4709
        %v4711 = vmul.f32 %v4710, 1.442695
        %v4712 = vpow.pop %v4711
        %4713 = vadd.xlane.f32.xlu0 %v4712
        %v4714 = vpop.xlane.xlu0 %4713
        %v4715 = vrcp.pop %v4714
        %v4716 = vmul.f32 %v4712, %v4715
        %4733 = vrot.lane.b32.xlu0 %v4459, 112
        %v4734 = vpop.permute.xlu0 %4733
        %4735 = vrot.lane.b32.xlu0 %v4460, 112
        %v4736 = vpop.permute.xlu0 %4735
        %4737 = vrot.lane.b32.xlu0 %v4461, 112
        %v4738 = vpop.permute.xlu0 %4737
        %4739 = vrot.lane.b32.xlu0 %v4462, 112
        %v4740 = vpop.permute.xlu0 %4739
        %4741 = vrot.lane.b32.xlu0 %v4463, 112
        %v4742 = vpop.permute.xlu0 %4741
        %4743 = vrot.lane.b32.xlu0 %v4464, 112
        %v4744 = vpop.permute.xlu0 %4743
        %4745 = vrot.lane.b32.xlu0 %v4465, 112
        %v4746 = vpop.permute.xlu0 %4745
        %4747 = vrot.lane.b32.xlu0 %v4466, 112
        %v4748 = vpop.permute.xlu0 %4747
        %4749 = vrot.lane.b32.xlu0 %v4467, 112
        %v4750 = vpop.permute.xlu0 %4749
        %4751 = vrot.lane.b32.xlu0 %v4468, 112
        %v4752 = vpop.permute.xlu0 %4751
        %4753 = vrot.lane.b32.xlu0 %v4469, 112
        %v4754 = vpop.permute.xlu0 %4753
        %4755 = vrot.lane.b32.xlu0 %v4470, 112
        %v4756 = vpop.permute.xlu0 %4755
        %4757 = vrot.lane.b32.xlu0 %v4471, 112
        %v4758 = vpop.permute.xlu0 %4757
        %4759 = vrot.lane.b32.xlu0 %v4472, 112
        %v4760 = vpop.permute.xlu0 %4759
        %4761 = vrot.lane.b32.xlu0 %v4473, 112
        %v4762 = vpop.permute.xlu0 %4761
        %4763 = vrot.lane.b32.xlu0 %v4474, 112
        %v4764 = vpop.permute.xlu0 %4763
        %4781 = vmatprep.subr.mxu0 0.0
        %4782 = vmatpush1.msra.mxu0 %v4734
        %4783 = vmatprep.subr.mxu0 0.0
        %4784 = vmatpush1.msra.mxu0 %v4736
        %4785 = vmatprep.subr.mxu0 0.0
        %4786 = vmatpush1.msra.mxu0 %v4738
        %4787 = vmatprep.subr.mxu0 0.0
        %4788 = vmatpush1.msra.mxu0 %v4740
        %4789 = vmatprep.subr.mxu0 0.0
        %4790 = vmatpush1.msra.mxu0 %v4742
        %4791 = vmatprep.subr.mxu0 0.0
        %4792 = vmatpush1.msra.mxu0 %v4744
        %4793 = vmatprep.subr.mxu0 0.0
        %4794 = vmatpush1.msra.mxu0 %v4746
        %4795 = vmatprep.subr.mxu0 0.0
        %4796 = vmatpush1.msra.mxu0 %v4748
        %4797 = vmatprep.subr.mxu0 0.0
        %4798 = vmatpush1.msra.mxu0 %v4750
        %4799 = vmatprep.subr.mxu0 0.0
        %4800 = vmatpush1.msra.mxu0 %v4752
        %4801 = vmatprep.subr.mxu0 0.0
        %4802 = vmatpush1.msra.mxu0 %v4754
        %4803 = vmatprep.subr.mxu0 0.0
        %4804 = vmatpush1.msra.mxu0 %v4756
        %4805 = vmatprep.subr.mxu0 0.0
        %4806 = vmatpush1.msra.mxu0 %v4758
        %4807 = vmatprep.subr.mxu0 0.0
        %4808 = vmatpush1.msra.mxu0 %v4760
        %4809 = vmatprep.subr.mxu0 0.0
        %4810 = vmatpush1.msra.mxu0 %v4762
        %4811 = vmatprep.subr.mxu0 0.0
        %4812 = vmatpush1.msra.mxu0 %v4764
        %4813 = vmatprep.subr.mxu0 0.0
        %4814 = vmatpush1.msra.mxu0 0.0
        %4815 = vmatprep.subr.mxu0 0.0
        %4816 = vmatpush1.msra.mxu0 0.0
        %4817 = vmatprep.subr.mxu0 0.0
        %4818 = vmatpush1.msra.mxu0 0.0
        %4819 = vmatprep.subr.mxu0 0.0
        %4820 = vmatpush1.msra.mxu0 0.0
        %4821 = vmatprep.subr.mxu0 0.0
        %4822 = vmatpush1.msra.mxu0 0.0
        %4823 = vmatprep.subr.mxu0 0.0
        %4824 = vmatpush1.msra.mxu0 0.0
        %4825 = vmatprep.subr.mxu0 0.0
        %4826 = vmatpush1.msra.mxu0 0.0
        %4827 = vmatprep.subr.mxu0 0.0
        %4828 = vmatpush1.msra.mxu0 0.0
        %4829 = vmatprep.subr.mxu0 0.0
        %4830 = vmatpush1.msra.mxu0 0.0
        %4831 = vmatprep.subr.mxu0 0.0
        %4832 = vmatpush1.msra.mxu0 0.0
        %4833 = vmatprep.subr.mxu0 0.0
        %4834 = vmatpush1.msra.mxu0 0.0
        %4835 = vmatprep.subr.mxu0 0.0
        %4836 = vmatpush1.msra.mxu0 0.0
        %4837 = vmatprep.subr.mxu0 0.0
        %4838 = vmatpush1.msra.mxu0 0.0
        %4839 = vmatprep.subr.mxu0 0.0
        %4840 = vmatpush1.msra.mxu0 0.0
        %4841 = vmatprep.subr.mxu0 0.0
        %4842 = vmatpush1.msra.mxu0 0.0
        %4843 = vmatprep.subr.mxu0 0.0
        %4844 = vmatpush1.msra.mxu0 0.0
        %4845 = vmatprep.mubr.f32.mxu0 0.0
        %4846 = vmatmul.mubr.f32.gmra.mrb[0].mxu0 %v4716
        %v4847 = vpop.f32.mrb[0].mxu0
        %v4848 = vadd.f32 0.0, %v4847
        %v4849 = vpop.f32.mrb[0].mxu0
        %4850 = vdwg.mxu0
        %4851 = vrot.lane.b32.xlu0 %v4440, 96
        %v4852 = vpop.permute.xlu0 %4851
        %v4853 = vsel %vm799, %v4852, 0
        %4855 = vmatprep.subr.mxu0 0.0
        %4856 = vmatpush1.msra.mxu0 %v4447
        %4857 = vmatprep.subr.mxu0 0.0
        %4858 = vmatpush1.msra.mxu0 %v4448
        %4859 = vmatprep.subr.mxu0 0.0
        %4860 = vmatpush1.msra.mxu0 0.0
        %4861 = vmatprep.subr.mxu0 0.0
        %4862 = vmatpush1.msra.mxu0 0.0
        %4863 = vmatprep.subr.mxu0 0.0
        %4864 = vmatpush1.msra.mxu0 0.0
        %4865 = vmatprep.subr.mxu0 0.0
        %4866 = vmatpush1.msra.mxu0 0.0
        %4867 = vmatprep.subr.mxu0 0.0
        %4868 = vmatpush1.msra.mxu0 0.0
        %4869 = vmatprep.subr.mxu0 0.0
        %4870 = vmatpush1.msra.mxu0 0.0
        %4871 = vmatprep.subr.mxu0 0.0
        %4872 = vmatpush1.msra.mxu0 0.0
        %4873 = vmatprep.subr.mxu0 0.0
        %4874 = vmatpush1.msra.mxu0 0.0
        %4875 = vmatprep.subr.mxu0 0.0
        %4876 = vmatpush1.msra.mxu0 0.0
        %4877 = vmatprep.subr.mxu0 0.0
        %4878 = vmatpush1.msra.mxu0 0.0
        %4879 = vmatprep.subr.mxu0 0.0
        %4880 = vmatpush1.msra.mxu0 0.0
        %4881 = vmatprep.subr.mxu0 0.0
        %4882 = vmatpush1.msra.mxu0 0.0
        %4883 = vmatprep.subr.mxu0 0.0
        %4884 = vmatpush1.msra.mxu0 0.0
        %4885 = vmatprep.subr.mxu0 0.0
        %4886 = vmatpush1.msra.mxu0 0.0
        %4887 = vmatprep.subr.mxu0 0.0
        %4888 = vmatpush1.msra.mxu0 0.0
        %4889 = vmatprep.subr.mxu0 0.0
        %4890 = vmatpush1.msra.mxu0 0.0
        %4891 = vmatprep.subr.mxu0 0.0
        %4892 = vmatpush1.msra.mxu0 0.0
        %4893 = vmatprep.subr.mxu0 0.0
        %4894 = vmatpush1.msra.mxu0 0.0
        %4895 = vmatprep.subr.mxu0 0.0
        %4896 = vmatpush1.msra.mxu0 0.0
        %4897 = vmatprep.subr.mxu0 0.0
        %4898 = vmatpush1.msra.mxu0 0.0
        %4899 = vmatprep.subr.mxu0 0.0
        %4900 = vmatpush1.msra.mxu0 0.0
        %4901 = vmatprep.subr.mxu0 0.0
        %4902 = vmatpush1.msra.mxu0 0.0
        %4903 = vmatprep.subr.mxu0 0.0
        %4904 = vmatpush1.msra.mxu0 0.0
        %4905 = vmatprep.subr.mxu0 0.0
        %4906 = vmatpush1.msra.mxu0 0.0
        %4907 = vmatprep.subr.mxu0 0.0
        %4908 = vmatpush1.msra.mxu0 0.0
        %4909 = vmatprep.subr.mxu0 0.0
        %4910 = vmatpush1.msra.mxu0 0.0
        %4911 = vmatprep.subr.mxu0 0.0
        %4912 = vmatpush1.msra.mxu0 0.0
        %4913 = vmatprep.subr.mxu0 0.0
        %4914 = vmatpush1.msra.mxu0 0.0
        %4915 = vmatprep.subr.mxu0 0.0
        %4916 = vmatpush1.msra.mxu0 0.0
        %4917 = vmatprep.subr.mxu0 0.0
        %4918 = vmatpush1.msra.mxu0 0.0
        %4919 = vmatprep.mubr.f32.mxu0 0.0
        %4920 = vmatmul.mubr.f32.gmra.mrb[0].mxu0 %v4853
        %v4921 = vpop.f32.mrb[0].mxu0
        %v4922 = vadd.f32 %v4480, %v4921
        %v4923 = vpop.f32.mrb[0].mxu0
        %4924 = vdwg.mxu0
        %4925 = vmax.xlane.f32.xlu0 %v4922
        %v4926 = vpop.xlane.xlu0 %4925
        %v4927 = vsub.f32 %v4922, %v4926
        %v4928 = vmul.f32 %v4927, 1.442695
        %v4929 = vpow.pop %v4928
        %4930 = vadd.xlane.f32.xlu0 %v4929
        %v4931 = vpop.xlane.xlu0 %4930
        %v4932 = vrcp.pop %v4931
        %v4933 = vmul.f32 %v4929, %v4932
        %4934 = vrot.lane.b32.xlu0 %v4459, 96
        %v4935 = vpop.permute.xlu0 %4934
        %4936 = vrot.lane.b32.xlu0 %v4460, 96
        %v4937 = vpop.permute.xlu0 %4936
        %4938 = vrot.lane.b32.xlu0 %v4461, 96
        %v4939 = vpop.permute.xlu0 %4938
        %4940 = vrot.lane.b32.xlu0 %v4462, 96
        %v4941 = vpop.permute.xlu0 %4940
        %4942 = vrot.lane.b32.xlu0 %v4463, 96
        %v4943 = vpop.permute.xlu0 %4942
        %4944 = vrot.lane.b32.xlu0 %v4464, 96
        %v4945 = vpop.permute.xlu0 %4944
        %4946 = vrot.lane.b32.xlu0 %v4465, 96
        %v4947 = vpop.permute.xlu0 %4946
        %4948 = vrot.lane.b32.xlu0 %v4466, 96
        %v4949 = vpop.permute.xlu0 %4948
        %4950 = vrot.lane.b32.xlu0 %v4467, 96
        %v4951 = vpop.permute.xlu0 %4950
        %4952 = vrot.lane.b32.xlu0 %v4468, 96
        %v4953 = vpop.permute.xlu0 %4952
        %4954 = vrot.lane.b32.xlu0 %v4469, 96
        %v4955 = vpop.permute.xlu0 %4954
        %4956 = vrot.lane.b32.xlu0 %v4470, 96
        %v4957 = vpop.permute.xlu0 %4956
        %4958 = vrot.lane.b32.xlu0 %v4471, 96
        %v4959 = vpop.permute.xlu0 %4958
        %4960 = vrot.lane.b32.xlu0 %v4472, 96
        %v4961 = vpop.permute.xlu0 %4960
        %4962 = vrot.lane.b32.xlu0 %v4473, 96
        %v4963 = vpop.permute.xlu0 %4962
        %4964 = vrot.lane.b32.xlu0 %v4474, 96
        %v4965 = vpop.permute.xlu0 %4964
        %4982 = vmatprep.subr.mxu0 0.0
        %4983 = vmatpush1.msra.mxu0 %v4935
        %4984 = vmatprep.subr.mxu0 0.0
        %4985 = vmatpush1.msra.mxu0 %v4937
        %4986 = vmatprep.subr.mxu0 0.0
        %4987 = vmatpush1.msra.mxu0 %v4939
        %4988 = vmatprep.subr.mxu0 0.0
        %4989 = vmatpush1.msra.mxu0 %v4941
        %4990 = vmatprep.subr.mxu0 0.0
        %4991 = vmatpush1.msra.mxu0 %v4943
        %4992 = vmatprep.subr.mxu0 0.0
        %4993 = vmatpush1.msra.mxu0 %v4945
        %4994 = vmatprep.subr.mxu0 0.0
        %4995 = vmatpush1.msra.mxu0 %v4947
        %4996 = vmatprep.subr.mxu0 0.0
        %4997 = vmatpush1.msra.mxu0 %v4949
        %4998 = vmatprep.subr.mxu0 0.0
        %4999 = vmatpush1.msra.mxu0 %v4951
        %5000 = vmatprep.subr.mxu0 0.0
        %5001 = vmatpush1.msra.mxu0 %v4953
        %5002 = vmatprep.subr.mxu0 0.0
        %5003 = vmatpush1.msra.mxu0 %v4955
        %5004 = vmatprep.subr.mxu0 0.0
        %5005 = vmatpush1.msra.mxu0 %v4957
        %5006 = vmatprep.subr.mxu0 0.0
        %5007 = vmatpush1.msra.mxu0 %v4959
        %5008 = vmatprep.subr.mxu0 0.0
        %5009 = vmatpush1.msra.mxu0 %v4961
        %5010 = vmatprep.subr.mxu0 0.0
        %5011 = vmatpush1.msra.mxu0 %v4963
        %5012 = vmatprep.subr.mxu0 0.0
        %5013 = vmatpush1.msra.mxu0 %v4965
        %5014 = vmatprep.subr.mxu0 0.0
        %5015 = vmatpush1.msra.mxu0 0.0
        %5016 = vmatprep.subr.mxu0 0.0
        %5017 = vmatpush1.msra.mxu0 0.0
        %5018 = vmatprep.subr.mxu0 0.0
        %5019 = vmatpush1.msra.mxu0 0.0
        %5020 = vmatprep.subr.mxu0 0.0
        %5021 = vmatpush1.msra.mxu0 0.0
        %5022 = vmatprep.subr.mxu0 0.0
        %5023 = vmatpush1.msra.mxu0 0.0
        %5024 = vmatprep.subr.mxu0 0.0
        %5025 = vmatpush1.msra.mxu0 0.0
        %5026 = vmatprep.subr.mxu0 0.0
        %5027 = vmatpush1.msra.mxu0 0.0
        %5028 = vmatprep.subr.mxu0 0.0
        %5029 = vmatpush1.msra.mxu0 0.0
        %5030 = vmatprep.subr.mxu0 0.0
        %5031 = vmatpush1.msra.mxu0 0.0
        %5032 = vmatprep.subr.mxu0 0.0
        %5033 = vmatpush1.msra.mxu0 0.0
        %5034 = vmatprep.subr.mxu0 0.0
        %5035 = vmatpush1.msra.mxu0 0.0
        %5036 = vmatprep.subr.mxu0 0.0
        %5037 = vmatpush1.msra.mxu0 0.0
        %5038 = vmatprep.subr.mxu0 0.0
        %5039 = vmatpush1.msra.mxu0 0.0
        %5040 = vmatprep.subr.mxu0 0.0
        %5041 = vmatpush1.msra.mxu0 0.0
        %5042 = vmatprep.subr.mxu0 0.0
        %5043 = vmatpush1.msra.mxu0 0.0
        %5044 = vmatprep.subr.mxu0 0.0
        %5045 = vmatpush1.msra.mxu0 0.0
        %5046 = vmatprep.mubr.f32.mxu0 0.0
        %5047 = vmatmul.mubr.f32.gmra.mrb[0].mxu0 %v4933
        %v5048 = vpop.f32.mrb[0].mxu0
        %v5049 = vadd.f32 0.0, %v5048
        %v5050 = vpop.f32.mrb[0].mxu0
        %5051 = vdwg.mxu0
        %5052 = vrot.lane.b32.xlu0 %v4440, 80
        %v5053 = vpop.permute.xlu0 %5052
        %v5054 = vsel %vm799, %v5053, 0
        %5056 = vmatprep.subr.mxu0 0.0
        %5057 = vmatpush1.msra.mxu0 %v4449
        %5058 = vmatprep.subr.mxu0 0.0
        %5059 = vmatpush1.msra.mxu0 %v4450
        %5060 = vmatprep.subr.mxu0 0.0
        %5061 = vmatpush1.msra.mxu0 0.0
        %5062 = vmatprep.subr.mxu0 0.0
        %5063 = vmatpush1.msra.mxu0 0.0
        %5064 = vmatprep.subr.mxu0 0.0
        %5065 = vmatpush1.msra.mxu0 0.0
        %5066 = vmatprep.subr.mxu0 0.0
        %5067 = vmatpush1.msra.mxu0 0.0
        %5068 = vmatprep.subr.mxu0 0.0
        %5069 = vmatpush1.msra.mxu0 0.0
        %5070 = vmatprep.subr.mxu0 0.0
        %5071 = vmatpush1.msra.mxu0 0.0
        %5072 = vmatprep.subr.mxu0 0.0
        %5073 = vmatpush1.msra.mxu0 0.0
        %5074 = vmatprep.subr.mxu0 0.0
        %5075 = vmatpush1.msra.mxu0 0.0
        %5076 = vmatprep.subr.mxu0 0.0
        %5077 = vmatpush1.msra.mxu0 0.0
        %5078 = vmatprep.subr.mxu0 0.0
        %5079 = vmatpush1.msra.mxu0 0.0
        %5080 = vmatprep.subr.mxu0 0.0
        %5081 = vmatpush1.msra.mxu0 0.0
        %5082 = vmatprep.subr.mxu0 0.0
        %5083 = vmatpush1.msra.mxu0 0.0
        %5084 = vmatprep.subr.mxu0 0.0
        %5085 = vmatpush1.msra.mxu0 0.0
        %5086 = vmatprep.subr.mxu0 0.0
        %5087 = vmatpush1.msra.mxu0 0.0
        %5088 = vmatprep.subr.mxu0 0.0
        %5089 = vmatpush1.msra.mxu0 0.0
        %5090 = vmatprep.subr.mxu0 0.0
        %5091 = vmatpush1.msra.mxu0 0.0
        %5092 = vmatprep.subr.mxu0 0.0
        %5093 = vmatpush1.msra.mxu0 0.0
        %5094 = vmatprep.subr.mxu0 0.0
        %5095 = vmatpush1.msra.mxu0 0.0
        %5096 = vmatprep.subr.mxu0 0.0
        %5097 = vmatpush1.msra.mxu0 0.0
        %5098 = vmatprep.subr.mxu0 0.0
        %5099 = vmatpush1.msra.mxu0 0.0
        %5100 = vmatprep.subr.mxu0 0.0
        %5101 = vmatpush1.msra.mxu0 0.0
        %5102 = vmatprep.subr.mxu0 0.0
        %5103 = vmatpush1.msra.mxu0 0.0
        %5104 = vmatprep.subr.mxu0 0.0
        %5105 = vmatpush1.msra.mxu0 0.0
        %5106 = vmatprep.subr.mxu0 0.0
        %5107 = vmatpush1.msra.mxu0 0.0
        %5108 = vmatprep.subr.mxu0 0.0
        %5109 = vmatpush1.msra.mxu0 0.0
        %5110 = vmatprep.subr.mxu0 0.0
        %5111 = vmatpush1.msra.mxu0 0.0
        %5112 = vmatprep.subr.mxu0 0.0
        %5113 = vmatpush1.msra.mxu0 0.0
        %5114 = vmatprep.subr.mxu0 0.0
        %5115 = vmatpush1.msra.mxu0 0.0
        %5116 = vmatprep.subr.mxu0 0.0
        %5117 = vmatpush1.msra.mxu0 0.0
        %5118 = vmatprep.subr.mxu0 0.0
        %5119 = vmatpush1.msra.mxu0 0.0
        %5120 = vmatprep.mubr.f32.mxu0 0.0
        %5121 = vmatmul.mubr.f32.gmra.mrb[0].mxu0 %v5054
        %v5122 = vpop.f32.mrb[0].mxu0
        %v5123 = vadd.f32 %v4480, %v5122
        %v5124 = vpop.f32.mrb[0].mxu0
        %5125 = vdwg.mxu0
        %5126 = vmax.xlane.f32.xlu0 %v5123
        %v5127 = vpop.xlane.xlu0 %5126
        %v5128 = vsub.f32 %v5123, %v5127
        %v5129 = vmul.f32 %v5128, 1.442695
        %v5130 = vpow.pop %v5129
        %5131 = vadd.xlane.f32.xlu0 %v5130
        %v5132 = vpop.xlane.xlu0 %5131
        %v5133 = vrcp.pop %v5132
        %v5134 = vmul.f32 %v5130, %v5133
        %5135 = vrot.lane.b32.xlu0 %v4459, 80
        %v5136 = vpop.permute.xlu0 %5135
        %5137 = vrot.lane.b32.xlu0 %v4460, 80
        %v5138 = vpop.permute.xlu0 %5137
        %5139 = vrot.lane.b32.xlu0 %v4461, 80
        %v5140 = vpop.permute.xlu0 %5139
        %5141 = vrot.lane.b32.xlu0 %v4462, 80
        %v5142 = vpop.permute.xlu0 %5141
        %5143 = vrot.lane.b32.xlu0 %v4463, 80
        %v5144 = vpop.permute.xlu0 %5143
        %5145 = vrot.lane.b32.xlu0 %v4464, 80
        %v5146 = vpop.permute.xlu0 %5145
        %5147 = vrot.lane.b32.xlu0 %v4465, 80
        %v5148 = vpop.permute.xlu0 %5147
        %5149 = vrot.lane.b32.xlu0 %v4466, 80
        %v5150 = vpop.permute.xlu0 %5149
        %5151 = vrot.lane.b32.xlu0 %v4467, 80
        %v5152 = vpop.permute.xlu0 %5151
        %5153 = vrot.lane.b32.xlu0 %v4468, 80
        %v5154 = vpop.permute.xlu0 %5153
        %5155 = vrot.lane.b32.xlu0 %v4469, 80
        %v5156 = vpop.permute.xlu0 %5155
        %5157 = vrot.lane.b32.xlu0 %v4470, 80
        %v5158 = vpop.permute.xlu0 %5157
        %5159 = vrot.lane.b32.xlu0 %v4471, 80
        %v5160 = vpop.permute.xlu0 %5159
        %5161 = vrot.lane.b32.xlu0 %v4472, 80
        %v5162 = vpop.permute.xlu0 %5161
        %5163 = vrot.lane.b32.xlu0 %v4473, 80
        %v5164 = vpop.permute.xlu0 %5163
        %5165 = vrot.lane.b32.xlu0 %v4474, 80
        %v5166 = vpop.permute.xlu0 %5165
        %5183 = vmatprep.subr.mxu0 0.0
        %5184 = vmatpush1.msra.mxu0 %v5136
        %5185 = vmatprep.subr.mxu0 0.0
        %5186 = vmatpush1.msra.mxu0 %v5138
        %5187 = vmatprep.subr.mxu0 0.0
        %5188 = vmatpush1.msra.mxu0 %v5140
        %5189 = vmatprep.subr.mxu0 0.0
        %5190 = vmatpush1.msra.mxu0 %v5142
        %5191 = vmatprep.subr.mxu0 0.0
        %5192 = vmatpush1.msra.mxu0 %v5144
        %5193 = vmatprep.subr.mxu0 0.0
        %5194 = vmatpush1.msra.mxu0 %v5146
        %5195 = vmatprep.subr.mxu0 0.0
        %5196 = vmatpush1.msra.mxu0 %v5148
        %5197 = vmatprep.subr.mxu0 0.0
        %5198 = vmatpush1.msra.mxu0 %v5150
        %5199 = vmatprep.subr.mxu0 0.0
        %5200 = vmatpush1.msra.mxu0 %v5152
        %5201 = vmatprep.subr.mxu0 0.0
        %5202 = vmatpush1.msra.mxu0 %v5154
        %5203 = vmatprep.subr.mxu0 0.0
        %5204 = vmatpush1.msra.mxu0 %v5156
        %5205 = vmatprep.subr.mxu0 0.0
        %5206 = vmatpush1.msra.mxu0 %v5158
        %5207 = vmatprep.subr.mxu0 0.0
        %5208 = vmatpush1.msra.mxu0 %v5160
        %5209 = vmatprep.subr.mxu0 0.0
        %5210 = vmatpush1.msra.mxu0 %v5162
        %5211 = vmatprep.subr.mxu0 0.0
        %5212 = vmatpush1.msra.mxu0 %v5164
        %5213 = vmatprep.subr.mxu0 0.0
        %5214 = vmatpush1.msra.mxu0 %v5166
        %5215 = vmatprep.subr.mxu0 0.0
        %5216 = vmatpush1.msra.mxu0 0.0
        %5217 = vmatprep.subr.mxu0 0.0
        %5218 = vmatpush1.msra.mxu0 0.0
        %5219 = vmatprep.subr.mxu0 0.0
        %5220 = vmatpush1.msra.mxu0 0.0
        %5221 = vmatprep.subr.mxu0 0.0
        %5222 = vmatpush1.msra.mxu0 0.0
        %5223 = vmatprep.subr.mxu0 0.0
        %5224 = vmatpush1.msra.mxu0 0.0
        %5225 = vmatprep.subr.mxu0 0.0
        %5226 = vmatpush1.msra.mxu0 0.0
        %5227 = vmatprep.subr.mxu0 0.0
        %5228 = vmatpush1.msra.mxu0 0.0
        %5229 = vmatprep.subr.mxu0 0.0
        %5230 = vmatpush1.msra.mxu0 0.0
        %5231 = vmatprep.subr.mxu0 0.0
        %5232 = vmatpush1.msra.mxu0 0.0
        %5233 = vmatprep.subr.mxu0 0.0
        %5234 = vmatpush1.msra.mxu0 0.0
        %5235 = vmatprep.subr.mxu0 0.0
        %5236 = vmatpush1.msra.mxu0 0.0
        %5237 = vmatprep.subr.mxu0 0.0
        %5238 = vmatpush1.msra.mxu0 0.0
        %5239 = vmatprep.subr.mxu0 0.0
        %5240 = vmatpush1.msra.mxu0 0.0
        %5241 = vmatprep.subr.mxu0 0.0
        %5242 = vmatpush1.msra.mxu0 0.0
        %5243 = vmatprep.subr.mxu0 0.0
        %5244 = vmatpush1.msra.mxu0 0.0
        %5245 = vmatprep.subr.mxu0 0.0
        %5246 = vmatpush1.msra.mxu0 0.0
        %5247 = vmatprep.mubr.f32.mxu0 0.0
        %5248 = vmatmul.mubr.f32.gmra.mrb[0].mxu0 %v5134
        %v5249 = vpop.f32.mrb[0].mxu0
        %v5250 = vadd.f32 0.0, %v5249
        %v5251 = vpop.f32.mrb[0].mxu0
        %5252 = vdwg.mxu0
        %5253 = vrot.lane.b32.xlu0 %v4440, 64
        %v5254 = vpop.permute.xlu0 %5253
        %v5255 = vsel %vm799, %v5254, 0
        %5257 = vmatprep.subr.mxu0 0.0
        %5258 = vmatpush1.msra.mxu0 %v4451
        %5259 = vmatprep.subr.mxu0 0.0
        %5260 = vmatpush1.msra.mxu0 %v4452
        %5261 = vmatprep.subr.mxu0 0.0
        %5262 = vmatpush1.msra.mxu0 0.0
        %5263 = vmatprep.subr.mxu0 0.0
        %5264 = vmatpush1.msra.mxu0 0.0
        %5265 = vmatprep.subr.mxu0 0.0
        %5266 = vmatpush1.msra.mxu0 0.0
        %5267 = vmatprep.subr.mxu0 0.0
        %5268 = vmatpush1.msra.mxu0 0.0
        %5269 = vmatprep.subr.mxu0 0.0
        %5270 = vmatpush1.msra.mxu0 0.0
        %5271 = vmatprep.subr.mxu0 0.0
        %5272 = vmatpush1.msra.mxu0 0.0
        %5273 = vmatprep.subr.mxu0 0.0
        %5274 = vmatpush1.msra.mxu0 0.0
        %5275 = vmatprep.subr.mxu0 0.0
        %5276 = vmatpush1.msra.mxu0 0.0
        %5277 = vmatprep.subr.mxu0 0.0
        %5278 = vmatpush1.msra.mxu0 0.0
        %5279 = vmatprep.subr.mxu0 0.0
        %5280 = vmatpush1.msra.mxu0 0.0
        %5281 = vmatprep.subr.mxu0 0.0
        %5282 = vmatpush1.msra.mxu0 0.0
        %5283 = vmatprep.subr.mxu0 0.0
        %5284 = vmatpush1.msra.mxu0 0.0
        %5285 = vmatprep.subr.mxu0 0.0
        %5286 = vmatpush1.msra.mxu0 0.0
        %5287 = vmatprep.subr.mxu0 0.0
        %5288 = vmatpush1.msra.mxu0 0.0
        %5289 = vmatprep.subr.mxu0 0.0
        %5290 = vmatpush1.msra.mxu0 0.0
        %5291 = vmatprep.subr.mxu0 0.0
        %5292 = vmatpush1.msra.mxu0 0.0
        %5293 = vmatprep.subr.mxu0 0.0
        %5294 = vmatpush1.msra.mxu0 0.0
        %5295 = vmatprep.subr.mxu0 0.0
        %5296 = vmatpush1.msra.mxu0 0.0
        %5297 = vmatprep.subr.mxu0 0.0
        %5298 = vmatpush1.msra.mxu0 0.0
        %5299 = vmatprep.subr.mxu0 0.0
        %5300 = vmatpush1.msra.mxu0 0.0
        %5301 = vmatprep.subr.mxu0 0.0
        %5302 = vmatpush1.msra.mxu0 0.0
        %5303 = vmatprep.subr.mxu0 0.0
        %5304 = vmatpush1.msra.mxu0 0.0
        %5305 = vmatprep.subr.mxu0 0.0
        %5306 = vmatpush1.msra.mxu0 0.0
        %5307 = vmatprep.subr.mxu0 0.0
        %5308 = vmatpush1.msra.mxu0 0.0
        %5309 = vmatprep.subr.mxu0 0.0
        %5310 = vmatpush1.msra.mxu0 0.0
        %5311 = vmatprep.subr.mxu0 0.0
        %5312 = vmatpush1.msra.mxu0 0.0
        %5313 = vmatprep.subr.mxu0 0.0
        %5314 = vmatpush1.msra.mxu0 0.0
        %5315 = vmatprep.subr.mxu0 0.0
        %5316 = vmatpush1.msra.mxu0 0.0
        %5317 = vmatprep.subr.mxu0 0.0
        %5318 = vmatpush1.msra.mxu0 0.0
        %5319 = vmatprep.subr.mxu0 0.0
        %5320 = vmatpush1.msra.mxu0 0.0
        %5321 = vmatprep.mubr.f32.mxu0 0.0
        %5322 = vmatmul.mubr.f32.gmra.mrb[0].mxu0 %v5255
        %v5323 = vpop.f32.mrb[0].mxu0
        %v5324 = vadd.f32 %v4480, %v5323
        %v5325 = vpop.f32.mrb[0].mxu0
        %5326 = vdwg.mxu0
        %5327 = vmax.xlane.f32.xlu0 %v5324
        %v5328 = vpop.xlane.xlu0 %5327
        %v5329 = vsub.f32 %v5324, %v5328
        %v5330 = vmul.f32 %v5329, 1.442695
        %v5331 = vpow.pop %v5330
        %5332 = vadd.xlane.f32.xlu0 %v5331
        %v5333 = vpop.xlane.xlu0 %5332
        %v5334 = vrcp.pop %v5333
        %v5335 = vmul.f32 %v5331, %v5334
        %5336 = vrot.lane.b32.xlu0 %v4459, 64
        %v5337 = vpop.permute.xlu0 %5336
        %5338 = vrot.lane.b32.xlu0 %v4460, 64
        %v5339 = vpop.permute.xlu0 %5338
        %5340 = vrot.lane.b32.xlu0 %v4461, 64
        %v5341 = vpop.permute.xlu0 %5340
        %5342 = vrot.lane.b32.xlu0 %v4462, 64
        %v5343 = vpop.permute.xlu0 %5342
        %5344 = vrot.lane.b32.xlu0 %v4463, 64
        %v5345 = vpop.permute.xlu0 %5344
        %5346 = vrot.lane.b32.xlu0 %v4464, 64
        %v5347 = vpop.permute.xlu0 %5346
        %5348 = vrot.lane.b32.xlu0 %v4465, 64
        %v5349 = vpop.permute.xlu0 %5348
        %5350 = vrot.lane.b32.xlu0 %v4466, 64
        %v5351 = vpop.permute.xlu0 %5350
        %5352 = vrot.lane.b32.xlu0 %v4467, 64
        %v5353 = vpop.permute.xlu0 %5352
        %5354 = vrot.lane.b32.xlu0 %v4468, 64
        %v5355 = vpop.permute.xlu0 %5354
        %5356 = vrot.lane.b32.xlu0 %v4469, 64
        %v5357 = vpop.permute.xlu0 %5356
        %5358 = vrot.lane.b32.xlu0 %v4470, 64
        %v5359 = vpop.permute.xlu0 %5358
        %5360 = vrot.lane.b32.xlu0 %v4471, 64
        %v5361 = vpop.permute.xlu0 %5360
        %5362 = vrot.lane.b32.xlu0 %v4472, 64
        %v5363 = vpop.permute.xlu0 %5362
        %5364 = vrot.lane.b32.xlu0 %v4473, 64
        %v5365 = vpop.permute.xlu0 %5364
        %5366 = vrot.lane.b32.xlu0 %v4474, 64
        %v5367 = vpop.permute.xlu0 %5366
        %5384 = vmatprep.subr.mxu0 0.0
        %5385 = vmatpush1.msra.mxu0 %v5337
        %5386 = vmatprep.subr.mxu0 0.0
        %5387 = vmatpush1.msra.mxu0 %v5339
        %5388 = vmatprep.subr.mxu0 0.0
        %5389 = vmatpush1.msra.mxu0 %v5341
        %5390 = vmatprep.subr.mxu0 0.0
        %5391 = vmatpush1.msra.mxu0 %v5343
        %5392 = vmatprep.subr.mxu0 0.0
        %5393 = vmatpush1.msra.mxu0 %v5345
        %5394 = vmatprep.subr.mxu0 0.0
        %5395 = vmatpush1.msra.mxu0 %v5347
        %5396 = vmatprep.subr.mxu0 0.0
        %5397 = vmatpush1.msra.mxu0 %v5349
        %5398 = vmatprep.subr.mxu0 0.0
        %5399 = vmatpush1.msra.mxu0 %v5351
        %5400 = vmatprep.subr.mxu0 0.0
        %5401 = vmatpush1.msra.mxu0 %v5353
        %5402 = vmatprep.subr.mxu0 0.0
        %5403 = vmatpush1.msra.mxu0 %v5355
        %5404 = vmatprep.subr.mxu0 0.0
        %5405 = vmatpush1.msra.mxu0 %v5357
        %5406 = vmatprep.subr.mxu0 0.0
        %5407 = vmatpush1.msra.mxu0 %v5359
        %5408 = vmatprep.subr.mxu0 0.0
        %5409 = vmatpush1.msra.mxu0 %v5361
        %5410 = vmatprep.subr.mxu0 0.0
        %5411 = vmatpush1.msra.mxu0 %v5363
        %5412 = vmatprep.subr.mxu0 0.0
        %5413 = vmatpush1.msra.mxu0 %v5365
        %5414 = vmatprep.subr.mxu0 0.0
        %5415 = vmatpush1.msra.mxu0 %v5367
        %5416 = vmatprep.subr.mxu0 0.0
        %5417 = vmatpush1.msra.mxu0 0.0
        %5418 = vmatprep.subr.mxu0 0.0
        %5419 = vmatpush1.msra.mxu0 0.0
        %5420 = vmatprep.subr.mxu0 0.0
        %5421 = vmatpush1.msra.mxu0 0.0
        %5422 = vmatprep.subr.mxu0 0.0
        %5423 = vmatpush1.msra.mxu0 0.0
        %5424 = vmatprep.subr.mxu0 0.0
        %5425 = vmatpush1.msra.mxu0 0.0
        %5426 = vmatprep.subr.mxu0 0.0
        %5427 = vmatpush1.msra.mxu0 0.0
        %5428 = vmatprep.subr.mxu0 0.0
        %5429 = vmatpush1.msra.mxu0 0.0
        %5430 = vmatprep.subr.mxu0 0.0
        %5431 = vmatpush1.msra.mxu0 0.0
        %5432 = vmatprep.subr.mxu0 0.0
        %5433 = vmatpush1.msra.mxu0 0.0
        %5434 = vmatprep.subr.mxu0 0.0
        %5435 = vmatpush1.msra.mxu0 0.0
        %5436 = vmatprep.subr.mxu0 0.0
        %5437 = vmatpush1.msra.mxu0 0.0
        %5438 = vmatprep.subr.mxu0 0.0
        %5439 = vmatpush1.msra.mxu0 0.0
        %5440 = vmatprep.subr.mxu0 0.0
        %5441 = vmatpush1.msra.mxu0 0.0
        %5442 = vmatprep.subr.mxu0 0.0
        %5443 = vmatpush1.msra.mxu0 0.0
        %5444 = vmatprep.subr.mxu0 0.0
        %5445 = vmatpush1.msra.mxu0 0.0
        %5446 = vmatprep.subr.mxu0 0.0
        %5447 = vmatpush1.msra.mxu0 0.0
        %5448 = vmatprep.mubr.f32.mxu0 0.0
        %5449 = vmatmul.mubr.f32.gmra.mrb[0].mxu0 %v5335
        %v5450 = vpop.f32.mrb[0].mxu0
        %v5451 = vadd.f32 0.0, %v5450
        %v5452 = vpop.f32.mrb[0].mxu0
        %5453 = vdwg.mxu0
        %5454 = vrot.lane.b32.xlu0 %v4440, 48
        %v5455 = vpop.permute.xlu0 %5454
        %v5456 = vsel %vm799, %v5455, 0
        %5458 = vmatprep.subr.mxu0 0.0
        %5459 = vmatpush1.msra.mxu0 %v4453
        %5460 = vmatprep.subr.mxu0 0.0
        %5461 = vmatpush1.msra.mxu0 %v4454
        %5462 = vmatprep.subr.mxu0 0.0
        %5463 = vmatpush1.msra.mxu0 0.0
        %5464 = vmatprep.subr.mxu0 0.0
        %5465 = vmatpush1.msra.mxu0 0.0
        %5466 = vmatprep.subr.mxu0 0.0
        %5467 = vmatpush1.msra.mxu0 0.0
        %5468 = vmatprep.subr.mxu0 0.0
        %5469 = vmatpush1.msra.mxu0 0.0
        %5470 = vmatprep.subr.mxu0 0.0
        %5471 = vmatpush1.msra.mxu0 0.0
        %5472 = vmatprep.subr.mxu0 0.0
        %5473 = vmatpush1.msra.mxu0 0.0
        %5474 = vmatprep.subr.mxu0 0.0
        %5475 = vmatpush1.msra.mxu0 0.0
        %5476 = vmatprep.subr.mxu0 0.0
        %5477 = vmatpush1.msra.mxu0 0.0
        %5478 = vmatprep.subr.mxu0 0.0
        %5479 = vmatpush1.msra.mxu0 0.0
        %5480 = vmatprep.subr.mxu0 0.0
        %5481 = vmatpush1.msra.mxu0 0.0
        %5482 = vmatprep.subr.mxu0 0.0
        %5483 = vmatpush1.msra.mxu0 0.0
        %5484 = vmatprep.subr.mxu0 0.0
        %5485 = vmatpush1.msra.mxu0 0.0
        %5486 = vmatprep.subr.mxu0 0.0
        %5487 = vmatpush1.msra.mxu0 0.0
        %5488 = vmatprep.subr.mxu0 0.0
        %5489 = vmatpush1.msra.mxu0 0.0
        %5490 = vmatprep.subr.mxu0 0.0
        %5491 = vmatpush1.msra.mxu0 0.0
        %5492 = vmatprep.subr.mxu0 0.0
        %5493 = vmatpush1.msra.mxu0 0.0
        %5494 = vmatprep.subr.mxu0 0.0
        %5495 = vmatpush1.msra.mxu0 0.0
        %5496 = vmatprep.subr.mxu0 0.0
        %5497 = vmatpush1.msra.mxu0 0.0
        %5498 = vmatprep.subr.mxu0 0.0
        %5499 = vmatpush1.msra.mxu0 0.0
        %5500 = vmatprep.subr.mxu0 0.0
        %5501 = vmatpush1.msra.mxu0 0.0
        %5502 = vmatprep.subr.mxu0 0.0
        %5503 = vmatpush1.msra.mxu0 0.0
        %5504 = vmatprep.subr.mxu0 0.0
        %5505 = vmatpush1.msra.mxu0 0.0
        %5506 = vmatprep.subr.mxu0 0.0
        %5507 = vmatpush1.msra.mxu0 0.0
        %5508 = vmatprep.subr.mxu0 0.0
        %5509 = vmatpush1.msra.mxu0 0.0
        %5510 = vmatprep.subr.mxu0 0.0
        %5511 = vmatpush1.msra.mxu0 0.0
        %5512 = vmatprep.subr.mxu0 0.0
        %5513 = vmatpush1.msra.mxu0 0.0
        %5514 = vmatprep.subr.mxu0 0.0
        %5515 = vmatpush1.msra.mxu0 0.0
        %5516 = vmatprep.subr.mxu0 0.0
        %5517 = vmatpush1.msra.mxu0 0.0
        %5518 = vmatprep.subr.mxu0 0.0
        %5519 = vmatpush1.msra.mxu0 0.0
        %5520 = vmatprep.subr.mxu0 0.0
        %5521 = vmatpush1.msra.mxu0 0.0
        %5522 = vmatprep.mubr.f32.mxu0 0.0
        %5523 = vmatmul.mubr.f32.gmra.mrb[0].mxu0 %v5456
        %v5524 = vpop.f32.mrb[0].mxu0
        %v5525 = vadd.f32 %v4480, %v5524
        %v5526 = vpop.f32.mrb[0].mxu0
        %5527 = vdwg.mxu0
        %5528 = vmax.xlane.f32.xlu0 %v5525
        %v5529 = vpop.xlane.xlu0 %5528
        %v5530 = vsub.f32 %v5525, %v5529
        %v5531 = vmul.f32 %v5530, 1.442695
        %v5532 = vpow.pop %v5531
        %5533 = vadd.xlane.f32.xlu0 %v5532
        %v5534 = vpop.xlane.xlu0 %5533
        %v5535 = vrcp.pop %v5534
        %v5536 = vmul.f32 %v5532, %v5535
        %5537 = vrot.lane.b32.xlu0 %v4459, 48
        %v5538 = vpop.permute.xlu0 %5537
        %5539 = vrot.lane.b32.xlu0 %v4460, 48
        %v5540 = vpop.permute.xlu0 %5539
        %5541 = vrot.lane.b32.xlu0 %v4461, 48
        %v5542 = vpop.permute.xlu0 %5541
        %5543 = vrot.lane.b32.xlu0 %v4462, 48
        %v5544 = vpop.permute.xlu0 %5543
        %5545 = vrot.lane.b32.xlu0 %v4463, 48
        %v5546 = vpop.permute.xlu0 %5545
        %5547 = vrot.lane.b32.xlu0 %v4464, 48
        %v5548 = vpop.permute.xlu0 %5547
        %5549 = vrot.lane.b32.xlu0 %v4465, 48
        %v5550 = vpop.permute.xlu0 %5549
        %5551 = vrot.lane.b32.xlu0 %v4466, 48
        %v5552 = vpop.permute.xlu0 %5551
        %5553 = vrot.lane.b32.xlu0 %v4467, 48
        %v5554 = vpop.permute.xlu0 %5553
        %5555 = vrot.lane.b32.xlu0 %v4468, 48
        %v5556 = vpop.permute.xlu0 %5555
        %5557 = vrot.lane.b32.xlu0 %v4469, 48
        %v5558 = vpop.permute.xlu0 %5557
        %5559 = vrot.lane.b32.xlu0 %v4470, 48
        %v5560 = vpop.permute.xlu0 %5559
        %5561 = vrot.lane.b32.xlu0 %v4471, 48
        %v5562 = vpop.permute.xlu0 %5561
        %5563 = vrot.lane.b32.xlu0 %v4472, 48
        %v5564 = vpop.permute.xlu0 %5563
        %5565 = vrot.lane.b32.xlu0 %v4473, 48
        %v5566 = vpop.permute.xlu0 %5565
        %5567 = vrot.lane.b32.xlu0 %v4474, 48
        %v5568 = vpop.permute.xlu0 %5567
        %5585 = vmatprep.subr.mxu0 0.0
        %5586 = vmatpush1.msra.mxu0 %v5538
        %5587 = vmatprep.subr.mxu0 0.0
        %5588 = vmatpush1.msra.mxu0 %v5540
        %5589 = vmatprep.subr.mxu0 0.0
        %5590 = vmatpush1.msra.mxu0 %v5542
        %5591 = vmatprep.subr.mxu0 0.0
        %5592 = vmatpush1.msra.mxu0 %v5544
        %5593 = vmatprep.subr.mxu0 0.0
        %5594 = vmatpush1.msra.mxu0 %v5546
        %5595 = vmatprep.subr.mxu0 0.0
        %5596 = vmatpush1.msra.mxu0 %v5548
        %5597 = vmatprep.subr.mxu0 0.0
        %5598 = vmatpush1.msra.mxu0 %v5550
        %5599 = vmatprep.subr.mxu0 0.0
        %5600 = vmatpush1.msra.mxu0 %v5552
        %5601 = vmatprep.subr.mxu0 0.0
        %5602 = vmatpush1.msra.mxu0 %v5554
        %5603 = vmatprep.subr.mxu0 0.0
        %5604 = vmatpush1.msra.mxu0 %v5556
        %5605 = vmatprep.subr.mxu0 0.0
        %5606 = vmatpush1.msra.mxu0 %v5558
        %5607 = vmatprep.subr.mxu0 0.0
        %5608 = vmatpush1.msra.mxu0 %v5560
        %5609 = vmatprep.subr.mxu0 0.0
        %5610 = vmatpush1.msra.mxu0 %v5562
        %5611 = vmatprep.subr.mxu0 0.0
        %5612 = vmatpush1.msra.mxu0 %v5564
        %5613 = vmatprep.subr.mxu0 0.0
        %5614 = vmatpush1.msra.mxu0 %v5566
        %5615 = vmatprep.subr.mxu0 0.0
        %5616 = vmatpush1.msra.mxu0 %v5568
        %5617 = vmatprep.subr.mxu0 0.0
        %5618 = vmatpush1.msra.mxu0 0.0
        %5619 = vmatprep.subr.mxu0 0.0
        %5620 = vmatpush1.msra.mxu0 0.0
        %5621 = vmatprep.subr.mxu0 0.0
        %5622 = vmatpush1.msra.mxu0 0.0
        %5623 = vmatprep.subr.mxu0 0.0
        %5624 = vmatpush1.msra.mxu0 0.0
        %5625 = vmatprep.subr.mxu0 0.0
        %5626 = vmatpush1.msra.mxu0 0.0
        %5627 = vmatprep.subr.mxu0 0.0
        %5628 = vmatpush1.msra.mxu0 0.0
        %5629 = vmatprep.subr.mxu0 0.0
        %5630 = vmatpush1.msra.mxu0 0.0
        %5631 = vmatprep.subr.mxu0 0.0
        %5632 = vmatpush1.msra.mxu0 0.0
        %5633 = vmatprep.subr.mxu0 0.0
        %5634 = vmatpush1.msra.mxu0 0.0
        %5635 = vmatprep.subr.mxu0 0.0
        %5636 = vmatpush1.msra.mxu0 0.0
        %5637 = vmatprep.subr.mxu0 0.0
        %5638 = vmatpush1.msra.mxu0 0.0
        %5639 = vmatprep.subr.mxu0 0.0
        %5640 = vmatpush1.msra.mxu0 0.0
        %5641 = vmatprep.subr.mxu0 0.0
        %5642 = vmatpush1.msra.mxu0 0.0
        %5643 = vmatprep.subr.mxu0 0.0
        %5644 = vmatpush1.msra.mxu0 0.0
        %5645 = vmatprep.subr.mxu0 0.0
        %5646 = vmatpush1.msra.mxu0 0.0
        %5647 = vmatprep.subr.mxu0 0.0
        %5648 = vmatpush1.msra.mxu0 0.0
        %5649 = vmatprep.mubr.f32.mxu0 0.0
        %5650 = vmatmul.mubr.f32.gmra.mrb[0].mxu0 %v5536
        %v5651 = vpop.f32.mrb[0].mxu0
        %v5652 = vadd.f32 0.0, %v5651
        %v5653 = vpop.f32.mrb[0].mxu0
        %5654 = vdwg.mxu0
        %5655 = vrot.lane.b32.xlu0 %v4440, 32
        %v5656 = vpop.permute.xlu0 %5655
        %v5657 = vsel %vm799, %v5656, 0
        %5659 = vmatprep.subr.mxu0 0.0
        %5660 = vmatpush1.msra.mxu0 %v4455
        %5661 = vmatprep.subr.mxu0 0.0
        %5662 = vmatpush1.msra.mxu0 %v4456
        %5663 = vmatprep.subr.mxu0 0.0
        %5664 = vmatpush1.msra.mxu0 0.0
        %5665 = vmatprep.subr.mxu0 0.0
        %5666 = vmatpush1.msra.mxu0 0.0
        %5667 = vmatprep.subr.mxu0 0.0
        %5668 = vmatpush1.msra.mxu0 0.0
        %5669 = vmatprep.subr.mxu0 0.0
        %5670 = vmatpush1.msra.mxu0 0.0
        %5671 = vmatprep.subr.mxu0 0.0
        %5672 = vmatpush1.msra.mxu0 0.0
        %5673 = vmatprep.subr.mxu0 0.0
        %5674 = vmatpush1.msra.mxu0 0.0
        %5675 = vmatprep.subr.mxu0 0.0
        %5676 = vmatpush1.msra.mxu0 0.0
        %5677 = vmatprep.subr.mxu0 0.0
        %5678 = vmatpush1.msra.mxu0 0.0
        %5679 = vmatprep.subr.mxu0 0.0
        %5680 = vmatpush1.msra.mxu0 0.0
        %5681 = vmatprep.subr.mxu0 0.0
        %5682 = vmatpush1.msra.mxu0 0.0
        %5683 = vmatprep.subr.mxu0 0.0
        %5684 = vmatpush1.msra.mxu0 0.0
        %5685 = vmatprep.subr.mxu0 0.0
        %5686 = vmatpush1.msra.mxu0 0.0
        %5687 = vmatprep.subr.mxu0 0.0
        %5688 = vmatpush1.msra.mxu0 0.0
        %5689 = vmatprep.subr.mxu0 0.0
        %5690 = vmatpush1.msra.mxu0 0.0
        %5691 = vmatprep.subr.mxu0 0.0
        %5692 = vmatpush1.msra.mxu0 0.0
        %5693 = vmatprep.subr.mxu0 0.0
        %5694 = vmatpush1.msra.mxu0 0.0
        %5695 = vmatprep.subr.mxu0 0.0
        %5696 = vmatpush1.msra.mxu0 0.0
        %5697 = vmatprep.subr.mxu0 0.0
        %5698 = vmatpush1.msra.mxu0 0.0
        %5699 = vmatprep.subr.mxu0 0.0
        %5700 = vmatpush1.msra.mxu0 0.0
        %5701 = vmatprep.subr.mxu0 0.0
        %5702 = vmatpush1.msra.mxu0 0.0
        %5703 = vmatprep.subr.mxu0 0.0
        %5704 = vmatpush1.msra.mxu0 0.0
        %5705 = vmatprep.subr.mxu0 0.0
        %5706 = vmatpush1.msra.mxu0 0.0
        %5707 = vmatprep.subr.mxu0 0.0
        %5708 = vmatpush1.msra.mxu0 0.0
        %5709 = vmatprep.subr.mxu0 0.0
        %5710 = vmatpush1.msra.mxu0 0.0
        %5711 = vmatprep.subr.mxu0 0.0
        %5712 = vmatpush1.msra.mxu0 0.0
        %5713 = vmatprep.subr.mxu0 0.0
        %5714 = vmatpush1.msra.mxu0 0.0
        %5715 = vmatprep.subr.mxu0 0.0
        %5716 = vmatpush1.msra.mxu0 0.0
        %5717 = vmatprep.subr.mxu0 0.0
        %5718 = vmatpush1.msra.mxu0 0.0
        %5719 = vmatprep.subr.mxu0 0.0
        %5720 = vmatpush1.msra.mxu0 0.0
        %5721 = vmatprep.subr.mxu0 0.0
        %5722 = vmatpush1.msra.mxu0 0.0
        %5723 = vmatprep.mubr.f32.mxu0 0.0
        %5724 = vmatmul.mubr.f32.gmra.mrb[0].mxu0 %v5657
        %v5725 = vpop.f32.mrb[0].mxu0
        %v5726 = vadd.f32 %v4480, %v5725
        %v5727 = vpop.f32.mrb[0].mxu0
        %5728 = vdwg.mxu0
        %5729 = vmax.xlane.f32.xlu0 %v5726
        %v5730 = vpop.xlane.xlu0 %5729
        %v5731 = vsub.f32 %v5726, %v5730
        %v5732 = vmul.f32 %v5731, 1.442695
        %v5733 = vpow.pop %v5732
        %5734 = vadd.xlane.f32.xlu0 %v5733
        %v5735 = vpop.xlane.xlu0 %5734
        %v5736 = vrcp.pop %v5735
        %v5737 = vmul.f32 %v5733, %v5736
        %5738 = vrot.lane.b32.xlu0 %v4459, 32
        %v5739 = vpop.permute.xlu0 %5738
        %5740 = vrot.lane.b32.xlu0 %v4460, 32
        %v5741 = vpop.permute.xlu0 %5740
        %5742 = vrot.lane.b32.xlu0 %v4461, 32
        %v5743 = vpop.permute.xlu0 %5742
        %5744 = vrot.lane.b32.xlu0 %v4462, 32
        %v5745 = vpop.permute.xlu0 %5744
        %5746 = vrot.lane.b32.xlu0 %v4463, 32
        %v5747 = vpop.permute.xlu0 %5746
        %5748 = vrot.lane.b32.xlu0 %v4464, 32
        %v5749 = vpop.permute.xlu0 %5748
        %5750 = vrot.lane.b32.xlu0 %v4465, 32
        %v5751 = vpop.permute.xlu0 %5750
        %5752 = vrot.lane.b32.xlu0 %v4466, 32
        %v5753 = vpop.permute.xlu0 %5752
        %5754 = vrot.lane.b32.xlu0 %v4467, 32
        %v5755 = vpop.permute.xlu0 %5754
        %5756 = vrot.lane.b32.xlu0 %v4468, 32
        %v5757 = vpop.permute.xlu0 %5756
        %5758 = vrot.lane.b32.xlu0 %v4469, 32
        %v5759 = vpop.permute.xlu0 %5758
        %5760 = vrot.lane.b32.xlu0 %v4470, 32
        %v5761 = vpop.permute.xlu0 %5760
        %5762 = vrot.lane.b32.xlu0 %v4471, 32
        %v5763 = vpop.permute.xlu0 %5762
        %5764 = vrot.lane.b32.xlu0 %v4472, 32
        %v5765 = vpop.permute.xlu0 %5764
        %5766 = vrot.lane.b32.xlu0 %v4473, 32
        %v5767 = vpop.permute.xlu0 %5766
        %5768 = vrot.lane.b32.xlu0 %v4474, 32
        %v5769 = vpop.permute.xlu0 %5768
        %5786 = vmatprep.subr.mxu0 0.0
        %5787 = vmatpush1.msra.mxu0 %v5739
        %5788 = vmatprep.subr.mxu0 0.0
        %5789 = vmatpush1.msra.mxu0 %v5741
        %5790 = vmatprep.subr.mxu0 0.0
        %5791 = vmatpush1.msra.mxu0 %v5743
        %5792 = vmatprep.subr.mxu0 0.0
        %5793 = vmatpush1.msra.mxu0 %v5745
        %5794 = vmatprep.subr.mxu0 0.0
        %5795 = vmatpush1.msra.mxu0 %v5747
        %5796 = vmatprep.subr.mxu0 0.0
        %5797 = vmatpush1.msra.mxu0 %v5749
        %5798 = vmatprep.subr.mxu0 0.0
        %5799 = vmatpush1.msra.mxu0 %v5751
        %5800 = vmatprep.subr.mxu0 0.0
        %5801 = vmatpush1.msra.mxu0 %v5753
        %5802 = vmatprep.subr.mxu0 0.0
        %5803 = vmatpush1.msra.mxu0 %v5755
        %5804 = vmatprep.subr.mxu0 0.0
        %5805 = vmatpush1.msra.mxu0 %v5757
        %5806 = vmatprep.subr.mxu0 0.0
        %5807 = vmatpush1.msra.mxu0 %v5759
        %5808 = vmatprep.subr.mxu0 0.0
        %5809 = vmatpush1.msra.mxu0 %v5761
        %5810 = vmatprep.subr.mxu0 0.0
        %5811 = vmatpush1.msra.mxu0 %v5763
        %5812 = vmatprep.subr.mxu0 0.0
        %5813 = vmatpush1.msra.mxu0 %v5765
        %5814 = vmatprep.subr.mxu0 0.0
        %5815 = vmatpush1.msra.mxu0 %v5767
        %5816 = vmatprep.subr.mxu0 0.0
        %5817 = vmatpush1.msra.mxu0 %v5769
        %5818 = vmatprep.subr.mxu0 0.0
        %5819 = vmatpush1.msra.mxu0 0.0
        %5820 = vmatprep.subr.mxu0 0.0
        %5821 = vmatpush1.msra.mxu0 0.0
        %5822 = vmatprep.subr.mxu0 0.0
        %5823 = vmatpush1.msra.mxu0 0.0
        %5824 = vmatprep.subr.mxu0 0.0
        %5825 = vmatpush1.msra.mxu0 0.0
        %5826 = vmatprep.subr.mxu0 0.0
        %5827 = vmatpush1.msra.mxu0 0.0
        %5828 = vmatprep.subr.mxu0 0.0
        %5829 = vmatpush1.msra.mxu0 0.0
        %5830 = vmatprep.subr.mxu0 0.0
        %5831 = vmatpush1.msra.mxu0 0.0
        %5832 = vmatprep.subr.mxu0 0.0
        %5833 = vmatpush1.msra.mxu0 0.0
        %5834 = vmatprep.subr.mxu0 0.0
        %5835 = vmatpush1.msra.mxu0 0.0
        %5836 = vmatprep.subr.mxu0 0.0
        %5837 = vmatpush1.msra.mxu0 0.0
        %5838 = vmatprep.subr.mxu0 0.0
        %5839 = vmatpush1.msra.mxu0 0.0
        %5840 = vmatprep.subr.mxu0 0.0
        %5841 = vmatpush1.msra.mxu0 0.0
        %5842 = vmatprep.subr.mxu0 0.0
        %5843 = vmatpush1.msra.mxu0 0.0
        %5844 = vmatprep.subr.mxu0 0.0
        %5845 = vmatpush1.msra.mxu0 0.0
        %5846 = vmatprep.subr.mxu0 0.0
        %5847 = vmatpush1.msra.mxu0 0.0
        %5848 = vmatprep.subr.mxu0 0.0
        %5849 = vmatpush1.msra.mxu0 0.0
        %5850 = vmatprep.mubr.f32.mxu0 0.0
        %5851 = vmatmul.mubr.f32.gmra.mrb[0].mxu0 %v5737
        %v5852 = vpop.f32.mrb[0].mxu0
        %v5853 = vadd.f32 0.0, %v5852
        %v5854 = vpop.f32.mrb[0].mxu0
        %5855 = vdwg.mxu0
        %5856 = vrot.lane.b32.xlu0 %v4440, 16
        %v5857 = vpop.permute.xlu0 %5856
        %v5858 = vsel %vm799, %v5857, 0
        %5860 = vmatprep.subr.mxu0 0.0
        %5861 = vmatpush1.msra.mxu0 %v4457
        %5862 = vmatprep.subr.mxu0 0.0
        %5863 = vmatpush1.msra.mxu0 %v4458
        %5864 = vmatprep.subr.mxu0 0.0
        %5865 = vmatpush1.msra.mxu0 0.0
        %5866 = vmatprep.subr.mxu0 0.0
        %5867 = vmatpush1.msra.mxu0 0.0
        %5868 = vmatprep.subr.mxu0 0.0
        %5869 = vmatpush1.msra.mxu0 0.0
        %5870 = vmatprep.subr.mxu0 0.0
        %5871 = vmatpush1.msra.mxu0 0.0
        %5872 = vmatprep.subr.mxu0 0.0
        %5873 = vmatpush1.msra.mxu0 0.0
        %5874 = vmatprep.subr.mxu0 0.0
        %5875 = vmatpush1.msra.mxu0 0.0
        %5876 = vmatprep.subr.mxu0 0.0
        %5877 = vmatpush1.msra.mxu0 0.0
        %5878 = vmatprep.subr.mxu0 0.0
        %5879 = vmatpush1.msra.mxu0 0.0
        %5880 = vmatprep.subr.mxu0 0.0
        %5881 = vmatpush1.msra.mxu0 0.0
        %5882 = vmatprep.subr.mxu0 0.0
        %5883 = vmatpush1.msra.mxu0 0.0
        %5884 = vmatprep.subr.mxu0 0.0
        %5885 = vmatpush1.msra.mxu0 0.0
        %5886 = vmatprep.subr.mxu0 0.0
        %5887 = vmatpush1.msra.mxu0 0.0
        %5888 = vmatprep.subr.mxu0 0.0
        %5889 = vmatpush1.msra.mxu0 0.0
        %5890 = vmatprep.subr.mxu0 0.0
        %5891 = vmatpush1.msra.mxu0 0.0
        %5892 = vmatprep.subr.mxu0 0.0
        %5893 = vmatpush1.msra.mxu0 0.0
        %5894 = vmatprep.subr.mxu0 0.0
        %5895 = vmatpush1.msra.mxu0 0.0
        %5896 = vmatprep.subr.mxu0 0.0
        %5897 = vmatpush1.msra.mxu0 0.0
        %5898 = vmatprep.subr.mxu0 0.0
        %5899 = vmatpush1.msra.mxu0 0.0
        %5900 = vmatprep.subr.mxu0 0.0
        %5901 = vmatpush1.msra.mxu0 0.0
        %5902 = vmatprep.subr.mxu0 0.0
        %5903 = vmatpush1.msra.mxu0 0.0
        %5904 = vmatprep.subr.mxu0 0.0
        %5905 = vmatpush1.msra.mxu0 0.0
        %5906 = vmatprep.subr.mxu0 0.0
        %5907 = vmatpush1.msra.mxu0 0.0
        %5908 = vmatprep.subr.mxu0 0.0
        %5909 = vmatpush1.msra.mxu0 0.0
        %5910 = vmatprep.subr.mxu0 0.0
        %5911 = vmatpush1.msra.mxu0 0.0
        %5912 = vmatprep.subr.mxu0 0.0
        %5913 = vmatpush1.msra.mxu0 0.0
        %5914 = vmatprep.subr.mxu0 0.0
        %5915 = vmatpush1.msra.mxu0 0.0
        %5916 = vmatprep.subr.mxu0 0.0
        %5917 = vmatpush1.msra.mxu0 0.0
        %5918 = vmatprep.subr.mxu0 0.0
        %5919 = vmatpush1.msra.mxu0 0.0
        %5920 = vmatprep.subr.mxu0 0.0
        %5921 = vmatpush1.msra.mxu0 0.0
        %5922 = vmatprep.subr.mxu0 0.0
        %5923 = vmatpush1.msra.mxu0 0.0
        %5924 = vmatprep.mubr.f32.mxu0 0.0
        %5925 = vmatmul.mubr.f32.gmra.mrb[0].mxu0 %v5858
        %v5926 = vpop.f32.mrb[0].mxu0
        %v5927 = vadd.f32 %v4480, %v5926
        %v5928 = vpop.f32.mrb[0].mxu0
        %5929 = vdwg.mxu0
        %5930 = vmax.xlane.f32.xlu0 %v5927
        %v5931 = vpop.xlane.xlu0 %5930
        %v5932 = vsub.f32 %v5927, %v5931
        %v5933 = vmul.f32 %v5932, 1.442695
        %v5934 = vpow.pop %v5933
        %5935 = vadd.xlane.f32.xlu0 %v5934
        %v5936 = vpop.xlane.xlu0 %5935
        %v5937 = vrcp.pop %v5936
        %v5938 = vmul.f32 %v5934, %v5937
        %5939 = vrot.lane.b32.xlu0 %v4459, 16
        %v5940 = vpop.permute.xlu0 %5939
        %5941 = vrot.lane.b32.xlu0 %v4460, 16
        %v5942 = vpop.permute.xlu0 %5941
        %5943 = vrot.lane.b32.xlu0 %v4461, 16
        %v5944 = vpop.permute.xlu0 %5943
        %5945 = vrot.lane.b32.xlu0 %v4462, 16
        %v5946 = vpop.permute.xlu0 %5945
        %5947 = vrot.lane.b32.xlu0 %v4463, 16
        %v5948 = vpop.permute.xlu0 %5947
        %5949 = vrot.lane.b32.xlu0 %v4464, 16
        %v5950 = vpop.permute.xlu0 %5949
        %5951 = vrot.lane.b32.xlu0 %v4465, 16
        %v5952 = vpop.permute.xlu0 %5951
        %5953 = vrot.lane.b32.xlu0 %v4466, 16
        %v5954 = vpop.permute.xlu0 %5953
        %5955 = vrot.lane.b32.xlu0 %v4467, 16
        %v5956 = vpop.permute.xlu0 %5955
        %5957 = vrot.lane.b32.xlu0 %v4468, 16
        %v5958 = vpop.permute.xlu0 %5957
        %5959 = vrot.lane.b32.xlu0 %v4469, 16
        %v5960 = vpop.permute.xlu0 %5959
        %5961 = vrot.lane.b32.xlu0 %v4470, 16
        %v5962 = vpop.permute.xlu0 %5961
        %5963 = vrot.lane.b32.xlu0 %v4471, 16
        %v5964 = vpop.permute.xlu0 %5963
        %5965 = vrot.lane.b32.xlu0 %v4472, 16
        %v5966 = vpop.permute.xlu0 %5965
        %5967 = vrot.lane.b32.xlu0 %v4473, 16
        %v5968 = vpop.permute.xlu0 %5967
        %5969 = vrot.lane.b32.xlu0 %v4474, 16
        %v5970 = vpop.permute.xlu0 %5969
        %5987 = vmatprep.subr.mxu0 0.0
        %5988 = vmatpush1.msra.mxu0 %v5940
        %5989 = vmatprep.subr.mxu0 0.0
        %5990 = vmatpush1.msra.mxu0 %v5942
        %5991 = vmatprep.subr.mxu0 0.0
        %5992 = vmatpush1.msra.mxu0 %v5944
        %5993 = vmatprep.subr.mxu0 0.0
        %5994 = vmatpush1.msra.mxu0 %v5946
        %5995 = vmatprep.subr.mxu0 0.0
        %5996 = vmatpush1.msra.mxu0 %v5948
        %5997 = vmatprep.subr.mxu0 0.0
        %5998 = vmatpush1.msra.mxu0 %v5950
        %5999 = vmatprep.subr.mxu0 0.0
        %6000 = vmatpush1.msra.mxu0 %v5952
        %6001 = vmatprep.subr.mxu0 0.0
        %6002 = vmatpush1.msra.mxu0 %v5954
        %6003 = vmatprep.subr.mxu0 0.0
        %6004 = vmatpush1.msra.mxu0 %v5956
        %6005 = vmatprep.subr.mxu0 0.0
        %6006 = vmatpush1.msra.mxu0 %v5958
        %6007 = vmatprep.subr.mxu0 0.0
        %6008 = vmatpush1.msra.mxu0 %v5960
        %6009 = vmatprep.subr.mxu0 0.0
        %6010 = vmatpush1.msra.mxu0 %v5962
        %6011 = vmatprep.subr.mxu0 0.0
        %6012 = vmatpush1.msra.mxu0 %v5964
        %6013 = vmatprep.subr.mxu0 0.0
        %6014 = vmatpush1.msra.mxu0 %v5966
        %6015 = vmatprep.subr.mxu0 0.0
        %6016 = vmatpush1.msra.mxu0 %v5968
        %6017 = vmatprep.subr.mxu0 0.0
        %6018 = vmatpush1.msra.mxu0 %v5970
        %6019 = vmatprep.subr.mxu0 0.0
        %6020 = vmatpush1.msra.mxu0 0.0
        %6021 = vmatprep.subr.mxu0 0.0
        %6022 = vmatpush1.msra.mxu0 0.0
        %6023 = vmatprep.subr.mxu0 0.0
        %6024 = vmatpush1.msra.mxu0 0.0
        %6025 = vmatprep.subr.mxu0 0.0
        %6026 = vmatpush1.msra.mxu0 0.0
        %6027 = vmatprep.subr.mxu0 0.0
        %6028 = vmatpush1.msra.mxu0 0.0
        %6029 = vmatprep.subr.mxu0 0.0
        %6030 = vmatpush1.msra.mxu0 0.0
        %6031 = vmatprep.subr.mxu0 0.0
        %6032 = vmatpush1.msra.mxu0 0.0
        %6033 = vmatprep.subr.mxu0 0.0
        %6034 = vmatpush1.msra.mxu0 0.0
        %6035 = vmatprep.subr.mxu0 0.0
        %6036 = vmatpush1.msra.mxu0 0.0
        %6037 = vmatprep.subr.mxu0 0.0
        %6038 = vmatpush1.msra.mxu0 0.0
        %6039 = vmatprep.subr.mxu0 0.0
        %6040 = vmatpush1.msra.mxu0 0.0
        %6041 = vmatprep.subr.mxu0 0.0
        %6042 = vmatpush1.msra.mxu0 0.0
        %6043 = vmatprep.subr.mxu0 0.0
        %6044 = vmatpush1.msra.mxu0 0.0
        %6045 = vmatprep.subr.mxu0 0.0
        %6046 = vmatpush1.msra.mxu0 0.0
        %6047 = vmatprep.subr.mxu0 0.0
        %6048 = vmatpush1.msra.mxu0 0.0
        %6049 = vmatprep.subr.mxu0 0.0
        %6050 = vmatpush1.msra.mxu0 0.0
        %6051 = vmatprep.mubr.f32.mxu0 0.0
        %6052 = vmatmul.mubr.f32.gmra.mrb[0].mxu0 %v5938
        %v6053 = vpop.f32.mrb[0].mxu0
        %v6054 = vadd.f32 0.0, %v6053
        %v6055 = vpop.f32.mrb[0].mxu0
        %6056 = vdwg.mxu0
        %6058 = vrot.lane.b32.xlu0 %v4848, 16
        %v6059 = vpop.permute.xlu0 %6058
        %6062 = vrot.lane.b32.xlu0 %v5049, 32
        %v6063 = vpop.permute.xlu0 %6062
        %6066 = vrot.lane.b32.xlu0 %v5250, 48
        %v6067 = vpop.permute.xlu0 %6066
        %6070 = vrot.lane.b32.xlu0 %v5451, 64
        %v6071 = vpop.permute.xlu0 %6070
        %6074 = vrot.lane.b32.xlu0 %v5652, 80
        %v6075 = vpop.permute.xlu0 %6074
        %6078 = vrot.lane.b32.xlu0 %v5853, 96
        %v6079 = vpop.permute.xlu0 %6078
        %6082 = vrot.lane.b32.xlu0 %v6054, 112
        %v6083 = vpop.permute.xlu0 %6082
        %v6085 = vsel %vm799, %v4631, %v6059
        %v6086 = vsel %vm2404, %v6085, %v6063
        %v6087 = vsel %vm2406, %v6086, %v6067
        %v6088 = vsel %vm2408, %v6087, %v6071
        %v6089 = vsel %vm2410, %v6088, %v6075
        %v6090 = vsel %vm2412, %v6089, %v6079
        %v6091 = vsel %vm2414, %v6090, %v6083
        %s6092 = scalar_lea.vmem [#allocation8], 256
        %v6093 = vld [vmem:[%s6092] sm:$0xff]
        %v6094 = vld [vmem:[%s6092 + $0x8] sm:$0xff]
        %v6095 = vld [vmem:[%s6092 + $0x10] sm:$0xff]
        %v6096 = vld [vmem:[%s6092 + $0x18] sm:$0xff]
        %v6097 = vld [vmem:[%s6092 + $0x20] sm:$0xff]
        %v6098 = vld [vmem:[%s6092 + $0x28] sm:$0xff]
        %v6099 = vld [vmem:[%s6092 + $0x30] sm:$0xff]
        %v6100 = vld [vmem:[%s6092 + $0x38] sm:$0xff]
        %v6101 = vld [vmem:[%s6092 + $0x40] sm:$0xff]
        %v6102 = vld [vmem:[%s6092 + $0x48] sm:$0xff]
        %v6103 = vld [vmem:[%s6092 + $0x50] sm:$0xff]
        %v6104 = vld [vmem:[%s6092 + $0x58] sm:$0xff]
        %v6105 = vld [vmem:[%s6092 + $0x60] sm:$0xff]
        %v6106 = vld [vmem:[%s6092 + $0x68] sm:$0xff]
        %v6107 = vld [vmem:[%s6092 + $0x70] sm:$0xff]
        %v6108 = vld [vmem:[%s6092 + $0x78] sm:$0xff]
        %s6109 = scalar_lea.vmem [#allocation10], 2
        %v6110 = vld [vmem:[%s6109] sm:$0x1]
        %v6112 = vlaneseq
        %v6113 = vshrl.u32 %v6112, 7
        %v6114 = vsub.s32 0, %v6113
        %v6115 = vrot.slane %v6110, %v6114
        %6117 = vmatprep.subr.mxu0 0.0
        %6118 = vmatpush1.msra.mxu0 %v6093
        %6119 = vmatprep.subr.mxu0 0.0
        %6120 = vmatpush1.msra.mxu0 %v6094
        %6121 = vmatprep.subr.mxu0 0.0
        %6122 = vmatpush1.msra.mxu0 %v6095
        %6123 = vmatprep.subr.mxu0 0.0
        %6124 = vmatpush1.msra.mxu0 %v6096
        %6125 = vmatprep.subr.mxu0 0.0
        %6126 = vmatpush1.msra.mxu0 %v6097
        %6127 = vmatprep.subr.mxu0 0.0
        %6128 = vmatpush1.msra.mxu0 %v6098
        %6129 = vmatprep.subr.mxu0 0.0
        %6130 = vmatpush1.msra.mxu0 %v6099
        %6131 = vmatprep.subr.mxu0 0.0
        %6132 = vmatpush1.msra.mxu0 %v6100
        %6133 = vmatprep.subr.mxu0 0.0
        %6134 = vmatpush1.msra.mxu0 %v6101
        %6135 = vmatprep.subr.mxu0 0.0
        %6136 = vmatpush1.msra.mxu0 %v6102
        %6137 = vmatprep.subr.mxu0 0.0
        %6138 = vmatpush1.msra.mxu0 %v6103
        %6139 = vmatprep.subr.mxu0 0.0
        %6140 = vmatpush1.msra.mxu0 %v6104
        %6141 = vmatprep.subr.mxu0 0.0
        %6142 = vmatpush1.msra.mxu0 %v6105
        %6143 = vmatprep.subr.mxu0 0.0
        %6144 = vmatpush1.msra.mxu0 %v6106
        %6145 = vmatprep.subr.mxu0 0.0
        %6146 = vmatpush1.msra.mxu0 %v6107
        %6147 = vmatprep.subr.mxu0 0.0
        %6148 = vmatpush1.msra.mxu0 %v6108
        %6149 = vmatprep.subr.mxu0 0.0
        %6150 = vmatpush1.msra.mxu0 0.0
        %6151 = vmatprep.subr.mxu0 0.0
        %6152 = vmatpush1.msra.mxu0 0.0
        %6153 = vmatprep.subr.mxu0 0.0
        %6154 = vmatpush1.msra.mxu0 0.0
        %6155 = vmatprep.subr.mxu0 0.0
        %6156 = vmatpush1.msra.mxu0 0.0
        %6157 = vmatprep.subr.mxu0 0.0
        %6158 = vmatpush1.msra.mxu0 0.0
        %6159 = vmatprep.subr.mxu0 0.0
        %6160 = vmatpush1.msra.mxu0 0.0
        %6161 = vmatprep.subr.mxu0 0.0
        %6162 = vmatpush1.msra.mxu0 0.0
        %6163 = vmatprep.subr.mxu0 0.0
        %6164 = vmatpush1.msra.mxu0 0.0
        %6165 = vmatprep.subr.mxu0 0.0
        %6166 = vmatpush1.msra.mxu0 0.0
        %6167 = vmatprep.subr.mxu0 0.0
        %6168 = vmatpush1.msra.mxu0 0.0
        %6169 = vmatprep.subr.mxu0 0.0
        %6170 = vmatpush1.msra.mxu0 0.0
        %6171 = vmatprep.subr.mxu0 0.0
        %6172 = vmatpush1.msra.mxu0 0.0
        %6173 = vmatprep.subr.mxu0 0.0
        %6174 = vmatpush1.msra.mxu0 0.0
        %6175 = vmatprep.subr.mxu0 0.0
        %6176 = vmatpush1.msra.mxu0 0.0
        %6177 = vmatprep.subr.mxu0 0.0
        %6178 = vmatpush1.msra.mxu0 0.0
        %6179 = vmatprep.subr.mxu0 0.0
        %6180 = vmatpush1.msra.mxu0 0.0
        %6181 = vmatprep.mubr.f32.mxu0 0.0
        %6182 = vmatmul.mubr.f32.gmra.mrb[0].mxu0 %v6091
        %v6183 = vpop.f32.mrb[0].mxu0
        %v6184 = vadd.f32 %v6115, %v6183
        %v6185 = vpop.f32.mrb[0].mxu0
        %6186 = vdwg.mxu0
        %v6187 = vadd.f32 %v4345, %v6184
        %v6188 = vadd.f32 %v2506, %v6187
        %v6189 = vadd.f32 %v666, %v6188
        %6190 = vst [vmem:[%s665] sm:$0xff] %v6189
        %s6191 = sand.u32 %s345, 1
        %s6192 = scalar_lea.sflag [#allocation4], %s6191
        %s6193 = sand.u32 %s345, 1
        %s6194 = smul.addr %s6193, 8
        %s6195 = scalar_lea.vmem [#allocation25], %s6194
        // Predicated region
        $region133: #{fractal_forward.1} parent=75 // pred_check
          %p6196 = pneg %p355
        $region134: #{fractal_forward.1} parent=75 // pred_check_branch
          %6198 = sbr.rel (%p6196) target = $region136
        $region135: #{fractal_forward.1} parent=75 // pred_region
          %s6200 = ssub.s32 128, 128
          %6201 = vsyncadd %s6192, %s6200
          %s6202 = smul.addr %s38, 128
          %s6203 = scalar_lea.hbm %s14, %s6202
          %s6205 = sshll.u32 %s6195, 4
          %s6206 = int_to_ptr.vmem [resolvable:$true] %s6205
          %6208 = dma.vmem_to_hbm [thread:$0]  %s6206, 128, %s6203, %s6192
        $region136: #{fractal_forward.1} parent=75 // pred_fallthru
          _
      $region76: #{fractal_forward.1} parent=5 // pred_fallthru
        _
      %p6209 = scmp.le.s32.totalorder 2, %s33
      // Predicated region
      $region137: #{fractal_forward.1} parent=5 // pred_check
        %p6210 = pneg %p6209
      $region138: #{fractal_forward.1} parent=5 // pred_check_branch
        %6212 = sbr.rel (%p6210) target = $region140
      $region139: #{fractal_forward.1} parent=5 // pred_region
        %s6213 = ssub.s32 %s33, 2
        // Predicated region
        $region141: #{fractal_forward.1} parent=139 // pred_check
          %p6214 = pneg %p361
        $region142: #{fractal_forward.1} parent=139 // pred_check_branch
          %6216 = sbr.rel (%p6214) target = $region144
        $region143: #{fractal_forward.1} parent=139 // pred_region
          %s6217 = sand.u32 %s346, 1
          %s6218 = scalar_lea.sflag [#allocation4], %s6217
          %s6219 = sand.u32 %s346, 1
          %s6220 = smul.addr %s6219, 8
          %s6221 = scalar_lea.vmem [#allocation25], %s6220
          %6222 = dma.done %s6218, 128
        $region144: #{fractal_forward.1} parent=139 // pred_fallthru
          _
      $region140: #{fractal_forward.1} parent=5 // pred_fallthru
        _
    $region6: #{fractal_forward.1} parent=1 // loop_footer
      %s37 = sadd.s32 1, %s33
    $region7: #{fractal_forward.1} parent=1 // loop_footer_branch
      %32 = sbr.rel target = $region3
    $region8: #{fractal_forward.1} parent=1 // loop_exit
      _
    %6223 = vsyncpa [#allocation3], 1
    %s6224 = scalar_lea.sflag [#allocation3], 1
    %6225 = vsyncpa %s6224, 1
    %6226 = vsyncpa [#allocation6], 1
    %6227 = vsyncpa [#allocation9], 1
    %6228 = vsyncpa [#allocation12], 1
    %6229 = vsyncpa [#allocation15], 1
    %6230 = vsyncpa [#allocation18], 1
    %6231 = vsyncpa [#allocation21], 1
    %6232 = vsyncpa [#allocation24], 1
    %6233 = vsyncpa [#allocation4], 1
    %s6234 = scalar_lea.sflag [#allocation4], 1
    %6235 = vsyncpa %s6234, 1

</llo_original>
